<compile_context>
chip_gen: v7x
topology: tpu7x:2x2x1
jax: 0.10.0
libtpu: 0.0.40
codegen_flags: <defaults>
</compile_context>

<pallas_src>
import functools

import jax
import jax.numpy as jnp
from jax.experimental import pallas as pl
from jax.experimental.pallas import tpu as pltpu

# ----------------------------- configuration --------------------------------
B = 2            # batch
T = 8            # sequence length (words)
CLEN = 8         # chars per word
TOKEN_EMBED = 32
CHAR_EMBED = 16
NUM_FILTERS = 16
KERNEL_SIZE = 3
HIDDEN = 32      # LSTM hidden size per direction
LAYERS = 2
LABEL_SIZE = 2   # number of CRFs
VOC_IV = 50
VOC_OOEV = 20
CHAR_VOC = 30
NUM_TAGS = 6     # b, i, e, s, o, eos
B_ID, I_ID, E_ID, S_ID, O_ID, EOS_ID = 0, 1, 2, 3, 4, 5


class NestedSequenceLabel:
    def __init__(self, start, end, label, children):
        self.start = start
        self.end = end
        self.label = label
        self.children = children


# ------------------------------ Pallas kernels ------------------------------
def dense_kernel(x_ref, w_ref, b_ref, o_ref):
    # (M, K) @ (K, N) + (1, N) -- whole operands resident in VMEM (small shapes).
    o_ref[...] = (jnp.dot(x_ref[...], w_ref[...],
                          preferred_element_type=jnp.float32) + b_ref[...])


def dense(x, w, b2d):
    m = x.shape[0]
    n = w.shape[1]
    return pl.pallas_call(
        dense_kernel,
        out_shape=jax.ShapeDtypeStruct((m, n), jnp.float32),
    )(x, w, b2d)


def char_cnn_kernel(x_ref, w_ref, b_ref, o_ref, *, n_words, t_out):
    # x_ref: (t_out*n_words, K*E) im2col patches, pooling-position major.
    # One matmul for the whole char conv, then max-pool over pooling positions
    # via static sublane slices (no in-kernel reshape), then sigmoid.
    acc = jnp.dot(x_ref[...], w_ref[...],
                  preferred_element_type=jnp.float32) + b_ref[...]
    pooled = acc[0:n_words, :]
    for j in range(1, t_out):
        pooled = jnp.maximum(pooled, acc[j * n_words:(j + 1) * n_words, :])
    o_ref[...] = jax.nn.sigmoid(pooled)


def char_cnn(ch, conv_w, conv_b):
    # ch: (N, C, E) channels-last; conv_w: (F, E, K) PyTorch layout; conv_b: (F,)
    n, c, e = ch.shape
    f, _, k = conv_w.shape
    pad = k - 1
    ch_pad = jnp.pad(ch, ((0, 0), (pad, pad), (0, 0)))            # conv padding=K-1
    t_out = c + k - 1                                             # PyTorch output len
    # im2col with the pooling axis major: row index = j*N + n, col index = k*E + e.
    windows = jnp.stack([ch_pad[:, j:j + k, :] for j in range(t_out)], axis=0)
    patches = windows.reshape(t_out * n, k * e)
    w2d = jnp.transpose(conv_w, (2, 1, 0)).reshape(k * e, f)      # rows = (k, e)
    b2d = conv_b[None, :]
    return pl.pallas_call(
        functools.partial(char_cnn_kernel, n_words=n, t_out=t_out),
        out_shape=jax.ShapeDtypeStruct((n, f), jnp.float32),
    )(patches, w2d, b2d)


def bilstm_kernel(xp_ref, m_ref, whh_f_ref, whh_b_ref, hf_ref, hb_ref, *, hidden):
    # xp_ref: (T, B, 8H) precomputed x@W_ih + b for BOTH directions ([fwd 4H | bwd 4H])
    # m_ref:  (T, B, 1) mask; whh_*_ref: (H, 4H); outputs: per-direction (T, B, H).
    # Whole sequence recurrence runs in one invocation; h/c live in loop carries.
    Tn = xp_ref.shape[0]
    bsz = xp_ref.shape[1]
    H = hidden
    whh_f = whh_f_ref[...]
    whh_b = whh_b_ref[...]

    def cell(xg, m, h_prev, c_prev, whh):
        gates = xg + jnp.dot(h_prev, whh, preferred_element_type=jnp.float32)
        i = jax.nn.sigmoid(gates[:, 0 * H:1 * H])
        f = jax.nn.sigmoid(gates[:, 1 * H:2 * H])
        g = jnp.tanh(gates[:, 2 * H:3 * H])
        o = jax.nn.sigmoid(gates[:, 3 * H:4 * H])
        c_new = f * c_prev + i * g
        h_new = o * jnp.tanh(c_new)
        return m * h_new + (1.0 - m) * h_prev, m * c_new + (1.0 - m) * c_prev

    def step(t, carry):
        h_f, c_f, h_b, c_b = carry
        tb = Tn - 1 - t
        x_f = xp_ref[t]                                  # (B, 8H)
        x_b = xp_ref[tb]
        h_f, c_f = cell(x_f[:, 0:4 * H], m_ref[t], h_f, c_f, whh_f)
        h_b, c_b = cell(x_b[:, 4 * H:8 * H], m_ref[tb], h_b, c_b, whh_b)
        hf_ref[t] = h_f
        hb_ref[tb] = h_b
        return h_f, c_f, h_b, c_b

    z = jnp.zeros((bsz, H), jnp.float32)
    jax.lax.fori_loop(0, Tn, step, (z, z, z, z), unroll=True)


def bilstm(xp, m_t, whh_f, whh_b):
    t, b, g8 = xp.shape
    h = g8 // 8
    hf, hb = pl.pallas_call(
        functools.partial(bilstm_kernel, hidden=h),
        out_shape=(jax.ShapeDtypeStruct((t, b, h), jnp.float32),
                   jax.ShapeDtypeStruct((t, b, h), jnp.float32)),
        compiler_params=pltpu.CompilerParams(vmem_limit_bytes=32 * 1024 * 1024),
    )(xp, m_t, whh_f, whh_b)
    return jnp.concatenate([hf, hb], axis=2)             # (T, B, 2H)


def _logsumexp(x, axis):
    mx = jnp.max(x, axis=axis, keepdims=True)
    return jnp.log(jnp.sum(jnp.exp(x - mx), axis=axis, keepdims=True)) + mx


def crf_kernel(e_ref, tg_ref, m_ref, loss_ref, *, eos_id):
    # e_ref: (T, Bf, L, L) energies; tg_ref: (T, Bf, L) one-hot targets;
    # m_ref: (T, Bf, 1) mask; loss_ref: (Bf, 1) NLL.  Whole chain in one call,
    # alpha/score/prev kept as loop carries (vregs), Bf = LABEL_SIZE * batch.
    Tn = e_ref.shape[0]
    e0 = e_ref[0]                    # (Bf, L, L)
    tg0 = tg_ref[0]                  # (Bf, L)
    m0 = m_ref[0]                    # (Bf, 1)
    alpha0 = e0[:, eos_id, :]                                   # start from EOS row
    score0 = jnp.sum(alpha0 * tg0, axis=1, keepdims=True) * m0
    prev0 = tg0

    def step(t, carry):
        alpha, score, prev = carry
        energy = e_ref[t]            # (Bf, L, L)
        cur = tg_ref[t]              # (Bf, L)
        m = m_ref[t]                 # (Bf, 1)
        lse = _logsumexp(alpha[:, :, None] + energy, axis=1)[:, 0, :]
        alpha = m * lse + (1.0 - m) * alpha
        sc = jnp.sum(prev[:, :, None] * energy * cur[:, None, :], axis=2)
        sc = jnp.sum(sc, axis=1, keepdims=True)                 # (Bf, 1)
        score = score + m * sc
        prev = m * cur + (1.0 - m) * prev
        return alpha, score, prev

    alpha, score, _ = jax.lax.fori_loop(1, Tn, step, (alpha0, score0, prev0),
                                        unroll=True)
    loss_ref[...] = _logsumexp(alpha, axis=1) - score           # (Bf, 1)


def crf_forward(e_tm, tg_tm, m_tm):
    t, bf, l, _ = e_tm.shape
    return pl.pallas_call(
        functools.partial(crf_kernel, eos_id=EOS_ID),
        out_shape=jax.ShapeDtypeStruct((bf, 1), jnp.float32),
        compiler_params=pltpu.CompilerParams(vmem_limit_bytes=32 * 1024 * 1024),
    )(e_tm, tg_tm, m_tm)


# ------------------------------ parameters -----------------------------------
def init_params(key):
    ks = jax.random.split(key, 8)

    def rn(k, shape, scale=0.1):
        return (jax.random.normal(k, shape) * scale).astype(jnp.float32)

    params = {
        "embedd_word": rn(ks[0], (VOC_IV, TOKEN_EMBED)),          # frozen pretrained
        "word_embedd_ooev": rn(ks[1], (VOC_OOEV, TOKEN_EMBED)),
        "char_embedd": rn(ks[2], (CHAR_VOC, CHAR_EMBED)),
        "conv_w": rn(ks[3], (NUM_FILTERS, CHAR_EMBED, KERNEL_SIZE)),
        "conv_b": jnp.zeros((NUM_FILTERS,), jnp.float32),
    }

    lstm = []
    in_size = TOKEN_EMBED + NUM_FILTERS
    for layer in range(LAYERS):
        kk = jax.random.split(ks[4 + layer], 4)
        wih_f = rn(kk[0], (in_size, 4 * HIDDEN))
        whh_f = rn(kk[1], (HIDDEN, 4 * HIDDEN))
        wih_b = rn(kk[2], (in_size, 4 * HIDDEN))
        whh_b = rn(kk[3], (HIDDEN, 4 * HIDDEN))
        # mirrors bias_hh[1, :] = 1.0 (forget-gate bias of FastLSTM).
        bias = jnp.zeros((4 * HIDDEN,), jnp.float32).at[HIDDEN:2 * HIDDEN].set(1.0)
        lstm.append({
            "wih_cat": jnp.concatenate([wih_f, wih_b], axis=1),   # (in, 8H) [fwd|bwd]
            "b_cat": jnp.concatenate([bias, bias])[None, :],      # (1, 8H)
            "whh_fwd": whh_f,
            "whh_bwd": whh_b,
        })
        in_size = 2 * HIDDEN
    params["lstm"] = lstm

    kk = jax.random.split(ks[4 + LAYERS], LABEL_SIZE)
    w_list = [rn(kk[l], (2 * HIDDEN, NUM_TAGS * NUM_TAGS)) for l in range(LABEL_SIZE)]
    params["crf_w_cat"] = jnp.concatenate(w_list, axis=1)         # (2H, LS*L*L)
    params["crf_b_cat"] = jnp.zeros((1, LABEL_SIZE * NUM_TAGS * NUM_TAGS), jnp.float32)
    return params


# ------------------------------ model (glue) ---------------------------------
def get_rnn_output(params, input_word_iv, input_word_ooev, input_char, mask):
    # word = frozen_iv_embed + (ooev != 0) * ooev_embed  (embedding gathers in XLA)
    w_iv = params["embedd_word"][input_word_iv]
    w_oo = params["word_embedd_ooev"][input_word_ooev]
    word = w_iv + (input_word_ooev != 0).astype(jnp.float32)[..., None] * w_oo
    # dropout_word / dropout_char / dropout_out: eval-mode identities.

    ch = (input_char != 0).astype(jnp.float32)[..., None] * params["char_embedd"][input_char]
    b, t, c, e = ch.shape
    char_feat = char_cnn(ch.reshape(b * t, c, e), params["conv_w"], params["conv_b"])
    char_feat = char_feat.reshape(b, t, -1)

    x_t = jnp.transpose(jnp.concatenate([word, char_feat], axis=2), (1, 0, 2))  # (T,B,IN)
    m_t = jnp.transpose(mask.astype(jnp.float32), (1, 0))[:, :, None]           # (T,B,1)

    for layer in params["lstm"]:
        tt, bb, in_dim = x_t.shape
        # one fused fwd+bwd input projection: (T*B, in) @ (in, 8H)
        xp = dense(x_t.reshape(tt * bb, in_dim), layer["wih_cat"], layer["b_cat"])
        x_t = bilstm(xp.reshape(tt, bb, -1), m_t, layer["whh_fwd"], layer["whh_bwd"])
    return x_t                                                                  # (T,B,2H)


@jax.jit
def forward_core(params, input_word_iv, input_word_ooev, input_char, tg_all, mask):
    output_t = get_rnn_output(params, input_word_iv, input_word_ooev, input_char, mask)
    t, b, d = output_t.shape
    l = NUM_TAGS
    ls = LABEL_SIZE
    # one dense call produces the energies of ALL label-CRFs at once.
    e_flat = dense(output_t.reshape(t * b, d), params["crf_w_cat"], params["crf_b_cat"])
    energy = e_flat.reshape(t, b, ls, l, l)
    e_tm = jnp.transpose(energy, (0, 2, 1, 3, 4)).reshape(t, ls * b, l, l)
    energy_all = jnp.transpose(energy, (2, 1, 0, 3, 4))           # (LS, B, T, L, L)

    tg_oh = jax.nn.one_hot(tg_all.reshape(ls * b, t), l, dtype=jnp.float32)
    tg_tm = jnp.transpose(tg_oh, (1, 0, 2))                       # (T, LS*B, L)
    m_f = mask.astype(jnp.float32)
    m_tm = jnp.transpose(jnp.tile(m_f[None], (ls, 1, 1)).reshape(ls * b, t),
                         (1, 0))[:, :, None]                      # (T, LS*B, 1)

    loss_lb = crf_forward(e_tm, tg_tm, m_tm).reshape(ls, b)       # per (label, batch) NLL
    return loss_lb, energy_all


def crf_nests_loss(energy_slice, label):
    # energy_slice: (len, L, L); label: (len,) int
    # TODO(synk): nested spans are evaluated one pallas_call each; pad/stack them
    #             into a single batched CRF call if deep nesting becomes common.
    t = energy_slice.shape[0]
    e_t = energy_slice[:, None, :, :]
    tg = jax.nn.one_hot(label, NUM_TAGS, dtype=jnp.float32)[:, None, :]
    m = jnp.ones((t, 1, 1), jnp.float32)
    return crf_forward(e_t, tg, m)[0, 0]


def forward(params, input_word_iv, input_word_ooev, input_char, target, mask):
    tg_all = jnp.stack(
        [jnp.stack([te.label for te in target[lab]], axis=0) for lab in range(LABEL_SIZE)],
        axis=0)                                                   # (LS, B, T)
    loss_lb, energy_all = forward_core(params, input_word_iv, input_word_ooev,
                                       input_char, tg_all, mask)
    batch = loss_lb.shape[1]

    def forward_recursively(loss, energy, tgt, offset):
        nests = []
        for child in tgt.children:
            if child.end - child.start > 1:
                e_slice = energy[child.start - offset:child.end - offset, :, :]
                nl = crf_nests_loss(e_slice, child.label)
                nests.append(forward_recursively(nl, e_slice, child, child.start))
        return sum(nests) + loss

    total = jnp.float32(0.0)
    for label in range(LABEL_SIZE):
        for i in range(batch):
            total = total + forward_recursively(loss_lb[label, i], energy_all[label, i],
                                                target[label][i], 0)
    return total / batch


# ---------------------------------- demo -------------------------------------
if __name__ == "__main__":
    root = jax.random.PRNGKey(0)
    kp, ki = jax.random.split(root)
    params = init_params(kp)

    kk = jax.random.split(ki, 4)
    input_word_iv = jax.random.randint(kk[0], (B, T), 0, VOC_IV)
    input_word_ooev = jax.random.randint(kk[1], (B, T), 0, VOC_OOEV)
    input_char = jax.random.randint(kk[2], (B, T, CLEN), 1, CHAR_VOC)
    input_char = input_char.at[:, :, 6:].set(0)                   # padded char slots

    lengths = jnp.array([T, T - 2])
    mask = (jnp.arange(T)[None, :] < lengths[:, None]).astype(jnp.float32)

    targets = []
    for label in range(LABEL_SIZE):
        per_batch = []
        for i in range(B):
            lab = jax.random.randint(jax.random.fold_in(kk[3], label * 10 + i),
                                     (T,), 0, NUM_TAGS)
            # flat targets (no nested children) in this synthetic example
            per_batch.append(NestedSequenceLabel(0, T, lab, []))
        targets.append(per_batch)

    loss = forward(params, input_word_iv, input_word_ooev, input_char, targets, mask)
    jax.block_until_ready(loss)
    print("KERNEL_OK")
</pallas_src>

<mosaic_0001>
module attributes {stable_mosaic.version = 11 : i64} {
  func.func @char_cnn_kernel(%arg0: memref<160x48xf32, #tpu.memory_space<vmem>>, %arg1: memref<48x16xf32, #tpu.memory_space<vmem>>, %arg2: memref<1x16xf32, #tpu.memory_space<vmem>>, %arg3: memref<16x16xf32, #tpu.memory_space<vmem>>) attributes {dimension_semantics = [], scalar_prefetch = 0 : i64, scratch_operands = 0 : i64, tpu.core_type = #tpu.core_type<tc>} {
    %c0 = arith.constant 0 : index
    %c0_0 = arith.constant 0 : index
    %0 = vector.load %arg0[%c0, %c0_0] : memref<160x48xf32, #tpu.memory_space<vmem>>, vector<160x48xf32>
    %c0_1 = arith.constant 0 : index
    %c0_2 = arith.constant 0 : index
    %1 = vector.load %arg1[%c0_1, %c0_2] : memref<48x16xf32, #tpu.memory_space<vmem>>, vector<48x16xf32>
    %cst = arith.constant dense<0.000000e+00> : vector<160x16xf32>
    %2 = tpu.matmul %0, %1, %cst {dimension_numbers = #tpu.dot_dimension_numbers<[1], [0], [0], [1], [0, 0, 1, 1], [], []>} : vector<160x48xf32>, vector<48x16xf32>, vector<160x16xf32> -> vector<160x16xf32>
    %c0_3 = arith.constant 0 : index
    %c0_4 = arith.constant 0 : index
    %3 = vector.load %arg2[%c0_3, %c0_4] : memref<1x16xf32, #tpu.memory_space<vmem>>, vector<1x16xf32>
    %4 = vector.broadcast %3 : vector<1x16xf32> to vector<160x16xf32>
    %5 = arith.addf %2, %4 : vector<160x16xf32>
    %6 = vector.extract_strided_slice %5 {offsets = [0, 0], sizes = [16, 16], strides = [1, 1]} : vector<160x16xf32> to vector<16x16xf32>
    %7 = vector.extract_strided_slice %5 {offsets = [16, 0], sizes = [16, 16], strides = [1, 1]} : vector<160x16xf32> to vector<16x16xf32>
    %8 = arith.maximumf %6, %7 : vector<16x16xf32>
    %9 = vector.extract_strided_slice %5 {offsets = [32, 0], sizes = [16, 16], strides = [1, 1]} : vector<160x16xf32> to vector<16x16xf32>
    %10 = arith.maximumf %8, %9 : vector<16x16xf32>
    %11 = vector.extract_strided_slice %5 {offsets = [48, 0], sizes = [16, 16], strides = [1, 1]} : vector<160x16xf32> to vector<16x16xf32>
    %12 = arith.maximumf %10, %11 : vector<16x16xf32>
    %13 = vector.extract_strided_slice %5 {offsets = [64, 0], sizes = [16, 16], strides = [1, 1]} : vector<160x16xf32> to vector<16x16xf32>
    %14 = arith.maximumf %12, %13 : vector<16x16xf32>
    %15 = vector.extract_strided_slice %5 {offsets = [80, 0], sizes = [16, 16], strides = [1, 1]} : vector<160x16xf32> to vector<16x16xf32>
    %16 = arith.maximumf %14, %15 : vector<16x16xf32>
    %17 = vector.extract_strided_slice %5 {offsets = [96, 0], sizes = [16, 16], strides = [1, 1]} : vector<160x16xf32> to vector<16x16xf32>
    %18 = arith.maximumf %16, %17 : vector<16x16xf32>
    %19 = vector.extract_strided_slice %5 {offsets = [112, 0], sizes = [16, 16], strides = [1, 1]} : vector<160x16xf32> to vector<16x16xf32>
    %20 = arith.maximumf %18, %19 : vector<16x16xf32>
    %21 = vector.extract_strided_slice %5 {offsets = [128, 0], sizes = [16, 16], strides = [1, 1]} : vector<160x16xf32> to vector<16x16xf32>
    %22 = arith.maximumf %20, %21 : vector<16x16xf32>
    %23 = vector.extract_strided_slice %5 {offsets = [144, 0], sizes = [16, 16], strides = [1, 1]} : vector<160x16xf32> to vector<16x16xf32>
    %24 = arith.maximumf %22, %23 : vector<16x16xf32>
    %25 = arith.negf %24 : vector<16x16xf32>
    %26 = math.exp %25 : vector<16x16xf32>
    %cst_5 = arith.constant 1.000000e+00 : f32
    %27 = vector.broadcast %cst_5 : f32 to vector<16x16xf32>
    %28 = arith.addf %27, %26 : vector<16x16xf32>
    %29 = arith.divf %27, %28 : vector<16x16xf32>
    %c0_6 = arith.constant 0 : index
    %c0_7 = arith.constant 0 : index
    %30 = vector.load %arg3[%c0_6, %c0_7] : memref<16x16xf32, #tpu.memory_space<vmem>>, vector<16x16xf32>
    tpu.vector_store %arg3[%c0_6, %c0_7], %29 {strides = array<i32>} : memref<16x16xf32, #tpu.memory_space<vmem>>, vector<16x16xf32>,
    return
  }
}

module attributes {stable_mosaic.version = 11 : i64} {
  func.func @dense_kernel(%arg0: memref<16x48xf32, #tpu.memory_space<vmem>>, %arg1: memref<48x256xf32, #tpu.memory_space<vmem>>, %arg2: memref<1x256xf32, #tpu.memory_space<vmem>>, %arg3: memref<16x256xf32, #tpu.memory_space<vmem>>) attributes {dimension_semantics = [], scalar_prefetch = 0 : i64, scratch_operands = 0 : i64, tpu.core_type = #tpu.core_type<tc>} {
    %c0 = arith.constant 0 : index
    %c0_0 = arith.constant 0 : index
    %0 = vector.load %arg0[%c0, %c0_0] : memref<16x48xf32, #tpu.memory_space<vmem>>, vector<16x48xf32>
    %c0_1 = arith.constant 0 : index
    %c0_2 = arith.constant 0 : index
    %1 = vector.load %arg1[%c0_1, %c0_2] : memref<48x256xf32, #tpu.memory_space<vmem>>, vector<48x256xf32>
    %cst = arith.constant dense<0.000000e+00> : vector<16x256xf32>
    %2 = tpu.matmul %0, %1, %cst {dimension_numbers = #tpu.dot_dimension_numbers<[1], [0], [0], [1], [0, 0, 1, 1], [], []>} : vector<16x48xf32>, vector<48x256xf32>, vector<16x256xf32> -> vector<16x256xf32>
    %c0_3 = arith.constant 0 : index
    %c0_4 = arith.constant 0 : index
    %3 = vector.load %arg2[%c0_3, %c0_4] : memref<1x256xf32, #tpu.memory_space<vmem>>, vector<1x256xf32>
    %4 = vector.broadcast %3 : vector<1x256xf32> to vector<16x256xf32>
    %5 = arith.addf %2, %4 : vector<16x256xf32>
    %c0_5 = arith.constant 0 : index
    %c0_6 = arith.constant 0 : index
    %6 = vector.load %arg3[%c0_5, %c0_6] : memref<16x256xf32, #tpu.memory_space<vmem>>, vector<16x256xf32>
    tpu.vector_store %arg3[%c0_5, %c0_6], %5 {strides = array<i32>} : memref<16x256xf32, #tpu.memory_space<vmem>>, vector<16x256xf32>,
    return
  }
}

module attributes {stable_mosaic.version = 11 : i64} {
  func.func @dense_kernel(%arg0: memref<16x64xf32, #tpu.memory_space<vmem>>, %arg1: memref<64x256xf32, #tpu.memory_space<vmem>>, %arg2: memref<1x256xf32, #tpu.memory_space<vmem>>, %arg3: memref<16x256xf32, #tpu.memory_space<vmem>>) attributes {dimension_semantics = [], scalar_prefetch = 0 : i64, scratch_operands = 0 : i64, tpu.core_type = #tpu.core_type<tc>} {
    %c0 = arith.constant 0 : index
    %c0_0 = arith.constant 0 : index
    %0 = vector.load %arg0[%c0, %c0_0] : memref<16x64xf32, #tpu.memory_space<vmem>>, vector<16x64xf32>
    %c0_1 = arith.constant 0 : index
    %c0_2 = arith.constant 0 : index
    %1 = vector.load %arg1[%c0_1, %c0_2] : memref<64x256xf32, #tpu.memory_space<vmem>>, vector<64x256xf32>
    %cst = arith.constant dense<0.000000e+00> : vector<16x256xf32>
    %2 = tpu.matmul %0, %1, %cst {dimension_numbers = #tpu.dot_dimension_numbers<[1], [0], [0], [1], [0, 0, 1, 1], [], []>} : vector<16x64xf32>, vector<64x256xf32>, vector<16x256xf32> -> vector<16x256xf32>
    %c0_3 = arith.constant 0 : index
    %c0_4 = arith.constant 0 : index
    %3 = vector.load %arg2[%c0_3, %c0_4] : memref<1x256xf32, #tpu.memory_space<vmem>>, vector<1x256xf32>
    %4 = vector.broadcast %3 : vector<1x256xf32> to vector<16x256xf32>
    %5 = arith.addf %2, %4 : vector<16x256xf32>
    %c0_5 = arith.constant 0 : index
    %c0_6 = arith.constant 0 : index
    %6 = vector.load %arg3[%c0_5, %c0_6] : memref<16x256xf32, #tpu.memory_space<vmem>>, vector<16x256xf32>
    tpu.vector_store %arg3[%c0_5, %c0_6], %5 {strides = array<i32>} : memref<16x256xf32, #tpu.memory_space<vmem>>, vector<16x256xf32>,
    return
  }
}

module attributes {stable_mosaic.version = 11 : i64} {
  func.func @bilstm_kernel(%arg0: memref<8x2x256xf32, #tpu.memory_space<vmem>>, %arg1: memref<8x2x1xf32, #tpu.memory_space<vmem>>, %arg2: memref<32x128xf32, #tpu.memory_space<vmem>>, %arg3: memref<32x128xf32, #tpu.memory_space<vmem>>, %arg4: memref<8x2x32xf32, #tpu.memory_space<vmem>>, %arg5: memref<8x2x32xf32, #tpu.memory_space<vmem>>) attributes {dimension_semantics = [], scalar_prefetch = 0 : i64, scratch_operands = 0 : i64, tpu.core_type = #tpu.core_type<tc>} {
    %c0 = arith.constant 0 : index
    %c0_0 = arith.constant 0 : index
    %0 = vector.load %arg2[%c0, %c0_0] : memref<32x128xf32, #tpu.memory_space<vmem>>, vector<32x128xf32>
    %c0_1 = arith.constant 0 : index
    %c0_2 = arith.constant 0 : index
    %1 = vector.load %arg3[%c0_1, %c0_2] : memref<32x128xf32, #tpu.memory_space<vmem>>, vector<32x128xf32>
    %cst = arith.constant 0.000000e+00 : f32
    %2 = vector.broadcast %cst : f32 to vector<2x32xf32>
    %c0_i32 = arith.constant 0 : i32
    %c7_i32 = arith.constant 7 : i32
    %3 = arith.subi %c7_i32, %c0_i32 : i32
    %4 = arith.index_cast %c0_i32 : i32 to index
    %c0_3 = arith.constant 0 : index
    %c0_4 = arith.constant 0 : index
    %5 = vector.load %arg0[%4, %c0_3, %c0_4] : memref<8x2x256xf32, #tpu.memory_space<vmem>>, vector<1x2x256xf32>
    %6 = vector.shape_cast %5 : vector<1x2x256xf32> to vector<2x256xf32>
    %7 = arith.index_cast %3 : i32 to index
    %c0_5 = arith.constant 0 : index
    %c0_6 = arith.constant 0 : index
    %8 = vector.load %arg0[%7, %c0_5, %c0_6] : memref<8x2x256xf32, #tpu.memory_space<vmem>>, vector<1x2x256xf32>
    %9 = vector.shape_cast %8 : vector<1x2x256xf32> to vector<2x256xf32>
    %10 = vector.extract_strided_slice %6 {offsets = [0, 0], sizes = [2, 128], strides = [1, 1]} : vector<2x256xf32> to vector<2x128xf32>
    %11 = arith.index_cast %c0_i32 : i32 to index
    %c0_7 = arith.constant 0 : index
    %c0_8 = arith.constant 0 : index
    %12 = vector.load %arg1[%11, %c0_7, %c0_8] : memref<8x2x1xf32, #tpu.memory_space<vmem>>, vector<1x2x1xf32>
    %13 = vector.shape_cast %12 : vector<1x2x1xf32> to vector<2x1xf32>
    %cst_9 = arith.constant dense<0.000000e+00> : vector<2x128xf32>
    %14 = tpu.matmul %2, %0, %cst_9 {dimension_numbers = #tpu.dot_dimension_numbers<[1], [0], [0], [1], [0, 0, 1, 1], [], []>} : vector<2x32xf32>, vector<32x128xf32>, vector<2x128xf32> -> vector<2x128xf32>
    %15 = arith.addf %10, %14 : vector<2x128xf32>
    %16 = vector.extract_strided_slice %15 {offsets = [0, 0], sizes = [2, 32], strides = [1, 1]} : vector<2x128xf32> to vector<2x32xf32>
    %17 = arith.negf %16 : vector<2x32xf32>
    %18 = math.exp %17 : vector<2x32xf32>
    %cst_10 = arith.constant 1.000000e+00 : f32
    %19 = vector.broadcast %cst_10 : f32 to vector<2x32xf32>
    %20 = arith.addf %19, %18 : vector<2x32xf32>
    %21 = arith.divf %19, %20 : vector<2x32xf32>
    %22 = vector.extract_strided_slice %15 {offsets = [0, 32], sizes = [2, 32], strides = [1, 1]} : vector<2x128xf32> to vector<2x32xf32>
    %23 = arith.negf %22 : vector<2x32xf32>
    %24 = math.exp %23 : vector<2x32xf32>
    %cst_11 = arith.constant 1.000000e+00 : f32
    %25 = vector.broadcast %cst_11 : f32 to vector<2x32xf32>
    %26 = arith.addf %25, %24 : vector<2x32xf32>
    %27 = arith.divf %25, %26 : vector<2x32xf32>
    %28 = vector.extract_strided_slice %15 {offsets = [0, 64], sizes = [2, 32], strides = [1, 1]} : vector<2x128xf32> to vector<2x32xf32>
    %29 = math.tanh %28 : vector<2x32xf32>
    %30 = vector.extract_strided_slice %15 {offsets = [0, 96], sizes = [2, 32], strides = [1, 1]} : vector<2x128xf32> to vector<2x32xf32>
    %31 = arith.negf %30 : vector<2x32xf32>
    %32 = math.exp %31 : vector<2x32xf32>
    %cst_12 = arith.constant 1.000000e+00 : f32
    %33 = vector.broadcast %cst_12 : f32 to vector<2x32xf32>
    %34 = arith.addf %33, %32 : vector<2x32xf32>
    %35 = arith.divf %33, %34 : vector<2x32xf32>
    %36 = arith.mulf %27, %2 : vector<2x32xf32>
    %37 = arith.mulf %21, %29 : vector<2x32xf32>
    %38 = arith.addf %36, %37 : vector<2x32xf32>
    %39 = math.tanh %38 : vector<2x32xf32>
    %40 = arith.mulf %35, %39 : vector<2x32xf32>
    %41 = vector.broadcast %13 : vector<2x1xf32> to vector<2x32xf32>
    %42 = arith.mulf %41, %40 : vector<2x32xf32>
    %cst_13 = arith.constant 1.000000e+00 : f32
    %43 = vector.broadcast %cst_13 : f32 to vector<2x1xf32>
    %44 = arith.subf %43, %13 : vector<2x1xf32>
    %45 = vector.broadcast %44 : vector<2x1xf32> to vector<2x32xf32>
    %46 = arith.mulf %45, %2 : vector<2x32xf32>
    %47 = arith.addf %42, %46 : vector<2x32xf32>
    %48 = vector.broadcast %13 : vector<2x1xf32> to vector<2x32xf32>
    %49 = arith.mulf %48, %38 : vector<2x32xf32>
    %cst_14 = arith.constant 1.000000e+00 : f32
    %50 = vector.broadcast %cst_14 : f32 to vector<2x1xf32>
    %51 = arith.subf %50, %13 : vector<2x1xf32>
    %52 = vector.broadcast %51 : vector<2x1xf32> to vector<2x32xf32>
    %53 = arith.mulf %52, %2 : vector<2x32xf32>
    %54 = arith.addf %49, %53 : vector<2x32xf32>
    %55 = vector.extract_strided_slice %9 {offsets = [0, 128], sizes = [2, 128], strides = [1, 1]} : vector<2x256xf32> to vector<2x128xf32>
    %56 = arith.index_cast %3 : i32 to index
    %c0_15 = arith.constant 0 : index
    %c0_16 = arith.constant 0 : index
    %57 = vector.load %arg1[%56, %c0_15, %c0_16] : memref<8x2x1xf32, #tpu.memory_space<vmem>>, vector<1x2x1xf32>
    %58 = vector.shape_cast %57 : vector<1x2x1xf32> to vector<2x1xf32>
    %cst_17 = arith.constant dense<0.000000e+00> : vector<2x128xf32>
    %59 = tpu.matmul %2, %1, %cst_17 {dimension_numbers = #tpu.dot_dimension_numbers<[1], [0], [0], [1], [0, 0, 1, 1], [], []>} : vector<2x32xf32>, vector<32x128xf32>, vector<2x128xf32> -> vector<2x128xf32>
    %60 = arith.addf %55, %59 : vector<2x128xf32>
    %61 = vector.extract_strided_slice %60 {offsets = [0, 0], sizes = [2, 32], strides = [1, 1]} : vector<2x128xf32> to vector<2x32xf32>
    %62 = arith.negf %61 : vector<2x32xf32>
    %63 = math.exp %62 : vector<2x32xf32>
    %cst_18 = arith.constant 1.000000e+00 : f32
    %64 = vector.broadcast %cst_18 : f32 to vector<2x32xf32>
    %65 = arith.addf %64, %63 : vector<2x32xf32>
    %66 = arith.divf %64, %65 : vector<2x32xf32>
    %67 = vector.extract_strided_slice %60 {offsets = [0, 32], sizes = [2, 32], strides = [1, 1]} : vector<2x128xf32> to vector<2x32xf32>
    %68 = arith.negf %67 : vector<2x32xf32>
    %69 = math.exp %68 : vector<2x32xf32>
    %cst_19 = arith.constant 1.000000e+00 : f32
    %70 = vector.broadcast %cst_19 : f32 to vector<2x32xf32>
    %71 = arith.addf %70, %69 : vector<2x32xf32>
    %72 = arith.divf %70, %71 : vector<2x32xf32>
    %73 = vector.extract_strided_slice %60 {offsets = [0, 64], sizes = [2, 32], strides = [1, 1]} : vector<2x128xf32> to vector<2x32xf32>
    %74 = math.tanh %73 : vector<2x32xf32>
    %75 = vector.extract_strided_slice %60 {offsets = [0, 96], sizes = [2, 32], strides = [1, 1]} : vector<2x128xf32> to vector<2x32xf32>
    %76 = arith.negf %75 : vector<2x32xf32>
    %77 = math.exp %76 : vector<2x32xf32>
    %cst_20 = arith.constant 1.000000e+00 : f32
    %78 = vector.broadcast %cst_20 : f32 to vector<2x32xf32>
    %79 = arith.addf %78, %77 : vector<2x32xf32>
    %80 = arith.divf %78, %79 : vector<2x32xf32>
    %81 = arith.mulf %72, %2 : vector<2x32xf32>
    %82 = arith.mulf %66, %74 : vector<2x32xf32>
    %83 = arith.addf %81, %82 : vector<2x32xf32>
    %84 = math.tanh %83 : vector<2x32xf32>
    %85 = arith.mulf %80, %84 : vector<2x32xf32>
    %86 = vector.broadcast %58 : vector<2x1xf32> to vector<2x32xf32>
    %87 = arith.mulf %86, %85 : vector<2x32xf32>
    %cst_21 = arith.constant 1.000000e+00 : f32
    %88 = vector.broadcast %cst_21 : f32 to vector<2x1xf32>
    %89 = arith.subf %88, %58 : vector<2x1xf32>
    %90 = vector.broadcast %89 : vector<2x1xf32> to vector<2x32xf32>
    %91 = arith.mulf %90, %2 : vector<2x32xf32>
    %92 = arith.addf %87, %91 : vector<2x32xf32>
    %93 = vector.broadcast %58 : vector<2x1xf32> to vector<2x32xf32>
    %94 = arith.mulf %93, %83 : vector<2x32xf32>
    %cst_22 = arith.constant 1.000000e+00 : f32
    %95 = vector.broadcast %cst_22 : f32 to vector<2x1xf32>
    %96 = arith.subf %95, %58 : vector<2x1xf32>
    %97 = vector.broadcast %96 : vector<2x1xf32> to vector<2x32xf32>
    %98 = arith.mulf %97, %2 : vector<2x32xf32>
    %99 = arith.addf %94, %98 : vector<2x32xf32>
    %100 = arith.index_cast %c0_i32 : i32 to index
    %c0_23 = arith.constant 0 : index
    %c0_24 = arith.constant 0 : index
    %101 = vector.load %arg4[%100, %c0_23, %c0_24] : memref<8x2x32xf32, #tpu.memory_space<vmem>>, vector<1x2x32xf32>
    %102 = vector.shape_cast %101 : vector<1x2x32xf32> to vector<2x32xf32>
    %103 = vector.shape_cast %47 : vector<2x32xf32> to vector<1x2x32xf32>
    tpu.vector_store %arg4[%100, %c0_23, %c0_24], %103 {strides = array<i32>} : memref<8x2x32xf32, #tpu.memory_space<vmem>>, vector<1x2x32xf32>,
    %104 = arith.index_cast %3 : i32 to index
    %c0_25 = arith.constant 0 : index
    %c0_26 = arith.constant 0 : index
    %105 = vector.load %arg5[%104, %c0_25, %c0_26] : memref<8x2x32xf32, #tpu.memory_space<vmem>>, vector<1x2x32xf32>
    %106 = vector.shape_cast %105 : vector<1x2x32xf32> to vector<2x32xf32>
    %107 = vector.shape_cast %92 : vector<2x32xf32> to vector<1x2x32xf32>
    tpu.vector_store %arg5[%104, %c0_25, %c0_26], %107 {strides = array<i32>} : memref<8x2x32xf32, #tpu.memory_space<vmem>>, vector<1x2x32xf32>,
    %c1_i32 = arith.constant 1 : i32
    %c7_i32_27 = arith.constant 7 : i32
    %108 = arith.subi %c7_i32_27, %c1_i32 : i32
    %109 = arith.index_cast %c1_i32 : i32 to index
    %c0_28 = arith.constant 0 : index
    %c0_29 = arith.constant 0 : index
    %110 = vector.load %arg0[%109, %c0_28, %c0_29] : memref<8x2x256xf32, #tpu.memory_space<vmem>>, vector<1x2x256xf32>
    %111 = vector.shape_cast %110 : vector<1x2x256xf32> to vector<2x256xf32>
    %112 = arith.index_cast %108 : i32 to index
    %c0_30 = arith.constant 0 : index
    %c0_31 = arith.constant 0 : index
    %113 = vector.load %arg0[%112, %c0_30, %c0_31] : memref<8x2x256xf32, #tpu.memory_space<vmem>>, vector<1x2x256xf32>
    %114 = vector.shape_cast %113 : vector<1x2x256xf32> to vector<2x256xf32>
    %115 = vector.extract_strided_slice %111 {offsets = [0, 0], sizes = [2, 128], strides = [1, 1]} : vector<2x256xf32> to vector<2x128xf32>
    %116 = arith.index_cast %c1_i32 : i32 to index
    %c0_32 = arith.constant 0 : index
    %c0_33 = arith.constant 0 : index
    %117 = vector.load %arg1[%116, %c0_32, %c0_33] : memref<8x2x1xf32, #tpu.memory_space<vmem>>, vector<1x2x1xf32>
    %118 = vector.shape_cast %117 : vector<1x2x1xf32> to vector<2x1xf32>
    %cst_34 = arith.constant dense<0.000000e+00> : vector<2x128xf32>
    %119 = tpu.matmul %47, %0, %cst_34 {dimension_numbers = #tpu.dot_dimension_numbers<[1], [0], [0], [1], [0, 0, 1, 1], [], []>} : vector<2x32xf32>, vector<32x128xf32>, vector<2x128xf32> -> vector<2x128xf32>
    %120 = arith.addf %115, %119 : vector<2x128xf32>
    %121 = vector.extract_strided_slice %120 {offsets = [0, 0], sizes = [2, 32], strides = [1, 1]} : vector<2x128xf32> to vector<2x32xf32>
    %122 = arith.negf %121 : vector<2x32xf32>
    %123 = math.exp %122 : vector<2x32xf32>
    %cst_35 = arith.constant 1.000000e+00 : f32
    %124 = vector.broadcast %cst_35 : f32 to vector<2x32xf32>
    %125 = arith.addf %124, %123 : vector<2x32xf32>
    %126 = arith.divf %124, %125 : vector<2x32xf32>
    %127 = vector.extract_strided_slice %120 {offsets = [0, 32], sizes = [2, 32], strides = [1, 1]} : vector<2x128xf32> to vector<2x32xf32>
    %128 = arith.negf %127 : vector<2x32xf32>
    %129 = math.exp %128 : vector<2x32xf32>
    %cst_36 = arith.constant 1.000000e+00 : f32
    %130 = vector.broadcast %cst_36 : f32 to vector<2x32xf32>
    %131 = arith.addf %130, %129 : vector<2x32xf32>
    %132 = arith.divf %130, %131 : vector<2x32xf32>
    %133 = vector.extract_strided_slice %120 {offsets = [0, 64], sizes = [2, 32], strides = [1, 1]} : vector<2x128xf32> to vector<2x32xf32>
    %134 = math.tanh %133 : vector<2x32xf32>
    %135 = vector.extract_strided_slice %120 {offsets = [0, 96], sizes = [2, 32], strides = [1, 1]} : vector<2x128xf32> to vector<2x32xf32>
    %136 = arith.negf %135 : vector<2x32xf32>
    %137 = math.exp %136 : vector<2x32xf32>
    %cst_37 = arith.constant 1.000000e+00 : f32
    %138 = vector.broadcast %cst_37 : f32 to vector<2x32xf32>
    %139 = arith.addf %138, %137 : vector<2x32xf32>
    %140 = arith.divf %138, %139 : vector<2x32xf32>
    %141 = arith.mulf %132, %54 : vector<2x32xf32>
    %142 = arith.mulf %126, %134 : vector<2x32xf32>
    %143 = arith.addf %141, %142 : vector<2x32xf32>
    %144 = math.tanh %143 : vector<2x32xf32>
    %145 = arith.mulf %140, %144 : vector<2x32xf32>
    %146 = vector.broadcast %118 : vector<2x1xf32> to vector<2x32xf32>
    %147 = arith.mulf %146, %145 : vector<2x32xf32>
    %cst_38 = arith.constant 1.000000e+00 : f32
    %148 = vector.broadcast %cst_38 : f32 to vector<2x1xf32>
    %149 = arith.subf %148, %118 : vector<2x1xf32>
    %150 = vector.broadcast %149 : vector<2x1xf32> to vector<2x32xf32>
    %151 = arith.mulf %150, %47 : vector<2x32xf32>
    %152 = arith.addf %147, %151 : vector<2x32xf32>
    %153 = vector.broadcast %118 : vector<2x1xf32> to vector<2x32xf32>
    %154 = arith.mulf %153, %143 : vector<2x32xf32>
    %cst_39 = arith.constant 1.000000e+00 : f32
    %155 = vector.broadcast %cst_39 : f32 to vector<2x1xf32>
    %156 = arith.subf %155, %118 : vector<2x1xf32>
    %157 = vector.broadcast %156 : vector<2x1xf32> to vector<2x32xf32>
    %158 = arith.mulf %157, %54 : vector<2x32xf32>
    %159 = arith.addf %154, %158 : vector<2x32xf32>
    %160 = vector.extract_strided_slice %114 {offsets = [0, 128], sizes = [2, 128], strides = [1, 1]} : vector<2x256xf32> to vector<2x128xf32>
    %161 = arith.index_cast %108 : i32 to index
    %c0_40 = arith.constant 0 : index
    %c0_41 = arith.constant 0 : index
    %162 = vector.load %arg1[%161, %c0_40, %c0_41] : memref<8x2x1xf32, #tpu.memory_space<vmem>>, vector<1x2x1xf32>
    %163 = vector.shape_cast %162 : vector<1x2x1xf32> to vector<2x1xf32>
    %cst_42 = arith.constant dense<0.000000e+00> : vector<2x128xf32>
    %164 = tpu.matmul %92, %1, %cst_42 {dimension_numbers = #tpu.dot_dimension_numbers<[1], [0], [0], [1], [0, 0, 1, 1], [], []>} : vector<2x32xf32>, vector<32x128xf32>, vector<2x128xf32> -> vector<2x128xf32>
    %165 = arith.addf %160, %164 : vector<2x128xf32>
    %166 = vector.extract_strided_slice %165 {offsets = [0, 0], sizes = [2, 32], strides = [1, 1]} : vector<2x128xf32> to vector<2x32xf32>
    %167 = arith.negf %166 : vector<2x32xf32>
    %168 = math.exp %167 : vector<2x32xf32>
    %cst_43 = arith.constant 1.000000e+00 : f32
    %169 = vector.broadcast %cst_43 : f32 to vector<2x32xf32>
    %170 = arith.addf %169, %168 : vector<2x32xf32>
    %171 = arith.divf %169, %170 : vector<2x32xf32>
    %172 = vector.extract_strided_slice %165 {offsets = [0, 32], sizes = [2, 32], strides = [1, 1]} : vector<2x128xf32> to vector<2x32xf32>
    %173 = arith.negf %172 : vector<2x32xf32>
    %174 = math.exp %173 : vector<2x32xf32>
    %cst_44 = arith.constant 1.000000e+00 : f32
    %175 = vector.broadcast %cst_44 : f32 to vector<2x32xf32>
    %176 = arith.addf %175, %174 : vector<2x32xf32>
    %177 = arith.divf %175, %176 : vector<2x32xf32>
    %178 = vector.extract_strided_slice %165 {offsets = [0, 64], sizes = [2, 32], strides = [1, 1]} : vector<2x128xf32> to vector<2x32xf32>
    %179 = math.tanh %178 : vector<2x32xf32>
    %180 = vector.extract_strided_slice %165 {offsets = [0, 96], sizes = [2, 32], strides = [1, 1]} : vector<2x128xf32> to vector<2x32xf32>
    %181 = arith.negf %180 : vector<2x32xf32>
    %182 = math.exp %181 : vector<2x32xf32>
    %cst_45 = arith.constant 1.000000e+00 : f32
    %183 = vector.broadcast %cst_45 : f32 to vector<2x32xf32>
    %184 = arith.addf %183, %182 : vector<2x32xf32>
    %185 = arith.divf %183, %184 : vector<2x32xf32>
    %186 = arith.mulf %177, %99 : vector<2x32xf32>
    %187 = arith.mulf %171, %179 : vector<2x32xf32>
    %188 = arith.addf %186, %187 : vector<2x32xf32>
    %189 = math.tanh %188 : vector<2x32xf32>
    %190 = arith.mulf %185, %189 : vector<2x32xf32>
    %191 = vector.broadcast %163 : vector<2x1xf32> to vector<2x32xf32>
    %192 = arith.mulf %191, %190 : vector<2x32xf32>
    %cst_46 = arith.constant 1.000000e+00 : f32
    %193 = vector.broadcast %cst_46 : f32 to vector<2x1xf32>
    %194 = arith.subf %193, %163 : vector<2x1xf32>
    %195 = vector.broadcast %194 : vector<2x1xf32> to vector<2x32xf32>
    %196 = arith.mulf %195, %92 : vector<2x32xf32>
    %197 = arith.addf %192, %196 : vector<2x32xf32>
    %198 = vector.broadcast %163 : vector<2x1xf32> to vector<2x32xf32>
    %199 = arith.mulf %198, %188 : vector<2x32xf32>
    %cst_47 = arith.constant 1.000000e+00 : f32
    %200 = vector.broadcast %cst_47 : f32 to vector<2x1xf32>
    %201 = arith.subf %200, %163 : vector<2x1xf32>
    %202 = vector.broadcast %201 : vector<2x1xf32> to vector<2x32xf32>
    %203 = arith.mulf %202, %99 : vector<2x32xf32>
    %204 = arith.addf %199, %203 : vector<2x32xf32>
    %205 = arith.index_cast %c1_i32 : i32 to index
    %c0_48 = arith.constant 0 : index
    %c0_49 = arith.constant 0 : index
    %206 = vector.load %arg4[%205, %c0_48, %c0_49] : memref<8x2x32xf32, #tpu.memory_space<vmem>>, vector<1x2x32xf32>
    %207 = vector.shape_cast %206 : vector<1x2x32xf32> to vector<2x32xf32>
    %208 = vector.shape_cast %152 : vector<2x32xf32> to vector<1x2x32xf32>
    tpu.vector_store %arg4[%205, %c0_48, %c0_49], %208 {strides = array<i32>} : memref<8x2x32xf32, #tpu.memory_space<vmem>>, vector<1x2x32xf32>,
    %209 = arith.index_cast %108 : i32 to index
    %c0_50 = arith.constant 0 : index
    %c0_51 = arith.constant 0 : index
    %210 = vector.load %arg5[%209, %c0_50, %c0_51] : memref<8x2x32xf32, #tpu.memory_space<vmem>>, vector<1x2x32xf32>
    %211 = vector.shape_cast %210 : vector<1x2x32xf32> to vector<2x32xf32>
    %212 = vector.shape_cast %197 : vector<2x32xf32> to vector<1x2x32xf32>
    tpu.vector_store %arg5[%209, %c0_50, %c0_51], %212 {strides = array<i32>} : memref<8x2x32xf32, #tpu.memory_space<vmem>>, vector<1x2x32xf32>,
    %c2_i32 = arith.constant 2 : i32
    %c7_i32_52 = arith.constant 7 : i32
    %213 = arith.subi %c7_i32_52, %c2_i32 : i32
    %214 = arith.index_cast %c2_i32 : i32 to index
    %c0_53 = arith.constant 0 : index
    %c0_54 = arith.constant 0 : index
    %215 = vector.load %arg0[%214, %c0_53, %c0_54] : memref<8x2x256xf32, #tpu.memory_space<vmem>>, vector<1x2x256xf32>
    %216 = vector.shape_cast %215 : vector<1x2x256xf32> to vector<2x256xf32>
    %217 = arith.index_cast %213 : i32 to index
    %c0_55 = arith.constant 0 : index
    %c0_56 = arith.constant 0 : index
    %218 = vector.load %arg0[%217, %c0_55, %c0_56] : memref<8x2x256xf32, #tpu.memory_space<vmem>>, vector<1x2x256xf32>
    %219 = vector.shape_cast %218 : vector<1x2x256xf32> to vector<2x256xf32>
    %220 = vector.extract_strided_slice %216 {offsets = [0, 0], sizes = [2, 128], strides = [1, 1]} : vector<2x256xf32> to vector<2x128xf32>
    %221 = arith.index_cast %c2_i32 : i32 to index
    %c0_57 = arith.constant 0 : index
    %c0_58 = arith.constant 0 : index
    %222 = vector.load %arg1[%221, %c0_57, %c0_58] : memref<8x2x1xf32, #tpu.memory_space<vmem>>, vector<1x2x1xf32>
    %223 = vector.shape_cast %222 : vector<1x2x1xf32> to vector<2x1xf32>
    %cst_59 = arith.constant dense<0.000000e+00> : vector<2x128xf32>
    %224 = tpu.matmul %152, %0, %cst_59 {dimension_numbers = #tpu.dot_dimension_numbers<[1], [0], [0], [1], [0, 0, 1, 1], [], []>} : vector<2x32xf32>, vector<32x128xf32>, vector<2x128xf32> -> vector<2x128xf32>
    %225 = arith.addf %220, %224 : vector<2x128xf32>
    %226 = vector.extract_strided_slice %225 {offsets = [0, 0], sizes = [2, 32], strides = [1, 1]} : vector<2x128xf32> to vector<2x32xf32>
    %227 = arith.negf %226 : vector<2x32xf32>
    %228 = math.exp %227 : vector<2x32xf32>
    %cst_60 = arith.constant 1.000000e+00 : f32
    %229 = vector.broadcast %cst_60 : f32 to vector<2x32xf32>
    %230 = arith.addf %229, %228 : vector<2x32xf32>
    %231 = arith.divf %229, %230 : vector<2x32xf32>
    %232 = vector.extract_strided_slice %225 {offsets = [0, 32], sizes = [2, 32], strides = [1, 1]} : vector<2x128xf32> to vector<2x32xf32>
    %233 = arith.negf %232 : vector<2x32xf32>
    %234 = math.exp %233 : vector<2x32xf32>
    %cst_61 = arith.constant 1.000000e+00 : f32
    %235 = vector.broadcast %cst_61 : f32 to vector<2x32xf32>
    %236 = arith.addf %235, %234 : vector<2x32xf32>
    %237 = arith.divf %235, %236 : vector<2x32xf32>
    %238 = vector.extract_strided_slice %225 {offsets = [0, 64], sizes = [2, 32], strides = [1, 1]} : vector<2x128xf32> to vector<2x32xf32>
    %239 = math.tanh %238 : vector<2x32xf32>
    %240 = vector.extract_strided_slice %225 {offsets = [0, 96], sizes = [2, 32], strides = [1, 1]} : vector<2x128xf32> to vector<2x32xf32>
    %241 = arith.negf %240 : vector<2x32xf32>
    %242 = math.exp %241 : vector<2x32xf32>
    %cst_62 = arith.constant 1.000000e+00 : f32
    %243 = vector.broadcast %cst_62 : f32 to vector<2x32xf32>
    %244 = arith.addf %243, %242 : vector<2x32xf32>
    %245 = arith.divf %243, %244 : vector<2x32xf32>
    %246 = arith.mulf %237, %159 : vector<2x32xf32>
    %247 = arith.mulf %231, %239 : vector<2x32xf32>
    %248 = arith.addf %246, %247 : vector<2x32xf32>
    %249 = math.tanh %248 : vector<2x32xf32>
    %250 = arith.mulf %245, %249 : vector<2x32xf32>
    %251 = vector.broadcast %223 : vector<2x1xf32> to vector<2x32xf32>
    %252 = arith.mulf %251, %250 : vector<2x32xf32>
    %cst_63 = arith.constant 1.000000e+00 : f32
    %253 = vector.broadcast %cst_63 : f32 to vector<2x1xf32>
    %254 = arith.subf %253, %223 : vector<2x1xf32>
    %255 = vector.broadcast %254 : vector<2x1xf32> to vector<2x32xf32>
    %256 = arith.mulf %255, %152 : vector<2x32xf32>
    %257 = arith.addf %252, %256 : vector<2x32xf32>
    %258 = vector.broadcast %223 : vector<2x1xf32> to vector<2x32xf32>
    %259 = arith.mulf %258, %248 : vector<2x32xf32>
    %cst_64 = arith.constant 1.000000e+00 : f32
    %260 = vector.broadcast %cst_64 : f32 to vector<2x1xf32>
    %261 = arith.subf %260, %223 : vector<2x1xf32>
    %262 = vector.broadcast %261 : vector<2x1xf32> to vector<2x32xf32>
    %263 = arith.mulf %262, %159 : vector<2x32xf32>
    %264 = arith.addf %259, %263 : vector<2x32xf32>
    %265 = vector.extract_strided_slice %219 {offsets = [0, 128], sizes = [2, 128], strides = [1, 1]} : vector<2x256xf32> to vector<2x128xf32>
    %266 = arith.index_cast %213 : i32 to index
    %c0_65 = arith.constant 0 : index
    %c0_66 = arith.constant 0 : index
    %267 = vector.load %arg1[%266, %c0_65, %c0_66] : memref<8x2x1xf32, #tpu.memory_space<vmem>>, vector<1x2x1xf32>
    %268 = vector.shape_cast %267 : vector<1x2x1xf32> to vector<2x1xf32>
    %cst_67 = arith.constant dense<0.000000e+00> : vector<2x128xf32>
    %269 = tpu.matmul %197, %1, %cst_67 {dimension_numbers = #tpu.dot_dimension_numbers<[1], [0], [0], [1], [0, 0, 1, 1], [], []>} : vector<2x32xf32>, vector<32x128xf32>, vector<2x128xf32> -> vector<2x128xf32>
    %270 = arith.addf %265, %269 : vector<2x128xf32>
    %271 = vector.extract_strided_slice %270 {offsets = [0, 0], sizes = [2, 32], strides = [1, 1]} : vector<2x128xf32> to vector<2x32xf32>
    %272 = arith.negf %271 : vector<2x32xf32>
    %273 = math.exp %272 : vector<2x32xf32>
    %cst_68 = arith.constant 1.000000e+00 : f32
    %274 = vector.broadcast %cst_68 : f32 to vector<2x32xf32>
    %275 = arith.addf %274, %273 : vector<2x32xf32>
    %276 = arith.divf %274, %275 : vector<2x32xf32>
    %277 = vector.extract_strided_slice %270 {offsets = [0, 32], sizes = [2, 32], strides = [1, 1]} : vector<2x128xf32> to vector<2x32xf32>
    %278 = arith.negf %277 : vector<2x32xf32>
    %279 = math.exp %278 : vector<2x32xf32>
    %cst_69 = arith.constant 1.000000e+00 : f32
    %280 = vector.broadcast %cst_69 : f32 to vector<2x32xf32>
    %281 = arith.addf %280, %279 : vector<2x32xf32>
    %282 = arith.divf %280, %281 : vector<2x32xf32>
    %283 = vector.extract_strided_slice %270 {offsets = [0, 64], sizes = [2, 32], strides = [1, 1]} : vector<2x128xf32> to vector<2x32xf32>
    %284 = math.tanh %283 : vector<2x32xf32>
    %285 = vector.extract_strided_slice %270 {offsets = [0, 96], sizes = [2, 32], strides = [1, 1]} : vector<2x128xf32> to vector<2x32xf32>
    %286 = arith.negf %285 : vector<2x32xf32>
    %287 = math.exp %286 : vector<2x32xf32>
    %cst_70 = arith.constant 1.000000e+00 : f32
    %288 = vector.broadcast %cst_70 : f32 to vector<2x32xf32>
    %289 = arith.addf %288, %287 : vector<2x32xf32>
    %290 = arith.divf %288, %289 : vector<2x32xf32>
    %291 = arith.mulf %282, %204 : vector<2x32xf32>
    %292 = arith.mulf %276, %284 : vector<2x32xf32>
    %293 = arith.addf %291, %292 : vector<2x32xf32>
    %294 = math.tanh %293 : vector<2x32xf32>
    %295 = arith.mulf %290, %294 : vector<2x32xf32>
    %296 = vector.broadcast %268 : vector<2x1xf32> to vector<2x32xf32>
    %297 = arith.mulf %296, %295 : vector<2x32xf32>
    %cst_71 = arith.constant 1.000000e+00 : f32
    %298 = vector.broadcast %cst_71 : f32 to vector<2x1xf32>
    %299 = arith.subf %298, %268 : vector<2x1xf32>
    %300 = vector.broadcast %299 : vector<2x1xf32> to vector<2x32xf32>
    %301 = arith.mulf %300, %197 : vector<2x32xf32>
    %302 = arith.addf %297, %301 : vector<2x32xf32>
    %303 = vector.broadcast %268 : vector<2x1xf32> to vector<2x32xf32>
    %304 = arith.mulf %303, %293 : vector<2x32xf32>
    %cst_72 = arith.constant 1.000000e+00 : f32
    %305 = vector.broadcast %cst_72 : f32 to vector<2x1xf32>
    %306 = arith.subf %305, %268 : vector<2x1xf32>
    %307 = vector.broadcast %306 : vector<2x1xf32> to vector<2x32xf32>
    %308 = arith.mulf %307, %204 : vector<2x32xf32>
    %309 = arith.addf %304, %308 : vector<2x32xf32>
    %310 = arith.index_cast %c2_i32 : i32 to index
    %c0_73 = arith.constant 0 : index
    %c0_74 = arith.constant 0 : index
    %311 = vector.load %arg4[%310, %c0_73, %c0_74] : memref<8x2x32xf32, #tpu.memory_space<vmem>>, vector<1x2x32xf32>
    %312 = vector.shape_cast %311 : vector<1x2x32xf32> to vector<2x32xf32>
    %313 = vector.shape_cast %257 : vector<2x32xf32> to vector<1x2x32xf32>
    tpu.vector_store %arg4[%310, %c0_73, %c0_74], %313 {strides = array<i32>} : memref<8x2x32xf32, #tpu.memory_space<vmem>>, vector<1x2x32xf32>,
    %314 = arith.index_cast %213 : i32 to index
    %c0_75 = arith.constant 0 : index
    %c0_76 = arith.constant 0 : index
    %315 = vector.load %arg5[%314, %c0_75, %c0_76] : memref<8x2x32xf32, #tpu.memory_space<vmem>>, vector<1x2x32xf32>
    %316 = vector.shape_cast %315 : vector<1x2x32xf32> to vector<2x32xf32>
    %317 = vector.shape_cast %302 : vector<2x32xf32> to vector<1x2x32xf32>
    tpu.vector_store %arg5[%314, %c0_75, %c0_76], %317 {strides = array<i32>} : memref<8x2x32xf32, #tpu.memory_space<vmem>>, vector<1x2x32xf32>,
    %c3_i32 = arith.constant 3 : i32
    %c7_i32_77 = arith.constant 7 : i32
    %318 = arith.subi %c7_i32_77, %c3_i32 : i32
    %319 = arith.index_cast %c3_i32 : i32 to index
    %c0_78 = arith.constant 0 : index
    %c0_79 = arith.constant 0 : index
    %320 = vector.load %arg0[%319, %c0_78, %c0_79] : memref<8x2x256xf32, #tpu.memory_space<vmem>>, vector<1x2x256xf32>
    %321 = vector.shape_cast %320 : vector<1x2x256xf32> to vector<2x256xf32>
    %322 = arith.index_cast %318 : i32 to index
    %c0_80 = arith.constant 0 : index
    %c0_81 = arith.constant 0 : index
    %323 = vector.load %arg0[%322, %c0_80, %c0_81] : memref<8x2x256xf32, #tpu.memory_space<vmem>>, vector<1x2x256xf32>
    %324 = vector.shape_cast %323 : vector<1x2x256xf32> to vector<2x256xf32>
    %325 = vector.extract_strided_slice %321 {offsets = [0, 0], sizes = [2, 128], strides = [1, 1]} : vector<2x256xf32> to vector<2x128xf32>
    %326 = arith.index_cast %c3_i32 : i32 to index
    %c0_82 = arith.constant 0 : index
    %c0_83 = arith.constant 0 : index
    %327 = vector.load %arg1[%326, %c0_82, %c0_83] : memref<8x2x1xf32, #tpu.memory_space<vmem>>, vector<1x2x1xf32>
    %328 = vector.shape_cast %327 : vector<1x2x1xf32> to vector<2x1xf32>
    %cst_84 = arith.constant dense<0.000000e+00> : vector<2x128xf32>
    %329 = tpu.matmul %257, %0, %cst_84 {dimension_numbers = #tpu.dot_dimension_numbers<[1], [0], [0], [1], [0, 0, 1, 1], [], []>} : vector<2x32xf32>, vector<32x128xf32>, vector<2x128xf32> -> vector<2x128xf32>
    %330 = arith.addf %325, %329 : vector<2x128xf32>
    %331 = vector.extract_strided_slice %330 {offsets = [0, 0], sizes = [2, 32], strides = [1, 1]} : vector<2x128xf32> to vector<2x32xf32>
    %332 = arith.negf %331 : vector<2x32xf32>
    %333 = math.exp %332 : vector<2x32xf32>
    %cst_85 = arith.constant 1.000000e+00 : f32
    %334 = vector.broadcast %cst_85 : f32 to vector<2x32xf32>
    %335 = arith.addf %334, %333 : vector<2x32xf32>
    %336 = arith.divf %334, %335 : vector<2x32xf32>
    %337 = vector.extract_strided_slice %330 {offsets = [0, 32], sizes = [2, 32], strides = [1, 1]} : vector<2x128xf32> to vector<2x32xf32>
    %338 = arith.negf %337 : vector<2x32xf32>
    %339 = math.exp %338 : vector<2x32xf32>
    %cst_86 = arith.constant 1.000000e+00 : f32
    %340 = vector.broadcast %cst_86 : f32 to vector<2x32xf32>
    %341 = arith.addf %340, %339 : vector<2x32xf32>
    %342 = arith.divf %340, %341 : vector<2x32xf32>
    %343 = vector.extract_strided_slice %330 {offsets = [0, 64], sizes = [2, 32], strides = [1, 1]} : vector<2x128xf32> to vector<2x32xf32>
    %344 = math.tanh %343 : vector<2x32xf32>
    %345 = vector.extract_strided_slice %330 {offsets = [0, 96], sizes = [2, 32], strides = [1, 1]} : vector<2x128xf32> to vector<2x32xf32>
    %346 = arith.negf %345 : vector<2x32xf32>
    %347 = math.exp %346 : vector<2x32xf32>
    %cst_87 = arith.constant 1.000000e+00 : f32
    %348 = vector.broadcast %cst_87 : f32 to vector<2x32xf32>
    %349 = arith.addf %348, %347 : vector<2x32xf32>
    %350 = arith.divf %348, %349 : vector<2x32xf32>
    %351 = arith.mulf %342, %264 : vector<2x32xf32>
    %352 = arith.mulf %336, %344 : vector<2x32xf32>
    %353 = arith.addf %351, %352 : vector<2x32xf32>
    %354 = math.tanh %353 : vector<2x32xf32>
    %355 = arith.mulf %350, %354 : vector<2x32xf32>
    %356 = vector.broadcast %328 : vector<2x1xf32> to vector<2x32xf32>
    %357 = arith.mulf %356, %355 : vector<2x32xf32>
    %cst_88 = arith.constant 1.000000e+00 : f32
    %358 = vector.broadcast %cst_88 : f32 to vector<2x1xf32>
    %359 = arith.subf %358, %328 : vector<2x1xf32>
    %360 = vector.broadcast %359 : vector<2x1xf32> to vector<2x32xf32>
    %361 = arith.mulf %360, %257 : vector<2x32xf32>
    %362 = arith.addf %357, %361 : vector<2x32xf32>
    %363 = vector.broadcast %328 : vector<2x1xf32> to vector<2x32xf32>
    %364 = arith.mulf %363, %353 : vector<2x32xf32>
    %cst_89 = arith.constant 1.000000e+00 : f32
    %365 = vector.broadcast %cst_89 : f32 to vector<2x1xf32>
    %366 = arith.subf %365, %328 : vector<2x1xf32>
    %367 = vector.broadcast %366 : vector<2x1xf32> to vector<2x32xf32>
    %368 = arith.mulf %367, %264 : vector<2x32xf32>
    %369 = arith.addf %364, %368 : vector<2x32xf32>
    %370 = vector.extract_strided_slice %324 {offsets = [0, 128], sizes = [2, 128], strides = [1, 1]} : vector<2x256xf32> to vector<2x128xf32>
    %371 = arith.index_cast %318 : i32 to index
    %c0_90 = arith.constant 0 : index
    %c0_91 = arith.constant 0 : index
    %372 = vector.load %arg1[%371, %c0_90, %c0_91] : memref<8x2x1xf32, #tpu.memory_space<vmem>>, vector<1x2x1xf32>
    %373 = vector.shape_cast %372 : vector<1x2x1xf32> to vector<2x1xf32>
    %cst_92 = arith.constant dense<0.000000e+00> : vector<2x128xf32>
    %374 = tpu.matmul %302, %1, %cst_92 {dimension_numbers = #tpu.dot_dimension_numbers<[1], [0], [0], [1], [0, 0, 1, 1], [], []>} : vector<2x32xf32>, vector<32x128xf32>, vector<2x128xf32> -> vector<2x128xf32>
    %375 = arith.addf %370, %374 : vector<2x128xf32>
    %376 = vector.extract_strided_slice %375 {offsets = [0, 0], sizes = [2, 32], strides = [1, 1]} : vector<2x128xf32> to vector<2x32xf32>
    %377 = arith.negf %376 : vector<2x32xf32>
    %378 = math.exp %377 : vector<2x32xf32>
    %cst_93 = arith.constant 1.000000e+00 : f32
    %379 = vector.broadcast %cst_93 : f32 to vector<2x32xf32>
    %380 = arith.addf %379, %378 : vector<2x32xf32>
    %381 = arith.divf %379, %380 : vector<2x32xf32>
    %382 = vector.extract_strided_slice %375 {offsets = [0, 32], sizes = [2, 32], strides = [1, 1]} : vector<2x128xf32> to vector<2x32xf32>
    %383 = arith.negf %382 : vector<2x32xf32>
    %384 = math.exp %383 : vector<2x32xf32>
    %cst_94 = arith.constant 1.000000e+00 : f32
    %385 = vector.broadcast %cst_94 : f32 to vector<2x32xf32>
    %386 = arith.addf %385, %384 : vector<2x32xf32>
    %387 = arith.divf %385, %386 : vector<2x32xf32>
    %388 = vector.extract_strided_slice %375 {offsets = [0, 64], sizes = [2, 32], strides = [1, 1]} : vector<2x128xf32> to vector<2x32xf32>
    %389 = math.tanh %388 : vector<2x32xf32>
    %390 = vector.extract_strided_slice %375 {offsets = [0, 96], sizes = [2, 32], strides = [1, 1]} : vector<2x128xf32> to vector<2x32xf32>
    %391 = arith.negf %390 : vector<2x32xf32>
    %392 = math.exp %391 : vector<2x32xf32>
    %cst_95 = arith.constant 1.000000e+00 : f32
    %393 = vector.broadcast %cst_95 : f32 to vector<2x32xf32>
    %394 = arith.addf %393, %392 : vector<2x32xf32>
    %395 = arith.divf %393, %394 : vector<2x32xf32>
    %396 = arith.mulf %387, %309 : vector<2x32xf32>
    %397 = arith.mulf %381, %389 : vector<2x32xf32>
    %398 = arith.addf %396, %397 : vector<2x32xf32>
    %399 = math.tanh %398 : vector<2x32xf32>
    %400 = arith.mulf %395, %399 : vector<2x32xf32>
    %401 = vector.broadcast %373 : vector<2x1xf32> to vector<2x32xf32>
    %402 = arith.mulf %401, %400 : vector<2x32xf32>
    %cst_96 = arith.constant 1.000000e+00 : f32
    %403 = vector.broadcast %cst_96 : f32 to vector<2x1xf32>
    %404 = arith.subf %403, %373 : vector<2x1xf32>
    %405 = vector.broadcast %404 : vector<2x1xf32> to vector<2x32xf32>
    %406 = arith.mulf %405, %302 : vector<2x32xf32>
    %407 = arith.addf %402, %406 : vector<2x32xf32>
    %408 = vector.broadcast %373 : vector<2x1xf32> to vector<2x32xf32>
    %409 = arith.mulf %408, %398 : vector<2x32xf32>
    %cst_97 = arith.constant 1.000000e+00 : f32
    %410 = vector.broadcast %cst_97 : f32 to vector<2x1xf32>
    %411 = arith.subf %410, %373 : vector<2x1xf32>
    %412 = vector.broadcast %411 : vector<2x1xf32> to vector<2x32xf32>
    %413 = arith.mulf %412, %309 : vector<2x32xf32>
    %414 = arith.addf %409, %413 : vector<2x32xf32>
    %415 = arith.index_cast %c3_i32 : i32 to index
    %c0_98 = arith.constant 0 : index
    %c0_99 = arith.constant 0 : index
    %416 = vector.load %arg4[%415, %c0_98, %c0_99] : memref<8x2x32xf32, #tpu.memory_space<vmem>>, vector<1x2x32xf32>
    %417 = vector.shape_cast %416 : vector<1x2x32xf32> to vector<2x32xf32>
    %418 = vector.shape_cast %362 : vector<2x32xf32> to vector<1x2x32xf32>
    tpu.vector_store %arg4[%415, %c0_98, %c0_99], %418 {strides = array<i32>} : memref<8x2x32xf32, #tpu.memory_space<vmem>>, vector<1x2x32xf32>,
    %419 = arith.index_cast %318 : i32 to index
    %c0_100 = arith.constant 0 : index
    %c0_101 = arith.constant 0 : index
    %420 = vector.load %arg5[%419, %c0_100, %c0_101] : memref<8x2x32xf32, #tpu.memory_space<vmem>>, vector<1x2x32xf32>
    %421 = vector.shape_cast %420 : vector<1x2x32xf32> to vector<2x32xf32>
    %422 = vector.shape_cast %407 : vector<2x32xf32> to vector<1x2x32xf32>
    tpu.vector_store %arg5[%419, %c0_100, %c0_101], %422 {strides = array<i32>} : memref<8x2x32xf32, #tpu.memory_space<vmem>>, vector<1x2x32xf32>,
    %c4_i32 = arith.constant 4 : i32
    %c7_i32_102 = arith.constant 7 : i32
    %423 = arith.subi %c7_i32_102, %c4_i32 : i32
    %424 = arith.index_cast %c4_i32 : i32 to index
    %c0_103 = arith.constant 0 : index
    %c0_104 = arith.constant 0 : index
    %425 = vector.load %arg0[%424, %c0_103, %c0_104] : memref<8x2x256xf32, #tpu.memory_space<vmem>>, vector<1x2x256xf32>
    %426 = vector.shape_cast %425 : vector<1x2x256xf32> to vector<2x256xf32>
    %427 = arith.index_cast %423 : i32 to index
    %c0_105 = arith.constant 0 : index
    %c0_106 = arith.constant 0 : index
    %428 = vector.load %arg0[%427, %c0_105, %c0_106] : memref<8x2x256xf32, #tpu.memory_space<vmem>>, vector<1x2x256xf32>
    %429 = vector.shape_cast %428 : vector<1x2x256xf32> to vector<2x256xf32>
    %430 = vector.extract_strided_slice %426 {offsets = [0, 0], sizes = [2, 128], strides = [1, 1]} : vector<2x256xf32> to vector<2x128xf32>
    %431 = arith.index_cast %c4_i32 : i32 to index
    %c0_107 = arith.constant 0 : index
    %c0_108 = arith.constant 0 : index
    %432 = vector.load %arg1[%431, %c0_107, %c0_108] : memref<8x2x1xf32, #tpu.memory_space<vmem>>, vector<1x2x1xf32>
    %433 = vector.shape_cast %432 : vector<1x2x1xf32> to vector<2x1xf32>
    %cst_109 = arith.constant dense<0.000000e+00> : vector<2x128xf32>
    %434 = tpu.matmul %362, %0, %cst_109 {dimension_numbers = #tpu.dot_dimension_numbers<[1], [0], [0], [1], [0, 0, 1, 1], [], []>} : vector<2x32xf32>, vector<32x128xf32>, vector<2x128xf32> -> vector<2x128xf32>
    %435 = arith.addf %430, %434 : vector<2x128xf32>
    %436 = vector.extract_strided_slice %435 {offsets = [0, 0], sizes = [2, 32], strides = [1, 1]} : vector<2x128xf32> to vector<2x32xf32>
    %437 = arith.negf %436 : vector<2x32xf32>
    %438 = math.exp %437 : vector<2x32xf32>
    %cst_110 = arith.constant 1.000000e+00 : f32
    %439 = vector.broadcast %cst_110 : f32 to vector<2x32xf32>
    %440 = arith.addf %439, %438 : vector<2x32xf32>
    %441 = arith.divf %439, %440 : vector<2x32xf32>
    %442 = vector.extract_strided_slice %435 {offsets = [0, 32], sizes = [2, 32], strides = [1, 1]} : vector<2x128xf32> to vector<2x32xf32>
    %443 = arith.negf %442 : vector<2x32xf32>
    %444 = math.exp %443 : vector<2x32xf32>
    %cst_111 = arith.constant 1.000000e+00 : f32
    %445 = vector.broadcast %cst_111 : f32 to vector<2x32xf32>
    %446 = arith.addf %445, %444 : vector<2x32xf32>
    %447 = arith.divf %445, %446 : vector<2x32xf32>
    %448 = vector.extract_strided_slice %435 {offsets = [0, 64], sizes = [2, 32], strides = [1, 1]} : vector<2x128xf32> to vector<2x32xf32>
    %449 = math.tanh %448 : vector<2x32xf32>
    %450 = vector.extract_strided_slice %435 {offsets = [0, 96], sizes = [2, 32], strides = [1, 1]} : vector<2x128xf32> to vector<2x32xf32>
    %451 = arith.negf %450 : vector<2x32xf32>
    %452 = math.exp %451 : vector<2x32xf32>
    %cst_112 = arith.constant 1.000000e+00 : f32
    %453 = vector.broadcast %cst_112 : f32 to vector<2x32xf32>
    %454 = arith.addf %453, %452 : vector<2x32xf32>
    %455 = arith.divf %453, %454 : vector<2x32xf32>
    %456 = arith.mulf %447, %369 : vector<2x32xf32>
    %457 = arith.mulf %441, %449 : vector<2x32xf32>
    %458 = arith.addf %456, %457 : vector<2x32xf32>
    %459 = math.tanh %458 : vector<2x32xf32>
    %460 = arith.mulf %455, %459 : vector<2x32xf32>
    %461 = vector.broadcast %433 : vector<2x1xf32> to vector<2x32xf32>
    %462 = arith.mulf %461, %460 : vector<2x32xf32>
    %cst_113 = arith.constant 1.000000e+00 : f32
    %463 = vector.broadcast %cst_113 : f32 to vector<2x1xf32>
    %464 = arith.subf %463, %433 : vector<2x1xf32>
    %465 = vector.broadcast %464 : vector<2x1xf32> to vector<2x32xf32>
    %466 = arith.mulf %465, %362 : vector<2x32xf32>
    %467 = arith.addf %462, %466 : vector<2x32xf32>
    %468 = vector.broadcast %433 : vector<2x1xf32> to vector<2x32xf32>
    %469 = arith.mulf %468, %458 : vector<2x32xf32>
    %cst_114 = arith.constant 1.000000e+00 : f32
    %470 = vector.broadcast %cst_114 : f32 to vector<2x1xf32>
    %471 = arith.subf %470, %433 : vector<2x1xf32>
    %472 = vector.broadcast %471 : vector<2x1xf32> to vector<2x32xf32>
    %473 = arith.mulf %472, %369 : vector<2x32xf32>
    %474 = arith.addf %469, %473 : vector<2x32xf32>
    %475 = vector.extract_strided_slice %429 {offsets = [0, 128], sizes = [2, 128], strides = [1, 1]} : vector<2x256xf32> to vector<2x128xf32>
    %476 = arith.index_cast %423 : i32 to index
    %c0_115 = arith.constant 0 : index
    %c0_116 = arith.constant 0 : index
    %477 = vector.load %arg1[%476, %c0_115, %c0_116] : memref<8x2x1xf32, #tpu.memory_space<vmem>>, vector<1x2x1xf32>
    %478 = vector.shape_cast %477 : vector<1x2x1xf32> to vector<2x1xf32>
    %cst_117 = arith.constant dense<0.000000e+00> : vector<2x128xf32>
    %479 = tpu.matmul %407, %1, %cst_117 {dimension_numbers = #tpu.dot_dimension_numbers<[1], [0], [0], [1], [0, 0, 1, 1], [], []>} : vector<2x32xf32>, vector<32x128xf32>, vector<2x128xf32> -> vector<2x128xf32>
    %480 = arith.addf %475, %479 : vector<2x128xf32>
    %481 = vector.extract_strided_slice %480 {offsets = [0, 0], sizes = [2, 32], strides = [1, 1]} : vector<2x128xf32> to vector<2x32xf32>
    %482 = arith.negf %481 : vector<2x32xf32>
    %483 = math.exp %482 : vector<2x32xf32>
    %cst_118 = arith.constant 1.000000e+00 : f32
    %484 = vector.broadcast %cst_118 : f32 to vector<2x32xf32>
    %485 = arith.addf %484, %483 : vector<2x32xf32>
    %486 = arith.divf %484, %485 : vector<2x32xf32>
    %487 = vector.extract_strided_slice %480 {offsets = [0, 32], sizes = [2, 32], strides = [1, 1]} : vector<2x128xf32> to vector<2x32xf32>
    %488 = arith.negf %487 : vector<2x32xf32>
    %489 = math.exp %488 : vector<2x32xf32>
    %cst_119 = arith.constant 1.000000e+00 : f32
    %490 = vector.broadcast %cst_119 : f32 to vector<2x32xf32>
    %491 = arith.addf %490, %489 : vector<2x32xf32>
    %492 = arith.divf %490, %491 : vector<2x32xf32>
    %493 = vector.extract_strided_slice %480 {offsets = [0, 64], sizes = [2, 32], strides = [1, 1]} : vector<2x128xf32> to vector<2x32xf32>
    %494 = math.tanh %493 : vector<2x32xf32>
    %495 = vector.extract_strided_slice %480 {offsets = [0, 96], sizes = [2, 32], strides = [1, 1]} : vector<2x128xf32> to vector<2x32xf32>
    %496 = arith.negf %495 : vector<2x32xf32>
    %497 = math.exp %496 : vector<2x32xf32>
    %cst_120 = arith.constant 1.000000e+00 : f32
    %498 = vector.broadcast %cst_120 : f32 to vector<2x32xf32>
    %499 = arith.addf %498, %497 : vector<2x32xf32>
    %500 = arith.divf %498, %499 : vector<2x32xf32>
    %501 = arith.mulf %492, %414 : vector<2x32xf32>
    %502 = arith.mulf %486, %494 : vector<2x32xf32>
    %503 = arith.addf %501, %502 : vector<2x32xf32>
    %504 = math.tanh %503 : vector<2x32xf32>
    %505 = arith.mulf %500, %504 : vector<2x32xf32>
    %506 = vector.broadcast %478 : vector<2x1xf32> to vector<2x32xf32>
    %507 = arith.mulf %506, %505 : vector<2x32xf32>
    %cst_121 = arith.constant 1.000000e+00 : f32
    %508 = vector.broadcast %cst_121 : f32 to vector<2x1xf32>
    %509 = arith.subf %508, %478 : vector<2x1xf32>
    %510 = vector.broadcast %509 : vector<2x1xf32> to vector<2x32xf32>
    %511 = arith.mulf %510, %407 : vector<2x32xf32>
    %512 = arith.addf %507, %511 : vector<2x32xf32>
    %513 = vector.broadcast %478 : vector<2x1xf32> to vector<2x32xf32>
    %514 = arith.mulf %513, %503 : vector<2x32xf32>
    %cst_122 = arith.constant 1.000000e+00 : f32
    %515 = vector.broadcast %cst_122 : f32 to vector<2x1xf32>
    %516 = arith.subf %515, %478 : vector<2x1xf32>
    %517 = vector.broadcast %516 : vector<2x1xf32> to vector<2x32xf32>
    %518 = arith.mulf %517, %414 : vector<2x32xf32>
    %519 = arith.addf %514, %518 : vector<2x32xf32>
    %520 = arith.index_cast %c4_i32 : i32 to index
    %c0_123 = arith.constant 0 : index
    %c0_124 = arith.constant 0 : index
    %521 = vector.load %arg4[%520, %c0_123, %c0_124] : memref<8x2x32xf32, #tpu.memory_space<vmem>>, vector<1x2x32xf32>
    %522 = vector.shape_cast %521 : vector<1x2x32xf32> to vector<2x32xf32>
    %523 = vector.shape_cast %467 : vector<2x32xf32> to vector<1x2x32xf32>
    tpu.vector_store %arg4[%520, %c0_123, %c0_124], %523 {strides = array<i32>} : memref<8x2x32xf32, #tpu.memory_space<vmem>>, vector<1x2x32xf32>,
    %524 = arith.index_cast %423 : i32 to index
    %c0_125 = arith.constant 0 : index
    %c0_126 = arith.constant 0 : index
    %525 = vector.load %arg5[%524, %c0_125, %c0_126] : memref<8x2x32xf32, #tpu.memory_space<vmem>>, vector<1x2x32xf32>
    %526 = vector.shape_cast %525 : vector<1x2x32xf32> to vector<2x32xf32>
    %527 = vector.shape_cast %512 : vector<2x32xf32> to vector<1x2x32xf32>
    tpu.vector_store %arg5[%524, %c0_125, %c0_126], %527 {strides = array<i32>} : memref<8x2x32xf32, #tpu.memory_space<vmem>>, vector<1x2x32xf32>,
    %c5_i32 = arith.constant 5 : i32
    %c7_i32_127 = arith.constant 7 : i32
    %528 = arith.subi %c7_i32_127, %c5_i32 : i32
    %529 = arith.index_cast %c5_i32 : i32 to index
    %c0_128 = arith.constant 0 : index
    %c0_129 = arith.constant 0 : index
    %530 = vector.load %arg0[%529, %c0_128, %c0_129] : memref<8x2x256xf32, #tpu.memory_space<vmem>>, vector<1x2x256xf32>
    %531 = vector.shape_cast %530 : vector<1x2x256xf32> to vector<2x256xf32>
    %532 = arith.index_cast %528 : i32 to index
    %c0_130 = arith.constant 0 : index
    %c0_131 = arith.constant 0 : index
    %533 = vector.load %arg0[%532, %c0_130, %c0_131] : memref<8x2x256xf32, #tpu.memory_space<vmem>>, vector<1x2x256xf32>
    %534 = vector.shape_cast %533 : vector<1x2x256xf32> to vector<2x256xf32>
    %535 = vector.extract_strided_slice %531 {offsets = [0, 0], sizes = [2, 128], strides = [1, 1]} : vector<2x256xf32> to vector<2x128xf32>
    %536 = arith.index_cast %c5_i32 : i32 to index
    %c0_132 = arith.constant 0 : index
    %c0_133 = arith.constant 0 : index
    %537 = vector.load %arg1[%536, %c0_132, %c0_133] : memref<8x2x1xf32, #tpu.memory_space<vmem>>, vector<1x2x1xf32>
    %538 = vector.shape_cast %537 : vector<1x2x1xf32> to vector<2x1xf32>
    %cst_134 = arith.constant dense<0.000000e+00> : vector<2x128xf32>
    %539 = tpu.matmul %467, %0, %cst_134 {dimension_numbers = #tpu.dot_dimension_numbers<[1], [0], [0], [1], [0, 0, 1, 1], [], []>} : vector<2x32xf32>, vector<32x128xf32>, vector<2x128xf32> -> vector<2x128xf32>
    %540 = arith.addf %535, %539 : vector<2x128xf32>
    %541 = vector.extract_strided_slice %540 {offsets = [0, 0], sizes = [2, 32], strides = [1, 1]} : vector<2x128xf32> to vector<2x32xf32>
    %542 = arith.negf %541 : vector<2x32xf32>
    %543 = math.exp %542 : vector<2x32xf32>
    %cst_135 = arith.constant 1.000000e+00 : f32
    %544 = vector.broadcast %cst_135 : f32 to vector<2x32xf32>
    %545 = arith.addf %544, %543 : vector<2x32xf32>
    %546 = arith.divf %544, %545 : vector<2x32xf32>
    %547 = vector.extract_strided_slice %540 {offsets = [0, 32], sizes = [2, 32], strides = [1, 1]} : vector<2x128xf32> to vector<2x32xf32>
    %548 = arith.negf %547 : vector<2x32xf32>
    %549 = math.exp %548 : vector<2x32xf32>
    %cst_136 = arith.constant 1.000000e+00 : f32
    %550 = vector.broadcast %cst_136 : f32 to vector<2x32xf32>
    %551 = arith.addf %550, %549 : vector<2x32xf32>
    %552 = arith.divf %550, %551 : vector<2x32xf32>
    %553 = vector.extract_strided_slice %540 {offsets = [0, 64], sizes = [2, 32], strides = [1, 1]} : vector<2x128xf32> to vector<2x32xf32>
    %554 = math.tanh %553 : vector<2x32xf32>
    %555 = vector.extract_strided_slice %540 {offsets = [0, 96], sizes = [2, 32], strides = [1, 1]} : vector<2x128xf32> to vector<2x32xf32>
    %556 = arith.negf %555 : vector<2x32xf32>
    %557 = math.exp %556 : vector<2x32xf32>
    %cst_137 = arith.constant 1.000000e+00 : f32
    %558 = vector.broadcast %cst_137 : f32 to vector<2x32xf32>
    %559 = arith.addf %558, %557 : vector<2x32xf32>
    %560 = arith.divf %558, %559 : vector<2x32xf32>
    %561 = arith.mulf %552, %474 : vector<2x32xf32>
    %562 = arith.mulf %546, %554 : vector<2x32xf32>
    %563 = arith.addf %561, %562 : vector<2x32xf32>
    %564 = math.tanh %563 : vector<2x32xf32>
    %565 = arith.mulf %560, %564 : vector<2x32xf32>
    %566 = vector.broadcast %538 : vector<2x1xf32> to vector<2x32xf32>
    %567 = arith.mulf %566, %565 : vector<2x32xf32>
    %cst_138 = arith.constant 1.000000e+00 : f32
    %568 = vector.broadcast %cst_138 : f32 to vector<2x1xf32>
    %569 = arith.subf %568, %538 : vector<2x1xf32>
    %570 = vector.broadcast %569 : vector<2x1xf32> to vector<2x32xf32>
    %571 = arith.mulf %570, %467 : vector<2x32xf32>
    %572 = arith.addf %567, %571 : vector<2x32xf32>
    %573 = vector.broadcast %538 : vector<2x1xf32> to vector<2x32xf32>
    %574 = arith.mulf %573, %563 : vector<2x32xf32>
    %cst_139 = arith.constant 1.000000e+00 : f32
    %575 = vector.broadcast %cst_139 : f32 to vector<2x1xf32>
    %576 = arith.subf %575, %538 : vector<2x1xf32>
    %577 = vector.broadcast %576 : vector<2x1xf32> to vector<2x32xf32>
    %578 = arith.mulf %577, %474 : vector<2x32xf32>
    %579 = arith.addf %574, %578 : vector<2x32xf32>
    %580 = vector.extract_strided_slice %534 {offsets = [0, 128], sizes = [2, 128], strides = [1, 1]} : vector<2x256xf32> to vector<2x128xf32>
    %581 = arith.index_cast %528 : i32 to index
    %c0_140 = arith.constant 0 : index
    %c0_141 = arith.constant 0 : index
    %582 = vector.load %arg1[%581, %c0_140, %c0_141] : memref<8x2x1xf32, #tpu.memory_space<vmem>>, vector<1x2x1xf32>
    %583 = vector.shape_cast %582 : vector<1x2x1xf32> to vector<2x1xf32>
    %cst_142 = arith.constant dense<0.000000e+00> : vector<2x128xf32>
    %584 = tpu.matmul %512, %1, %cst_142 {dimension_numbers = #tpu.dot_dimension_numbers<[1], [0], [0], [1], [0, 0, 1, 1], [], []>} : vector<2x32xf32>, vector<32x128xf32>, vector<2x128xf32> -> vector<2x128xf32>
    %585 = arith.addf %580, %584 : vector<2x128xf32>
    %586 = vector.extract_strided_slice %585 {offsets = [0, 0], sizes = [2, 32], strides = [1, 1]} : vector<2x128xf32> to vector<2x32xf32>
    %587 = arith.negf %586 : vector<2x32xf32>
    %588 = math.exp %587 : vector<2x32xf32>
    %cst_143 = arith.constant 1.000000e+00 : f32
    %589 = vector.broadcast %cst_143 : f32 to vector<2x32xf32>
    %590 = arith.addf %589, %588 : vector<2x32xf32>
    %591 = arith.divf %589, %590 : vector<2x32xf32>
    %592 = vector.extract_strided_slice %585 {offsets = [0, 32], sizes = [2, 32], strides = [1, 1]} : vector<2x128xf32> to vector<2x32xf32>
    %593 = arith.negf %592 : vector<2x32xf32>
    %594 = math.exp %593 : vector<2x32xf32>
    %cst_144 = arith.constant 1.000000e+00 : f32
    %595 = vector.broadcast %cst_144 : f32 to vector<2x32xf32>
    %596 = arith.addf %595, %594 : vector<2x32xf32>
    %597 = arith.divf %595, %596 : vector<2x32xf32>
    %598 = vector.extract_strided_slice %585 {offsets = [0, 64], sizes = [2, 32], strides = [1, 1]} : vector<2x128xf32> to vector<2x32xf32>
    %599 = math.tanh %598 : vector<2x32xf32>
    %600 = vector.extract_strided_slice %585 {offsets = [0, 96], sizes = [2, 32], strides = [1, 1]} : vector<2x128xf32> to vector<2x32xf32>
    %601 = arith.negf %600 : vector<2x32xf32>
    %602 = math.exp %601 : vector<2x32xf32>
    %cst_145 = arith.constant 1.000000e+00 : f32
    %603 = vector.broadcast %cst_145 : f32 to vector<2x32xf32>
    %604 = arith.addf %603, %602 : vector<2x32xf32>
    %605 = arith.divf %603, %604 : vector<2x32xf32>
    %606 = arith.mulf %597, %519 : vector<2x32xf32>
    %607 = arith.mulf %591, %599 : vector<2x32xf32>
    %608 = arith.addf %606, %607 : vector<2x32xf32>
    %609 = math.tanh %608 : vector<2x32xf32>
    %610 = arith.mulf %605, %609 : vector<2x32xf32>
    %611 = vector.broadcast %583 : vector<2x1xf32> to vector<2x32xf32>
    %612 = arith.mulf %611, %610 : vector<2x32xf32>
    %cst_146 = arith.constant 1.000000e+00 : f32
    %613 = vector.broadcast %cst_146 : f32 to vector<2x1xf32>
    %614 = arith.subf %613, %583 : vector<2x1xf32>
    %615 = vector.broadcast %614 : vector<2x1xf32> to vector<2x32xf32>
    %616 = arith.mulf %615, %512 : vector<2x32xf32>
    %617 = arith.addf %612, %616 : vector<2x32xf32>
    %618 = vector.broadcast %583 : vector<2x1xf32> to vector<2x32xf32>
    %619 = arith.mulf %618, %608 : vector<2x32xf32>
    %cst_147 = arith.constant 1.000000e+00 : f32
    %620 = vector.broadcast %cst_147 : f32 to vector<2x1xf32>
    %621 = arith.subf %620, %583 : vector<2x1xf32>
    %622 = vector.broadcast %621 : vector<2x1xf32> to vector<2x32xf32>
    %623 = arith.mulf %622, %519 : vector<2x32xf32>
    %624 = arith.addf %619, %623 : vector<2x32xf32>
    %625 = arith.index_cast %c5_i32 : i32 to index
    %c0_148 = arith.constant 0 : index
    %c0_149 = arith.constant 0 : index
    %626 = vector.load %arg4[%625, %c0_148, %c0_149] : memref<8x2x32xf32, #tpu.memory_space<vmem>>, vector<1x2x32xf32>
    %627 = vector.shape_cast %626 : vector<1x2x32xf32> to vector<2x32xf32>
    %628 = vector.shape_cast %572 : vector<2x32xf32> to vector<1x2x32xf32>
    tpu.vector_store %arg4[%625, %c0_148, %c0_149], %628 {strides = array<i32>} : memref<8x2x32xf32, #tpu.memory_space<vmem>>, vector<1x2x32xf32>,
    %629 = arith.index_cast %528 : i32 to index
    %c0_150 = arith.constant 0 : index
    %c0_151 = arith.constant 0 : index
    %630 = vector.load %arg5[%629, %c0_150, %c0_151] : memref<8x2x32xf32, #tpu.memory_space<vmem>>, vector<1x2x32xf32>
    %631 = vector.shape_cast %630 : vector<1x2x32xf32> to vector<2x32xf32>
    %632 = vector.shape_cast %617 : vector<2x32xf32> to vector<1x2x32xf32>
    tpu.vector_store %arg5[%629, %c0_150, %c0_151], %632 {strides = array<i32>} : memref<8x2x32xf32, #tpu.memory_space<vmem>>, vector<1x2x32xf32>,
    %c6_i32 = arith.constant 6 : i32
    %c7_i32_152 = arith.constant 7 : i32
    %633 = arith.subi %c7_i32_152, %c6_i32 : i32
    %634 = arith.index_cast %c6_i32 : i32 to index
    %c0_153 = arith.constant 0 : index
    %c0_154 = arith.constant 0 : index
    %635 = vector.load %arg0[%634, %c0_153, %c0_154] : memref<8x2x256xf32, #tpu.memory_space<vmem>>, vector<1x2x256xf32>
    %636 = vector.shape_cast %635 : vector<1x2x256xf32> to vector<2x256xf32>
    %637 = arith.index_cast %633 : i32 to index
    %c0_155 = arith.constant 0 : index
    %c0_156 = arith.constant 0 : index
    %638 = vector.load %arg0[%637, %c0_155, %c0_156] : memref<8x2x256xf32, #tpu.memory_space<vmem>>, vector<1x2x256xf32>
    %639 = vector.shape_cast %638 : vector<1x2x256xf32> to vector<2x256xf32>
    %640 = vector.extract_strided_slice %636 {offsets = [0, 0], sizes = [2, 128], strides = [1, 1]} : vector<2x256xf32> to vector<2x128xf32>
    %641 = arith.index_cast %c6_i32 : i32 to index
    %c0_157 = arith.constant 0 : index
    %c0_158 = arith.constant 0 : index
    %642 = vector.load %arg1[%641, %c0_157, %c0_158] : memref<8x2x1xf32, #tpu.memory_space<vmem>>, vector<1x2x1xf32>
    %643 = vector.shape_cast %642 : vector<1x2x1xf32> to vector<2x1xf32>
    %cst_159 = arith.constant dense<0.000000e+00> : vector<2x128xf32>
    %644 = tpu.matmul %572, %0, %cst_159 {dimension_numbers = #tpu.dot_dimension_numbers<[1], [0], [0], [1], [0, 0, 1, 1], [], []>} : vector<2x32xf32>, vector<32x128xf32>, vector<2x128xf32> -> vector<2x128xf32>
    %645 = arith.addf %640, %644 : vector<2x128xf32>
    %646 = vector.extract_strided_slice %645 {offsets = [0, 0], sizes = [2, 32], strides = [1, 1]} : vector<2x128xf32> to vector<2x32xf32>
    %647 = arith.negf %646 : vector<2x32xf32>
    %648 = math.exp %647 : vector<2x32xf32>
    %cst_160 = arith.constant 1.000000e+00 : f32
    %649 = vector.broadcast %cst_160 : f32 to vector<2x32xf32>
    %650 = arith.addf %649, %648 : vector<2x32xf32>
    %651 = arith.divf %649, %650 : vector<2x32xf32>
    %652 = vector.extract_strided_slice %645 {offsets = [0, 32], sizes = [2, 32], strides = [1, 1]} : vector<2x128xf32> to vector<2x32xf32>
    %653 = arith.negf %652 : vector<2x32xf32>
    %654 = math.exp %653 : vector<2x32xf32>
    %cst_161 = arith.constant 1.000000e+00 : f32
    %655 = vector.broadcast %cst_161 : f32 to vector<2x32xf32>
    %656 = arith.addf %655, %654 : vector<2x32xf32>
    %657 = arith.divf %655, %656 : vector<2x32xf32>
    %658 = vector.extract_strided_slice %645 {offsets = [0, 64], sizes = [2, 32], strides = [1, 1]} : vector<2x128xf32> to vector<2x32xf32>
    %659 = math.tanh %658 : vector<2x32xf32>
    %660 = vector.extract_strided_slice %645 {offsets = [0, 96], sizes = [2, 32], strides = [1, 1]} : vector<2x128xf32> to vector<2x32xf32>
    %661 = arith.negf %660 : vector<2x32xf32>
    %662 = math.exp %661 : vector<2x32xf32>
    %cst_162 = arith.constant 1.000000e+00 : f32
    %663 = vector.broadcast %cst_162 : f32 to vector<2x32xf32>
    %664 = arith.addf %663, %662 : vector<2x32xf32>
    %665 = arith.divf %663, %664 : vector<2x32xf32>
    %666 = arith.mulf %657, %579 : vector<2x32xf32>
    %667 = arith.mulf %651, %659 : vector<2x32xf32>
    %668 = arith.addf %666, %667 : vector<2x32xf32>
    %669 = math.tanh %668 : vector<2x32xf32>
    %670 = arith.mulf %665, %669 : vector<2x32xf32>
    %671 = vector.broadcast %643 : vector<2x1xf32> to vector<2x32xf32>
    %672 = arith.mulf %671, %670 : vector<2x32xf32>
    %cst_163 = arith.constant 1.000000e+00 : f32
    %673 = vector.broadcast %cst_163 : f32 to vector<2x1xf32>
    %674 = arith.subf %673, %643 : vector<2x1xf32>
    %675 = vector.broadcast %674 : vector<2x1xf32> to vector<2x32xf32>
    %676 = arith.mulf %675, %572 : vector<2x32xf32>
    %677 = arith.addf %672, %676 : vector<2x32xf32>
    %678 = vector.broadcast %643 : vector<2x1xf32> to vector<2x32xf32>
    %679 = arith.mulf %678, %668 : vector<2x32xf32>
    %cst_164 = arith.constant 1.000000e+00 : f32
    %680 = vector.broadcast %cst_164 : f32 to vector<2x1xf32>
    %681 = arith.subf %680, %643 : vector<2x1xf32>
    %682 = vector.broadcast %681 : vector<2x1xf32> to vector<2x32xf32>
    %683 = arith.mulf %682, %579 : vector<2x32xf32>
    %684 = arith.addf %679, %683 : vector<2x32xf32>
    %685 = vector.extract_strided_slice %639 {offsets = [0, 128], sizes = [2, 128], strides = [1, 1]} : vector<2x256xf32> to vector<2x128xf32>
    %686 = arith.index_cast %633 : i32 to index
    %c0_165 = arith.constant 0 : index
    %c0_166 = arith.constant 0 : index
    %687 = vector.load %arg1[%686, %c0_165, %c0_166] : memref<8x2x1xf32, #tpu.memory_space<vmem>>, vector<1x2x1xf32>
    %688 = vector.shape_cast %687 : vector<1x2x1xf32> to vector<2x1xf32>
    %cst_167 = arith.constant dense<0.000000e+00> : vector<2x128xf32>
    %689 = tpu.matmul %617, %1, %cst_167 {dimension_numbers = #tpu.dot_dimension_numbers<[1], [0], [0], [1], [0, 0, 1, 1], [], []>} : vector<2x32xf32>, vector<32x128xf32>, vector<2x128xf32> -> vector<2x128xf32>
    %690 = arith.addf %685, %689 : vector<2x128xf32>
    %691 = vector.extract_strided_slice %690 {offsets = [0, 0], sizes = [2, 32], strides = [1, 1]} : vector<2x128xf32> to vector<2x32xf32>
    %692 = arith.negf %691 : vector<2x32xf32>
    %693 = math.exp %692 : vector<2x32xf32>
    %cst_168 = arith.constant 1.000000e+00 : f32
    %694 = vector.broadcast %cst_168 : f32 to vector<2x32xf32>
    %695 = arith.addf %694, %693 : vector<2x32xf32>
    %696 = arith.divf %694, %695 : vector<2x32xf32>
    %697 = vector.extract_strided_slice %690 {offsets = [0, 32], sizes = [2, 32], strides = [1, 1]} : vector<2x128xf32> to vector<2x32xf32>
    %698 = arith.negf %697 : vector<2x32xf32>
    %699 = math.exp %698 : vector<2x32xf32>
    %cst_169 = arith.constant 1.000000e+00 : f32
    %700 = vector.broadcast %cst_169 : f32 to vector<2x32xf32>
    %701 = arith.addf %700, %699 : vector<2x32xf32>
    %702 = arith.divf %700, %701 : vector<2x32xf32>
    %703 = vector.extract_strided_slice %690 {offsets = [0, 64], sizes = [2, 32], strides = [1, 1]} : vector<2x128xf32> to vector<2x32xf32>
    %704 = math.tanh %703 : vector<2x32xf32>
    %705 = vector.extract_strided_slice %690 {offsets = [0, 96], sizes = [2, 32], strides = [1, 1]} : vector<2x128xf32> to vector<2x32xf32>
    %706 = arith.negf %705 : vector<2x32xf32>
    %707 = math.exp %706 : vector<2x32xf32>
    %cst_170 = arith.constant 1.000000e+00 : f32
    %708 = vector.broadcast %cst_170 : f32 to vector<2x32xf32>
    %709 = arith.addf %708, %707 : vector<2x32xf32>
    %710 = arith.divf %708, %709 : vector<2x32xf32>
    %711 = arith.mulf %702, %624 : vector<2x32xf32>
    %712 = arith.mulf %696, %704 : vector<2x32xf32>
    %713 = arith.addf %711, %712 : vector<2x32xf32>
    %714 = math.tanh %713 : vector<2x32xf32>
    %715 = arith.mulf %710, %714 : vector<2x32xf32>
    %716 = vector.broadcast %688 : vector<2x1xf32> to vector<2x32xf32>
    %717 = arith.mulf %716, %715 : vector<2x32xf32>
    %cst_171 = arith.constant 1.000000e+00 : f32
    %718 = vector.broadcast %cst_171 : f32 to vector<2x1xf32>
    %719 = arith.subf %718, %688 : vector<2x1xf32>
    %720 = vector.broadcast %719 : vector<2x1xf32> to vector<2x32xf32>
    %721 = arith.mulf %720, %617 : vector<2x32xf32>
    %722 = arith.addf %717, %721 : vector<2x32xf32>
    %723 = vector.broadcast %688 : vector<2x1xf32> to vector<2x32xf32>
    %724 = arith.mulf %723, %713 : vector<2x32xf32>
    %cst_172 = arith.constant 1.000000e+00 : f32
    %725 = vector.broadcast %cst_172 : f32 to vector<2x1xf32>
    %726 = arith.subf %725, %688 : vector<2x1xf32>
    %727 = vector.broadcast %726 : vector<2x1xf32> to vector<2x32xf32>
    %728 = arith.mulf %727, %624 : vector<2x32xf32>
    %729 = arith.addf %724, %728 : vector<2x32xf32>
    %730 = arith.index_cast %c6_i32 : i32 to index
    %c0_173 = arith.constant 0 : index
    %c0_174 = arith.constant 0 : index
    %731 = vector.load %arg4[%730, %c0_173, %c0_174] : memref<8x2x32xf32, #tpu.memory_space<vmem>>, vector<1x2x32xf32>
    %732 = vector.shape_cast %731 : vector<1x2x32xf32> to vector<2x32xf32>
    %733 = vector.shape_cast %677 : vector<2x32xf32> to vector<1x2x32xf32>
    tpu.vector_store %arg4[%730, %c0_173, %c0_174], %733 {strides = array<i32>} : memref<8x2x32xf32, #tpu.memory_space<vmem>>, vector<1x2x32xf32>,
    %734 = arith.index_cast %633 : i32 to index
    %c0_175 = arith.constant 0 : index
    %c0_176 = arith.constant 0 : index
    %735 = vector.load %arg5[%734, %c0_175, %c0_176] : memref<8x2x32xf32, #tpu.memory_space<vmem>>, vector<1x2x32xf32>
    %736 = vector.shape_cast %735 : vector<1x2x32xf32> to vector<2x32xf32>
    %737 = vector.shape_cast %722 : vector<2x32xf32> to vector<1x2x32xf32>
    tpu.vector_store %arg5[%734, %c0_175, %c0_176], %737 {strides = array<i32>} : memref<8x2x32xf32, #tpu.memory_space<vmem>>, vector<1x2x32xf32>,
    %c7_i32_177 = arith.constant 7 : i32
    %c7_i32_178 = arith.constant 7 : i32
    %738 = arith.subi %c7_i32_178, %c7_i32_177 : i32
    %739 = arith.index_cast %c7_i32_177 : i32 to index
    %c0_179 = arith.constant 0 : index
    %c0_180 = arith.constant 0 : index
    %740 = vector.load %arg0[%739, %c0_179, %c0_180] : memref<8x2x256xf32, #tpu.memory_space<vmem>>, vector<1x2x256xf32>
    %741 = vector.shape_cast %740 : vector<1x2x256xf32> to vector<2x256xf32>
    %742 = arith.index_cast %738 : i32 to index
    %c0_181 = arith.constant 0 : index
    %c0_182 = arith.constant 0 : index
    %743 = vector.load %arg0[%742, %c0_181, %c0_182] : memref<8x2x256xf32, #tpu.memory_space<vmem>>, vector<1x2x256xf32>
    %744 = vector.shape_cast %743 : vector<1x2x256xf32> to vector<2x256xf32>
    %745 = vector.extract_strided_slice %741 {offsets = [0, 0], sizes = [2, 128], strides = [1, 1]} : vector<2x256xf32> to vector<2x128xf32>
    %746 = arith.index_cast %c7_i32_177 : i32 to index
    %c0_183 = arith.constant 0 : index
    %c0_184 = arith.constant 0 : index
    %747 = vector.load %arg1[%746, %c0_183, %c0_184] : memref<8x2x1xf32, #tpu.memory_space<vmem>>, vector<1x2x1xf32>
    %748 = vector.shape_cast %747 : vector<1x2x1xf32> to vector<2x1xf32>
    %cst_185 = arith.constant dense<0.000000e+00> : vector<2x128xf32>
    %749 = tpu.matmul %677, %0, %cst_185 {dimension_numbers = #tpu.dot_dimension_numbers<[1], [0], [0], [1], [0, 0, 1, 1], [], []>} : vector<2x32xf32>, vector<32x128xf32>, vector<2x128xf32> -> vector<2x128xf32>
    %750 = arith.addf %745, %749 : vector<2x128xf32>
    %751 = vector.extract_strided_slice %750 {offsets = [0, 0], sizes = [2, 32], strides = [1, 1]} : vector<2x128xf32> to vector<2x32xf32>
    %752 = arith.negf %751 : vector<2x32xf32>
    %753 = math.exp %752 : vector<2x32xf32>
    %cst_186 = arith.constant 1.000000e+00 : f32
    %754 = vector.broadcast %cst_186 : f32 to vector<2x32xf32>
    %755 = arith.addf %754, %753 : vector<2x32xf32>
    %756 = arith.divf %754, %755 : vector<2x32xf32>
    %757 = vector.extract_strided_slice %750 {offsets = [0, 32], sizes = [2, 32], strides = [1, 1]} : vector<2x128xf32> to vector<2x32xf32>
    %758 = arith.negf %757 : vector<2x32xf32>
    %759 = math.exp %758 : vector<2x32xf32>
    %cst_187 = arith.constant 1.000000e+00 : f32
    %760 = vector.broadcast %cst_187 : f32 to vector<2x32xf32>
    %761 = arith.addf %760, %759 : vector<2x32xf32>
    %762 = arith.divf %760, %761 : vector<2x32xf32>
    %763 = vector.extract_strided_slice %750 {offsets = [0, 64], sizes = [2, 32], strides = [1, 1]} : vector<2x128xf32> to vector<2x32xf32>
    %764 = math.tanh %763 : vector<2x32xf32>
    %765 = vector.extract_strided_slice %750 {offsets = [0, 96], sizes = [2, 32], strides = [1, 1]} : vector<2x128xf32> to vector<2x32xf32>
    %766 = arith.negf %765 : vector<2x32xf32>
    %767 = math.exp %766 : vector<2x32xf32>
    %cst_188 = arith.constant 1.000000e+00 : f32
    %768 = vector.broadcast %cst_188 : f32 to vector<2x32xf32>
    %769 = arith.addf %768, %767 : vector<2x32xf32>
    %770 = arith.divf %768, %769 : vector<2x32xf32>
    %771 = arith.mulf %762, %684 : vector<2x32xf32>
    %772 = arith.mulf %756, %764 : vector<2x32xf32>
    %773 = arith.addf %771, %772 : vector<2x32xf32>
    %774 = math.tanh %773 : vector<2x32xf32>
    %775 = arith.mulf %770, %774 : vector<2x32xf32>
    %776 = vector.broadcast %748 : vector<2x1xf32> to vector<2x32xf32>
    %777 = arith.mulf %776, %775 : vector<2x32xf32>
    %cst_189 = arith.constant 1.000000e+00 : f32
    %778 = vector.broadcast %cst_189 : f32 to vector<2x1xf32>
    %779 = arith.subf %778, %748 : vector<2x1xf32>
    %780 = vector.broadcast %779 : vector<2x1xf32> to vector<2x32xf32>
    %781 = arith.mulf %780, %677 : vector<2x32xf32>
    %782 = arith.addf %777, %781 : vector<2x32xf32>
    %783 = vector.broadcast %748 : vector<2x1xf32> to vector<2x32xf32>
    %784 = arith.mulf %783, %773 : vector<2x32xf32>
    %cst_190 = arith.constant 1.000000e+00 : f32
    %785 = vector.broadcast %cst_190 : f32 to vector<2x1xf32>
    %786 = arith.subf %785, %748 : vector<2x1xf32>
    %787 = vector.broadcast %786 : vector<2x1xf32> to vector<2x32xf32>
    %788 = arith.mulf %787, %684 : vector<2x32xf32>
    %789 = arith.addf %784, %788 : vector<2x32xf32>
    %790 = vector.extract_strided_slice %744 {offsets = [0, 128], sizes = [2, 128], strides = [1, 1]} : vector<2x256xf32> to vector<2x128xf32>
    %791 = arith.index_cast %738 : i32 to index
    %c0_191 = arith.constant 0 : index
    %c0_192 = arith.constant 0 : index
    %792 = vector.load %arg1[%791, %c0_191, %c0_192] : memref<8x2x1xf32, #tpu.memory_space<vmem>>, vector<1x2x1xf32>
    %793 = vector.shape_cast %792 : vector<1x2x1xf32> to vector<2x1xf32>
    %cst_193 = arith.constant dense<0.000000e+00> : vector<2x128xf32>
    %794 = tpu.matmul %722, %1, %cst_193 {dimension_numbers = #tpu.dot_dimension_numbers<[1], [0], [0], [1], [0, 0, 1, 1], [], []>} : vector<2x32xf32>, vector<32x128xf32>, vector<2x128xf32> -> vector<2x128xf32>
    %795 = arith.addf %790, %794 : vector<2x128xf32>
    %796 = vector.extract_strided_slice %795 {offsets = [0, 0], sizes = [2, 32], strides = [1, 1]} : vector<2x128xf32> to vector<2x32xf32>
    %797 = arith.negf %796 : vector<2x32xf32>
    %798 = math.exp %797 : vector<2x32xf32>
    %cst_194 = arith.constant 1.000000e+00 : f32
    %799 = vector.broadcast %cst_194 : f32 to vector<2x32xf32>
    %800 = arith.addf %799, %798 : vector<2x32xf32>
    %801 = arith.divf %799, %800 : vector<2x32xf32>
    %802 = vector.extract_strided_slice %795 {offsets = [0, 32], sizes = [2, 32], strides = [1, 1]} : vector<2x128xf32> to vector<2x32xf32>
    %803 = arith.negf %802 : vector<2x32xf32>
    %804 = math.exp %803 : vector<2x32xf32>
    %cst_195 = arith.constant 1.000000e+00 : f32
    %805 = vector.broadcast %cst_195 : f32 to vector<2x32xf32>
    %806 = arith.addf %805, %804 : vector<2x32xf32>
    %807 = arith.divf %805, %806 : vector<2x32xf32>
    %808 = vector.extract_strided_slice %795 {offsets = [0, 64], sizes = [2, 32], strides = [1, 1]} : vector<2x128xf32> to vector<2x32xf32>
    %809 = math.tanh %808 : vector<2x32xf32>
    %810 = vector.extract_strided_slice %795 {offsets = [0, 96], sizes = [2, 32], strides = [1, 1]} : vector<2x128xf32> to vector<2x32xf32>
    %811 = arith.negf %810 : vector<2x32xf32>
    %812 = math.exp %811 : vector<2x32xf32>
    %cst_196 = arith.constant 1.000000e+00 : f32
    %813 = vector.broadcast %cst_196 : f32 to vector<2x32xf32>
    %814 = arith.addf %813, %812 : vector<2x32xf32>
    %815 = arith.divf %813, %814 : vector<2x32xf32>
    %816 = arith.mulf %807, %729 : vector<2x32xf32>
    %817 = arith.mulf %801, %809 : vector<2x32xf32>
    %818 = arith.addf %816, %817 : vector<2x32xf32>
    %819 = math.tanh %818 : vector<2x32xf32>
    %820 = arith.mulf %815, %819 : vector<2x32xf32>
    %821 = vector.broadcast %793 : vector<2x1xf32> to vector<2x32xf32>
    %822 = arith.mulf %821, %820 : vector<2x32xf32>
    %cst_197 = arith.constant 1.000000e+00 : f32
    %823 = vector.broadcast %cst_197 : f32 to vector<2x1xf32>
    %824 = arith.subf %823, %793 : vector<2x1xf32>
    %825 = vector.broadcast %824 : vector<2x1xf32> to vector<2x32xf32>
    %826 = arith.mulf %825, %722 : vector<2x32xf32>
    %827 = arith.addf %822, %826 : vector<2x32xf32>
    %828 = vector.broadcast %793 : vector<2x1xf32> to vector<2x32xf32>
    %829 = arith.mulf %828, %818 : vector<2x32xf32>
    %cst_198 = arith.constant 1.000000e+00 : f32
    %830 = vector.broadcast %cst_198 : f32 to vector<2x1xf32>
    %831 = arith.subf %830, %793 : vector<2x1xf32>
    %832 = vector.broadcast %831 : vector<2x1xf32> to vector<2x32xf32>
    %833 = arith.mulf %832, %729 : vector<2x32xf32>
    %834 = arith.addf %829, %833 : vector<2x32xf32>
    %835 = arith.index_cast %c7_i32_177 : i32 to index
    %c0_199 = arith.constant 0 : index
    %c0_200 = arith.constant 0 : index
    %836 = vector.load %arg4[%835, %c0_199, %c0_200] : memref<8x2x32xf32, #tpu.memory_space<vmem>>, vector<1x2x32xf32>
    %837 = vector.shape_cast %836 : vector<1x2x32xf32> to vector<2x32xf32>
    %838 = vector.shape_cast %782 : vector<2x32xf32> to vector<1x2x32xf32>
    tpu.vector_store %arg4[%835, %c0_199, %c0_200], %838 {strides = array<i32>} : memref<8x2x32xf32, #tpu.memory_space<vmem>>, vector<1x2x32xf32>,
    %839 = arith.index_cast %738 : i32 to index
    %c0_201 = arith.constant 0 : index
    %c0_202 = arith.constant 0 : index
    %840 = vector.load %arg5[%839, %c0_201, %c0_202] : memref<8x2x32xf32, #tpu.memory_space<vmem>>, vector<1x2x32xf32>
    %841 = vector.shape_cast %840 : vector<1x2x32xf32> to vector<2x32xf32>
    %842 = vector.shape_cast %827 : vector<2x32xf32> to vector<1x2x32xf32>
    tpu.vector_store %arg5[%839, %c0_201, %c0_202], %842 {strides = array<i32>} : memref<8x2x32xf32, #tpu.memory_space<vmem>>, vector<1x2x32xf32>,
    %c8_i32 = arith.constant 8 : i32
    return
  }
}

module attributes {stable_mosaic.version = 11 : i64} {
  func.func @dense_kernel(%arg0: memref<16x64xf32, #tpu.memory_space<vmem>>, %arg1: memref<64x72xf32, #tpu.memory_space<vmem>>, %arg2: memref<1x72xf32, #tpu.memory_space<vmem>>, %arg3: memref<16x72xf32, #tpu.memory_space<vmem>>) attributes {dimension_semantics = [], scalar_prefetch = 0 : i64, scratch_operands = 0 : i64, tpu.core_type = #tpu.core_type<tc>} {
    %c0 = arith.constant 0 : index
    %c0_0 = arith.constant 0 : index
    %0 = vector.load %arg0[%c0, %c0_0] : memref<16x64xf32, #tpu.memory_space<vmem>>, vector<16x64xf32>
    %c0_1 = arith.constant 0 : index
    %c0_2 = arith.constant 0 : index
    %1 = vector.load %arg1[%c0_1, %c0_2] : memref<64x72xf32, #tpu.memory_space<vmem>>, vector<64x72xf32>
    %cst = arith.constant dense<0.000000e+00> : vector<16x72xf32>
    %2 = tpu.matmul %0, %1, %cst {dimension_numbers = #tpu.dot_dimension_numbers<[1], [0], [0], [1], [0, 0, 1, 1], [], []>} : vector<16x64xf32>, vector<64x72xf32>, vector<16x72xf32> -> vector<16x72xf32>
    %c0_3 = arith.constant 0 : index
    %c0_4 = arith.constant 0 : index
    %3 = vector.load %arg2[%c0_3, %c0_4] : memref<1x72xf32, #tpu.memory_space<vmem>>, vector<1x72xf32>
    %4 = vector.broadcast %3 : vector<1x72xf32> to vector<16x72xf32>
    %5 = arith.addf %2, %4 : vector<16x72xf32>
    %c0_5 = arith.constant 0 : index
    %c0_6 = arith.constant 0 : index
    %6 = vector.load %arg3[%c0_5, %c0_6] : memref<16x72xf32, #tpu.memory_space<vmem>>, vector<16x72xf32>
    tpu.vector_store %arg3[%c0_5, %c0_6], %5 {strides = array<i32>} : memref<16x72xf32, #tpu.memory_space<vmem>>, vector<16x72xf32>,
    return
  }
}

module attributes {stable_mosaic.version = 11 : i64} {
  func.func @crf_kernel(%arg0: memref<8x4x6x6xf32, #tpu.memory_space<vmem>>, %arg1: memref<8x4x6xf32, #tpu.memory_space<vmem>>, %arg2: memref<8x4x1xf32, #tpu.memory_space<vmem>>, %arg3: memref<4x1xf32, #tpu.memory_space<vmem>>) attributes {dimension_semantics = [], scalar_prefetch = 0 : i64, scratch_operands = 0 : i64, tpu.core_type = #tpu.core_type<tc>} {
    %c0 = arith.constant 0 : index
    %c0_0 = arith.constant 0 : index
    %c0_1 = arith.constant 0 : index
    %c0_2 = arith.constant 0 : index
    %0 = vector.load %arg0[%c0, %c0_0, %c0_1, %c0_2] : memref<8x4x6x6xf32, #tpu.memory_space<vmem>>, vector<1x4x6x6xf32>
    %1 = vector.shape_cast %0 : vector<1x4x6x6xf32> to vector<4x6x6xf32>
    %c0_3 = arith.constant 0 : index
    %c0_4 = arith.constant 0 : index
    %c0_5 = arith.constant 0 : index
    %2 = vector.load %arg1[%c0_3, %c0_4, %c0_5] : memref<8x4x6xf32, #tpu.memory_space<vmem>>, vector<1x4x6xf32>
    %3 = vector.shape_cast %2 : vector<1x4x6xf32> to vector<4x6xf32>
    %c0_6 = arith.constant 0 : index
    %c0_7 = arith.constant 0 : index
    %c0_8 = arith.constant 0 : index
    %4 = vector.load %arg2[%c0_6, %c0_7, %c0_8] : memref<8x4x1xf32, #tpu.memory_space<vmem>>, vector<1x4x1xf32>
    %5 = vector.shape_cast %4 : vector<1x4x1xf32> to vector<4x1xf32>
    %6 = vector.extract_strided_slice %1 {offsets = [0, 5, 0], sizes = [4, 1, 6], strides = [1, 1, 1]} : vector<4x6x6xf32> to vector<4x1x6xf32>
    %7 = vector.shape_cast %6 : vector<4x1x6xf32> to vector<4x6xf32>
    %8 = arith.mulf %7, %3 : vector<4x6xf32>
    %cst = arith.constant dense<0.000000e+00> : vector<4xf32>
    %9 = vector.multi_reduction <add>, %8, %cst [1] : vector<4x6xf32> to vector<4xf32>
    %10 = vector.shape_cast %9 : vector<4xf32> to vector<4x1xf32>
    %11 = arith.mulf %10, %5 : vector<4x1xf32>
    %c1_i32 = arith.constant 1 : i32
    %12 = arith.index_cast %c1_i32 : i32 to index
    %c0_9 = arith.constant 0 : index
    %c0_10 = arith.constant 0 : index
    %c0_11 = arith.constant 0 : index
    %13 = vector.load %arg0[%12, %c0_9, %c0_10, %c0_11] : memref<8x4x6x6xf32, #tpu.memory_space<vmem>>, vector<1x4x6x6xf32>
    %14 = vector.shape_cast %13 : vector<1x4x6x6xf32> to vector<4x6x6xf32>
    %15 = arith.index_cast %c1_i32 : i32 to index
    %c0_12 = arith.constant 0 : index
    %c0_13 = arith.constant 0 : index
    %16 = vector.load %arg1[%15, %c0_12, %c0_13] : memref<8x4x6xf32, #tpu.memory_space<vmem>>, vector<1x4x6xf32>
    %17 = vector.shape_cast %16 : vector<1x4x6xf32> to vector<4x6xf32>
    %18 = arith.index_cast %c1_i32 : i32 to index
    %c0_14 = arith.constant 0 : index
    %c0_15 = arith.constant 0 : index
    %19 = vector.load %arg2[%18, %c0_14, %c0_15] : memref<8x4x1xf32, #tpu.memory_space<vmem>>, vector<1x4x1xf32>
    %20 = vector.shape_cast %19 : vector<1x4x1xf32> to vector<4x1xf32>
    %21 = vector.shape_cast %7 : vector<4x6xf32> to vector<4x6x1xf32>
    %22 = vector.broadcast %21 : vector<4x6x1xf32> to vector<4x6x6xf32>
    %23 = arith.addf %22, %14 : vector<4x6x6xf32>
    %cst_16 = arith.constant dense<0xFF800000> : vector<4x6xf32>
    %24 = vector.multi_reduction <maximumf>, %23, %cst_16 [1] : vector<4x6x6xf32> to vector<4x6xf32>
    %25 = vector.shape_cast %24 : vector<4x6xf32> to vector<4x1x6xf32>
    %26 = vector.broadcast %25 : vector<4x1x6xf32> to vector<4x6x6xf32>
    %27 = arith.subf %23, %26 : vector<4x6x6xf32>
    %28 = math.exp %27 : vector<4x6x6xf32>
    %cst_17 = arith.constant dense<0.000000e+00> : vector<4x6xf32>
    %29 = vector.multi_reduction <add>, %28, %cst_17 [1] : vector<4x6x6xf32> to vector<4x6xf32>
    %30 = vector.shape_cast %29 : vector<4x6xf32> to vector<4x1x6xf32>
    %31 = math.log %30 : vector<4x1x6xf32>
    %32 = arith.addf %31, %25 : vector<4x1x6xf32>
    %33 = vector.shape_cast %32 : vector<4x1x6xf32> to vector<4x6xf32>
    %34 = vector.broadcast %20 : vector<4x1xf32> to vector<4x6xf32>
    %35 = arith.mulf %34, %33 : vector<4x6xf32>
    %cst_18 = arith.constant 1.000000e+00 : f32
    %36 = vector.broadcast %cst_18 : f32 to vector<4x1xf32>
    %37 = arith.subf %36, %20 : vector<4x1xf32>
    %38 = vector.broadcast %37 : vector<4x1xf32> to vector<4x6xf32>
    %39 = arith.mulf %38, %7 : vector<4x6xf32>
    %40 = arith.addf %35, %39 : vector<4x6xf32>
    %41 = vector.shape_cast %3 : vector<4x6xf32> to vector<4x6x1xf32>
    %42 = vector.broadcast %41 : vector<4x6x1xf32> to vector<4x6x6xf32>
    %43 = arith.mulf %42, %14 : vector<4x6x6xf32>
    %44 = vector.shape_cast %17 : vector<4x6xf32> to vector<4x1x6xf32>
    %45 = vector.broadcast %44 : vector<4x1x6xf32> to vector<4x6x6xf32>
    %46 = arith.mulf %43, %45 : vector<4x6x6xf32>
    %cst_19 = arith.constant dense<0.000000e+00> : vector<4x6xf32>
    %47 = vector.multi_reduction <add>, %46, %cst_19 [2] : vector<4x6x6xf32> to vector<4x6xf32>
    %cst_20 = arith.constant dense<0.000000e+00> : vector<4xf32>
    %48 = vector.multi_reduction <add>, %47, %cst_20 [1] : vector<4x6xf32> to vector<4xf32>
    %49 = vector.shape_cast %48 : vector<4xf32> to vector<4x1xf32>
    %50 = arith.mulf %20, %49 : vector<4x1xf32>
    %51 = arith.addf %11, %50 : vector<4x1xf32>
    %52 = vector.broadcast %20 : vector<4x1xf32> to vector<4x6xf32>
    %53 = arith.mulf %52, %17 : vector<4x6xf32>
    %cst_21 = arith.constant 1.000000e+00 : f32
    %54 = vector.broadcast %cst_21 : f32 to vector<4x1xf32>
    %55 = arith.subf %54, %20 : vector<4x1xf32>
    %56 = vector.broadcast %55 : vector<4x1xf32> to vector<4x6xf32>
    %57 = arith.mulf %56, %3 : vector<4x6xf32>
    %58 = arith.addf %53, %57 : vector<4x6xf32>
    %c2_i32 = arith.constant 2 : i32
    %59 = arith.index_cast %c2_i32 : i32 to index
    %c0_22 = arith.constant 0 : index
    %c0_23 = arith.constant 0 : index
    %c0_24 = arith.constant 0 : index
    %60 = vector.load %arg0[%59, %c0_22, %c0_23, %c0_24] : memref<8x4x6x6xf32, #tpu.memory_space<vmem>>, vector<1x4x6x6xf32>
    %61 = vector.shape_cast %60 : vector<1x4x6x6xf32> to vector<4x6x6xf32>
    %62 = arith.index_cast %c2_i32 : i32 to index
    %c0_25 = arith.constant 0 : index
    %c0_26 = arith.constant 0 : index
    %63 = vector.load %arg1[%62, %c0_25, %c0_26] : memref<8x4x6xf32, #tpu.memory_space<vmem>>, vector<1x4x6xf32>
    %64 = vector.shape_cast %63 : vector<1x4x6xf32> to vector<4x6xf32>
    %65 = arith.index_cast %c2_i32 : i32 to index
    %c0_27 = arith.constant 0 : index
    %c0_28 = arith.constant 0 : index
    %66 = vector.load %arg2[%65, %c0_27, %c0_28] : memref<8x4x1xf32, #tpu.memory_space<vmem>>, vector<1x4x1xf32>
    %67 = vector.shape_cast %66 : vector<1x4x1xf32> to vector<4x1xf32>
    %68 = vector.shape_cast %40 : vector<4x6xf32> to vector<4x6x1xf32>
    %69 = vector.broadcast %68 : vector<4x6x1xf32> to vector<4x6x6xf32>
    %70 = arith.addf %69, %61 : vector<4x6x6xf32>
    %cst_29 = arith.constant dense<0xFF800000> : vector<4x6xf32>
    %71 = vector.multi_reduction <maximumf>, %70, %cst_29 [1] : vector<4x6x6xf32> to vector<4x6xf32>
    %72 = vector.shape_cast %71 : vector<4x6xf32> to vector<4x1x6xf32>
    %73 = vector.broadcast %72 : vector<4x1x6xf32> to vector<4x6x6xf32>
    %74 = arith.subf %70, %73 : vector<4x6x6xf32>
    %75 = math.exp %74 : vector<4x6x6xf32>
    %cst_30 = arith.constant dense<0.000000e+00> : vector<4x6xf32>
    %76 = vector.multi_reduction <add>, %75, %cst_30 [1] : vector<4x6x6xf32> to vector<4x6xf32>
    %77 = vector.shape_cast %76 : vector<4x6xf32> to vector<4x1x6xf32>
    %78 = math.log %77 : vector<4x1x6xf32>
    %79 = arith.addf %78, %72 : vector<4x1x6xf32>
    %80 = vector.shape_cast %79 : vector<4x1x6xf32> to vector<4x6xf32>
    %81 = vector.broadcast %67 : vector<4x1xf32> to vector<4x6xf32>
    %82 = arith.mulf %81, %80 : vector<4x6xf32>
    %cst_31 = arith.constant 1.000000e+00 : f32
    %83 = vector.broadcast %cst_31 : f32 to vector<4x1xf32>
    %84 = arith.subf %83, %67 : vector<4x1xf32>
    %85 = vector.broadcast %84 : vector<4x1xf32> to vector<4x6xf32>
    %86 = arith.mulf %85, %40 : vector<4x6xf32>
    %87 = arith.addf %82, %86 : vector<4x6xf32>
    %88 = vector.shape_cast %58 : vector<4x6xf32> to vector<4x6x1xf32>
    %89 = vector.broadcast %88 : vector<4x6x1xf32> to vector<4x6x6xf32>
    %90 = arith.mulf %89, %61 : vector<4x6x6xf32>
    %91 = vector.shape_cast %64 : vector<4x6xf32> to vector<4x1x6xf32>
    %92 = vector.broadcast %91 : vector<4x1x6xf32> to vector<4x6x6xf32>
    %93 = arith.mulf %90, %92 : vector<4x6x6xf32>
    %cst_32 = arith.constant dense<0.000000e+00> : vector<4x6xf32>
    %94 = vector.multi_reduction <add>, %93, %cst_32 [2] : vector<4x6x6xf32> to vector<4x6xf32>
    %cst_33 = arith.constant dense<0.000000e+00> : vector<4xf32>
    %95 = vector.multi_reduction <add>, %94, %cst_33 [1] : vector<4x6xf32> to vector<4xf32>
    %96 = vector.shape_cast %95 : vector<4xf32> to vector<4x1xf32>
    %97 = arith.mulf %67, %96 : vector<4x1xf32>
    %98 = arith.addf %51, %97 : vector<4x1xf32>
    %99 = vector.broadcast %67 : vector<4x1xf32> to vector<4x6xf32>
    %100 = arith.mulf %99, %64 : vector<4x6xf32>
    %cst_34 = arith.constant 1.000000e+00 : f32
    %101 = vector.broadcast %cst_34 : f32 to vector<4x1xf32>
    %102 = arith.subf %101, %67 : vector<4x1xf32>
    %103 = vector.broadcast %102 : vector<4x1xf32> to vector<4x6xf32>
    %104 = arith.mulf %103, %58 : vector<4x6xf32>
    %105 = arith.addf %100, %104 : vector<4x6xf32>
    %c3_i32 = arith.constant 3 : i32
    %106 = arith.index_cast %c3_i32 : i32 to index
    %c0_35 = arith.constant 0 : index
    %c0_36 = arith.constant 0 : index
    %c0_37 = arith.constant 0 : index
    %107 = vector.load %arg0[%106, %c0_35, %c0_36, %c0_37] : memref<8x4x6x6xf32, #tpu.memory_space<vmem>>, vector<1x4x6x6xf32>
    %108 = vector.shape_cast %107 : vector<1x4x6x6xf32> to vector<4x6x6xf32>
    %109 = arith.index_cast %c3_i32 : i32 to index
    %c0_38 = arith.constant 0 : index
    %c0_39 = arith.constant 0 : index
    %110 = vector.load %arg1[%109, %c0_38, %c0_39] : memref<8x4x6xf32, #tpu.memory_space<vmem>>, vector<1x4x6xf32>
    %111 = vector.shape_cast %110 : vector<1x4x6xf32> to vector<4x6xf32>
    %112 = arith.index_cast %c3_i32 : i32 to index
    %c0_40 = arith.constant 0 : index
    %c0_41 = arith.constant 0 : index
    %113 = vector.load %arg2[%112, %c0_40, %c0_41] : memref<8x4x1xf32, #tpu.memory_space<vmem>>, vector<1x4x1xf32>
    %114 = vector.shape_cast %113 : vector<1x4x1xf32> to vector<4x1xf32>
    %115 = vector.shape_cast %87 : vector<4x6xf32> to vector<4x6x1xf32>
    %116 = vector.broadcast %115 : vector<4x6x1xf32> to vector<4x6x6xf32>
    %117 = arith.addf %116, %108 : vector<4x6x6xf32>
    %cst_42 = arith.constant dense<0xFF800000> : vector<4x6xf32>
    %118 = vector.multi_reduction <maximumf>, %117, %cst_42 [1] : vector<4x6x6xf32> to vector<4x6xf32>
    %119 = vector.shape_cast %118 : vector<4x6xf32> to vector<4x1x6xf32>
    %120 = vector.broadcast %119 : vector<4x1x6xf32> to vector<4x6x6xf32>
    %121 = arith.subf %117, %120 : vector<4x6x6xf32>
    %122 = math.exp %121 : vector<4x6x6xf32>
    %cst_43 = arith.constant dense<0.000000e+00> : vector<4x6xf32>
    %123 = vector.multi_reduction <add>, %122, %cst_43 [1] : vector<4x6x6xf32> to vector<4x6xf32>
    %124 = vector.shape_cast %123 : vector<4x6xf32> to vector<4x1x6xf32>
    %125 = math.log %124 : vector<4x1x6xf32>
    %126 = arith.addf %125, %119 : vector<4x1x6xf32>
    %127 = vector.shape_cast %126 : vector<4x1x6xf32> to vector<4x6xf32>
    %128 = vector.broadcast %114 : vector<4x1xf32> to vector<4x6xf32>
    %129 = arith.mulf %128, %127 : vector<4x6xf32>
    %cst_44 = arith.constant 1.000000e+00 : f32
    %130 = vector.broadcast %cst_44 : f32 to vector<4x1xf32>
    %131 = arith.subf %130, %114 : vector<4x1xf32>
    %132 = vector.broadcast %131 : vector<4x1xf32> to vector<4x6xf32>
    %133 = arith.mulf %132, %87 : vector<4x6xf32>
    %134 = arith.addf %129, %133 : vector<4x6xf32>
    %135 = vector.shape_cast %105 : vector<4x6xf32> to vector<4x6x1xf32>
    %136 = vector.broadcast %135 : vector<4x6x1xf32> to vector<4x6x6xf32>
    %137 = arith.mulf %136, %108 : vector<4x6x6xf32>
    %138 = vector.shape_cast %111 : vector<4x6xf32> to vector<4x1x6xf32>
    %139 = vector.broadcast %138 : vector<4x1x6xf32> to vector<4x6x6xf32>
    %140 = arith.mulf %137, %139 : vector<4x6x6xf32>
    %cst_45 = arith.constant dense<0.000000e+00> : vector<4x6xf32>
    %141 = vector.multi_reduction <add>, %140, %cst_45 [2] : vector<4x6x6xf32> to vector<4x6xf32>
    %cst_46 = arith.constant dense<0.000000e+00> : vector<4xf32>
    %142 = vector.multi_reduction <add>, %141, %cst_46 [1] : vector<4x6xf32> to vector<4xf32>
    %143 = vector.shape_cast %142 : vector<4xf32> to vector<4x1xf32>
    %144 = arith.mulf %114, %143 : vector<4x1xf32>
    %145 = arith.addf %98, %144 : vector<4x1xf32>
    %146 = vector.broadcast %114 : vector<4x1xf32> to vector<4x6xf32>
    %147 = arith.mulf %146, %111 : vector<4x6xf32>
    %cst_47 = arith.constant 1.000000e+00 : f32
    %148 = vector.broadcast %cst_47 : f32 to vector<4x1xf32>
    %149 = arith.subf %148, %114 : vector<4x1xf32>
    %150 = vector.broadcast %149 : vector<4x1xf32> to vector<4x6xf32>
    %151 = arith.mulf %150, %105 : vector<4x6xf32>
    %152 = arith.addf %147, %151 : vector<4x6xf32>
    %c4_i32 = arith.constant 4 : i32
    %153 = arith.index_cast %c4_i32 : i32 to index
    %c0_48 = arith.constant 0 : index
    %c0_49 = arith.constant 0 : index
    %c0_50 = arith.constant 0 : index
    %154 = vector.load %arg0[%153, %c0_48, %c0_49, %c0_50] : memref<8x4x6x6xf32, #tpu.memory_space<vmem>>, vector<1x4x6x6xf32>
    %155 = vector.shape_cast %154 : vector<1x4x6x6xf32> to vector<4x6x6xf32>
    %156 = arith.index_cast %c4_i32 : i32 to index
    %c0_51 = arith.constant 0 : index
    %c0_52 = arith.constant 0 : index
    %157 = vector.load %arg1[%156, %c0_51, %c0_52] : memref<8x4x6xf32, #tpu.memory_space<vmem>>, vector<1x4x6xf32>
    %158 = vector.shape_cast %157 : vector<1x4x6xf32> to vector<4x6xf32>
    %159 = arith.index_cast %c4_i32 : i32 to index
    %c0_53 = arith.constant 0 : index
    %c0_54 = arith.constant 0 : index
    %160 = vector.load %arg2[%159, %c0_53, %c0_54] : memref<8x4x1xf32, #tpu.memory_space<vmem>>, vector<1x4x1xf32>
    %161 = vector.shape_cast %160 : vector<1x4x1xf32> to vector<4x1xf32>
    %162 = vector.shape_cast %134 : vector<4x6xf32> to vector<4x6x1xf32>
    %163 = vector.broadcast %162 : vector<4x6x1xf32> to vector<4x6x6xf32>
    %164 = arith.addf %163, %155 : vector<4x6x6xf32>
    %cst_55 = arith.constant dense<0xFF800000> : vector<4x6xf32>
    %165 = vector.multi_reduction <maximumf>, %164, %cst_55 [1] : vector<4x6x6xf32> to vector<4x6xf32>
    %166 = vector.shape_cast %165 : vector<4x6xf32> to vector<4x1x6xf32>
    %167 = vector.broadcast %166 : vector<4x1x6xf32> to vector<4x6x6xf32>
    %168 = arith.subf %164, %167 : vector<4x6x6xf32>
    %169 = math.exp %168 : vector<4x6x6xf32>
    %cst_56 = arith.constant dense<0.000000e+00> : vector<4x6xf32>
    %170 = vector.multi_reduction <add>, %169, %cst_56 [1] : vector<4x6x6xf32> to vector<4x6xf32>
    %171 = vector.shape_cast %170 : vector<4x6xf32> to vector<4x1x6xf32>
    %172 = math.log %171 : vector<4x1x6xf32>
    %173 = arith.addf %172, %166 : vector<4x1x6xf32>
    %174 = vector.shape_cast %173 : vector<4x1x6xf32> to vector<4x6xf32>
    %175 = vector.broadcast %161 : vector<4x1xf32> to vector<4x6xf32>
    %176 = arith.mulf %175, %174 : vector<4x6xf32>
    %cst_57 = arith.constant 1.000000e+00 : f32
    %177 = vector.broadcast %cst_57 : f32 to vector<4x1xf32>
    %178 = arith.subf %177, %161 : vector<4x1xf32>
    %179 = vector.broadcast %178 : vector<4x1xf32> to vector<4x6xf32>
    %180 = arith.mulf %179, %134 : vector<4x6xf32>
    %181 = arith.addf %176, %180 : vector<4x6xf32>
    %182 = vector.shape_cast %152 : vector<4x6xf32> to vector<4x6x1xf32>
    %183 = vector.broadcast %182 : vector<4x6x1xf32> to vector<4x6x6xf32>
    %184 = arith.mulf %183, %155 : vector<4x6x6xf32>
    %185 = vector.shape_cast %158 : vector<4x6xf32> to vector<4x1x6xf32>
    %186 = vector.broadcast %185 : vector<4x1x6xf32> to vector<4x6x6xf32>
    %187 = arith.mulf %184, %186 : vector<4x6x6xf32>
    %cst_58 = arith.constant dense<0.000000e+00> : vector<4x6xf32>
    %188 = vector.multi_reduction <add>, %187, %cst_58 [2] : vector<4x6x6xf32> to vector<4x6xf32>
    %cst_59 = arith.constant dense<0.000000e+00> : vector<4xf32>
    %189 = vector.multi_reduction <add>, %188, %cst_59 [1] : vector<4x6xf32> to vector<4xf32>
    %190 = vector.shape_cast %189 : vector<4xf32> to vector<4x1xf32>
    %191 = arith.mulf %161, %190 : vector<4x1xf32>
    %192 = arith.addf %145, %191 : vector<4x1xf32>
    %193 = vector.broadcast %161 : vector<4x1xf32> to vector<4x6xf32>
    %194 = arith.mulf %193, %158 : vector<4x6xf32>
    %cst_60 = arith.constant 1.000000e+00 : f32
    %195 = vector.broadcast %cst_60 : f32 to vector<4x1xf32>
    %196 = arith.subf %195, %161 : vector<4x1xf32>
    %197 = vector.broadcast %196 : vector<4x1xf32> to vector<4x6xf32>
    %198 = arith.mulf %197, %152 : vector<4x6xf32>
    %199 = arith.addf %194, %198 : vector<4x6xf32>
    %c5_i32 = arith.constant 5 : i32
    %200 = arith.index_cast %c5_i32 : i32 to index
    %c0_61 = arith.constant 0 : index
    %c0_62 = arith.constant 0 : index
    %c0_63 = arith.constant 0 : index
    %201 = vector.load %arg0[%200, %c0_61, %c0_62, %c0_63] : memref<8x4x6x6xf32, #tpu.memory_space<vmem>>, vector<1x4x6x6xf32>
    %202 = vector.shape_cast %201 : vector<1x4x6x6xf32> to vector<4x6x6xf32>
    %203 = arith.index_cast %c5_i32 : i32 to index
    %c0_64 = arith.constant 0 : index
    %c0_65 = arith.constant 0 : index
    %204 = vector.load %arg1[%203, %c0_64, %c0_65] : memref<8x4x6xf32, #tpu.memory_space<vmem>>, vector<1x4x6xf32>
    %205 = vector.shape_cast %204 : vector<1x4x6xf32> to vector<4x6xf32>
    %206 = arith.index_cast %c5_i32 : i32 to index
    %c0_66 = arith.constant 0 : index
    %c0_67 = arith.constant 0 : index
    %207 = vector.load %arg2[%206, %c0_66, %c0_67] : memref<8x4x1xf32, #tpu.memory_space<vmem>>, vector<1x4x1xf32>
    %208 = vector.shape_cast %207 : vector<1x4x1xf32> to vector<4x1xf32>
    %209 = vector.shape_cast %181 : vector<4x6xf32> to vector<4x6x1xf32>
    %210 = vector.broadcast %209 : vector<4x6x1xf32> to vector<4x6x6xf32>
    %211 = arith.addf %210, %202 : vector<4x6x6xf32>
    %cst_68 = arith.constant dense<0xFF800000> : vector<4x6xf32>
    %212 = vector.multi_reduction <maximumf>, %211, %cst_68 [1] : vector<4x6x6xf32> to vector<4x6xf32>
    %213 = vector.shape_cast %212 : vector<4x6xf32> to vector<4x1x6xf32>
    %214 = vector.broadcast %213 : vector<4x1x6xf32> to vector<4x6x6xf32>
    %215 = arith.subf %211, %214 : vector<4x6x6xf32>
    %216 = math.exp %215 : vector<4x6x6xf32>
    %cst_69 = arith.constant dense<0.000000e+00> : vector<4x6xf32>
    %217 = vector.multi_reduction <add>, %216, %cst_69 [1] : vector<4x6x6xf32> to vector<4x6xf32>
    %218 = vector.shape_cast %217 : vector<4x6xf32> to vector<4x1x6xf32>
    %219 = math.log %218 : vector<4x1x6xf32>
    %220 = arith.addf %219, %213 : vector<4x1x6xf32>
    %221 = vector.shape_cast %220 : vector<4x1x6xf32> to vector<4x6xf32>
    %222 = vector.broadcast %208 : vector<4x1xf32> to vector<4x6xf32>
    %223 = arith.mulf %222, %221 : vector<4x6xf32>
    %cst_70 = arith.constant 1.000000e+00 : f32
    %224 = vector.broadcast %cst_70 : f32 to vector<4x1xf32>
    %225 = arith.subf %224, %208 : vector<4x1xf32>
    %226 = vector.broadcast %225 : vector<4x1xf32> to vector<4x6xf32>
    %227 = arith.mulf %226, %181 : vector<4x6xf32>
    %228 = arith.addf %223, %227 : vector<4x6xf32>
    %229 = vector.shape_cast %199 : vector<4x6xf32> to vector<4x6x1xf32>
    %230 = vector.broadcast %229 : vector<4x6x1xf32> to vector<4x6x6xf32>
    %231 = arith.mulf %230, %202 : vector<4x6x6xf32>
    %232 = vector.shape_cast %205 : vector<4x6xf32> to vector<4x1x6xf32>
    %233 = vector.broadcast %232 : vector<4x1x6xf32> to vector<4x6x6xf32>
    %234 = arith.mulf %231, %233 : vector<4x6x6xf32>
    %cst_71 = arith.constant dense<0.000000e+00> : vector<4x6xf32>
    %235 = vector.multi_reduction <add>, %234, %cst_71 [2] : vector<4x6x6xf32> to vector<4x6xf32>
    %cst_72 = arith.constant dense<0.000000e+00> : vector<4xf32>
    %236 = vector.multi_reduction <add>, %235, %cst_72 [1] : vector<4x6xf32> to vector<4xf32>
    %237 = vector.shape_cast %236 : vector<4xf32> to vector<4x1xf32>
    %238 = arith.mulf %208, %237 : vector<4x1xf32>
    %239 = arith.addf %192, %238 : vector<4x1xf32>
    %240 = vector.broadcast %208 : vector<4x1xf32> to vector<4x6xf32>
    %241 = arith.mulf %240, %205 : vector<4x6xf32>
    %cst_73 = arith.constant 1.000000e+00 : f32
    %242 = vector.broadcast %cst_73 : f32 to vector<4x1xf32>
    %243 = arith.subf %242, %208 : vector<4x1xf32>
    %244 = vector.broadcast %243 : vector<4x1xf32> to vector<4x6xf32>
    %245 = arith.mulf %244, %199 : vector<4x6xf32>
    %246 = arith.addf %241, %245 : vector<4x6xf32>
    %c6_i32 = arith.constant 6 : i32
    %247 = arith.index_cast %c6_i32 : i32 to index
    %c0_74 = arith.constant 0 : index
    %c0_75 = arith.constant 0 : index
    %c0_76 = arith.constant 0 : index
    %248 = vector.load %arg0[%247, %c0_74, %c0_75, %c0_76] : memref<8x4x6x6xf32, #tpu.memory_space<vmem>>, vector<1x4x6x6xf32>
    %249 = vector.shape_cast %248 : vector<1x4x6x6xf32> to vector<4x6x6xf32>
    %250 = arith.index_cast %c6_i32 : i32 to index
    %c0_77 = arith.constant 0 : index
    %c0_78 = arith.constant 0 : index
    %251 = vector.load %arg1[%250, %c0_77, %c0_78] : memref<8x4x6xf32, #tpu.memory_space<vmem>>, vector<1x4x6xf32>
    %252 = vector.shape_cast %251 : vector<1x4x6xf32> to vector<4x6xf32>
    %253 = arith.index_cast %c6_i32 : i32 to index
    %c0_79 = arith.constant 0 : index
    %c0_80 = arith.constant 0 : index
    %254 = vector.load %arg2[%253, %c0_79, %c0_80] : memref<8x4x1xf32, #tpu.memory_space<vmem>>, vector<1x4x1xf32>
    %255 = vector.shape_cast %254 : vector<1x4x1xf32> to vector<4x1xf32>
    %256 = vector.shape_cast %228 : vector<4x6xf32> to vector<4x6x1xf32>
    %257 = vector.broadcast %256 : vector<4x6x1xf32> to vector<4x6x6xf32>
    %258 = arith.addf %257, %249 : vector<4x6x6xf32>
    %cst_81 = arith.constant dense<0xFF800000> : vector<4x6xf32>
    %259 = vector.multi_reduction <maximumf>, %258, %cst_81 [1] : vector<4x6x6xf32> to vector<4x6xf32>
    %260 = vector.shape_cast %259 : vector<4x6xf32> to vector<4x1x6xf32>
    %261 = vector.broadcast %260 : vector<4x1x6xf32> to vector<4x6x6xf32>
    %262 = arith.subf %258, %261 : vector<4x6x6xf32>
    %263 = math.exp %262 : vector<4x6x6xf32>
    %cst_82 = arith.constant dense<0.000000e+00> : vector<4x6xf32>
    %264 = vector.multi_reduction <add>, %263, %cst_82 [1] : vector<4x6x6xf32> to vector<4x6xf32>
    %265 = vector.shape_cast %264 : vector<4x6xf32> to vector<4x1x6xf32>
    %266 = math.log %265 : vector<4x1x6xf32>
    %267 = arith.addf %266, %260 : vector<4x1x6xf32>
    %268 = vector.shape_cast %267 : vector<4x1x6xf32> to vector<4x6xf32>
    %269 = vector.broadcast %255 : vector<4x1xf32> to vector<4x6xf32>
    %270 = arith.mulf %269, %268 : vector<4x6xf32>
    %cst_83 = arith.constant 1.000000e+00 : f32
    %271 = vector.broadcast %cst_83 : f32 to vector<4x1xf32>
    %272 = arith.subf %271, %255 : vector<4x1xf32>
    %273 = vector.broadcast %272 : vector<4x1xf32> to vector<4x6xf32>
    %274 = arith.mulf %273, %228 : vector<4x6xf32>
    %275 = arith.addf %270, %274 : vector<4x6xf32>
    %276 = vector.shape_cast %246 : vector<4x6xf32> to vector<4x6x1xf32>
    %277 = vector.broadcast %276 : vector<4x6x1xf32> to vector<4x6x6xf32>
    %278 = arith.mulf %277, %249 : vector<4x6x6xf32>
    %279 = vector.shape_cast %252 : vector<4x6xf32> to vector<4x1x6xf32>
    %280 = vector.broadcast %279 : vector<4x1x6xf32> to vector<4x6x6xf32>
    %281 = arith.mulf %278, %280 : vector<4x6x6xf32>
    %cst_84 = arith.constant dense<0.000000e+00> : vector<4x6xf32>
    %282 = vector.multi_reduction <add>, %281, %cst_84 [2] : vector<4x6x6xf32> to vector<4x6xf32>
    %cst_85 = arith.constant dense<0.000000e+00> : vector<4xf32>
    %283 = vector.multi_reduction <add>, %282, %cst_85 [1] : vector<4x6xf32> to vector<4xf32>
    %284 = vector.shape_cast %283 : vector<4xf32> to vector<4x1xf32>
    %285 = arith.mulf %255, %284 : vector<4x1xf32>
    %286 = arith.addf %239, %285 : vector<4x1xf32>
    %287 = vector.broadcast %255 : vector<4x1xf32> to vector<4x6xf32>
    %288 = arith.mulf %287, %252 : vector<4x6xf32>
    %cst_86 = arith.constant 1.000000e+00 : f32
    %289 = vector.broadcast %cst_86 : f32 to vector<4x1xf32>
    %290 = arith.subf %289, %255 : vector<4x1xf32>
    %291 = vector.broadcast %290 : vector<4x1xf32> to vector<4x6xf32>
    %292 = arith.mulf %291, %246 : vector<4x6xf32>
    %293 = arith.addf %288, %292 : vector<4x6xf32>
    %c7_i32 = arith.constant 7 : i32
    %294 = arith.index_cast %c7_i32 : i32 to index
    %c0_87 = arith.constant 0 : index
    %c0_88 = arith.constant 0 : index
    %c0_89 = arith.constant 0 : index
    %295 = vector.load %arg0[%294, %c0_87, %c0_88, %c0_89] : memref<8x4x6x6xf32, #tpu.memory_space<vmem>>, vector<1x4x6x6xf32>
    %296 = vector.shape_cast %295 : vector<1x4x6x6xf32> to vector<4x6x6xf32>
    %297 = arith.index_cast %c7_i32 : i32 to index
    %c0_90 = arith.constant 0 : index
    %c0_91 = arith.constant 0 : index
    %298 = vector.load %arg1[%297, %c0_90, %c0_91] : memref<8x4x6xf32, #tpu.memory_space<vmem>>, vector<1x4x6xf32>
    %299 = vector.shape_cast %298 : vector<1x4x6xf32> to vector<4x6xf32>
    %300 = arith.index_cast %c7_i32 : i32 to index
    %c0_92 = arith.constant 0 : index
    %c0_93 = arith.constant 0 : index
    %301 = vector.load %arg2[%300, %c0_92, %c0_93] : memref<8x4x1xf32, #tpu.memory_space<vmem>>, vector<1x4x1xf32>
    %302 = vector.shape_cast %301 : vector<1x4x1xf32> to vector<4x1xf32>
    %303 = vector.shape_cast %275 : vector<4x6xf32> to vector<4x6x1xf32>
    %304 = vector.broadcast %303 : vector<4x6x1xf32> to vector<4x6x6xf32>
    %305 = arith.addf %304, %296 : vector<4x6x6xf32>
    %cst_94 = arith.constant dense<0xFF800000> : vector<4x6xf32>
    %306 = vector.multi_reduction <maximumf>, %305, %cst_94 [1] : vector<4x6x6xf32> to vector<4x6xf32>
    %307 = vector.shape_cast %306 : vector<4x6xf32> to vector<4x1x6xf32>
    %308 = vector.broadcast %307 : vector<4x1x6xf32> to vector<4x6x6xf32>
    %309 = arith.subf %305, %308 : vector<4x6x6xf32>
    %310 = math.exp %309 : vector<4x6x6xf32>
    %cst_95 = arith.constant dense<0.000000e+00> : vector<4x6xf32>
    %311 = vector.multi_reduction <add>, %310, %cst_95 [1] : vector<4x6x6xf32> to vector<4x6xf32>
    %312 = vector.shape_cast %311 : vector<4x6xf32> to vector<4x1x6xf32>
    %313 = math.log %312 : vector<4x1x6xf32>
    %314 = arith.addf %313, %307 : vector<4x1x6xf32>
    %315 = vector.shape_cast %314 : vector<4x1x6xf32> to vector<4x6xf32>
    %316 = vector.broadcast %302 : vector<4x1xf32> to vector<4x6xf32>
    %317 = arith.mulf %316, %315 : vector<4x6xf32>
    %cst_96 = arith.constant 1.000000e+00 : f32
    %318 = vector.broadcast %cst_96 : f32 to vector<4x1xf32>
    %319 = arith.subf %318, %302 : vector<4x1xf32>
    %320 = vector.broadcast %319 : vector<4x1xf32> to vector<4x6xf32>
    %321 = arith.mulf %320, %275 : vector<4x6xf32>
    %322 = arith.addf %317, %321 : vector<4x6xf32>
    %323 = vector.shape_cast %293 : vector<4x6xf32> to vector<4x6x1xf32>
    %324 = vector.broadcast %323 : vector<4x6x1xf32> to vector<4x6x6xf32>
    %325 = arith.mulf %324, %296 : vector<4x6x6xf32>
    %326 = vector.shape_cast %299 : vector<4x6xf32> to vector<4x1x6xf32>
    %327 = vector.broadcast %326 : vector<4x1x6xf32> to vector<4x6x6xf32>
    %328 = arith.mulf %325, %327 : vector<4x6x6xf32>
    %cst_97 = arith.constant dense<0.000000e+00> : vector<4x6xf32>
    %329 = vector.multi_reduction <add>, %328, %cst_97 [2] : vector<4x6x6xf32> to vector<4x6xf32>
    %cst_98 = arith.constant dense<0.000000e+00> : vector<4xf32>
    %330 = vector.multi_reduction <add>, %329, %cst_98 [1] : vector<4x6xf32> to vector<4xf32>
    %331 = vector.shape_cast %330 : vector<4xf32> to vector<4x1xf32>
    %332 = arith.mulf %302, %331 : vector<4x1xf32>
    %333 = arith.addf %286, %332 : vector<4x1xf32>
    %334 = vector.broadcast %302 : vector<4x1xf32> to vector<4x6xf32>
    %335 = arith.mulf %334, %299 : vector<4x6xf32>
    %cst_99 = arith.constant 1.000000e+00 : f32
    %336 = vector.broadcast %cst_99 : f32 to vector<4x1xf32>
    %337 = arith.subf %336, %302 : vector<4x1xf32>
    %338 = vector.broadcast %337 : vector<4x1xf32> to vector<4x6xf32>
    %339 = arith.mulf %338, %293 : vector<4x6xf32>
    %340 = arith.addf %335, %339 : vector<4x6xf32>
    %c7_i32_100 = arith.constant 7 : i32
    %cst_101 = arith.constant dense<0xFF800000> : vector<4xf32>
    %341 = vector.multi_reduction <maximumf>, %322, %cst_101 [1] : vector<4x6xf32> to vector<4xf32>
    %342 = vector.shape_cast %341 : vector<4xf32> to vector<4x1xf32>
    %343 = vector.broadcast %342 : vector<4x1xf32> to vector<4x6xf32>
    %344 = arith.subf %322, %343 : vector<4x6xf32>
    %345 = math.exp %344 : vector<4x6xf32>
    %cst_102 = arith.constant dense<0.000000e+00> : vector<4xf32>
    %346 = vector.multi_reduction <add>, %345, %cst_102 [1] : vector<4x6xf32> to vector<4xf32>
    %347 = vector.shape_cast %346 : vector<4xf32> to vector<4x1xf32>
    %348 = math.log %347 : vector<4x1xf32>
    %349 = arith.addf %348, %342 : vector<4x1xf32>
    %350 = arith.subf %349, %333 : vector<4x1xf32>
    %c0_103 = arith.constant 0 : index
    %c0_104 = arith.constant 0 : index
    %351 = vector.load %arg3[%c0_103, %c0_104] : memref<4x1xf32, #tpu.memory_space<vmem>>, vector<4x1xf32>
    tpu.vector_store %arg3[%c0_103, %c0_104], %350 {strides = array<i32>} : memref<4x1xf32, #tpu.memory_space<vmem>>, vector<4x1xf32>,
    return
  }
}

</mosaic_0001>

<llo_original>
// kernel: forward_core.7
$region0: #{forward_core.7}
  #allocation0 [shape = 'u32[]', space=smem, size = 0x4, offset = 0x4, fixed_abs, tag = 'smem constant byte address 0x4 - core index']
  #allocation1 [shape = 'u32[144,128]{1,0:T(1,128)}', space=vmem, size = 0x12000, scoped, tag = 'internal scratch']
  %s0 = inlined_call_operand.vmem [shape: f32[160,48], index: 0, kind: input, shape index: {}]
  %s1 = inlined_call_operand.vmem [shape: f32[48,16], index: 1, kind: input, shape index: {}]
  %s2 = inlined_call_operand.vmem [shape: f32[1,16], index: 2, kind: input, shape index: {}]
  %s3 = inlined_call_operand.vmem [shape: f32[16,16], index: 3, kind: output, shape index: {}]
  %s4 = sld [smem:[#allocation0]]
  $region22: #{forward_core.7} parent=0
    _
  %s6 = ssub.s32 1, %s4
  %s7 = scalar_select 0, %s6, %s4
  // Predicated region
  $region2: #{forward_core.7} parent=0 // pred_check
    _
  $region3: #{forward_core.7} parent=0 // pred_check_branch
    %9 = sbr.rel (0) target = $region5
  $region4: #{forward_core.7} parent=0 // pred_region
    _
  $region5: #{forward_core.7} parent=0 // pred_fallthru
    _
  // Predicated region
  $region6: #{forward_core.7} parent=0 // pred_check
    _
  $region7: #{forward_core.7} parent=0 // pred_check_branch
    %11 = sbr.rel (0) target = $region9
  $region8: #{forward_core.7} parent=0 // pred_region
    _
  $region9: #{forward_core.7} parent=0 // pred_fallthru
    _
  // Predicated region
  $region10: #{forward_core.7} parent=0 // pred_check
    _
  $region11: #{forward_core.7} parent=0 // pred_check_branch
    %13 = sbr.rel (0) target = $region13
  $region12: #{forward_core.7} parent=0 // pred_region
    _
  $region13: #{forward_core.7} parent=0 // pred_fallthru
    _
  %v14 = vld [vmem:[%s0] sm:$0xff]
  %v15 = vld [vmem:[%s0 + $0x8] sm:$0xff]
  %v16 = vld [vmem:[%s0 + $0x10] sm:$0xff]
  %v17 = vld [vmem:[%s0 + $0x18] sm:$0xff]
  %v18 = vld [vmem:[%s0 + $0x20] sm:$0xff]
  %v19 = vld [vmem:[%s0 + $0x28] sm:$0xff]
  %v20 = vld [vmem:[%s0 + $0x30] sm:$0xff]
  %v21 = vld [vmem:[%s0 + $0x38] sm:$0xff]
  %v22 = vld [vmem:[%s0 + $0x40] sm:$0xff]
  %v23 = vld [vmem:[%s0 + $0x48] sm:$0xff]
  %v24 = vld [vmem:[%s0 + $0x50] sm:$0xff]
  %v25 = vld [vmem:[%s0 + $0x58] sm:$0xff]
  %v26 = vld [vmem:[%s0 + $0x60] sm:$0xff]
  %v27 = vld [vmem:[%s0 + $0x68] sm:$0xff]
  %v28 = vld [vmem:[%s0 + $0x70] sm:$0xff]
  %v29 = vld [vmem:[%s0 + $0x78] sm:$0xff]
  %v30 = vld [vmem:[%s0 + $0x80] sm:$0xff]
  %v31 = vld [vmem:[%s0 + $0x88] sm:$0xff]
  %v32 = vld [vmem:[%s0 + $0x90] sm:$0xff]
  %v33 = vld [vmem:[%s0 + $0x98] sm:$0xff]
  %v34 = vld [vmem:[%s1] sm:$0xff]
  %v35 = vld [vmem:[%s1 + $0x8] sm:$0xff]
  %v36 = vld [vmem:[%s1 + $0x10] sm:$0xff]
  %v37 = vld [vmem:[%s1 + $0x18] sm:$0xff]
  %v38 = vld [vmem:[%s1 + $0x20] sm:$0xff]
  %v39 = vld [vmem:[%s1 + $0x28] sm:$0xff]
  %v40 = vld [vmem:[%s2] sm:$0x1]
  %v42 = vlaneseq
  %v43 = vshrl.u32 %v42, 7
  %v44 = vsub.s32 0, %v43
  %v45 = vrot.slane %v40, %v44
  %vm47 = vcmask 392192
  %v49 = vsel %vm47, %v14, 0
  %v52 = vsel %vm47, %v15, 0
  %v55 = vsel %vm47, %v16, 0
  %v58 = vsel %vm47, %v17, 0
  %v61 = vsel %vm47, %v18, 0
  %v64 = vsel %vm47, %v19, 0
  %v67 = vsel %vm47, %v20, 0
  %v70 = vsel %vm47, %v21, 0
  %v73 = vsel %vm47, %v22, 0
  %v76 = vsel %vm47, %v23, 0
  %v79 = vsel %vm47, %v24, 0
  %v82 = vsel %vm47, %v25, 0
  %v85 = vsel %vm47, %v26, 0
  %v88 = vsel %vm47, %v27, 0
  %v91 = vsel %vm47, %v28, 0
  %v94 = vsel %vm47, %v29, 0
  %v97 = vsel %vm47, %v30, 0
  %v100 = vsel %vm47, %v31, 0
  %v103 = vsel %vm47, %v32, 0
  %v106 = vsel %vm47, %v33, 0
  %108 = vmatprep.subr.mxu0 0.0
  %109 = vmatpush1.msra.mxu0 %v34
  %110 = vmatprep.subr.mxu0 0.0
  %111 = vmatpush1.msra.mxu0 %v35
  %112 = vmatprep.subr.mxu0 0.0
  %113 = vmatpush1.msra.mxu0 %v36
  %114 = vmatprep.subr.mxu0 0.0
  %115 = vmatpush1.msra.mxu0 %v37
  %116 = vmatprep.subr.mxu0 0.0
  %117 = vmatpush1.msra.mxu0 %v38
  %118 = vmatprep.subr.mxu0 0.0
  %119 = vmatpush1.msra.mxu0 %v39
  %120 = vmatprep.subr.mxu0 0.0
  %121 = vmatpush1.msra.mxu0 0.0
  %122 = vmatprep.subr.mxu0 0.0
  %123 = vmatpush1.msra.mxu0 0.0
  %124 = vmatprep.subr.mxu0 0.0
  %125 = vmatpush1.msra.mxu0 0.0
  %126 = vmatprep.subr.mxu0 0.0
  %127 = vmatpush1.msra.mxu0 0.0
  %128 = vmatprep.subr.mxu0 0.0
  %129 = vmatpush1.msra.mxu0 0.0
  %130 = vmatprep.subr.mxu0 0.0
  %131 = vmatpush1.msra.mxu0 0.0
  %132 = vmatprep.subr.mxu0 0.0
  %133 = vmatpush1.msra.mxu0 0.0
  %134 = vmatprep.subr.mxu0 0.0
  %135 = vmatpush1.msra.mxu0 0.0
  %136 = vmatprep.subr.mxu0 0.0
  %137 = vmatpush1.msra.mxu0 0.0
  %138 = vmatprep.subr.mxu0 0.0
  %139 = vmatpush1.msra.mxu0 0.0
  %140 = vmatprep.subr.mxu0 0.0
  %141 = vmatpush1.msra.mxu0 0.0
  %142 = vmatprep.subr.mxu0 0.0
  %143 = vmatpush1.msra.mxu0 0.0
  %144 = vmatprep.subr.mxu0 0.0
  %145 = vmatpush1.msra.mxu0 0.0
  %146 = vmatprep.subr.mxu0 0.0
  %147 = vmatpush1.msra.mxu0 0.0
  %148 = vmatprep.subr.mxu0 0.0
  %149 = vmatpush1.msra.mxu0 0.0
  %150 = vmatprep.subr.mxu0 0.0
  %151 = vmatpush1.msra.mxu0 0.0
  %152 = vmatprep.subr.mxu0 0.0
  %153 = vmatpush1.msra.mxu0 0.0
  %154 = vmatprep.subr.mxu0 0.0
  %155 = vmatpush1.msra.mxu0 0.0
  %156 = vmatprep.subr.mxu0 0.0
  %157 = vmatpush1.msra.mxu0 0.0
  %158 = vmatprep.subr.mxu0 0.0
  %159 = vmatpush1.msra.mxu0 0.0
  %160 = vmatprep.subr.mxu0 0.0
  %161 = vmatpush1.msra.mxu0 0.0
  %162 = vmatprep.subr.mxu0 0.0
  %163 = vmatpush1.msra.mxu0 0.0
  %164 = vmatprep.subr.mxu0 0.0
  %165 = vmatpush1.msra.mxu0 0.0
  %166 = vmatprep.subr.mxu0 0.0
  %167 = vmatpush1.msra.mxu0 0.0
  %168 = vmatprep.subr.mxu0 0.0
  %169 = vmatpush1.msra.mxu0 0.0
  %170 = vmatprep.subr.mxu0 0.0
  %171 = vmatpush1.msra.mxu0 0.0
  %172 = vmatprep.mubr.f32.mxu0 0.0
  %173 = vmatmul.mubr.f32.gmra.mrb[0].mxu0 %v49
  %v174 = vpop.f32.mrb[0].mxu0
  %v175 = vadd.f32 %v45, %v174
  %v176 = vpop.f32.mrb[0].mxu0
  %177 = vmatprep.mubr.f32.mxu0 0.0
  %178 = vmatmul.mubr.f32.gmra.mrb[0].mxu0 %v52
  %v179 = vpop.f32.mrb[0].mxu0
  %v180 = vadd.f32 %v45, %v179
  %v181 = vpop.f32.mrb[0].mxu0
  %182 = vmatprep.mubr.f32.mxu0 0.0
  %183 = vmatmul.mubr.f32.gmra.mrb[0].mxu0 %v55
  %v184 = vpop.f32.mrb[0].mxu0
  %v185 = vadd.f32 %v45, %v184
  %v186 = vpop.f32.mrb[0].mxu0
  %187 = vmatprep.mubr.f32.mxu0 0.0
  %188 = vmatmul.mubr.f32.gmra.mrb[0].mxu0 %v58
  %v189 = vpop.f32.mrb[0].mxu0
  %v190 = vadd.f32 %v45, %v189
  %v191 = vpop.f32.mrb[0].mxu0
  %192 = vmatprep.mubr.f32.mxu0 0.0
  %193 = vmatmul.mubr.f32.gmra.mrb[0].mxu0 %v61
  %v194 = vpop.f32.mrb[0].mxu0
  %v195 = vadd.f32 %v45, %v194
  %v196 = vpop.f32.mrb[0].mxu0
  %197 = vmatprep.mubr.f32.mxu0 0.0
  %198 = vmatmul.mubr.f32.gmra.mrb[0].mxu0 %v64
  %v199 = vpop.f32.mrb[0].mxu0
  %v200 = vadd.f32 %v45, %v199
  %v201 = vpop.f32.mrb[0].mxu0
  %202 = vmatprep.mubr.f32.mxu0 0.0
  %203 = vmatmul.mubr.f32.gmra.mrb[0].mxu0 %v67
  %v204 = vpop.f32.mrb[0].mxu0
  %v205 = vadd.f32 %v45, %v204
  %v206 = vpop.f32.mrb[0].mxu0
  %207 = vmatprep.mubr.f32.mxu0 0.0
  %208 = vmatmul.mubr.f32.gmra.mrb[0].mxu0 %v70
  %v209 = vpop.f32.mrb[0].mxu0
  %v210 = vadd.f32 %v45, %v209
  %v211 = vpop.f32.mrb[0].mxu0
  %212 = vmatprep.mubr.f32.mxu0 0.0
  %213 = vmatmul.mubr.f32.gmra.mrb[0].mxu0 %v73
  %v214 = vpop.f32.mrb[0].mxu0
  %v215 = vadd.f32 %v45, %v214
  %v216 = vpop.f32.mrb[0].mxu0
  %217 = vmatprep.mubr.f32.mxu0 0.0
  %218 = vmatmul.mubr.f32.gmra.mrb[0].mxu0 %v76
  %v219 = vpop.f32.mrb[0].mxu0
  %v220 = vadd.f32 %v45, %v219
  %v221 = vpop.f32.mrb[0].mxu0
  %222 = vmatprep.mubr.f32.mxu0 0.0
  %223 = vmatmul.mubr.f32.gmra.mrb[0].mxu0 %v79
  %v224 = vpop.f32.mrb[0].mxu0
  %v225 = vadd.f32 %v45, %v224
  %v226 = vpop.f32.mrb[0].mxu0
  %227 = vmatprep.mubr.f32.mxu0 0.0
  %228 = vmatmul.mubr.f32.gmra.mrb[0].mxu0 %v82
  %v229 = vpop.f32.mrb[0].mxu0
  %v230 = vadd.f32 %v45, %v229
  %v231 = vpop.f32.mrb[0].mxu0
  %232 = vmatprep.mubr.f32.mxu0 0.0
  %233 = vmatmul.mubr.f32.gmra.mrb[0].mxu0 %v85
  %v234 = vpop.f32.mrb[0].mxu0
  %v235 = vadd.f32 %v45, %v234
  %v236 = vpop.f32.mrb[0].mxu0
  %237 = vmatprep.mubr.f32.mxu0 0.0
  %238 = vmatmul.mubr.f32.gmra.mrb[0].mxu0 %v88
  %v239 = vpop.f32.mrb[0].mxu0
  %v240 = vadd.f32 %v45, %v239
  %v241 = vpop.f32.mrb[0].mxu0
  %242 = vmatprep.mubr.f32.mxu0 0.0
  %243 = vmatmul.mubr.f32.gmra.mrb[0].mxu0 %v91
  %v244 = vpop.f32.mrb[0].mxu0
  %v245 = vadd.f32 %v45, %v244
  %v246 = vpop.f32.mrb[0].mxu0
  %247 = vmatprep.mubr.f32.mxu0 0.0
  %248 = vmatmul.mubr.f32.gmra.mrb[0].mxu0 %v94
  %v249 = vpop.f32.mrb[0].mxu0
  %v250 = vadd.f32 %v45, %v249
  %v251 = vpop.f32.mrb[0].mxu0
  %252 = vmatprep.mubr.f32.mxu0 0.0
  %253 = vmatmul.mubr.f32.gmra.mrb[0].mxu0 %v97
  %v254 = vpop.f32.mrb[0].mxu0
  %v255 = vadd.f32 %v45, %v254
  %v256 = vpop.f32.mrb[0].mxu0
  %257 = vmatprep.mubr.f32.mxu0 0.0
  %258 = vmatmul.mubr.f32.gmra.mrb[0].mxu0 %v100
  %v259 = vpop.f32.mrb[0].mxu0
  %v260 = vadd.f32 %v45, %v259
  %v261 = vpop.f32.mrb[0].mxu0
  %262 = vmatprep.mubr.f32.mxu0 0.0
  %263 = vmatmul.mubr.f32.gmra.mrb[0].mxu0 %v103
  %v264 = vpop.f32.mrb[0].mxu0
  %v265 = vadd.f32 %v45, %v264
  %v266 = vpop.f32.mrb[0].mxu0
  %267 = vmatprep.mubr.f32.mxu0 0.0
  %268 = vmatmul.mubr.f32.gmra.mrb[0].mxu0 %v106
  %v269 = vpop.f32.mrb[0].mxu0
  %v270 = vadd.f32 %v45, %v269
  %v271 = vpop.f32.mrb[0].mxu0
  %272 = vdwg.mxu0
  %v273 = vmax.f32 %v175, %v185
  %v274 = vmax.f32 %v180, %v190
  %v275 = vmax.f32 %v273, %v195
  %v276 = vmax.f32 %v274, %v200
  %v277 = vmax.f32 %v275, %v205
  %v278 = vmax.f32 %v276, %v210
  %v279 = vmax.f32 %v277, %v215
  %v280 = vmax.f32 %v278, %v220
  %v281 = vmax.f32 %v279, %v225
  %v282 = vmax.f32 %v280, %v230
  %v283 = vmax.f32 %v281, %v235
  %v284 = vmax.f32 %v282, %v240
  %v285 = vmax.f32 %v283, %v245
  %v286 = vmax.f32 %v284, %v250
  %v287 = vmax.f32 %v285, %v255
  %v288 = vmax.f32 %v286, %v260
  %v289 = vmax.f32 %v287, %v265
  %v290 = vmax.f32 %v288, %v270
  %v291 = vxor.u32 %v289, 2147483648
  %v292 = vxor.u32 %v290, 2147483648
  %v293 = vmul.f32 %v291, 1.442695
  %v294 = vpow.pop %v293
  %v295 = vmul.f32 %v292, 1.442695
  %v296 = vpow.pop %v295
  %v297 = vadd.f32 %v294, 1.0
  %v298 = vadd.f32 %v296, 1.0
  %v299 = vrcp.pop %v297
  %v300 = vmul.f32 1.0, %v299
  %v301 = vrcp.pop %v298
  %v302 = vmul.f32 1.0, %v301
  %vm303 = vcmask 130048
  %304 = vst.msk [vmem:[%s3] sm:$0xff] %vm303, %v300
  %305 = vst.msk [vmem:[%s3 + $0x8] sm:$0xff] %vm303, %v302
  // Predicated region
  $region14: #{forward_core.7} parent=0 // pred_check
    _
  $region15: #{forward_core.7} parent=0 // pred_check_branch
    %307 = sbr.rel (0) target = $region17
  $region16: #{forward_core.7} parent=0 // pred_region
    _
  $region17: #{forward_core.7} parent=0 // pred_fallthru
    _
  // Predicated region
  $region18: #{forward_core.7} parent=0 // pred_check
    _
  $region19: #{forward_core.7} parent=0 // pred_check_branch
    %309 = sbr.rel (0) target = $region21
  $region20: #{forward_core.7} parent=0 // pred_region
    _
  $region21: #{forward_core.7} parent=0 // pred_fallthru
    _

// kernel: forward_core.8
$region0: #{forward_core.8}
  #allocation0 [shape = 'u32[]', space=smem, size = 0x4, offset = 0x4, fixed_abs, tag = 'smem constant byte address 0x4 - core index']
  #allocation1 [shape = 'u32[144,128]{1,0:T(1,128)}', space=vmem, size = 0x12000, scoped, tag = 'internal scratch']
  %s0 = inlined_call_operand.vmem [shape: f32[16,48], index: 0, kind: input, shape index: {}]
  %s1 = inlined_call_operand.vmem [shape: f32[48,256], index: 1, kind: input, shape index: {}]
  %s2 = inlined_call_operand.vmem [shape: f32[1,256], index: 2, kind: input, shape index: {}]
  %s3 = inlined_call_operand.vmem [shape: f32[16,256], index: 3, kind: output, shape index: {}]
  %s4 = sld [smem:[#allocation0]]
  $region22: #{forward_core.8} parent=0
    _
  %s6 = ssub.s32 1, %s4
  %s7 = scalar_select 0, %s6, %s4
  // Predicated region
  $region2: #{forward_core.8} parent=0 // pred_check
    _
  $region3: #{forward_core.8} parent=0 // pred_check_branch
    %9 = sbr.rel (0) target = $region5
  $region4: #{forward_core.8} parent=0 // pred_region
    _
  $region5: #{forward_core.8} parent=0 // pred_fallthru
    _
  // Predicated region
  $region6: #{forward_core.8} parent=0 // pred_check
    _
  $region7: #{forward_core.8} parent=0 // pred_check_branch
    %11 = sbr.rel (0) target = $region9
  $region8: #{forward_core.8} parent=0 // pred_region
    _
  $region9: #{forward_core.8} parent=0 // pred_fallthru
    _
  // Predicated region
  $region10: #{forward_core.8} parent=0 // pred_check
    _
  $region11: #{forward_core.8} parent=0 // pred_check_branch
    %13 = sbr.rel (0) target = $region13
  $region12: #{forward_core.8} parent=0 // pred_region
    _
  $region13: #{forward_core.8} parent=0 // pred_fallthru
    _
  %v14 = vld [vmem:[%s0] sm:$0xff]
  %v15 = vld [vmem:[%s0 + $0x8] sm:$0xff]
  %v16 = vld [vmem:[%s1] sm:$0xff]
  %v17 = vld [vmem:[%s1 + $0x8] sm:$0xff]
  %v18 = vld [vmem:[%s1 + $0x10] sm:$0xff]
  %v19 = vld [vmem:[%s1 + $0x18] sm:$0xff]
  %v20 = vld [vmem:[%s1 + $0x20] sm:$0xff]
  %v21 = vld [vmem:[%s1 + $0x28] sm:$0xff]
  %v22 = vld [vmem:[%s1 + $0x30] sm:$0xff]
  %v23 = vld [vmem:[%s1 + $0x38] sm:$0xff]
  %v24 = vld [vmem:[%s1 + $0x40] sm:$0xff]
  %v25 = vld [vmem:[%s1 + $0x48] sm:$0xff]
  %v26 = vld [vmem:[%s1 + $0x50] sm:$0xff]
  %v27 = vld [vmem:[%s1 + $0x58] sm:$0xff]
  %v28 = vld [vmem:[%s2] sm:$0x3]
  %v30 = vlaneseq
  %v31 = vshrl.u32 %v30, 7
  %v32 = vsub.s32 0, %v31
  %v33 = vrot.slane %v28, %v32
  %v34 = vlaneseq
  %v35 = vshrl.u32 %v34, 7
  %v36 = vsub.s32 1, %v35
  %v37 = vrot.slane %v28, %v36
  %vm40 = vcmask 392192
  %v42 = vsel %vm40, %v14, 0
  %v45 = vsel %vm40, %v15, 0
  %47 = vmatprep.subr.mxu0 %v17
  %48 = vmatpush1.msra.mxu0 %v16
  %49 = vmatprep.subr.mxu0 %v19
  %50 = vmatpush1.msra.mxu0 %v18
  %51 = vmatprep.subr.mxu0 %v21
  %52 = vmatpush1.msra.mxu0 %v20
  %53 = vmatprep.subr.mxu0 %v23
  %54 = vmatpush1.msra.mxu0 %v22
  %55 = vmatprep.subr.mxu0 %v25
  %56 = vmatpush1.msra.mxu0 %v24
  %57 = vmatprep.subr.mxu0 %v27
  %58 = vmatpush1.msra.mxu0 %v26
  %59 = vmatprep.subr.mxu0 0.0
  %60 = vmatpush1.msra.mxu0 0.0
  %61 = vmatprep.subr.mxu0 0.0
  %62 = vmatpush1.msra.mxu0 0.0
  %63 = vmatprep.subr.mxu0 0.0
  %64 = vmatpush1.msra.mxu0 0.0
  %65 = vmatprep.subr.mxu0 0.0
  %66 = vmatpush1.msra.mxu0 0.0
  %67 = vmatprep.subr.mxu0 0.0
  %68 = vmatpush1.msra.mxu0 0.0
  %69 = vmatprep.subr.mxu0 0.0
  %70 = vmatpush1.msra.mxu0 0.0
  %71 = vmatprep.subr.mxu0 0.0
  %72 = vmatpush1.msra.mxu0 0.0
  %73 = vmatprep.subr.mxu0 0.0
  %74 = vmatpush1.msra.mxu0 0.0
  %75 = vmatprep.subr.mxu0 0.0
  %76 = vmatpush1.msra.mxu0 0.0
  %77 = vmatprep.subr.mxu0 0.0
  %78 = vmatpush1.msra.mxu0 0.0
  %79 = vmatprep.subr.mxu0 0.0
  %80 = vmatpush1.msra.mxu0 0.0
  %81 = vmatprep.subr.mxu0 0.0
  %82 = vmatpush1.msra.mxu0 0.0
  %83 = vmatprep.subr.mxu0 0.0
  %84 = vmatpush1.msra.mxu0 0.0
  %85 = vmatprep.subr.mxu0 0.0
  %86 = vmatpush1.msra.mxu0 0.0
  %87 = vmatprep.subr.mxu0 0.0
  %88 = vmatpush1.msra.mxu0 0.0
  %89 = vmatprep.subr.mxu0 0.0
  %90 = vmatpush1.msra.mxu0 0.0
  %91 = vmatprep.subr.mxu0 0.0
  %92 = vmatpush1.msra.mxu0 0.0
  %93 = vmatprep.subr.mxu0 0.0
  %94 = vmatpush1.msra.mxu0 0.0
  %95 = vmatprep.subr.mxu0 0.0
  %96 = vmatpush1.msra.mxu0 0.0
  %97 = vmatprep.subr.mxu0 0.0
  %98 = vmatpush1.msra.mxu0 0.0
  %99 = vmatprep.subr.mxu0 0.0
  %100 = vmatpush1.msra.mxu0 0.0
  %101 = vmatprep.subr.mxu0 0.0
  %102 = vmatpush1.msra.mxu0 0.0
  %103 = vmatprep.subr.mxu0 0.0
  %104 = vmatpush1.msra.mxu0 0.0
  %105 = vmatprep.subr.mxu0 0.0
  %106 = vmatpush1.msra.mxu0 0.0
  %107 = vmatprep.subr.mxu0 0.0
  %108 = vmatpush1.msra.mxu0 0.0
  %109 = vmatprep.subr.mxu0 0.0
  %110 = vmatpush1.msra.mxu0 0.0
  %111 = vmatprep.mubr.f32.mxu0 0.0
  %112 = vmatmul.mubr.f32.gmra.mrb[0].mxu0 %v42
  %v113 = vpop.f32.mrb[0].mxu0
  %v114 = vadd.f32 %v33, %v113
  %v115 = vpop.f32.mrb[0].mxu0
  %v116 = vadd.f32 %v37, %v115
  %117 = vmatprep.mubr.f32.mxu0 0.0
  %118 = vmatmul.mubr.f32.gmra.mrb[0].mxu0 %v45
  %v119 = vpop.f32.mrb[0].mxu0
  %v120 = vadd.f32 %v33, %v119
  %v121 = vpop.f32.mrb[0].mxu0
  %v122 = vadd.f32 %v37, %v121
  %123 = vdwg.mxu0
  %124 = vst [vmem:[%s3] sm:$0xff] %v114
  %125 = vst [vmem:[%s3 + $0x8] sm:$0xff] %v116
  %126 = vst [vmem:[%s3 + $0x10] sm:$0xff] %v120
  %127 = vst [vmem:[%s3 + $0x18] sm:$0xff] %v122
  // Predicated region
  $region14: #{forward_core.8} parent=0 // pred_check
    _
  $region15: #{forward_core.8} parent=0 // pred_check_branch
    %129 = sbr.rel (0) target = $region17
  $region16: #{forward_core.8} parent=0 // pred_region
    _
  $region17: #{forward_core.8} parent=0 // pred_fallthru
    _
  // Predicated region
  $region18: #{forward_core.8} parent=0 // pred_check
    _
  $region19: #{forward_core.8} parent=0 // pred_check_branch
    %131 = sbr.rel (0) target = $region21
  $region20: #{forward_core.8} parent=0 // pred_region
    _
  $region21: #{forward_core.8} parent=0 // pred_fallthru
    _

// kernel: forward_core.10
$region0: #{forward_core.10}
  #allocation0 [shape = 'u32[]', space=smem, size = 0x4, offset = 0x4, fixed_abs, tag = 'smem constant byte address 0x4 - core index']
  #allocation1 [shape = 'u32[144,128]{1,0:T(1,128)}', space=vmem, size = 0x12000, scoped, tag = 'internal scratch']
  %s0 = inlined_call_operand.vmem [shape: f32[16,64], index: 0, kind: input, shape index: {}]
  %s1 = inlined_call_operand.vmem [shape: f32[64,256], index: 1, kind: input, shape index: {}]
  %s2 = inlined_call_operand.vmem [shape: f32[1,256], index: 2, kind: input, shape index: {}]
  %s3 = inlined_call_operand.vmem [shape: f32[16,256], index: 3, kind: output, shape index: {}]
  %s4 = sld [smem:[#allocation0]]
  $region22: #{forward_core.10} parent=0
    _
  %s6 = ssub.s32 1, %s4
  %s7 = scalar_select 0, %s6, %s4
  // Predicated region
  $region2: #{forward_core.10} parent=0 // pred_check
    _
  $region3: #{forward_core.10} parent=0 // pred_check_branch
    %9 = sbr.rel (0) target = $region5
  $region4: #{forward_core.10} parent=0 // pred_region
    _
  $region5: #{forward_core.10} parent=0 // pred_fallthru
    _
  // Predicated region
  $region6: #{forward_core.10} parent=0 // pred_check
    _
  $region7: #{forward_core.10} parent=0 // pred_check_branch
    %11 = sbr.rel (0) target = $region9
  $region8: #{forward_core.10} parent=0 // pred_region
    _
  $region9: #{forward_core.10} parent=0 // pred_fallthru
    _
  // Predicated region
  $region10: #{forward_core.10} parent=0 // pred_check
    _
  $region11: #{forward_core.10} parent=0 // pred_check_branch
    %13 = sbr.rel (0) target = $region13
  $region12: #{forward_core.10} parent=0 // pred_region
    _
  $region13: #{forward_core.10} parent=0 // pred_fallthru
    _
  %v14 = vld [vmem:[%s0] sm:$0xff]
  %v15 = vld [vmem:[%s0 + $0x8] sm:$0xff]
  %v16 = vld [vmem:[%s1] sm:$0xff]
  %v17 = vld [vmem:[%s1 + $0x8] sm:$0xff]
  %v18 = vld [vmem:[%s1 + $0x10] sm:$0xff]
  %v19 = vld [vmem:[%s1 + $0x18] sm:$0xff]
  %v20 = vld [vmem:[%s1 + $0x20] sm:$0xff]
  %v21 = vld [vmem:[%s1 + $0x28] sm:$0xff]
  %v22 = vld [vmem:[%s1 + $0x30] sm:$0xff]
  %v23 = vld [vmem:[%s1 + $0x38] sm:$0xff]
  %v24 = vld [vmem:[%s1 + $0x40] sm:$0xff]
  %v25 = vld [vmem:[%s1 + $0x48] sm:$0xff]
  %v26 = vld [vmem:[%s1 + $0x50] sm:$0xff]
  %v27 = vld [vmem:[%s1 + $0x58] sm:$0xff]
  %v28 = vld [vmem:[%s1 + $0x60] sm:$0xff]
  %v29 = vld [vmem:[%s1 + $0x68] sm:$0xff]
  %v30 = vld [vmem:[%s1 + $0x70] sm:$0xff]
  %v31 = vld [vmem:[%s1 + $0x78] sm:$0xff]
  %v32 = vld [vmem:[%s2] sm:$0x3]
  %v34 = vlaneseq
  %v35 = vshrl.u32 %v34, 7
  %v36 = vsub.s32 0, %v35
  %v37 = vrot.slane %v32, %v36
  %v38 = vlaneseq
  %v39 = vshrl.u32 %v38, 7
  %v40 = vsub.s32 1, %v39
  %v41 = vrot.slane %v32, %v40
  %vm44 = vcmask 523264
  %v46 = vsel %vm44, %v14, 0
  %v49 = vsel %vm44, %v15, 0
  %51 = vmatprep.subr.mxu0 %v17
  %52 = vmatpush1.msra.mxu0 %v16
  %53 = vmatprep.subr.mxu0 %v19
  %54 = vmatpush1.msra.mxu0 %v18
  %55 = vmatprep.subr.mxu0 %v21
  %56 = vmatpush1.msra.mxu0 %v20
  %57 = vmatprep.subr.mxu0 %v23
  %58 = vmatpush1.msra.mxu0 %v22
  %59 = vmatprep.subr.mxu0 %v25
  %60 = vmatpush1.msra.mxu0 %v24
  %61 = vmatprep.subr.mxu0 %v27
  %62 = vmatpush1.msra.mxu0 %v26
  %63 = vmatprep.subr.mxu0 %v29
  %64 = vmatpush1.msra.mxu0 %v28
  %65 = vmatprep.subr.mxu0 %v31
  %66 = vmatpush1.msra.mxu0 %v30
  %67 = vmatprep.subr.mxu0 0.0
  %68 = vmatpush1.msra.mxu0 0.0
  %69 = vmatprep.subr.mxu0 0.0
  %70 = vmatpush1.msra.mxu0 0.0
  %71 = vmatprep.subr.mxu0 0.0
  %72 = vmatpush1.msra.mxu0 0.0
  %73 = vmatprep.subr.mxu0 0.0
  %74 = vmatpush1.msra.mxu0 0.0
  %75 = vmatprep.subr.mxu0 0.0
  %76 = vmatpush1.msra.mxu0 0.0
  %77 = vmatprep.subr.mxu0 0.0
  %78 = vmatpush1.msra.mxu0 0.0
  %79 = vmatprep.subr.mxu0 0.0
  %80 = vmatpush1.msra.mxu0 0.0
  %81 = vmatprep.subr.mxu0 0.0
  %82 = vmatpush1.msra.mxu0 0.0
  %83 = vmatprep.subr.mxu0 0.0
  %84 = vmatpush1.msra.mxu0 0.0
  %85 = vmatprep.subr.mxu0 0.0
  %86 = vmatpush1.msra.mxu0 0.0
  %87 = vmatprep.subr.mxu0 0.0
  %88 = vmatpush1.msra.mxu0 0.0
  %89 = vmatprep.subr.mxu0 0.0
  %90 = vmatpush1.msra.mxu0 0.0
  %91 = vmatprep.subr.mxu0 0.0
  %92 = vmatpush1.msra.mxu0 0.0
  %93 = vmatprep.subr.mxu0 0.0
  %94 = vmatpush1.msra.mxu0 0.0
  %95 = vmatprep.subr.mxu0 0.0
  %96 = vmatpush1.msra.mxu0 0.0
  %97 = vmatprep.subr.mxu0 0.0
  %98 = vmatpush1.msra.mxu0 0.0
  %99 = vmatprep.subr.mxu0 0.0
  %100 = vmatpush1.msra.mxu0 0.0
  %101 = vmatprep.subr.mxu0 0.0
  %102 = vmatpush1.msra.mxu0 0.0
  %103 = vmatprep.subr.mxu0 0.0
  %104 = vmatpush1.msra.mxu0 0.0
  %105 = vmatprep.subr.mxu0 0.0
  %106 = vmatpush1.msra.mxu0 0.0
  %107 = vmatprep.subr.mxu0 0.0
  %108 = vmatpush1.msra.mxu0 0.0
  %109 = vmatprep.subr.mxu0 0.0
  %110 = vmatpush1.msra.mxu0 0.0
  %111 = vmatprep.subr.mxu0 0.0
  %112 = vmatpush1.msra.mxu0 0.0
  %113 = vmatprep.subr.mxu0 0.0
  %114 = vmatpush1.msra.mxu0 0.0
  %115 = vmatprep.mubr.f32.mxu0 0.0
  %116 = vmatmul.mubr.f32.gmra.mrb[0].mxu0 %v46
  %v117 = vpop.f32.mrb[0].mxu0
  %v118 = vadd.f32 %v37, %v117
  %v119 = vpop.f32.mrb[0].mxu0
  %v120 = vadd.f32 %v41, %v119
  %121 = vmatprep.mubr.f32.mxu0 0.0
  %122 = vmatmul.mubr.f32.gmra.mrb[0].mxu0 %v49
  %v123 = vpop.f32.mrb[0].mxu0
  %v124 = vadd.f32 %v37, %v123
  %v125 = vpop.f32.mrb[0].mxu0
  %v126 = vadd.f32 %v41, %v125
  %127 = vdwg.mxu0
  %128 = vst [vmem:[%s3] sm:$0xff] %v118
  %129 = vst [vmem:[%s3 + $0x8] sm:$0xff] %v120
  %130 = vst [vmem:[%s3 + $0x10] sm:$0xff] %v124
  %131 = vst [vmem:[%s3 + $0x18] sm:$0xff] %v126
  // Predicated region
  $region14: #{forward_core.10} parent=0 // pred_check
    _
  $region15: #{forward_core.10} parent=0 // pred_check_branch
    %133 = sbr.rel (0) target = $region17
  $region16: #{forward_core.10} parent=0 // pred_region
    _
  $region17: #{forward_core.10} parent=0 // pred_fallthru
    _
  // Predicated region
  $region18: #{forward_core.10} parent=0 // pred_check
    _
  $region19: #{forward_core.10} parent=0 // pred_check_branch
    %135 = sbr.rel (0) target = $region21
  $region20: #{forward_core.10} parent=0 // pred_region
    _
  $region21: #{forward_core.10} parent=0 // pred_fallthru
    _

// kernel: forward_core.12
$region0: #{forward_core.12}
  #allocation0 [shape = 'u32[]', space=smem, size = 0x4, offset = 0x4, fixed_abs, tag = 'smem constant byte address 0x4 - core index']
  #allocation1 [shape = 'u32[144,128]{1,0:T(1,128)}', space=vmem, size = 0x12000, scoped, tag = 'internal scratch']
  %s0 = inlined_call_operand.vmem [shape: f32[16,64], index: 0, kind: input, shape index: {}]
  %s1 = inlined_call_operand.vmem [shape: f32[64,72], index: 1, kind: input, shape index: {}]
  %s2 = inlined_call_operand.vmem [shape: f32[1,72], index: 2, kind: input, shape index: {}]
  %s3 = inlined_call_operand.vmem [shape: f32[16,72], index: 3, kind: output, shape index: {}]
  %s4 = sld [smem:[#allocation0]]
  $region22: #{forward_core.12} parent=0
    _
  %s6 = ssub.s32 1, %s4
  %s7 = scalar_select 0, %s6, %s4
  // Predicated region
  $region2: #{forward_core.12} parent=0 // pred_check
    _
  $region3: #{forward_core.12} parent=0 // pred_check_branch
    %9 = sbr.rel (0) target = $region5
  $region4: #{forward_core.12} parent=0 // pred_region
    _
  $region5: #{forward_core.12} parent=0 // pred_fallthru
    _
  // Predicated region
  $region6: #{forward_core.12} parent=0 // pred_check
    _
  $region7: #{forward_core.12} parent=0 // pred_check_branch
    %11 = sbr.rel (0) target = $region9
  $region8: #{forward_core.12} parent=0 // pred_region
    _
  $region9: #{forward_core.12} parent=0 // pred_fallthru
    _
  // Predicated region
  $region10: #{forward_core.12} parent=0 // pred_check
    _
  $region11: #{forward_core.12} parent=0 // pred_check_branch
    %13 = sbr.rel (0) target = $region13
  $region12: #{forward_core.12} parent=0 // pred_region
    _
  $region13: #{forward_core.12} parent=0 // pred_fallthru
    _
  %v14 = vld [vmem:[%s0] sm:$0xff]
  %v15 = vld [vmem:[%s0 + $0x8] sm:$0xff]
  %v16 = vld [vmem:[%s1] sm:$0xff]
  %v17 = vld [vmem:[%s1 + $0x8] sm:$0xff]
  %v18 = vld [vmem:[%s1 + $0x10] sm:$0xff]
  %v19 = vld [vmem:[%s1 + $0x18] sm:$0xff]
  %v20 = vld [vmem:[%s1 + $0x20] sm:$0xff]
  %v21 = vld [vmem:[%s1 + $0x28] sm:$0xff]
  %v22 = vld [vmem:[%s1 + $0x30] sm:$0xff]
  %v23 = vld [vmem:[%s1 + $0x38] sm:$0xff]
  %v24 = vld [vmem:[%s2] sm:$0x1]
  %v26 = vlaneseq
  %v27 = vshrl.u32 %v26, 7
  %v28 = vsub.s32 0, %v27
  %v29 = vrot.slane %v24, %v28
  %vm31 = vcmask 523264
  %v33 = vsel %vm31, %v14, 0
  %v36 = vsel %vm31, %v15, 0
  %38 = vmatprep.subr.mxu0 0.0
  %39 = vmatpush1.msra.mxu0 %v16
  %40 = vmatprep.subr.mxu0 0.0
  %41 = vmatpush1.msra.mxu0 %v17
  %42 = vmatprep.subr.mxu0 0.0
  %43 = vmatpush1.msra.mxu0 %v18
  %44 = vmatprep.subr.mxu0 0.0
  %45 = vmatpush1.msra.mxu0 %v19
  %46 = vmatprep.subr.mxu0 0.0
  %47 = vmatpush1.msra.mxu0 %v20
  %48 = vmatprep.subr.mxu0 0.0
  %49 = vmatpush1.msra.mxu0 %v21
  %50 = vmatprep.subr.mxu0 0.0
  %51 = vmatpush1.msra.mxu0 %v22
  %52 = vmatprep.subr.mxu0 0.0
  %53 = vmatpush1.msra.mxu0 %v23
  %54 = vmatprep.subr.mxu0 0.0
  %55 = vmatpush1.msra.mxu0 0.0
  %56 = vmatprep.subr.mxu0 0.0
  %57 = vmatpush1.msra.mxu0 0.0
  %58 = vmatprep.subr.mxu0 0.0
  %59 = vmatpush1.msra.mxu0 0.0
  %60 = vmatprep.subr.mxu0 0.0
  %61 = vmatpush1.msra.mxu0 0.0
  %62 = vmatprep.subr.mxu0 0.0
  %63 = vmatpush1.msra.mxu0 0.0
  %64 = vmatprep.subr.mxu0 0.0
  %65 = vmatpush1.msra.mxu0 0.0
  %66 = vmatprep.subr.mxu0 0.0
  %67 = vmatpush1.msra.mxu0 0.0
  %68 = vmatprep.subr.mxu0 0.0
  %69 = vmatpush1.msra.mxu0 0.0
  %70 = vmatprep.subr.mxu0 0.0
  %71 = vmatpush1.msra.mxu0 0.0
  %72 = vmatprep.subr.mxu0 0.0
  %73 = vmatpush1.msra.mxu0 0.0
  %74 = vmatprep.subr.mxu0 0.0
  %75 = vmatpush1.msra.mxu0 0.0
  %76 = vmatprep.subr.mxu0 0.0
  %77 = vmatpush1.msra.mxu0 0.0
  %78 = vmatprep.subr.mxu0 0.0
  %79 = vmatpush1.msra.mxu0 0.0
  %80 = vmatprep.subr.mxu0 0.0
  %81 = vmatpush1.msra.mxu0 0.0
  %82 = vmatprep.subr.mxu0 0.0
  %83 = vmatpush1.msra.mxu0 0.0
  %84 = vmatprep.subr.mxu0 0.0
  %85 = vmatpush1.msra.mxu0 0.0
  %86 = vmatprep.subr.mxu0 0.0
  %87 = vmatpush1.msra.mxu0 0.0
  %88 = vmatprep.subr.mxu0 0.0
  %89 = vmatpush1.msra.mxu0 0.0
  %90 = vmatprep.subr.mxu0 0.0
  %91 = vmatpush1.msra.mxu0 0.0
  %92 = vmatprep.subr.mxu0 0.0
  %93 = vmatpush1.msra.mxu0 0.0
  %94 = vmatprep.subr.mxu0 0.0
  %95 = vmatpush1.msra.mxu0 0.0
  %96 = vmatprep.subr.mxu0 0.0
  %97 = vmatpush1.msra.mxu0 0.0
  %98 = vmatprep.subr.mxu0 0.0
  %99 = vmatpush1.msra.mxu0 0.0
  %100 = vmatprep.subr.mxu0 0.0
  %101 = vmatpush1.msra.mxu0 0.0
  %102 = vmatprep.mubr.f32.mxu0 0.0
  %103 = vmatmul.mubr.f32.gmra.mrb[0].mxu0 %v33
  %v104 = vpop.f32.mrb[0].mxu0
  %v105 = vadd.f32 %v29, %v104
  %v106 = vpop.f32.mrb[0].mxu0
  %107 = vmatprep.mubr.f32.mxu0 0.0
  %108 = vmatmul.mubr.f32.gmra.mrb[0].mxu0 %v36
  %v109 = vpop.f32.mrb[0].mxu0
  %v110 = vadd.f32 %v29, %v109
  %v111 = vpop.f32.mrb[0].mxu0
  %112 = vdwg.mxu0
  %vm113 = vcmask 588800
  %114 = vst.msk [vmem:[%s3] sm:$0xff] %vm113, %v105
  %115 = vst.msk [vmem:[%s3 + $0x8] sm:$0xff] %vm113, %v110
  // Predicated region
  $region14: #{forward_core.12} parent=0 // pred_check
    _
  $region15: #{forward_core.12} parent=0 // pred_check_branch
    %117 = sbr.rel (0) target = $region17
  $region16: #{forward_core.12} parent=0 // pred_region
    _
  $region17: #{forward_core.12} parent=0 // pred_fallthru
    _
  // Predicated region
  $region18: #{forward_core.12} parent=0 // pred_check
    _
  $region19: #{forward_core.12} parent=0 // pred_check_branch
    %119 = sbr.rel (0) target = $region21
  $region20: #{forward_core.12} parent=0 // pred_region
    _
  $region21: #{forward_core.12} parent=0 // pred_fallthru
    _

// kernel: forward_core.9
$region0: #{forward_core.9}
  #allocation0 [shape = 'u32[]', space=smem, size = 0x4, offset = 0x4, fixed_abs, tag = 'smem constant byte address 0x4 - core index']
  #allocation1 [shape = 'u32[144,128]{1,0:T(1,128)}', space=vmem, size = 0x12000, scoped, tag = 'internal scratch']
  %s0 = inlined_call_operand.vmem [shape: f32[8,2,256], index: 0, kind: input, shape index: {}]
  %s1 = inlined_call_operand.vmem [shape: f32[8,2,1], index: 1, kind: input, shape index: {}]
  %s2 = inlined_call_operand.vmem [shape: f32[32,128], index: 2, kind: input, shape index: {}]
  %s3 = inlined_call_operand.vmem [shape: f32[32,128], index: 3, kind: input, shape index: {}]
  %s4 = inlined_call_operand.vmem [shape: f32[8,2,32], index: 4, kind: output, shape index: {0}]
  %s5 = inlined_call_operand.vmem [shape: f32[8,2,32], index: 5, kind: output, shape index: {1}]
  %6 = xla_tuple %s4, %s5
  %s7 = sld [smem:[#allocation0]]
  $region34: #{forward_core.9} parent=0
    _
  %s9 = ssub.s32 1, %s7
  %s10 = scalar_select 0, %s9, %s7
  // Predicated region
  $region2: #{forward_core.9} parent=0 // pred_check
    _
  $region3: #{forward_core.9} parent=0 // pred_check_branch
    %12 = sbr.rel (0) target = $region5
  $region4: #{forward_core.9} parent=0 // pred_region
    _
  $region5: #{forward_core.9} parent=0 // pred_fallthru
    _
  // Predicated region
  $region6: #{forward_core.9} parent=0 // pred_check
    _
  $region7: #{forward_core.9} parent=0 // pred_check_branch
    %14 = sbr.rel (0) target = $region9
  $region8: #{forward_core.9} parent=0 // pred_region
    _
  $region9: #{forward_core.9} parent=0 // pred_fallthru
    _
  // Predicated region
  $region10: #{forward_core.9} parent=0 // pred_check
    _
  $region11: #{forward_core.9} parent=0 // pred_check_branch
    %16 = sbr.rel (0) target = $region13
  $region12: #{forward_core.9} parent=0 // pred_region
    _
  $region13: #{forward_core.9} parent=0 // pred_fallthru
    _
  // Predicated region
  $region14: #{forward_core.9} parent=0 // pred_check
    _
  $region15: #{forward_core.9} parent=0 // pred_check_branch
    %18 = sbr.rel (0) target = $region17
  $region16: #{forward_core.9} parent=0 // pred_region
    _
  $region17: #{forward_core.9} parent=0 // pred_fallthru
    _
  %v19 = vld [vmem:[%s2] sm:$0xff]
  %v20 = vld [vmem:[%s2 + $0x8] sm:$0xff]
  %v21 = vld [vmem:[%s2 + $0x10] sm:$0xff]
  %v22 = vld [vmem:[%s2 + $0x18] sm:$0xff]
  %v23 = vld [vmem:[%s3] sm:$0xff]
  %v24 = vld [vmem:[%s3 + $0x8] sm:$0xff]
  %v25 = vld [vmem:[%s3 + $0x10] sm:$0xff]
  %v26 = vld [vmem:[%s3 + $0x18] sm:$0xff]
  %v27 = vld [vmem:[%s0] sm:$0xf]
  %s28 = scalar_lea.vmem %s0, 28
  %v29 = vld [vmem:[%s28] sm:$0xf]
  %v30 = vld [vmem:[%s1] sm:$0x3]
  %vm31 = vcmask 261120
  %v33 = vsel %vm31, 0.0, 0
  %35 = vmatprep.subr.mxu0 0.0
  %36 = vmatpush1.msra.mxu0 %v19
  %37 = vmatprep.subr.mxu0 0.0
  %38 = vmatpush1.msra.mxu0 %v20
  %39 = vmatprep.subr.mxu0 0.0
  %40 = vmatpush1.msra.mxu0 %v21
  %41 = vmatprep.subr.mxu0 0.0
  %42 = vmatpush1.msra.mxu0 %v22
  %43 = vmatprep.subr.mxu0 0.0
  %44 = vmatpush1.msra.mxu0 0.0
  %45 = vmatprep.subr.mxu0 0.0
  %46 = vmatpush1.msra.mxu0 0.0
  %47 = vmatprep.subr.mxu0 0.0
  %48 = vmatpush1.msra.mxu0 0.0
  %49 = vmatprep.subr.mxu0 0.0
  %50 = vmatpush1.msra.mxu0 0.0
  %51 = vmatprep.subr.mxu0 0.0
  %52 = vmatpush1.msra.mxu0 0.0
  %53 = vmatprep.subr.mxu0 0.0
  %54 = vmatpush1.msra.mxu0 0.0
  %55 = vmatprep.subr.mxu0 0.0
  %56 = vmatpush1.msra.mxu0 0.0
  %57 = vmatprep.subr.mxu0 0.0
  %58 = vmatpush1.msra.mxu0 0.0
  %59 = vmatprep.subr.mxu0 0.0
  %60 = vmatpush1.msra.mxu0 0.0
  %61 = vmatprep.subr.mxu0 0.0
  %62 = vmatpush1.msra.mxu0 0.0
  %63 = vmatprep.subr.mxu0 0.0
  %64 = vmatpush1.msra.mxu0 0.0
  %65 = vmatprep.subr.mxu0 0.0
  %66 = vmatpush1.msra.mxu0 0.0
  %67 = vmatprep.subr.mxu0 0.0
  %68 = vmatpush1.msra.mxu0 0.0
  %69 = vmatprep.subr.mxu0 0.0
  %70 = vmatpush1.msra.mxu0 0.0
  %71 = vmatprep.subr.mxu0 0.0
  %72 = vmatpush1.msra.mxu0 0.0
  %73 = vmatprep.subr.mxu0 0.0
  %74 = vmatpush1.msra.mxu0 0.0
  %75 = vmatprep.subr.mxu0 0.0
  %76 = vmatpush1.msra.mxu0 0.0
  %77 = vmatprep.subr.mxu0 0.0
  %78 = vmatpush1.msra.mxu0 0.0
  %79 = vmatprep.subr.mxu0 0.0
  %80 = vmatpush1.msra.mxu0 0.0
  %81 = vmatprep.subr.mxu0 0.0
  %82 = vmatpush1.msra.mxu0 0.0
  %83 = vmatprep.subr.mxu0 0.0
  %84 = vmatpush1.msra.mxu0 0.0
  %85 = vmatprep.subr.mxu0 0.0
  %86 = vmatpush1.msra.mxu0 0.0
  %87 = vmatprep.subr.mxu0 0.0
  %88 = vmatpush1.msra.mxu0 0.0
  %89 = vmatprep.subr.mxu0 0.0
  %90 = vmatpush1.msra.mxu0 0.0
  %91 = vmatprep.subr.mxu0 0.0
  %92 = vmatpush1.msra.mxu0 0.0
  %93 = vmatprep.subr.mxu0 0.0
  %94 = vmatpush1.msra.mxu0 0.0
  %95 = vmatprep.subr.mxu0 0.0
  %96 = vmatpush1.msra.mxu0 0.0
  %97 = vmatprep.subr.mxu0 0.0
  %98 = vmatpush1.msra.mxu0 0.0
  %99 = vmatprep.mubr.f32.mxu0 0.0
  %100 = vmatmul.mubr.f32.gmra.mrb[0].mxu0 %v33
  %v101 = vpop.f32.mrb[0].mxu0
  %v102 = vadd.f32 0.0, %v101
  %v103 = vpop.f32.mrb[0].mxu0
  %104 = vdwg.mxu0
  %v105 = vadd.f32 %v27, %v102
  %v106 = vxor.u32 %v105, 2147483648
  %v107 = vmul.f32 %v106, 1.442695
  %v108 = vpow.pop %v107
  %v109 = vadd.f32 %v108, 1.0
  %v110 = vrcp.pop %v109
  %v111 = vmul.f32 1.0, %v110
  %v112 = vtanh.pop %v105
  %v113 = vmul.f32 %v111, 0.0
  %115 = vrot.lane.b32.xlu0 %v112, 64
  %v116 = vpop.permute.xlu0 %115
  %v118 = vmul.f32 %v111, %v116
  %120 = vrot.lane.b32.xlu0 %v118, 32
  %v121 = vpop.permute.xlu0 %120
  %v123 = vadd.f32 %v113, %v121
  %v124 = vtanh.pop %v123
  %126 = vrot.lane.b32.xlu0 %v124, 64
  %v127 = vpop.permute.xlu0 %126
  %v129 = vmul.f32 %v111, %v127
  %131 = vset.pattern.permute.xlu0 0
  %132 = vperm.xlu0 %131, %v30
  %v133 = vpop.permute.xlu0 %132
  %v137 = vunpack.c.l.s4 1983009808
  %v138 = vunpack.c.0.s8 %v137
  %v139 = vlaneseq
  %v140 = vshrl.u32 %v139, 7
  %v141 = vsub.s32 %v138, %v140
  %v142 = vrot.slane %v129, %v141
  %143 = vrot.lane.b32.xlu0 %v142, 32
  %v144 = vpop.permute.xlu0 %143
  %v146 = vmul.f32 %v133, %v144
  %v147 = vsub.f32 1.0, %v30
  %149 = vset.pattern.permute.xlu0 0
  %150 = vperm.xlu0 %149, %v147
  %v151 = vpop.permute.xlu0 %150
  %v153 = vmul.f32 %v151, 0.0
  %v154 = vadd.f32 %v146, %v153
  %v157 = vunpack.c.l.s4 1983009808
  %v158 = vunpack.c.0.s8 %v157
  %v159 = vlaneseq
  %v160 = vshrl.u32 %v159, 7
  %v161 = vsub.s32 %v158, %v160
  %v162 = vrot.slane %v123, %v161
  %163 = vrot.lane.b32.xlu0 %v162, 96
  %v164 = vpop.permute.xlu0 %163
  %v166 = vmul.f32 %v133, %v164
  %v167 = vadd.f32 %v166, %v153
  %s168 = scalar_lea.vmem %s1, 14
  %v169 = vld [vmem:[%s168] sm:$0x3]
  %170 = vmatprep.subr.mxu0 0.0
  %171 = vmatpush1.msra.mxu0 %v23
  %172 = vmatprep.subr.mxu0 0.0
  %173 = vmatpush1.msra.mxu0 %v24
  %174 = vmatprep.subr.mxu0 0.0
  %175 = vmatpush1.msra.mxu0 %v25
  %176 = vmatprep.subr.mxu0 0.0
  %177 = vmatpush1.msra.mxu0 %v26
  %178 = vmatprep.subr.mxu0 0.0
  %179 = vmatpush1.msra.mxu0 0.0
  %180 = vmatprep.subr.mxu0 0.0
  %181 = vmatpush1.msra.mxu0 0.0
  %182 = vmatprep.subr.mxu0 0.0
  %183 = vmatpush1.msra.mxu0 0.0
  %184 = vmatprep.subr.mxu0 0.0
  %185 = vmatpush1.msra.mxu0 0.0
  %186 = vmatprep.subr.mxu0 0.0
  %187 = vmatpush1.msra.mxu0 0.0
  %188 = vmatprep.subr.mxu0 0.0
  %189 = vmatpush1.msra.mxu0 0.0
  %190 = vmatprep.subr.mxu0 0.0
  %191 = vmatpush1.msra.mxu0 0.0
  %192 = vmatprep.subr.mxu0 0.0
  %193 = vmatpush1.msra.mxu0 0.0
  %194 = vmatprep.subr.mxu0 0.0
  %195 = vmatpush1.msra.mxu0 0.0
  %196 = vmatprep.subr.mxu0 0.0
  %197 = vmatpush1.msra.mxu0 0.0
  %198 = vmatprep.subr.mxu0 0.0
  %199 = vmatpush1.msra.mxu0 0.0
  %200 = vmatprep.subr.mxu0 0.0
  %201 = vmatpush1.msra.mxu0 0.0
  %202 = vmatprep.subr.mxu0 0.0
  %203 = vmatpush1.msra.mxu0 0.0
  %204 = vmatprep.subr.mxu0 0.0
  %205 = vmatpush1.msra.mxu0 0.0
  %206 = vmatprep.subr.mxu0 0.0
  %207 = vmatpush1.msra.mxu0 0.0
  %208 = vmatprep.subr.mxu0 0.0
  %209 = vmatpush1.msra.mxu0 0.0
  %210 = vmatprep.subr.mxu0 0.0
  %211 = vmatpush1.msra.mxu0 0.0
  %212 = vmatprep.subr.mxu0 0.0
  %213 = vmatpush1.msra.mxu0 0.0
  %214 = vmatprep.subr.mxu0 0.0
  %215 = vmatpush1.msra.mxu0 0.0
  %216 = vmatprep.subr.mxu0 0.0
  %217 = vmatpush1.msra.mxu0 0.0
  %218 = vmatprep.subr.mxu0 0.0
  %219 = vmatpush1.msra.mxu0 0.0
  %220 = vmatprep.subr.mxu0 0.0
  %221 = vmatpush1.msra.mxu0 0.0
  %222 = vmatprep.subr.mxu0 0.0
  %223 = vmatpush1.msra.mxu0 0.0
  %224 = vmatprep.subr.mxu0 0.0
  %225 = vmatpush1.msra.mxu0 0.0
  %226 = vmatprep.subr.mxu0 0.0
  %227 = vmatpush1.msra.mxu0 0.0
  %228 = vmatprep.subr.mxu0 0.0
  %229 = vmatpush1.msra.mxu0 0.0
  %230 = vmatprep.subr.mxu0 0.0
  %231 = vmatpush1.msra.mxu0 0.0
  %232 = vmatprep.subr.mxu0 0.0
  %233 = vmatpush1.msra.mxu0 0.0
  %234 = vmatprep.mubr.f32.mxu0 0.0
  %235 = vmatmul.mubr.f32.gmra.mrb[0].mxu0 %v33
  %v236 = vpop.f32.mrb[0].mxu0
  %v237 = vadd.f32 0.0, %v236
  %v238 = vpop.f32.mrb[0].mxu0
  %239 = vdwg.mxu0
  %v241 = vrot.slane %v29, 2
  %v243 = vadd.f32 %v241, %v237
  %v244 = vxor.u32 %v243, 2147483648
  %v245 = vmul.f32 %v244, 1.442695
  %v246 = vpow.pop %v245
  %v247 = vadd.f32 %v246, 1.0
  %v248 = vrcp.pop %v247
  %v249 = vmul.f32 1.0, %v248
  %v250 = vtanh.pop %v243
  %v251 = vmul.f32 %v249, 0.0
  %253 = vrot.lane.b32.xlu0 %v250, 64
  %v254 = vpop.permute.xlu0 %253
  %v256 = vmul.f32 %v249, %v254
  %258 = vrot.lane.b32.xlu0 %v256, 32
  %v259 = vpop.permute.xlu0 %258
  %v261 = vadd.f32 %v251, %v259
  %v262 = vtanh.pop %v261
  %264 = vrot.lane.b32.xlu0 %v262, 64
  %v265 = vpop.permute.xlu0 %264
  %v267 = vmul.f32 %v249, %v265
  %269 = vset.pattern.permute.xlu0 0
  %270 = vperm.xlu0 %269, %v169
  %v271 = vpop.permute.xlu0 %270
  %v275 = vunpack.c.l.s4 1983009808
  %v276 = vunpack.c.0.s8 %v275
  %v277 = vlaneseq
  %v278 = vshrl.u32 %v277, 7
  %v279 = vsub.s32 %v276, %v278
  %v280 = vrot.slane %v267, %v279
  %281 = vrot.lane.b32.xlu0 %v280, 32
  %v282 = vpop.permute.xlu0 %281
  %v284 = vmul.f32 %v271, %v282
  %v285 = vsub.f32 1.0, %v169
  %287 = vset.pattern.permute.xlu0 0
  %288 = vperm.xlu0 %287, %v285
  %v289 = vpop.permute.xlu0 %288
  %v291 = vmul.f32 %v289, 0.0
  %v292 = vadd.f32 %v284, %v291
  %v295 = vunpack.c.l.s4 1983009808
  %v296 = vunpack.c.0.s8 %v295
  %v297 = vlaneseq
  %v298 = vshrl.u32 %v297, 7
  %v299 = vsub.s32 %v296, %v298
  %v300 = vrot.slane %v261, %v299
  %301 = vrot.lane.b32.xlu0 %v300, 96
  %v302 = vpop.permute.xlu0 %301
  %v304 = vmul.f32 %v271, %v302
  %v305 = vadd.f32 %v304, %v291
  %vm306 = vcmask 254976
  %307 = vst.msk [vmem:[%s4] sm:$0x3] %vm306, %v154
  %s308 = scalar_lea.vmem %s5, 14
  %309 = vst.msk [vmem:[%s308] sm:$0x3] %vm306, %v292
  %s310 = scalar_lea.vmem %s0, 4
  %v311 = vld [vmem:[%s310] sm:$0xf]
  %s312 = scalar_lea.vmem %s0, 24
  %v313 = vld [vmem:[%s312] sm:$0xf]
  %s314 = scalar_lea.vmem %s1, 2
  %v315 = vld [vmem:[%s314] sm:$0x3]
  %v317 = vsel %vm31, %v154, 0
  %319 = vmatprep.subr.mxu0 0.0
  %320 = vmatpush1.msra.mxu0 %v19
  %321 = vmatprep.subr.mxu0 0.0
  %322 = vmatpush1.msra.mxu0 %v20
  %323 = vmatprep.subr.mxu0 0.0
  %324 = vmatpush1.msra.mxu0 %v21
  %325 = vmatprep.subr.mxu0 0.0
  %326 = vmatpush1.msra.mxu0 %v22
  %327 = vmatprep.subr.mxu0 0.0
  %328 = vmatpush1.msra.mxu0 0.0
  %329 = vmatprep.subr.mxu0 0.0
  %330 = vmatpush1.msra.mxu0 0.0
  %331 = vmatprep.subr.mxu0 0.0
  %332 = vmatpush1.msra.mxu0 0.0
  %333 = vmatprep.subr.mxu0 0.0
  %334 = vmatpush1.msra.mxu0 0.0
  %335 = vmatprep.subr.mxu0 0.0
  %336 = vmatpush1.msra.mxu0 0.0
  %337 = vmatprep.subr.mxu0 0.0
  %338 = vmatpush1.msra.mxu0 0.0
  %339 = vmatprep.subr.mxu0 0.0
  %340 = vmatpush1.msra.mxu0 0.0
  %341 = vmatprep.subr.mxu0 0.0
  %342 = vmatpush1.msra.mxu0 0.0
  %343 = vmatprep.subr.mxu0 0.0
  %344 = vmatpush1.msra.mxu0 0.0
  %345 = vmatprep.subr.mxu0 0.0
  %346 = vmatpush1.msra.mxu0 0.0
  %347 = vmatprep.subr.mxu0 0.0
  %348 = vmatpush1.msra.mxu0 0.0
  %349 = vmatprep.subr.mxu0 0.0
  %350 = vmatpush1.msra.mxu0 0.0
  %351 = vmatprep.subr.mxu0 0.0
  %352 = vmatpush1.msra.mxu0 0.0
  %353 = vmatprep.subr.mxu0 0.0
  %354 = vmatpush1.msra.mxu0 0.0
  %355 = vmatprep.subr.mxu0 0.0
  %356 = vmatpush1.msra.mxu0 0.0
  %357 = vmatprep.subr.mxu0 0.0
  %358 = vmatpush1.msra.mxu0 0.0
  %359 = vmatprep.subr.mxu0 0.0
  %360 = vmatpush1.msra.mxu0 0.0
  %361 = vmatprep.subr.mxu0 0.0
  %362 = vmatpush1.msra.mxu0 0.0
  %363 = vmatprep.subr.mxu0 0.0
  %364 = vmatpush1.msra.mxu0 0.0
  %365 = vmatprep.subr.mxu0 0.0
  %366 = vmatpush1.msra.mxu0 0.0
  %367 = vmatprep.subr.mxu0 0.0
  %368 = vmatpush1.msra.mxu0 0.0
  %369 = vmatprep.subr.mxu0 0.0
  %370 = vmatpush1.msra.mxu0 0.0
  %371 = vmatprep.subr.mxu0 0.0
  %372 = vmatpush1.msra.mxu0 0.0
  %373 = vmatprep.subr.mxu0 0.0
  %374 = vmatpush1.msra.mxu0 0.0
  %375 = vmatprep.subr.mxu0 0.0
  %376 = vmatpush1.msra.mxu0 0.0
  %377 = vmatprep.subr.mxu0 0.0
  %378 = vmatpush1.msra.mxu0 0.0
  %379 = vmatprep.subr.mxu0 0.0
  %380 = vmatpush1.msra.mxu0 0.0
  %381 = vmatprep.subr.mxu0 0.0
  %382 = vmatpush1.msra.mxu0 0.0
  %383 = vmatprep.mubr.f32.mxu0 0.0
  %384 = vmatmul.mubr.f32.gmra.mrb[0].mxu0 %v317
  %v385 = vpop.f32.mrb[0].mxu0
  %v386 = vadd.f32 0.0, %v385
  %v387 = vpop.f32.mrb[0].mxu0
  %388 = vdwg.mxu0
  %v389 = vadd.f32 %v311, %v386
  %v390 = vxor.u32 %v389, 2147483648
  %v391 = vmul.f32 %v390, 1.442695
  %v392 = vpow.pop %v391
  %v393 = vadd.f32 %v392, 1.0
  %v394 = vrcp.pop %v393
  %v395 = vmul.f32 1.0, %v394
  %v396 = vtanh.pop %v389
  %v399 = vunpack.c.l.s4 1983009808
  %v400 = vunpack.c.0.s8 %v399
  %v401 = vlaneseq
  %v402 = vshrl.u32 %v401, 7
  %v403 = vsub.s32 %v400, %v402
  %v404 = vrot.slane %v167, %v403
  %405 = vrot.lane.b32.xlu0 %v404, 32
  %v406 = vpop.permute.xlu0 %405
  %v408 = vmul.f32 %v395, %v406
  %410 = vrot.lane.b32.xlu0 %v396, 64
  %v411 = vpop.permute.xlu0 %410
  %v413 = vmul.f32 %v395, %v411
  %415 = vrot.lane.b32.xlu0 %v413, 32
  %v416 = vpop.permute.xlu0 %415
  %v418 = vadd.f32 %v408, %v416
  %v419 = vtanh.pop %v418
  %421 = vrot.lane.b32.xlu0 %v419, 64
  %v422 = vpop.permute.xlu0 %421
  %v424 = vmul.f32 %v395, %v422
  %426 = vset.pattern.permute.xlu0 0
  %427 = vperm.xlu0 %426, %v315
  %v428 = vpop.permute.xlu0 %427
  %v432 = vunpack.c.l.s4 1983009808
  %v433 = vunpack.c.0.s8 %v432
  %v434 = vlaneseq
  %v435 = vshrl.u32 %v434, 7
  %v436 = vsub.s32 %v433, %v435
  %v437 = vrot.slane %v424, %v436
  %438 = vrot.lane.b32.xlu0 %v437, 32
  %v439 = vpop.permute.xlu0 %438
  %v441 = vmul.f32 %v428, %v439
  %v442 = vsub.f32 1.0, %v315
  %444 = vset.pattern.permute.xlu0 0
  %445 = vperm.xlu0 %444, %v442
  %v446 = vpop.permute.xlu0 %445
  %v448 = vmul.f32 %v446, %v154
  %v449 = vadd.f32 %v441, %v448
  %v452 = vunpack.c.l.s4 1983009808
  %v453 = vunpack.c.0.s8 %v452
  %v454 = vlaneseq
  %v455 = vshrl.u32 %v454, 7
  %v456 = vsub.s32 %v453, %v455
  %v457 = vrot.slane %v418, %v456
  %458 = vrot.lane.b32.xlu0 %v457, 96
  %v459 = vpop.permute.xlu0 %458
  %v461 = vmul.f32 %v428, %v459
  %v462 = vmul.f32 %v446, %v167
  %v463 = vadd.f32 %v461, %v462
  %s464 = scalar_lea.vmem %s1, 12
  %v465 = vld [vmem:[%s464] sm:$0x3]
  %v467 = vsel %vm31, %v292, 0
  %469 = vmatprep.subr.mxu0 0.0
  %470 = vmatpush1.msra.mxu0 %v23
  %471 = vmatprep.subr.mxu0 0.0
  %472 = vmatpush1.msra.mxu0 %v24
  %473 = vmatprep.subr.mxu0 0.0
  %474 = vmatpush1.msra.mxu0 %v25
  %475 = vmatprep.subr.mxu0 0.0
  %476 = vmatpush1.msra.mxu0 %v26
  %477 = vmatprep.subr.mxu0 0.0
  %478 = vmatpush1.msra.mxu0 0.0
  %479 = vmatprep.subr.mxu0 0.0
  %480 = vmatpush1.msra.mxu0 0.0
  %481 = vmatprep.subr.mxu0 0.0
  %482 = vmatpush1.msra.mxu0 0.0
  %483 = vmatprep.subr.mxu0 0.0
  %484 = vmatpush1.msra.mxu0 0.0
  %485 = vmatprep.subr.mxu0 0.0
  %486 = vmatpush1.msra.mxu0 0.0
  %487 = vmatprep.subr.mxu0 0.0
  %488 = vmatpush1.msra.mxu0 0.0
  %489 = vmatprep.subr.mxu0 0.0
  %490 = vmatpush1.msra.mxu0 0.0
  %491 = vmatprep.subr.mxu0 0.0
  %492 = vmatpush1.msra.mxu0 0.0
  %493 = vmatprep.subr.mxu0 0.0
  %494 = vmatpush1.msra.mxu0 0.0
  %495 = vmatprep.subr.mxu0 0.0
  %496 = vmatpush1.msra.mxu0 0.0
  %497 = vmatprep.subr.mxu0 0.0
  %498 = vmatpush1.msra.mxu0 0.0
  %499 = vmatprep.subr.mxu0 0.0
  %500 = vmatpush1.msra.mxu0 0.0
  %501 = vmatprep.subr.mxu0 0.0
  %502 = vmatpush1.msra.mxu0 0.0
  %503 = vmatprep.subr.mxu0 0.0
  %504 = vmatpush1.msra.mxu0 0.0
  %505 = vmatprep.subr.mxu0 0.0
  %506 = vmatpush1.msra.mxu0 0.0
  %507 = vmatprep.subr.mxu0 0.0
  %508 = vmatpush1.msra.mxu0 0.0
  %509 = vmatprep.subr.mxu0 0.0
  %510 = vmatpush1.msra.mxu0 0.0
  %511 = vmatprep.subr.mxu0 0.0
  %512 = vmatpush1.msra.mxu0 0.0
  %513 = vmatprep.subr.mxu0 0.0
  %514 = vmatpush1.msra.mxu0 0.0
  %515 = vmatprep.subr.mxu0 0.0
  %516 = vmatpush1.msra.mxu0 0.0
  %517 = vmatprep.subr.mxu0 0.0
  %518 = vmatpush1.msra.mxu0 0.0
  %519 = vmatprep.subr.mxu0 0.0
  %520 = vmatpush1.msra.mxu0 0.0
  %521 = vmatprep.subr.mxu0 0.0
  %522 = vmatpush1.msra.mxu0 0.0
  %523 = vmatprep.subr.mxu0 0.0
  %524 = vmatpush1.msra.mxu0 0.0
  %525 = vmatprep.subr.mxu0 0.0
  %526 = vmatpush1.msra.mxu0 0.0
  %527 = vmatprep.subr.mxu0 0.0
  %528 = vmatpush1.msra.mxu0 0.0
  %529 = vmatprep.subr.mxu0 0.0
  %530 = vmatpush1.msra.mxu0 0.0
  %531 = vmatprep.subr.mxu0 0.0
  %532 = vmatpush1.msra.mxu0 0.0
  %533 = vmatprep.mubr.f32.mxu0 0.0
  %534 = vmatmul.mubr.f32.gmra.mrb[0].mxu0 %v467
  %v535 = vpop.f32.mrb[0].mxu0
  %v536 = vadd.f32 0.0, %v535
  %v537 = vpop.f32.mrb[0].mxu0
  %538 = vdwg.mxu0
  %v540 = vrot.slane %v313, 2
  %v542 = vadd.f32 %v540, %v536
  %v543 = vxor.u32 %v542, 2147483648
  %v544 = vmul.f32 %v543, 1.442695
  %v545 = vpow.pop %v544
  %v546 = vadd.f32 %v545, 1.0
  %v547 = vrcp.pop %v546
  %v548 = vmul.f32 1.0, %v547
  %v549 = vtanh.pop %v542
  %v552 = vunpack.c.l.s4 1983009808
  %v553 = vunpack.c.0.s8 %v552
  %v554 = vlaneseq
  %v555 = vshrl.u32 %v554, 7
  %v556 = vsub.s32 %v553, %v555
  %v557 = vrot.slane %v305, %v556
  %558 = vrot.lane.b32.xlu0 %v557, 32
  %v559 = vpop.permute.xlu0 %558
  %v561 = vmul.f32 %v548, %v559
  %563 = vrot.lane.b32.xlu0 %v549, 64
  %v564 = vpop.permute.xlu0 %563
  %v566 = vmul.f32 %v548, %v564
  %568 = vrot.lane.b32.xlu0 %v566, 32
  %v569 = vpop.permute.xlu0 %568
  %v571 = vadd.f32 %v561, %v569
  %v572 = vtanh.pop %v571
  %574 = vrot.lane.b32.xlu0 %v572, 64
  %v575 = vpop.permute.xlu0 %574
  %v577 = vmul.f32 %v548, %v575
  %579 = vset.pattern.permute.xlu0 0
  %580 = vperm.xlu0 %579, %v465
  %v581 = vpop.permute.xlu0 %580
  %v585 = vunpack.c.l.s4 1983009808
  %v586 = vunpack.c.0.s8 %v585
  %v587 = vlaneseq
  %v588 = vshrl.u32 %v587, 7
  %v589 = vsub.s32 %v586, %v588
  %v590 = vrot.slane %v577, %v589
  %591 = vrot.lane.b32.xlu0 %v590, 32
  %v592 = vpop.permute.xlu0 %591
  %v594 = vmul.f32 %v581, %v592
  %v595 = vsub.f32 1.0, %v465
  %597 = vset.pattern.permute.xlu0 0
  %598 = vperm.xlu0 %597, %v595
  %v599 = vpop.permute.xlu0 %598
  %v601 = vmul.f32 %v599, %v292
  %v602 = vadd.f32 %v594, %v601
  %v605 = vunpack.c.l.s4 1983009808
  %v606 = vunpack.c.0.s8 %v605
  %v607 = vlaneseq
  %v608 = vshrl.u32 %v607, 7
  %v609 = vsub.s32 %v606, %v608
  %v610 = vrot.slane %v571, %v609
  %611 = vrot.lane.b32.xlu0 %v610, 96
  %v612 = vpop.permute.xlu0 %611
  %v614 = vmul.f32 %v581, %v612
  %v615 = vmul.f32 %v599, %v305
  %v616 = vadd.f32 %v614, %v615
  %s617 = scalar_lea.vmem %s4, 2
  %618 = vst.msk [vmem:[%s617] sm:$0x3] %vm306, %v449
  %s619 = scalar_lea.vmem %s5, 12
  %620 = vst.msk [vmem:[%s619] sm:$0x3] %vm306, %v602
  %s621 = scalar_lea.vmem %s0, 8
  %v622 = vld [vmem:[%s621] sm:$0xf]
  %s623 = scalar_lea.vmem %s0, 20
  %v624 = vld [vmem:[%s623] sm:$0xf]
  %s625 = scalar_lea.vmem %s1, 4
  %v626 = vld [vmem:[%s625] sm:$0x3]
  %v628 = vsel %vm31, %v449, 0
  %630 = vmatprep.subr.mxu0 0.0
  %631 = vmatpush1.msra.mxu0 %v19
  %632 = vmatprep.subr.mxu0 0.0
  %633 = vmatpush1.msra.mxu0 %v20
  %634 = vmatprep.subr.mxu0 0.0
  %635 = vmatpush1.msra.mxu0 %v21
  %636 = vmatprep.subr.mxu0 0.0
  %637 = vmatpush1.msra.mxu0 %v22
  %638 = vmatprep.subr.mxu0 0.0
  %639 = vmatpush1.msra.mxu0 0.0
  %640 = vmatprep.subr.mxu0 0.0
  %641 = vmatpush1.msra.mxu0 0.0
  %642 = vmatprep.subr.mxu0 0.0
  %643 = vmatpush1.msra.mxu0 0.0
  %644 = vmatprep.subr.mxu0 0.0
  %645 = vmatpush1.msra.mxu0 0.0
  %646 = vmatprep.subr.mxu0 0.0
  %647 = vmatpush1.msra.mxu0 0.0
  %648 = vmatprep.subr.mxu0 0.0
  %649 = vmatpush1.msra.mxu0 0.0
  %650 = vmatprep.subr.mxu0 0.0
  %651 = vmatpush1.msra.mxu0 0.0
  %652 = vmatprep.subr.mxu0 0.0
  %653 = vmatpush1.msra.mxu0 0.0
  %654 = vmatprep.subr.mxu0 0.0
  %655 = vmatpush1.msra.mxu0 0.0
  %656 = vmatprep.subr.mxu0 0.0
  %657 = vmatpush1.msra.mxu0 0.0
  %658 = vmatprep.subr.mxu0 0.0
  %659 = vmatpush1.msra.mxu0 0.0
  %660 = vmatprep.subr.mxu0 0.0
  %661 = vmatpush1.msra.mxu0 0.0
  %662 = vmatprep.subr.mxu0 0.0
  %663 = vmatpush1.msra.mxu0 0.0
  %664 = vmatprep.subr.mxu0 0.0
  %665 = vmatpush1.msra.mxu0 0.0
  %666 = vmatprep.subr.mxu0 0.0
  %667 = vmatpush1.msra.mxu0 0.0
  %668 = vmatprep.subr.mxu0 0.0
  %669 = vmatpush1.msra.mxu0 0.0
  %670 = vmatprep.subr.mxu0 0.0
  %671 = vmatpush1.msra.mxu0 0.0
  %672 = vmatprep.subr.mxu0 0.0
  %673 = vmatpush1.msra.mxu0 0.0
  %674 = vmatprep.subr.mxu0 0.0
  %675 = vmatpush1.msra.mxu0 0.0
  %676 = vmatprep.subr.mxu0 0.0
  %677 = vmatpush1.msra.mxu0 0.0
  %678 = vmatprep.subr.mxu0 0.0
  %679 = vmatpush1.msra.mxu0 0.0
  %680 = vmatprep.subr.mxu0 0.0
  %681 = vmatpush1.msra.mxu0 0.0
  %682 = vmatprep.subr.mxu0 0.0
  %683 = vmatpush1.msra.mxu0 0.0
  %684 = vmatprep.subr.mxu0 0.0
  %685 = vmatpush1.msra.mxu0 0.0
  %686 = vmatprep.subr.mxu0 0.0
  %687 = vmatpush1.msra.mxu0 0.0
  %688 = vmatprep.subr.mxu0 0.0
  %689 = vmatpush1.msra.mxu0 0.0
  %690 = vmatprep.subr.mxu0 0.0
  %691 = vmatpush1.msra.mxu0 0.0
  %692 = vmatprep.subr.mxu0 0.0
  %693 = vmatpush1.msra.mxu0 0.0
  %694 = vmatprep.mubr.f32.mxu0 0.0
  %695 = vmatmul.mubr.f32.gmra.mrb[0].mxu0 %v628
  %v696 = vpop.f32.mrb[0].mxu0
  %v697 = vadd.f32 0.0, %v696
  %v698 = vpop.f32.mrb[0].mxu0
  %699 = vdwg.mxu0
  %v700 = vadd.f32 %v622, %v697
  %v701 = vxor.u32 %v700, 2147483648
  %v702 = vmul.f32 %v701, 1.442695
  %v703 = vpow.pop %v702
  %v704 = vadd.f32 %v703, 1.0
  %v705 = vrcp.pop %v704
  %v706 = vmul.f32 1.0, %v705
  %v707 = vtanh.pop %v700
  %v710 = vunpack.c.l.s4 1983009808
  %v711 = vunpack.c.0.s8 %v710
  %v712 = vlaneseq
  %v713 = vshrl.u32 %v712, 7
  %v714 = vsub.s32 %v711, %v713
  %v715 = vrot.slane %v463, %v714
  %716 = vrot.lane.b32.xlu0 %v715, 32
  %v717 = vpop.permute.xlu0 %716
  %v719 = vmul.f32 %v706, %v717
  %721 = vrot.lane.b32.xlu0 %v707, 64
  %v722 = vpop.permute.xlu0 %721
  %v724 = vmul.f32 %v706, %v722
  %726 = vrot.lane.b32.xlu0 %v724, 32
  %v727 = vpop.permute.xlu0 %726
  %v729 = vadd.f32 %v719, %v727
  %v730 = vtanh.pop %v729
  %732 = vrot.lane.b32.xlu0 %v730, 64
  %v733 = vpop.permute.xlu0 %732
  %v735 = vmul.f32 %v706, %v733
  %737 = vset.pattern.permute.xlu0 0
  %738 = vperm.xlu0 %737, %v626
  %v739 = vpop.permute.xlu0 %738
  %v743 = vunpack.c.l.s4 1983009808
  %v744 = vunpack.c.0.s8 %v743
  %v745 = vlaneseq
  %v746 = vshrl.u32 %v745, 7
  %v747 = vsub.s32 %v744, %v746
  %v748 = vrot.slane %v735, %v747
  %749 = vrot.lane.b32.xlu0 %v748, 32
  %v750 = vpop.permute.xlu0 %749
  %v752 = vmul.f32 %v739, %v750
  %v753 = vsub.f32 1.0, %v626
  %755 = vset.pattern.permute.xlu0 0
  %756 = vperm.xlu0 %755, %v753
  %v757 = vpop.permute.xlu0 %756
  %v759 = vmul.f32 %v757, %v449
  %v760 = vadd.f32 %v752, %v759
  %v763 = vunpack.c.l.s4 1983009808
  %v764 = vunpack.c.0.s8 %v763
  %v765 = vlaneseq
  %v766 = vshrl.u32 %v765, 7
  %v767 = vsub.s32 %v764, %v766
  %v768 = vrot.slane %v729, %v767
  %769 = vrot.lane.b32.xlu0 %v768, 96
  %v770 = vpop.permute.xlu0 %769
  %v772 = vmul.f32 %v739, %v770
  %v773 = vmul.f32 %v757, %v463
  %v774 = vadd.f32 %v772, %v773
  %s775 = scalar_lea.vmem %s1, 10
  %v776 = vld [vmem:[%s775] sm:$0x3]
  %v778 = vsel %vm31, %v602, 0
  %780 = vmatprep.subr.mxu0 0.0
  %781 = vmatpush1.msra.mxu0 %v23
  %782 = vmatprep.subr.mxu0 0.0
  %783 = vmatpush1.msra.mxu0 %v24
  %784 = vmatprep.subr.mxu0 0.0
  %785 = vmatpush1.msra.mxu0 %v25
  %786 = vmatprep.subr.mxu0 0.0
  %787 = vmatpush1.msra.mxu0 %v26
  %788 = vmatprep.subr.mxu0 0.0
  %789 = vmatpush1.msra.mxu0 0.0
  %790 = vmatprep.subr.mxu0 0.0
  %791 = vmatpush1.msra.mxu0 0.0
  %792 = vmatprep.subr.mxu0 0.0
  %793 = vmatpush1.msra.mxu0 0.0
  %794 = vmatprep.subr.mxu0 0.0
  %795 = vmatpush1.msra.mxu0 0.0
  %796 = vmatprep.subr.mxu0 0.0
  %797 = vmatpush1.msra.mxu0 0.0
  %798 = vmatprep.subr.mxu0 0.0
  %799 = vmatpush1.msra.mxu0 0.0
  %800 = vmatprep.subr.mxu0 0.0
  %801 = vmatpush1.msra.mxu0 0.0
  %802 = vmatprep.subr.mxu0 0.0
  %803 = vmatpush1.msra.mxu0 0.0
  %804 = vmatprep.subr.mxu0 0.0
  %805 = vmatpush1.msra.mxu0 0.0
  %806 = vmatprep.subr.mxu0 0.0
  %807 = vmatpush1.msra.mxu0 0.0
  %808 = vmatprep.subr.mxu0 0.0
  %809 = vmatpush1.msra.mxu0 0.0
  %810 = vmatprep.subr.mxu0 0.0
  %811 = vmatpush1.msra.mxu0 0.0
  %812 = vmatprep.subr.mxu0 0.0
  %813 = vmatpush1.msra.mxu0 0.0
  %814 = vmatprep.subr.mxu0 0.0
  %815 = vmatpush1.msra.mxu0 0.0
  %816 = vmatprep.subr.mxu0 0.0
  %817 = vmatpush1.msra.mxu0 0.0
  %818 = vmatprep.subr.mxu0 0.0
  %819 = vmatpush1.msra.mxu0 0.0
  %820 = vmatprep.subr.mxu0 0.0
  %821 = vmatpush1.msra.mxu0 0.0
  %822 = vmatprep.subr.mxu0 0.0
  %823 = vmatpush1.msra.mxu0 0.0
  %824 = vmatprep.subr.mxu0 0.0
  %825 = vmatpush1.msra.mxu0 0.0
  %826 = vmatprep.subr.mxu0 0.0
  %827 = vmatpush1.msra.mxu0 0.0
  %828 = vmatprep.subr.mxu0 0.0
  %829 = vmatpush1.msra.mxu0 0.0
  %830 = vmatprep.subr.mxu0 0.0
  %831 = vmatpush1.msra.mxu0 0.0
  %832 = vmatprep.subr.mxu0 0.0
  %833 = vmatpush1.msra.mxu0 0.0
  %834 = vmatprep.subr.mxu0 0.0
  %835 = vmatpush1.msra.mxu0 0.0
  %836 = vmatprep.subr.mxu0 0.0
  %837 = vmatpush1.msra.mxu0 0.0
  %838 = vmatprep.subr.mxu0 0.0
  %839 = vmatpush1.msra.mxu0 0.0
  %840 = vmatprep.subr.mxu0 0.0
  %841 = vmatpush1.msra.mxu0 0.0
  %842 = vmatprep.subr.mxu0 0.0
  %843 = vmatpush1.msra.mxu0 0.0
  %844 = vmatprep.mubr.f32.mxu0 0.0
  %845 = vmatmul.mubr.f32.gmra.mrb[0].mxu0 %v778
  %v846 = vpop.f32.mrb[0].mxu0
  %v847 = vadd.f32 0.0, %v846
  %v848 = vpop.f32.mrb[0].mxu0
  %849 = vdwg.mxu0
  %v851 = vrot.slane %v624, 2
  %v853 = vadd.f32 %v851, %v847
  %v854 = vxor.u32 %v853, 2147483648
  %v855 = vmul.f32 %v854, 1.442695
  %v856 = vpow.pop %v855
  %v857 = vadd.f32 %v856, 1.0
  %v858 = vrcp.pop %v857
  %v859 = vmul.f32 1.0, %v858
  %v860 = vtanh.pop %v853
  %v863 = vunpack.c.l.s4 1983009808
  %v864 = vunpack.c.0.s8 %v863
  %v865 = vlaneseq
  %v866 = vshrl.u32 %v865, 7
  %v867 = vsub.s32 %v864, %v866
  %v868 = vrot.slane %v616, %v867
  %869 = vrot.lane.b32.xlu0 %v868, 32
  %v870 = vpop.permute.xlu0 %869
  %v872 = vmul.f32 %v859, %v870
  %874 = vrot.lane.b32.xlu0 %v860, 64
  %v875 = vpop.permute.xlu0 %874
  %v877 = vmul.f32 %v859, %v875
  %879 = vrot.lane.b32.xlu0 %v877, 32
  %v880 = vpop.permute.xlu0 %879
  %v882 = vadd.f32 %v872, %v880
  %v883 = vtanh.pop %v882
  %885 = vrot.lane.b32.xlu0 %v883, 64
  %v886 = vpop.permute.xlu0 %885
  %v888 = vmul.f32 %v859, %v886
  %890 = vset.pattern.permute.xlu0 0
  %891 = vperm.xlu0 %890, %v776
  %v892 = vpop.permute.xlu0 %891
  %v896 = vunpack.c.l.s4 1983009808
  %v897 = vunpack.c.0.s8 %v896
  %v898 = vlaneseq
  %v899 = vshrl.u32 %v898, 7
  %v900 = vsub.s32 %v897, %v899
  %v901 = vrot.slane %v888, %v900
  %902 = vrot.lane.b32.xlu0 %v901, 32
  %v903 = vpop.permute.xlu0 %902
  %v905 = vmul.f32 %v892, %v903
  %v906 = vsub.f32 1.0, %v776
  %908 = vset.pattern.permute.xlu0 0
  %909 = vperm.xlu0 %908, %v906
  %v910 = vpop.permute.xlu0 %909
  %v912 = vmul.f32 %v910, %v602
  %v913 = vadd.f32 %v905, %v912
  %v916 = vunpack.c.l.s4 1983009808
  %v917 = vunpack.c.0.s8 %v916
  %v918 = vlaneseq
  %v919 = vshrl.u32 %v918, 7
  %v920 = vsub.s32 %v917, %v919
  %v921 = vrot.slane %v882, %v920
  %922 = vrot.lane.b32.xlu0 %v921, 96
  %v923 = vpop.permute.xlu0 %922
  %v925 = vmul.f32 %v892, %v923
  %v926 = vmul.f32 %v910, %v616
  %v927 = vadd.f32 %v925, %v926
  %s928 = scalar_lea.vmem %s4, 4
  %929 = vst.msk [vmem:[%s928] sm:$0x3] %vm306, %v760
  %s930 = scalar_lea.vmem %s5, 10
  %931 = vst.msk [vmem:[%s930] sm:$0x3] %vm306, %v913
  %s932 = scalar_lea.vmem %s0, 12
  %v933 = vld [vmem:[%s932] sm:$0xf]
  %s934 = scalar_lea.vmem %s0, 16
  %v935 = vld [vmem:[%s934] sm:$0xf]
  %s936 = scalar_lea.vmem %s1, 6
  %v937 = vld [vmem:[%s936] sm:$0x3]
  %v939 = vsel %vm31, %v760, 0
  %941 = vmatprep.subr.mxu0 0.0
  %942 = vmatpush1.msra.mxu0 %v19
  %943 = vmatprep.subr.mxu0 0.0
  %944 = vmatpush1.msra.mxu0 %v20
  %945 = vmatprep.subr.mxu0 0.0
  %946 = vmatpush1.msra.mxu0 %v21
  %947 = vmatprep.subr.mxu0 0.0
  %948 = vmatpush1.msra.mxu0 %v22
  %949 = vmatprep.subr.mxu0 0.0
  %950 = vmatpush1.msra.mxu0 0.0
  %951 = vmatprep.subr.mxu0 0.0
  %952 = vmatpush1.msra.mxu0 0.0
  %953 = vmatprep.subr.mxu0 0.0
  %954 = vmatpush1.msra.mxu0 0.0
  %955 = vmatprep.subr.mxu0 0.0
  %956 = vmatpush1.msra.mxu0 0.0
  %957 = vmatprep.subr.mxu0 0.0
  %958 = vmatpush1.msra.mxu0 0.0
  %959 = vmatprep.subr.mxu0 0.0
  %960 = vmatpush1.msra.mxu0 0.0
  %961 = vmatprep.subr.mxu0 0.0
  %962 = vmatpush1.msra.mxu0 0.0
  %963 = vmatprep.subr.mxu0 0.0
  %964 = vmatpush1.msra.mxu0 0.0
  %965 = vmatprep.subr.mxu0 0.0
  %966 = vmatpush1.msra.mxu0 0.0
  %967 = vmatprep.subr.mxu0 0.0
  %968 = vmatpush1.msra.mxu0 0.0
  %969 = vmatprep.subr.mxu0 0.0
  %970 = vmatpush1.msra.mxu0 0.0
  %971 = vmatprep.subr.mxu0 0.0
  %972 = vmatpush1.msra.mxu0 0.0
  %973 = vmatprep.subr.mxu0 0.0
  %974 = vmatpush1.msra.mxu0 0.0
  %975 = vmatprep.subr.mxu0 0.0
  %976 = vmatpush1.msra.mxu0 0.0
  %977 = vmatprep.subr.mxu0 0.0
  %978 = vmatpush1.msra.mxu0 0.0
  %979 = vmatprep.subr.mxu0 0.0
  %980 = vmatpush1.msra.mxu0 0.0
  %981 = vmatprep.subr.mxu0 0.0
  %982 = vmatpush1.msra.mxu0 0.0
  %983 = vmatprep.subr.mxu0 0.0
  %984 = vmatpush1.msra.mxu0 0.0
  %985 = vmatprep.subr.mxu0 0.0
  %986 = vmatpush1.msra.mxu0 0.0
  %987 = vmatprep.subr.mxu0 0.0
  %988 = vmatpush1.msra.mxu0 0.0
  %989 = vmatprep.subr.mxu0 0.0
  %990 = vmatpush1.msra.mxu0 0.0
  %991 = vmatprep.subr.mxu0 0.0
  %992 = vmatpush1.msra.mxu0 0.0
  %993 = vmatprep.subr.mxu0 0.0
  %994 = vmatpush1.msra.mxu0 0.0
  %995 = vmatprep.subr.mxu0 0.0
  %996 = vmatpush1.msra.mxu0 0.0
  %997 = vmatprep.subr.mxu0 0.0
  %998 = vmatpush1.msra.mxu0 0.0
  %999 = vmatprep.subr.mxu0 0.0
  %1000 = vmatpush1.msra.mxu0 0.0
  %1001 = vmatprep.subr.mxu0 0.0
  %1002 = vmatpush1.msra.mxu0 0.0
  %1003 = vmatprep.subr.mxu0 0.0
  %1004 = vmatpush1.msra.mxu0 0.0
  %1005 = vmatprep.mubr.f32.mxu0 0.0
  %1006 = vmatmul.mubr.f32.gmra.mrb[0].mxu0 %v939
  %v1007 = vpop.f32.mrb[0].mxu0
  %v1008 = vadd.f32 0.0, %v1007
  %v1009 = vpop.f32.mrb[0].mxu0
  %1010 = vdwg.mxu0
  %v1011 = vadd.f32 %v933, %v1008
  %v1012 = vxor.u32 %v1011, 2147483648
  %v1013 = vmul.f32 %v1012, 1.442695
  %v1014 = vpow.pop %v1013
  %v1015 = vadd.f32 %v1014, 1.0
  %v1016 = vrcp.pop %v1015
  %v1017 = vmul.f32 1.0, %v1016
  %v1018 = vtanh.pop %v1011
  %v1021 = vunpack.c.l.s4 1983009808
  %v1022 = vunpack.c.0.s8 %v1021
  %v1023 = vlaneseq
  %v1024 = vshrl.u32 %v1023, 7
  %v1025 = vsub.s32 %v1022, %v1024
  %v1026 = vrot.slane %v774, %v1025
  %1027 = vrot.lane.b32.xlu0 %v1026, 32
  %v1028 = vpop.permute.xlu0 %1027
  %v1030 = vmul.f32 %v1017, %v1028
  %1032 = vrot.lane.b32.xlu0 %v1018, 64
  %v1033 = vpop.permute.xlu0 %1032
  %v1035 = vmul.f32 %v1017, %v1033
  %1037 = vrot.lane.b32.xlu0 %v1035, 32
  %v1038 = vpop.permute.xlu0 %1037
  %v1040 = vadd.f32 %v1030, %v1038
  %v1041 = vtanh.pop %v1040
  %1043 = vrot.lane.b32.xlu0 %v1041, 64
  %v1044 = vpop.permute.xlu0 %1043
  %v1046 = vmul.f32 %v1017, %v1044
  %1048 = vset.pattern.permute.xlu0 0
  %1049 = vperm.xlu0 %1048, %v937
  %v1050 = vpop.permute.xlu0 %1049
  %v1054 = vunpack.c.l.s4 1983009808
  %v1055 = vunpack.c.0.s8 %v1054
  %v1056 = vlaneseq
  %v1057 = vshrl.u32 %v1056, 7
  %v1058 = vsub.s32 %v1055, %v1057
  %v1059 = vrot.slane %v1046, %v1058
  %1060 = vrot.lane.b32.xlu0 %v1059, 32
  %v1061 = vpop.permute.xlu0 %1060
  %v1063 = vmul.f32 %v1050, %v1061
  %v1064 = vsub.f32 1.0, %v937
  %1066 = vset.pattern.permute.xlu0 0
  %1067 = vperm.xlu0 %1066, %v1064
  %v1068 = vpop.permute.xlu0 %1067
  %v1070 = vmul.f32 %v1068, %v760
  %v1071 = vadd.f32 %v1063, %v1070
  %v1074 = vunpack.c.l.s4 1983009808
  %v1075 = vunpack.c.0.s8 %v1074
  %v1076 = vlaneseq
  %v1077 = vshrl.u32 %v1076, 7
  %v1078 = vsub.s32 %v1075, %v1077
  %v1079 = vrot.slane %v1040, %v1078
  %1080 = vrot.lane.b32.xlu0 %v1079, 96
  %v1081 = vpop.permute.xlu0 %1080
  %v1083 = vmul.f32 %v1050, %v1081
  %v1084 = vmul.f32 %v1068, %v774
  %v1085 = vadd.f32 %v1083, %v1084
  %s1086 = scalar_lea.vmem %s1, 8
  %v1087 = vld [vmem:[%s1086] sm:$0x3]
  %v1089 = vsel %vm31, %v913, 0
  %1091 = vmatprep.subr.mxu0 0.0
  %1092 = vmatpush1.msra.mxu0 %v23
  %1093 = vmatprep.subr.mxu0 0.0
  %1094 = vmatpush1.msra.mxu0 %v24
  %1095 = vmatprep.subr.mxu0 0.0
  %1096 = vmatpush1.msra.mxu0 %v25
  %1097 = vmatprep.subr.mxu0 0.0
  %1098 = vmatpush1.msra.mxu0 %v26
  %1099 = vmatprep.subr.mxu0 0.0
  %1100 = vmatpush1.msra.mxu0 0.0
  %1101 = vmatprep.subr.mxu0 0.0
  %1102 = vmatpush1.msra.mxu0 0.0
  %1103 = vmatprep.subr.mxu0 0.0
  %1104 = vmatpush1.msra.mxu0 0.0
  %1105 = vmatprep.subr.mxu0 0.0
  %1106 = vmatpush1.msra.mxu0 0.0
  %1107 = vmatprep.subr.mxu0 0.0
  %1108 = vmatpush1.msra.mxu0 0.0
  %1109 = vmatprep.subr.mxu0 0.0
  %1110 = vmatpush1.msra.mxu0 0.0
  %1111 = vmatprep.subr.mxu0 0.0
  %1112 = vmatpush1.msra.mxu0 0.0
  %1113 = vmatprep.subr.mxu0 0.0
  %1114 = vmatpush1.msra.mxu0 0.0
  %1115 = vmatprep.subr.mxu0 0.0
  %1116 = vmatpush1.msra.mxu0 0.0
  %1117 = vmatprep.subr.mxu0 0.0
  %1118 = vmatpush1.msra.mxu0 0.0
  %1119 = vmatprep.subr.mxu0 0.0
  %1120 = vmatpush1.msra.mxu0 0.0
  %1121 = vmatprep.subr.mxu0 0.0
  %1122 = vmatpush1.msra.mxu0 0.0
  %1123 = vmatprep.subr.mxu0 0.0
  %1124 = vmatpush1.msra.mxu0 0.0
  %1125 = vmatprep.subr.mxu0 0.0
  %1126 = vmatpush1.msra.mxu0 0.0
  %1127 = vmatprep.subr.mxu0 0.0
  %1128 = vmatpush1.msra.mxu0 0.0
  %1129 = vmatprep.subr.mxu0 0.0
  %1130 = vmatpush1.msra.mxu0 0.0
  %1131 = vmatprep.subr.mxu0 0.0
  %1132 = vmatpush1.msra.mxu0 0.0
  %1133 = vmatprep.subr.mxu0 0.0
  %1134 = vmatpush1.msra.mxu0 0.0
  %1135 = vmatprep.subr.mxu0 0.0
  %1136 = vmatpush1.msra.mxu0 0.0
  %1137 = vmatprep.subr.mxu0 0.0
  %1138 = vmatpush1.msra.mxu0 0.0
  %1139 = vmatprep.subr.mxu0 0.0
  %1140 = vmatpush1.msra.mxu0 0.0
  %1141 = vmatprep.subr.mxu0 0.0
  %1142 = vmatpush1.msra.mxu0 0.0
  %1143 = vmatprep.subr.mxu0 0.0
  %1144 = vmatpush1.msra.mxu0 0.0
  %1145 = vmatprep.subr.mxu0 0.0
  %1146 = vmatpush1.msra.mxu0 0.0
  %1147 = vmatprep.subr.mxu0 0.0
  %1148 = vmatpush1.msra.mxu0 0.0
  %1149 = vmatprep.subr.mxu0 0.0
  %1150 = vmatpush1.msra.mxu0 0.0
  %1151 = vmatprep.subr.mxu0 0.0
  %1152 = vmatpush1.msra.mxu0 0.0
  %1153 = vmatprep.subr.mxu0 0.0
  %1154 = vmatpush1.msra.mxu0 0.0
  %1155 = vmatprep.mubr.f32.mxu0 0.0
  %1156 = vmatmul.mubr.f32.gmra.mrb[0].mxu0 %v1089
  %v1157 = vpop.f32.mrb[0].mxu0
  %v1158 = vadd.f32 0.0, %v1157
  %v1159 = vpop.f32.mrb[0].mxu0
  %1160 = vdwg.mxu0
  %v1162 = vrot.slane %v935, 2
  %v1164 = vadd.f32 %v1162, %v1158
  %v1165 = vxor.u32 %v1164, 2147483648
  %v1166 = vmul.f32 %v1165, 1.442695
  %v1167 = vpow.pop %v1166
  %v1168 = vadd.f32 %v1167, 1.0
  %v1169 = vrcp.pop %v1168
  %v1170 = vmul.f32 1.0, %v1169
  %v1171 = vtanh.pop %v1164
  %v1174 = vunpack.c.l.s4 1983009808
  %v1175 = vunpack.c.0.s8 %v1174
  %v1176 = vlaneseq
  %v1177 = vshrl.u32 %v1176, 7
  %v1178 = vsub.s32 %v1175, %v1177
  %v1179 = vrot.slane %v927, %v1178
  %1180 = vrot.lane.b32.xlu0 %v1179, 32
  %v1181 = vpop.permute.xlu0 %1180
  %v1183 = vmul.f32 %v1170, %v1181
  %1185 = vrot.lane.b32.xlu0 %v1171, 64
  %v1186 = vpop.permute.xlu0 %1185
  %v1188 = vmul.f32 %v1170, %v1186
  %1190 = vrot.lane.b32.xlu0 %v1188, 32
  %v1191 = vpop.permute.xlu0 %1190
  %v1193 = vadd.f32 %v1183, %v1191
  %v1194 = vtanh.pop %v1193
  %1196 = vrot.lane.b32.xlu0 %v1194, 64
  %v1197 = vpop.permute.xlu0 %1196
  %v1199 = vmul.f32 %v1170, %v1197
  %1201 = vset.pattern.permute.xlu0 0
  %1202 = vperm.xlu0 %1201, %v1087
  %v1203 = vpop.permute.xlu0 %1202
  %v1207 = vunpack.c.l.s4 1983009808
  %v1208 = vunpack.c.0.s8 %v1207
  %v1209 = vlaneseq
  %v1210 = vshrl.u32 %v1209, 7
  %v1211 = vsub.s32 %v1208, %v1210
  %v1212 = vrot.slane %v1199, %v1211
  %1213 = vrot.lane.b32.xlu0 %v1212, 32
  %v1214 = vpop.permute.xlu0 %1213
  %v1216 = vmul.f32 %v1203, %v1214
  %v1217 = vsub.f32 1.0, %v1087
  %1219 = vset.pattern.permute.xlu0 0
  %1220 = vperm.xlu0 %1219, %v1217
  %v1221 = vpop.permute.xlu0 %1220
  %v1223 = vmul.f32 %v1221, %v913
  %v1224 = vadd.f32 %v1216, %v1223
  %v1227 = vunpack.c.l.s4 1983009808
  %v1228 = vunpack.c.0.s8 %v1227
  %v1229 = vlaneseq
  %v1230 = vshrl.u32 %v1229, 7
  %v1231 = vsub.s32 %v1228, %v1230
  %v1232 = vrot.slane %v1193, %v1231
  %1233 = vrot.lane.b32.xlu0 %v1232, 96
  %v1234 = vpop.permute.xlu0 %1233
  %v1236 = vmul.f32 %v1203, %v1234
  %v1237 = vmul.f32 %v1221, %v927
  %v1238 = vadd.f32 %v1236, %v1237
  %s1239 = scalar_lea.vmem %s4, 6
  %1240 = vst.msk [vmem:[%s1239] sm:$0x3] %vm306, %v1071
  %s1241 = scalar_lea.vmem %s5, 8
  %1242 = vst.msk [vmem:[%s1241] sm:$0x3] %vm306, %v1224
  %v1243 = vld [vmem:[%s934] sm:$0xf]
  %v1244 = vld [vmem:[%s932] sm:$0xf]
  %v1245 = vld [vmem:[%s1086] sm:$0x3]
  %v1247 = vsel %vm31, %v1071, 0
  %1249 = vmatprep.subr.mxu0 0.0
  %1250 = vmatpush1.msra.mxu0 %v19
  %1251 = vmatprep.subr.mxu0 0.0
  %1252 = vmatpush1.msra.mxu0 %v20
  %1253 = vmatprep.subr.mxu0 0.0
  %1254 = vmatpush1.msra.mxu0 %v21
  %1255 = vmatprep.subr.mxu0 0.0
  %1256 = vmatpush1.msra.mxu0 %v22
  %1257 = vmatprep.subr.mxu0 0.0
  %1258 = vmatpush1.msra.mxu0 0.0
  %1259 = vmatprep.subr.mxu0 0.0
  %1260 = vmatpush1.msra.mxu0 0.0
  %1261 = vmatprep.subr.mxu0 0.0
  %1262 = vmatpush1.msra.mxu0 0.0
  %1263 = vmatprep.subr.mxu0 0.0
  %1264 = vmatpush1.msra.mxu0 0.0
  %1265 = vmatprep.subr.mxu0 0.0
  %1266 = vmatpush1.msra.mxu0 0.0
  %1267 = vmatprep.subr.mxu0 0.0
  %1268 = vmatpush1.msra.mxu0 0.0
  %1269 = vmatprep.subr.mxu0 0.0
  %1270 = vmatpush1.msra.mxu0 0.0
  %1271 = vmatprep.subr.mxu0 0.0
  %1272 = vmatpush1.msra.mxu0 0.0
  %1273 = vmatprep.subr.mxu0 0.0
  %1274 = vmatpush1.msra.mxu0 0.0
  %1275 = vmatprep.subr.mxu0 0.0
  %1276 = vmatpush1.msra.mxu0 0.0
  %1277 = vmatprep.subr.mxu0 0.0
  %1278 = vmatpush1.msra.mxu0 0.0
  %1279 = vmatprep.subr.mxu0 0.0
  %1280 = vmatpush1.msra.mxu0 0.0
  %1281 = vmatprep.subr.mxu0 0.0
  %1282 = vmatpush1.msra.mxu0 0.0
  %1283 = vmatprep.subr.mxu0 0.0
  %1284 = vmatpush1.msra.mxu0 0.0
  %1285 = vmatprep.subr.mxu0 0.0
  %1286 = vmatpush1.msra.mxu0 0.0
  %1287 = vmatprep.subr.mxu0 0.0
  %1288 = vmatpush1.msra.mxu0 0.0
  %1289 = vmatprep.subr.mxu0 0.0
  %1290 = vmatpush1.msra.mxu0 0.0
  %1291 = vmatprep.subr.mxu0 0.0
  %1292 = vmatpush1.msra.mxu0 0.0
  %1293 = vmatprep.subr.mxu0 0.0
  %1294 = vmatpush1.msra.mxu0 0.0
  %1295 = vmatprep.subr.mxu0 0.0
  %1296 = vmatpush1.msra.mxu0 0.0
  %1297 = vmatprep.subr.mxu0 0.0
  %1298 = vmatpush1.msra.mxu0 0.0
  %1299 = vmatprep.subr.mxu0 0.0
  %1300 = vmatpush1.msra.mxu0 0.0
  %1301 = vmatprep.subr.mxu0 0.0
  %1302 = vmatpush1.msra.mxu0 0.0
  %1303 = vmatprep.subr.mxu0 0.0
  %1304 = vmatpush1.msra.mxu0 0.0
  %1305 = vmatprep.subr.mxu0 0.0
  %1306 = vmatpush1.msra.mxu0 0.0
  %1307 = vmatprep.subr.mxu0 0.0
  %1308 = vmatpush1.msra.mxu0 0.0
  %1309 = vmatprep.subr.mxu0 0.0
  %1310 = vmatpush1.msra.mxu0 0.0
  %1311 = vmatprep.subr.mxu0 0.0
  %1312 = vmatpush1.msra.mxu0 0.0
  %1313 = vmatprep.mubr.f32.mxu0 0.0
  %1314 = vmatmul.mubr.f32.gmra.mrb[0].mxu0 %v1247
  %v1315 = vpop.f32.mrb[0].mxu0
  %v1316 = vadd.f32 0.0, %v1315
  %v1317 = vpop.f32.mrb[0].mxu0
  %1318 = vdwg.mxu0
  %v1319 = vadd.f32 %v1243, %v1316
  %v1320 = vxor.u32 %v1319, 2147483648
  %v1321 = vmul.f32 %v1320, 1.442695
  %v1322 = vpow.pop %v1321
  %v1323 = vadd.f32 %v1322, 1.0
  %v1324 = vrcp.pop %v1323
  %v1325 = vmul.f32 1.0, %v1324
  %v1326 = vtanh.pop %v1319
  %v1329 = vunpack.c.l.s4 1983009808
  %v1330 = vunpack.c.0.s8 %v1329
  %v1331 = vlaneseq
  %v1332 = vshrl.u32 %v1331, 7
  %v1333 = vsub.s32 %v1330, %v1332
  %v1334 = vrot.slane %v1085, %v1333
  %1335 = vrot.lane.b32.xlu0 %v1334, 32
  %v1336 = vpop.permute.xlu0 %1335
  %v1338 = vmul.f32 %v1325, %v1336
  %1340 = vrot.lane.b32.xlu0 %v1326, 64
  %v1341 = vpop.permute.xlu0 %1340
  %v1343 = vmul.f32 %v1325, %v1341
  %1345 = vrot.lane.b32.xlu0 %v1343, 32
  %v1346 = vpop.permute.xlu0 %1345
  %v1348 = vadd.f32 %v1338, %v1346
  %v1349 = vtanh.pop %v1348
  %1351 = vrot.lane.b32.xlu0 %v1349, 64
  %v1352 = vpop.permute.xlu0 %1351
  %v1354 = vmul.f32 %v1325, %v1352
  %1356 = vset.pattern.permute.xlu0 0
  %1357 = vperm.xlu0 %1356, %v1245
  %v1358 = vpop.permute.xlu0 %1357
  %v1362 = vunpack.c.l.s4 1983009808
  %v1363 = vunpack.c.0.s8 %v1362
  %v1364 = vlaneseq
  %v1365 = vshrl.u32 %v1364, 7
  %v1366 = vsub.s32 %v1363, %v1365
  %v1367 = vrot.slane %v1354, %v1366
  %1368 = vrot.lane.b32.xlu0 %v1367, 32
  %v1369 = vpop.permute.xlu0 %1368
  %v1371 = vmul.f32 %v1358, %v1369
  %v1372 = vsub.f32 1.0, %v1245
  %1374 = vset.pattern.permute.xlu0 0
  %1375 = vperm.xlu0 %1374, %v1372
  %v1376 = vpop.permute.xlu0 %1375
  %v1378 = vmul.f32 %v1376, %v1071
  %v1379 = vadd.f32 %v1371, %v1378
  %v1382 = vunpack.c.l.s4 1983009808
  %v1383 = vunpack.c.0.s8 %v1382
  %v1384 = vlaneseq
  %v1385 = vshrl.u32 %v1384, 7
  %v1386 = vsub.s32 %v1383, %v1385
  %v1387 = vrot.slane %v1348, %v1386
  %1388 = vrot.lane.b32.xlu0 %v1387, 96
  %v1389 = vpop.permute.xlu0 %1388
  %v1391 = vmul.f32 %v1358, %v1389
  %v1392 = vmul.f32 %v1376, %v1085
  %v1393 = vadd.f32 %v1391, %v1392
  %v1394 = vld [vmem:[%s936] sm:$0x3]
  %v1396 = vsel %vm31, %v1224, 0
  %1398 = vmatprep.subr.mxu0 0.0
  %1399 = vmatpush1.msra.mxu0 %v23
  %1400 = vmatprep.subr.mxu0 0.0
  %1401 = vmatpush1.msra.mxu0 %v24
  %1402 = vmatprep.subr.mxu0 0.0
  %1403 = vmatpush1.msra.mxu0 %v25
  %1404 = vmatprep.subr.mxu0 0.0
  %1405 = vmatpush1.msra.mxu0 %v26
  %1406 = vmatprep.subr.mxu0 0.0
  %1407 = vmatpush1.msra.mxu0 0.0
  %1408 = vmatprep.subr.mxu0 0.0
  %1409 = vmatpush1.msra.mxu0 0.0
  %1410 = vmatprep.subr.mxu0 0.0
  %1411 = vmatpush1.msra.mxu0 0.0
  %1412 = vmatprep.subr.mxu0 0.0
  %1413 = vmatpush1.msra.mxu0 0.0
  %1414 = vmatprep.subr.mxu0 0.0
  %1415 = vmatpush1.msra.mxu0 0.0
  %1416 = vmatprep.subr.mxu0 0.0
  %1417 = vmatpush1.msra.mxu0 0.0
  %1418 = vmatprep.subr.mxu0 0.0
  %1419 = vmatpush1.msra.mxu0 0.0
  %1420 = vmatprep.subr.mxu0 0.0
  %1421 = vmatpush1.msra.mxu0 0.0
  %1422 = vmatprep.subr.mxu0 0.0
  %1423 = vmatpush1.msra.mxu0 0.0
  %1424 = vmatprep.subr.mxu0 0.0
  %1425 = vmatpush1.msra.mxu0 0.0
  %1426 = vmatprep.subr.mxu0 0.0
  %1427 = vmatpush1.msra.mxu0 0.0
  %1428 = vmatprep.subr.mxu0 0.0
  %1429 = vmatpush1.msra.mxu0 0.0
  %1430 = vmatprep.subr.mxu0 0.0
  %1431 = vmatpush1.msra.mxu0 0.0
  %1432 = vmatprep.subr.mxu0 0.0
  %1433 = vmatpush1.msra.mxu0 0.0
  %1434 = vmatprep.subr.mxu0 0.0
  %1435 = vmatpush1.msra.mxu0 0.0
  %1436 = vmatprep.subr.mxu0 0.0
  %1437 = vmatpush1.msra.mxu0 0.0
  %1438 = vmatprep.subr.mxu0 0.0
  %1439 = vmatpush1.msra.mxu0 0.0
  %1440 = vmatprep.subr.mxu0 0.0
  %1441 = vmatpush1.msra.mxu0 0.0
  %1442 = vmatprep.subr.mxu0 0.0
  %1443 = vmatpush1.msra.mxu0 0.0
  %1444 = vmatprep.subr.mxu0 0.0
  %1445 = vmatpush1.msra.mxu0 0.0
  %1446 = vmatprep.subr.mxu0 0.0
  %1447 = vmatpush1.msra.mxu0 0.0
  %1448 = vmatprep.subr.mxu0 0.0
  %1449 = vmatpush1.msra.mxu0 0.0
  %1450 = vmatprep.subr.mxu0 0.0
  %1451 = vmatpush1.msra.mxu0 0.0
  %1452 = vmatprep.subr.mxu0 0.0
  %1453 = vmatpush1.msra.mxu0 0.0
  %1454 = vmatprep.subr.mxu0 0.0
  %1455 = vmatpush1.msra.mxu0 0.0
  %1456 = vmatprep.subr.mxu0 0.0
  %1457 = vmatpush1.msra.mxu0 0.0
  %1458 = vmatprep.subr.mxu0 0.0
  %1459 = vmatpush1.msra.mxu0 0.0
  %1460 = vmatprep.subr.mxu0 0.0
  %1461 = vmatpush1.msra.mxu0 0.0
  %1462 = vmatprep.mubr.f32.mxu0 0.0
  %1463 = vmatmul.mubr.f32.gmra.mrb[0].mxu0 %v1396
  %v1464 = vpop.f32.mrb[0].mxu0
  %v1465 = vadd.f32 0.0, %v1464
  %v1466 = vpop.f32.mrb[0].mxu0
  %1467 = vdwg.mxu0
  %v1469 = vrot.slane %v1244, 2
  %v1471 = vadd.f32 %v1469, %v1465
  %v1472 = vxor.u32 %v1471, 2147483648
  %v1473 = vmul.f32 %v1472, 1.442695
  %v1474 = vpow.pop %v1473
  %v1475 = vadd.f32 %v1474, 1.0
  %v1476 = vrcp.pop %v1475
  %v1477 = vmul.f32 1.0, %v1476
  %v1478 = vtanh.pop %v1471
  %v1481 = vunpack.c.l.s4 1983009808
  %v1482 = vunpack.c.0.s8 %v1481
  %v1483 = vlaneseq
  %v1484 = vshrl.u32 %v1483, 7
  %v1485 = vsub.s32 %v1482, %v1484
  %v1486 = vrot.slane %v1238, %v1485
  %1487 = vrot.lane.b32.xlu0 %v1486, 32
  %v1488 = vpop.permute.xlu0 %1487
  %v1490 = vmul.f32 %v1477, %v1488
  %1492 = vrot.lane.b32.xlu0 %v1478, 64
  %v1493 = vpop.permute.xlu0 %1492
  %v1495 = vmul.f32 %v1477, %v1493
  %1497 = vrot.lane.b32.xlu0 %v1495, 32
  %v1498 = vpop.permute.xlu0 %1497
  %v1500 = vadd.f32 %v1490, %v1498
  %v1501 = vtanh.pop %v1500
  %1503 = vrot.lane.b32.xlu0 %v1501, 64
  %v1504 = vpop.permute.xlu0 %1503
  %v1506 = vmul.f32 %v1477, %v1504
  %1508 = vset.pattern.permute.xlu0 0
  %1509 = vperm.xlu0 %1508, %v1394
  %v1510 = vpop.permute.xlu0 %1509
  %v1514 = vunpack.c.l.s4 1983009808
  %v1515 = vunpack.c.0.s8 %v1514
  %v1516 = vlaneseq
  %v1517 = vshrl.u32 %v1516, 7
  %v1518 = vsub.s32 %v1515, %v1517
  %v1519 = vrot.slane %v1506, %v1518
  %1520 = vrot.lane.b32.xlu0 %v1519, 32
  %v1521 = vpop.permute.xlu0 %1520
  %v1523 = vmul.f32 %v1510, %v1521
  %v1524 = vsub.f32 1.0, %v1394
  %1526 = vset.pattern.permute.xlu0 0
  %1527 = vperm.xlu0 %1526, %v1524
  %v1528 = vpop.permute.xlu0 %1527
  %v1530 = vmul.f32 %v1528, %v1224
  %v1531 = vadd.f32 %v1523, %v1530
  %v1534 = vunpack.c.l.s4 1983009808
  %v1535 = vunpack.c.0.s8 %v1534
  %v1536 = vlaneseq
  %v1537 = vshrl.u32 %v1536, 7
  %v1538 = vsub.s32 %v1535, %v1537
  %v1539 = vrot.slane %v1500, %v1538
  %1540 = vrot.lane.b32.xlu0 %v1539, 96
  %v1541 = vpop.permute.xlu0 %1540
  %v1543 = vmul.f32 %v1510, %v1541
  %v1544 = vmul.f32 %v1528, %v1238
  %v1545 = vadd.f32 %v1543, %v1544
  %s1546 = scalar_lea.vmem %s4, 8
  %1547 = vst.msk [vmem:[%s1546] sm:$0x3] %vm306, %v1379
  %s1548 = scalar_lea.vmem %s5, 6
  %1549 = vst.msk [vmem:[%s1548] sm:$0x3] %vm306, %v1531
  %v1550 = vld [vmem:[%s623] sm:$0xf]
  %v1551 = vld [vmem:[%s621] sm:$0xf]
  %v1552 = vld [vmem:[%s775] sm:$0x3]
  %v1554 = vsel %vm31, %v1379, 0
  %1556 = vmatprep.subr.mxu0 0.0
  %1557 = vmatpush1.msra.mxu0 %v19
  %1558 = vmatprep.subr.mxu0 0.0
  %1559 = vmatpush1.msra.mxu0 %v20
  %1560 = vmatprep.subr.mxu0 0.0
  %1561 = vmatpush1.msra.mxu0 %v21
  %1562 = vmatprep.subr.mxu0 0.0
  %1563 = vmatpush1.msra.mxu0 %v22
  %1564 = vmatprep.subr.mxu0 0.0
  %1565 = vmatpush1.msra.mxu0 0.0
  %1566 = vmatprep.subr.mxu0 0.0
  %1567 = vmatpush1.msra.mxu0 0.0
  %1568 = vmatprep.subr.mxu0 0.0
  %1569 = vmatpush1.msra.mxu0 0.0
  %1570 = vmatprep.subr.mxu0 0.0
  %1571 = vmatpush1.msra.mxu0 0.0
  %1572 = vmatprep.subr.mxu0 0.0
  %1573 = vmatpush1.msra.mxu0 0.0
  %1574 = vmatprep.subr.mxu0 0.0
  %1575 = vmatpush1.msra.mxu0 0.0
  %1576 = vmatprep.subr.mxu0 0.0
  %1577 = vmatpush1.msra.mxu0 0.0
  %1578 = vmatprep.subr.mxu0 0.0
  %1579 = vmatpush1.msra.mxu0 0.0
  %1580 = vmatprep.subr.mxu0 0.0
  %1581 = vmatpush1.msra.mxu0 0.0
  %1582 = vmatprep.subr.mxu0 0.0
  %1583 = vmatpush1.msra.mxu0 0.0
  %1584 = vmatprep.subr.mxu0 0.0
  %1585 = vmatpush1.msra.mxu0 0.0
  %1586 = vmatprep.subr.mxu0 0.0
  %1587 = vmatpush1.msra.mxu0 0.0
  %1588 = vmatprep.subr.mxu0 0.0
  %1589 = vmatpush1.msra.mxu0 0.0
  %1590 = vmatprep.subr.mxu0 0.0
  %1591 = vmatpush1.msra.mxu0 0.0
  %1592 = vmatprep.subr.mxu0 0.0
  %1593 = vmatpush1.msra.mxu0 0.0
  %1594 = vmatprep.subr.mxu0 0.0
  %1595 = vmatpush1.msra.mxu0 0.0
  %1596 = vmatprep.subr.mxu0 0.0
  %1597 = vmatpush1.msra.mxu0 0.0
  %1598 = vmatprep.subr.mxu0 0.0
  %1599 = vmatpush1.msra.mxu0 0.0
  %1600 = vmatprep.subr.mxu0 0.0
  %1601 = vmatpush1.msra.mxu0 0.0
  %1602 = vmatprep.subr.mxu0 0.0
  %1603 = vmatpush1.msra.mxu0 0.0
  %1604 = vmatprep.subr.mxu0 0.0
  %1605 = vmatpush1.msra.mxu0 0.0
  %1606 = vmatprep.subr.mxu0 0.0
  %1607 = vmatpush1.msra.mxu0 0.0
  %1608 = vmatprep.subr.mxu0 0.0
  %1609 = vmatpush1.msra.mxu0 0.0
  %1610 = vmatprep.subr.mxu0 0.0
  %1611 = vmatpush1.msra.mxu0 0.0
  %1612 = vmatprep.subr.mxu0 0.0
  %1613 = vmatpush1.msra.mxu0 0.0
  %1614 = vmatprep.subr.mxu0 0.0
  %1615 = vmatpush1.msra.mxu0 0.0
  %1616 = vmatprep.subr.mxu0 0.0
  %1617 = vmatpush1.msra.mxu0 0.0
  %1618 = vmatprep.subr.mxu0 0.0
  %1619 = vmatpush1.msra.mxu0 0.0
  %1620 = vmatprep.mubr.f32.mxu0 0.0
  %1621 = vmatmul.mubr.f32.gmra.mrb[0].mxu0 %v1554
  %v1622 = vpop.f32.mrb[0].mxu0
  %v1623 = vadd.f32 0.0, %v1622
  %v1624 = vpop.f32.mrb[0].mxu0
  %1625 = vdwg.mxu0
  %v1626 = vadd.f32 %v1550, %v1623
  %v1627 = vxor.u32 %v1626, 2147483648
  %v1628 = vmul.f32 %v1627, 1.442695
  %v1629 = vpow.pop %v1628
  %v1630 = vadd.f32 %v1629, 1.0
  %v1631 = vrcp.pop %v1630
  %v1632 = vmul.f32 1.0, %v1631
  %v1633 = vtanh.pop %v1626
  %v1636 = vunpack.c.l.s4 1983009808
  %v1637 = vunpack.c.0.s8 %v1636
  %v1638 = vlaneseq
  %v1639 = vshrl.u32 %v1638, 7
  %v1640 = vsub.s32 %v1637, %v1639
  %v1641 = vrot.slane %v1393, %v1640
  %1642 = vrot.lane.b32.xlu0 %v1641, 32
  %v1643 = vpop.permute.xlu0 %1642
  %v1645 = vmul.f32 %v1632, %v1643
  %1647 = vrot.lane.b32.xlu0 %v1633, 64
  %v1648 = vpop.permute.xlu0 %1647
  %v1650 = vmul.f32 %v1632, %v1648
  %1652 = vrot.lane.b32.xlu0 %v1650, 32
  %v1653 = vpop.permute.xlu0 %1652
  %v1655 = vadd.f32 %v1645, %v1653
  %v1656 = vtanh.pop %v1655
  %1658 = vrot.lane.b32.xlu0 %v1656, 64
  %v1659 = vpop.permute.xlu0 %1658
  %v1661 = vmul.f32 %v1632, %v1659
  %1663 = vset.pattern.permute.xlu0 0
  %1664 = vperm.xlu0 %1663, %v1552
  %v1665 = vpop.permute.xlu0 %1664
  %v1669 = vunpack.c.l.s4 1983009808
  %v1670 = vunpack.c.0.s8 %v1669
  %v1671 = vlaneseq
  %v1672 = vshrl.u32 %v1671, 7
  %v1673 = vsub.s32 %v1670, %v1672
  %v1674 = vrot.slane %v1661, %v1673
  %1675 = vrot.lane.b32.xlu0 %v1674, 32
  %v1676 = vpop.permute.xlu0 %1675
  %v1678 = vmul.f32 %v1665, %v1676
  %v1679 = vsub.f32 1.0, %v1552
  %1681 = vset.pattern.permute.xlu0 0
  %1682 = vperm.xlu0 %1681, %v1679
  %v1683 = vpop.permute.xlu0 %1682
  %v1685 = vmul.f32 %v1683, %v1379
  %v1686 = vadd.f32 %v1678, %v1685
  %v1689 = vunpack.c.l.s4 1983009808
  %v1690 = vunpack.c.0.s8 %v1689
  %v1691 = vlaneseq
  %v1692 = vshrl.u32 %v1691, 7
  %v1693 = vsub.s32 %v1690, %v1692
  %v1694 = vrot.slane %v1655, %v1693
  %1695 = vrot.lane.b32.xlu0 %v1694, 96
  %v1696 = vpop.permute.xlu0 %1695
  %v1698 = vmul.f32 %v1665, %v1696
  %v1699 = vmul.f32 %v1683, %v1393
  %v1700 = vadd.f32 %v1698, %v1699
  %v1701 = vld [vmem:[%s625] sm:$0x3]
  %v1703 = vsel %vm31, %v1531, 0
  %1705 = vmatprep.subr.mxu0 0.0
  %1706 = vmatpush1.msra.mxu0 %v23
  %1707 = vmatprep.subr.mxu0 0.0
  %1708 = vmatpush1.msra.mxu0 %v24
  %1709 = vmatprep.subr.mxu0 0.0
  %1710 = vmatpush1.msra.mxu0 %v25
  %1711 = vmatprep.subr.mxu0 0.0
  %1712 = vmatpush1.msra.mxu0 %v26
  %1713 = vmatprep.subr.mxu0 0.0
  %1714 = vmatpush1.msra.mxu0 0.0
  %1715 = vmatprep.subr.mxu0 0.0
  %1716 = vmatpush1.msra.mxu0 0.0
  %1717 = vmatprep.subr.mxu0 0.0
  %1718 = vmatpush1.msra.mxu0 0.0
  %1719 = vmatprep.subr.mxu0 0.0
  %1720 = vmatpush1.msra.mxu0 0.0
  %1721 = vmatprep.subr.mxu0 0.0
  %1722 = vmatpush1.msra.mxu0 0.0
  %1723 = vmatprep.subr.mxu0 0.0
  %1724 = vmatpush1.msra.mxu0 0.0
  %1725 = vmatprep.subr.mxu0 0.0
  %1726 = vmatpush1.msra.mxu0 0.0
  %1727 = vmatprep.subr.mxu0 0.0
  %1728 = vmatpush1.msra.mxu0 0.0
  %1729 = vmatprep.subr.mxu0 0.0
  %1730 = vmatpush1.msra.mxu0 0.0
  %1731 = vmatprep.subr.mxu0 0.0
  %1732 = vmatpush1.msra.mxu0 0.0
  %1733 = vmatprep.subr.mxu0 0.0
  %1734 = vmatpush1.msra.mxu0 0.0
  %1735 = vmatprep.subr.mxu0 0.0
  %1736 = vmatpush1.msra.mxu0 0.0
  %1737 = vmatprep.subr.mxu0 0.0
  %1738 = vmatpush1.msra.mxu0 0.0
  %1739 = vmatprep.subr.mxu0 0.0
  %1740 = vmatpush1.msra.mxu0 0.0
  %1741 = vmatprep.subr.mxu0 0.0
  %1742 = vmatpush1.msra.mxu0 0.0
  %1743 = vmatprep.subr.mxu0 0.0
  %1744 = vmatpush1.msra.mxu0 0.0
  %1745 = vmatprep.subr.mxu0 0.0
  %1746 = vmatpush1.msra.mxu0 0.0
  %1747 = vmatprep.subr.mxu0 0.0
  %1748 = vmatpush1.msra.mxu0 0.0
  %1749 = vmatprep.subr.mxu0 0.0
  %1750 = vmatpush1.msra.mxu0 0.0
  %1751 = vmatprep.subr.mxu0 0.0
  %1752 = vmatpush1.msra.mxu0 0.0
  %1753 = vmatprep.subr.mxu0 0.0
  %1754 = vmatpush1.msra.mxu0 0.0
  %1755 = vmatprep.subr.mxu0 0.0
  %1756 = vmatpush1.msra.mxu0 0.0
  %1757 = vmatprep.subr.mxu0 0.0
  %1758 = vmatpush1.msra.mxu0 0.0
  %1759 = vmatprep.subr.mxu0 0.0
  %1760 = vmatpush1.msra.mxu0 0.0
  %1761 = vmatprep.subr.mxu0 0.0
  %1762 = vmatpush1.msra.mxu0 0.0
  %1763 = vmatprep.subr.mxu0 0.0
  %1764 = vmatpush1.msra.mxu0 0.0
  %1765 = vmatprep.subr.mxu0 0.0
  %1766 = vmatpush1.msra.mxu0 0.0
  %1767 = vmatprep.subr.mxu0 0.0
  %1768 = vmatpush1.msra.mxu0 0.0
  %1769 = vmatprep.mubr.f32.mxu0 0.0
  %1770 = vmatmul.mubr.f32.gmra.mrb[0].mxu0 %v1703
  %v1771 = vpop.f32.mrb[0].mxu0
  %v1772 = vadd.f32 0.0, %v1771
  %v1773 = vpop.f32.mrb[0].mxu0
  %1774 = vdwg.mxu0
  %v1776 = vrot.slane %v1551, 2
  %v1778 = vadd.f32 %v1776, %v1772
  %v1779 = vxor.u32 %v1778, 2147483648
  %v1780 = vmul.f32 %v1779, 1.442695
  %v1781 = vpow.pop %v1780
  %v1782 = vadd.f32 %v1781, 1.0
  %v1783 = vrcp.pop %v1782
  %v1784 = vmul.f32 1.0, %v1783
  %v1785 = vtanh.pop %v1778
  %v1788 = vunpack.c.l.s4 1983009808
  %v1789 = vunpack.c.0.s8 %v1788
  %v1790 = vlaneseq
  %v1791 = vshrl.u32 %v1790, 7
  %v1792 = vsub.s32 %v1789, %v1791
  %v1793 = vrot.slane %v1545, %v1792
  %1794 = vrot.lane.b32.xlu0 %v1793, 32
  %v1795 = vpop.permute.xlu0 %1794
  %v1797 = vmul.f32 %v1784, %v1795
  %1799 = vrot.lane.b32.xlu0 %v1785, 64
  %v1800 = vpop.permute.xlu0 %1799
  %v1802 = vmul.f32 %v1784, %v1800
  %1804 = vrot.lane.b32.xlu0 %v1802, 32
  %v1805 = vpop.permute.xlu0 %1804
  %v1807 = vadd.f32 %v1797, %v1805
  %v1808 = vtanh.pop %v1807
  %1810 = vrot.lane.b32.xlu0 %v1808, 64
  %v1811 = vpop.permute.xlu0 %1810
  %v1813 = vmul.f32 %v1784, %v1811
  %1815 = vset.pattern.permute.xlu0 0
  %1816 = vperm.xlu0 %1815, %v1701
  %v1817 = vpop.permute.xlu0 %1816
  %v1821 = vunpack.c.l.s4 1983009808
  %v1822 = vunpack.c.0.s8 %v1821
  %v1823 = vlaneseq
  %v1824 = vshrl.u32 %v1823, 7
  %v1825 = vsub.s32 %v1822, %v1824
  %v1826 = vrot.slane %v1813, %v1825
  %1827 = vrot.lane.b32.xlu0 %v1826, 32
  %v1828 = vpop.permute.xlu0 %1827
  %v1830 = vmul.f32 %v1817, %v1828
  %v1831 = vsub.f32 1.0, %v1701
  %1833 = vset.pattern.permute.xlu0 0
  %1834 = vperm.xlu0 %1833, %v1831
  %v1835 = vpop.permute.xlu0 %1834
  %v1837 = vmul.f32 %v1835, %v1531
  %v1838 = vadd.f32 %v1830, %v1837
  %v1841 = vunpack.c.l.s4 1983009808
  %v1842 = vunpack.c.0.s8 %v1841
  %v1843 = vlaneseq
  %v1844 = vshrl.u32 %v1843, 7
  %v1845 = vsub.s32 %v1842, %v1844
  %v1846 = vrot.slane %v1807, %v1845
  %1847 = vrot.lane.b32.xlu0 %v1846, 96
  %v1848 = vpop.permute.xlu0 %1847
  %v1850 = vmul.f32 %v1817, %v1848
  %v1851 = vmul.f32 %v1835, %v1545
  %v1852 = vadd.f32 %v1850, %v1851
  %s1853 = scalar_lea.vmem %s4, 10
  %1854 = vst.msk [vmem:[%s1853] sm:$0x3] %vm306, %v1686
  %s1855 = scalar_lea.vmem %s5, 4
  %1856 = vst.msk [vmem:[%s1855] sm:$0x3] %vm306, %v1838
  %v1857 = vld [vmem:[%s312] sm:$0xf]
  %v1858 = vld [vmem:[%s310] sm:$0xf]
  %v1859 = vld [vmem:[%s464] sm:$0x3]
  %v1861 = vsel %vm31, %v1686, 0
  %1863 = vmatprep.subr.mxu0 0.0
  %1864 = vmatpush1.msra.mxu0 %v19
  %1865 = vmatprep.subr.mxu0 0.0
  %1866 = vmatpush1.msra.mxu0 %v20
  %1867 = vmatprep.subr.mxu0 0.0
  %1868 = vmatpush1.msra.mxu0 %v21
  %1869 = vmatprep.subr.mxu0 0.0
  %1870 = vmatpush1.msra.mxu0 %v22
  %1871 = vmatprep.subr.mxu0 0.0
  %1872 = vmatpush1.msra.mxu0 0.0
  %1873 = vmatprep.subr.mxu0 0.0
  %1874 = vmatpush1.msra.mxu0 0.0
  %1875 = vmatprep.subr.mxu0 0.0
  %1876 = vmatpush1.msra.mxu0 0.0
  %1877 = vmatprep.subr.mxu0 0.0
  %1878 = vmatpush1.msra.mxu0 0.0
  %1879 = vmatprep.subr.mxu0 0.0
  %1880 = vmatpush1.msra.mxu0 0.0
  %1881 = vmatprep.subr.mxu0 0.0
  %1882 = vmatpush1.msra.mxu0 0.0
  %1883 = vmatprep.subr.mxu0 0.0
  %1884 = vmatpush1.msra.mxu0 0.0
  %1885 = vmatprep.subr.mxu0 0.0
  %1886 = vmatpush1.msra.mxu0 0.0
  %1887 = vmatprep.subr.mxu0 0.0
  %1888 = vmatpush1.msra.mxu0 0.0
  %1889 = vmatprep.subr.mxu0 0.0
  %1890 = vmatpush1.msra.mxu0 0.0
  %1891 = vmatprep.subr.mxu0 0.0
  %1892 = vmatpush1.msra.mxu0 0.0
  %1893 = vmatprep.subr.mxu0 0.0
  %1894 = vmatpush1.msra.mxu0 0.0
  %1895 = vmatprep.subr.mxu0 0.0
  %1896 = vmatpush1.msra.mxu0 0.0
  %1897 = vmatprep.subr.mxu0 0.0
  %1898 = vmatpush1.msra.mxu0 0.0
  %1899 = vmatprep.subr.mxu0 0.0
  %1900 = vmatpush1.msra.mxu0 0.0
  %1901 = vmatprep.subr.mxu0 0.0
  %1902 = vmatpush1.msra.mxu0 0.0
  %1903 = vmatprep.subr.mxu0 0.0
  %1904 = vmatpush1.msra.mxu0 0.0
  %1905 = vmatprep.subr.mxu0 0.0
  %1906 = vmatpush1.msra.mxu0 0.0
  %1907 = vmatprep.subr.mxu0 0.0
  %1908 = vmatpush1.msra.mxu0 0.0
  %1909 = vmatprep.subr.mxu0 0.0
  %1910 = vmatpush1.msra.mxu0 0.0
  %1911 = vmatprep.subr.mxu0 0.0
  %1912 = vmatpush1.msra.mxu0 0.0
  %1913 = vmatprep.subr.mxu0 0.0
  %1914 = vmatpush1.msra.mxu0 0.0
  %1915 = vmatprep.subr.mxu0 0.0
  %1916 = vmatpush1.msra.mxu0 0.0
  %1917 = vmatprep.subr.mxu0 0.0
  %1918 = vmatpush1.msra.mxu0 0.0
  %1919 = vmatprep.subr.mxu0 0.0
  %1920 = vmatpush1.msra.mxu0 0.0
  %1921 = vmatprep.subr.mxu0 0.0
  %1922 = vmatpush1.msra.mxu0 0.0
  %1923 = vmatprep.subr.mxu0 0.0
  %1924 = vmatpush1.msra.mxu0 0.0
  %1925 = vmatprep.subr.mxu0 0.0
  %1926 = vmatpush1.msra.mxu0 0.0
  %1927 = vmatprep.mubr.f32.mxu0 0.0
  %1928 = vmatmul.mubr.f32.gmra.mrb[0].mxu0 %v1861
  %v1929 = vpop.f32.mrb[0].mxu0
  %v1930 = vadd.f32 0.0, %v1929
  %v1931 = vpop.f32.mrb[0].mxu0
  %1932 = vdwg.mxu0
  %v1933 = vadd.f32 %v1857, %v1930
  %v1934 = vxor.u32 %v1933, 2147483648
  %v1935 = vmul.f32 %v1934, 1.442695
  %v1936 = vpow.pop %v1935
  %v1937 = vadd.f32 %v1936, 1.0
  %v1938 = vrcp.pop %v1937
  %v1939 = vmul.f32 1.0, %v1938
  %v1940 = vtanh.pop %v1933
  %v1943 = vunpack.c.l.s4 1983009808
  %v1944 = vunpack.c.0.s8 %v1943
  %v1945 = vlaneseq
  %v1946 = vshrl.u32 %v1945, 7
  %v1947 = vsub.s32 %v1944, %v1946
  %v1948 = vrot.slane %v1700, %v1947
  %1949 = vrot.lane.b32.xlu0 %v1948, 32
  %v1950 = vpop.permute.xlu0 %1949
  %v1952 = vmul.f32 %v1939, %v1950
  %1954 = vrot.lane.b32.xlu0 %v1940, 64
  %v1955 = vpop.permute.xlu0 %1954
  %v1957 = vmul.f32 %v1939, %v1955
  %1959 = vrot.lane.b32.xlu0 %v1957, 32
  %v1960 = vpop.permute.xlu0 %1959
  %v1962 = vadd.f32 %v1952, %v1960
  %v1963 = vtanh.pop %v1962
  %1965 = vrot.lane.b32.xlu0 %v1963, 64
  %v1966 = vpop.permute.xlu0 %1965
  %v1968 = vmul.f32 %v1939, %v1966
  %1970 = vset.pattern.permute.xlu0 0
  %1971 = vperm.xlu0 %1970, %v1859
  %v1972 = vpop.permute.xlu0 %1971
  %v1976 = vunpack.c.l.s4 1983009808
  %v1977 = vunpack.c.0.s8 %v1976
  %v1978 = vlaneseq
  %v1979 = vshrl.u32 %v1978, 7
  %v1980 = vsub.s32 %v1977, %v1979
  %v1981 = vrot.slane %v1968, %v1980
  %1982 = vrot.lane.b32.xlu0 %v1981, 32
  %v1983 = vpop.permute.xlu0 %1982
  %v1985 = vmul.f32 %v1972, %v1983
  %v1986 = vsub.f32 1.0, %v1859
  %1988 = vset.pattern.permute.xlu0 0
  %1989 = vperm.xlu0 %1988, %v1986
  %v1990 = vpop.permute.xlu0 %1989
  %v1992 = vmul.f32 %v1990, %v1686
  %v1993 = vadd.f32 %v1985, %v1992
  %v1996 = vunpack.c.l.s4 1983009808
  %v1997 = vunpack.c.0.s8 %v1996
  %v1998 = vlaneseq
  %v1999 = vshrl.u32 %v1998, 7
  %v2000 = vsub.s32 %v1997, %v1999
  %v2001 = vrot.slane %v1962, %v2000
  %2002 = vrot.lane.b32.xlu0 %v2001, 96
  %v2003 = vpop.permute.xlu0 %2002
  %v2005 = vmul.f32 %v1972, %v2003
  %v2006 = vmul.f32 %v1990, %v1700
  %v2007 = vadd.f32 %v2005, %v2006
  %v2008 = vld [vmem:[%s314] sm:$0x3]
  %v2010 = vsel %vm31, %v1838, 0
  %2012 = vmatprep.subr.mxu0 0.0
  %2013 = vmatpush1.msra.mxu0 %v23
  %2014 = vmatprep.subr.mxu0 0.0
  %2015 = vmatpush1.msra.mxu0 %v24
  %2016 = vmatprep.subr.mxu0 0.0
  %2017 = vmatpush1.msra.mxu0 %v25
  %2018 = vmatprep.subr.mxu0 0.0
  %2019 = vmatpush1.msra.mxu0 %v26
  %2020 = vmatprep.subr.mxu0 0.0
  %2021 = vmatpush1.msra.mxu0 0.0
  %2022 = vmatprep.subr.mxu0 0.0
  %2023 = vmatpush1.msra.mxu0 0.0
  %2024 = vmatprep.subr.mxu0 0.0
  %2025 = vmatpush1.msra.mxu0 0.0
  %2026 = vmatprep.subr.mxu0 0.0
  %2027 = vmatpush1.msra.mxu0 0.0
  %2028 = vmatprep.subr.mxu0 0.0
  %2029 = vmatpush1.msra.mxu0 0.0
  %2030 = vmatprep.subr.mxu0 0.0
  %2031 = vmatpush1.msra.mxu0 0.0
  %2032 = vmatprep.subr.mxu0 0.0
  %2033 = vmatpush1.msra.mxu0 0.0
  %2034 = vmatprep.subr.mxu0 0.0
  %2035 = vmatpush1.msra.mxu0 0.0
  %2036 = vmatprep.subr.mxu0 0.0
  %2037 = vmatpush1.msra.mxu0 0.0
  %2038 = vmatprep.subr.mxu0 0.0
  %2039 = vmatpush1.msra.mxu0 0.0
  %2040 = vmatprep.subr.mxu0 0.0
  %2041 = vmatpush1.msra.mxu0 0.0
  %2042 = vmatprep.subr.mxu0 0.0
  %2043 = vmatpush1.msra.mxu0 0.0
  %2044 = vmatprep.subr.mxu0 0.0
  %2045 = vmatpush1.msra.mxu0 0.0
  %2046 = vmatprep.subr.mxu0 0.0
  %2047 = vmatpush1.msra.mxu0 0.0
  %2048 = vmatprep.subr.mxu0 0.0
  %2049 = vmatpush1.msra.mxu0 0.0
  %2050 = vmatprep.subr.mxu0 0.0
  %2051 = vmatpush1.msra.mxu0 0.0
  %2052 = vmatprep.subr.mxu0 0.0
  %2053 = vmatpush1.msra.mxu0 0.0
  %2054 = vmatprep.subr.mxu0 0.0
  %2055 = vmatpush1.msra.mxu0 0.0
  %2056 = vmatprep.subr.mxu0 0.0
  %2057 = vmatpush1.msra.mxu0 0.0
  %2058 = vmatprep.subr.mxu0 0.0
  %2059 = vmatpush1.msra.mxu0 0.0
  %2060 = vmatprep.subr.mxu0 0.0
  %2061 = vmatpush1.msra.mxu0 0.0
  %2062 = vmatprep.subr.mxu0 0.0
  %2063 = vmatpush1.msra.mxu0 0.0
  %2064 = vmatprep.subr.mxu0 0.0
  %2065 = vmatpush1.msra.mxu0 0.0
  %2066 = vmatprep.subr.mxu0 0.0
  %2067 = vmatpush1.msra.mxu0 0.0
  %2068 = vmatprep.subr.mxu0 0.0
  %2069 = vmatpush1.msra.mxu0 0.0
  %2070 = vmatprep.subr.mxu0 0.0
  %2071 = vmatpush1.msra.mxu0 0.0
  %2072 = vmatprep.subr.mxu0 0.0
  %2073 = vmatpush1.msra.mxu0 0.0
  %2074 = vmatprep.subr.mxu0 0.0
  %2075 = vmatpush1.msra.mxu0 0.0
  %2076 = vmatprep.mubr.f32.mxu0 0.0
  %2077 = vmatmul.mubr.f32.gmra.mrb[0].mxu0 %v2010
  %v2078 = vpop.f32.mrb[0].mxu0
  %v2079 = vadd.f32 0.0, %v2078
  %v2080 = vpop.f32.mrb[0].mxu0
  %2081 = vdwg.mxu0
  %v2083 = vrot.slane %v1858, 2
  %v2085 = vadd.f32 %v2083, %v2079
  %v2086 = vxor.u32 %v2085, 2147483648
  %v2087 = vmul.f32 %v2086, 1.442695
  %v2088 = vpow.pop %v2087
  %v2089 = vadd.f32 %v2088, 1.0
  %v2090 = vrcp.pop %v2089
  %v2091 = vmul.f32 1.0, %v2090
  %v2092 = vtanh.pop %v2085
  %v2095 = vunpack.c.l.s4 1983009808
  %v2096 = vunpack.c.0.s8 %v2095
  %v2097 = vlaneseq
  %v2098 = vshrl.u32 %v2097, 7
  %v2099 = vsub.s32 %v2096, %v2098
  %v2100 = vrot.slane %v1852, %v2099
  %2101 = vrot.lane.b32.xlu0 %v2100, 32
  %v2102 = vpop.permute.xlu0 %2101
  %v2104 = vmul.f32 %v2091, %v2102
  %2106 = vrot.lane.b32.xlu0 %v2092, 64
  %v2107 = vpop.permute.xlu0 %2106
  %v2109 = vmul.f32 %v2091, %v2107
  %2111 = vrot.lane.b32.xlu0 %v2109, 32
  %v2112 = vpop.permute.xlu0 %2111
  %v2114 = vadd.f32 %v2104, %v2112
  %v2115 = vtanh.pop %v2114
  %2117 = vrot.lane.b32.xlu0 %v2115, 64
  %v2118 = vpop.permute.xlu0 %2117
  %v2120 = vmul.f32 %v2091, %v2118
  %2122 = vset.pattern.permute.xlu0 0
  %2123 = vperm.xlu0 %2122, %v2008
  %v2124 = vpop.permute.xlu0 %2123
  %v2128 = vunpack.c.l.s4 1983009808
  %v2129 = vunpack.c.0.s8 %v2128
  %v2130 = vlaneseq
  %v2131 = vshrl.u32 %v2130, 7
  %v2132 = vsub.s32 %v2129, %v2131
  %v2133 = vrot.slane %v2120, %v2132
  %2134 = vrot.lane.b32.xlu0 %v2133, 32
  %v2135 = vpop.permute.xlu0 %2134
  %v2137 = vmul.f32 %v2124, %v2135
  %v2138 = vsub.f32 1.0, %v2008
  %2140 = vset.pattern.permute.xlu0 0
  %2141 = vperm.xlu0 %2140, %v2138
  %v2142 = vpop.permute.xlu0 %2141
  %v2144 = vmul.f32 %v2142, %v1838
  %v2145 = vadd.f32 %v2137, %v2144
  %v2148 = vunpack.c.l.s4 1983009808
  %v2149 = vunpack.c.0.s8 %v2148
  %v2150 = vlaneseq
  %v2151 = vshrl.u32 %v2150, 7
  %v2152 = vsub.s32 %v2149, %v2151
  %v2153 = vrot.slane %v2114, %v2152
  %2154 = vrot.lane.b32.xlu0 %v2153, 96
  %v2155 = vpop.permute.xlu0 %2154
  %v2157 = vmul.f32 %v2124, %v2155
  %v2158 = vmul.f32 %v2142, %v1852
  %v2159 = vadd.f32 %v2157, %v2158
  %s2160 = scalar_lea.vmem %s4, 12
  %2161 = vst.msk [vmem:[%s2160] sm:$0x3] %vm306, %v1993
  %s2162 = scalar_lea.vmem %s5, 2
  %2163 = vst.msk [vmem:[%s2162] sm:$0x3] %vm306, %v2145
  %v2164 = vld [vmem:[%s28] sm:$0xf]
  %v2165 = vld [vmem:[%s0] sm:$0xf]
  %v2166 = vld [vmem:[%s168] sm:$0x3]
  %v2168 = vsel %vm31, %v1993, 0
  %2170 = vmatprep.subr.mxu0 0.0
  %2171 = vmatpush1.msra.mxu0 %v19
  %2172 = vmatprep.subr.mxu0 0.0
  %2173 = vmatpush1.msra.mxu0 %v20
  %2174 = vmatprep.subr.mxu0 0.0
  %2175 = vmatpush1.msra.mxu0 %v21
  %2176 = vmatprep.subr.mxu0 0.0
  %2177 = vmatpush1.msra.mxu0 %v22
  %2178 = vmatprep.subr.mxu0 0.0
  %2179 = vmatpush1.msra.mxu0 0.0
  %2180 = vmatprep.subr.mxu0 0.0
  %2181 = vmatpush1.msra.mxu0 0.0
  %2182 = vmatprep.subr.mxu0 0.0
  %2183 = vmatpush1.msra.mxu0 0.0
  %2184 = vmatprep.subr.mxu0 0.0
  %2185 = vmatpush1.msra.mxu0 0.0
  %2186 = vmatprep.subr.mxu0 0.0
  %2187 = vmatpush1.msra.mxu0 0.0
  %2188 = vmatprep.subr.mxu0 0.0
  %2189 = vmatpush1.msra.mxu0 0.0
  %2190 = vmatprep.subr.mxu0 0.0
  %2191 = vmatpush1.msra.mxu0 0.0
  %2192 = vmatprep.subr.mxu0 0.0
  %2193 = vmatpush1.msra.mxu0 0.0
  %2194 = vmatprep.subr.mxu0 0.0
  %2195 = vmatpush1.msra.mxu0 0.0
  %2196 = vmatprep.subr.mxu0 0.0
  %2197 = vmatpush1.msra.mxu0 0.0
  %2198 = vmatprep.subr.mxu0 0.0
  %2199 = vmatpush1.msra.mxu0 0.0
  %2200 = vmatprep.subr.mxu0 0.0
  %2201 = vmatpush1.msra.mxu0 0.0
  %2202 = vmatprep.subr.mxu0 0.0
  %2203 = vmatpush1.msra.mxu0 0.0
  %2204 = vmatprep.subr.mxu0 0.0
  %2205 = vmatpush1.msra.mxu0 0.0
  %2206 = vmatprep.subr.mxu0 0.0
  %2207 = vmatpush1.msra.mxu0 0.0
  %2208 = vmatprep.subr.mxu0 0.0
  %2209 = vmatpush1.msra.mxu0 0.0
  %2210 = vmatprep.subr.mxu0 0.0
  %2211 = vmatpush1.msra.mxu0 0.0
  %2212 = vmatprep.subr.mxu0 0.0
  %2213 = vmatpush1.msra.mxu0 0.0
  %2214 = vmatprep.subr.mxu0 0.0
  %2215 = vmatpush1.msra.mxu0 0.0
  %2216 = vmatprep.subr.mxu0 0.0
  %2217 = vmatpush1.msra.mxu0 0.0
  %2218 = vmatprep.subr.mxu0 0.0
  %2219 = vmatpush1.msra.mxu0 0.0
  %2220 = vmatprep.subr.mxu0 0.0
  %2221 = vmatpush1.msra.mxu0 0.0
  %2222 = vmatprep.subr.mxu0 0.0
  %2223 = vmatpush1.msra.mxu0 0.0
  %2224 = vmatprep.subr.mxu0 0.0
  %2225 = vmatpush1.msra.mxu0 0.0
  %2226 = vmatprep.subr.mxu0 0.0
  %2227 = vmatpush1.msra.mxu0 0.0
  %2228 = vmatprep.subr.mxu0 0.0
  %2229 = vmatpush1.msra.mxu0 0.0
  %2230 = vmatprep.subr.mxu0 0.0
  %2231 = vmatpush1.msra.mxu0 0.0
  %2232 = vmatprep.subr.mxu0 0.0
  %2233 = vmatpush1.msra.mxu0 0.0
  %2234 = vmatprep.mubr.f32.mxu0 0.0
  %2235 = vmatmul.mubr.f32.gmra.mrb[0].mxu0 %v2168
  %v2236 = vpop.f32.mrb[0].mxu0
  %v2237 = vadd.f32 0.0, %v2236
  %v2238 = vpop.f32.mrb[0].mxu0
  %2239 = vdwg.mxu0
  %v2240 = vadd.f32 %v2164, %v2237
  %v2241 = vxor.u32 %v2240, 2147483648
  %v2242 = vmul.f32 %v2241, 1.442695
  %v2243 = vpow.pop %v2242
  %v2244 = vadd.f32 %v2243, 1.0
  %v2245 = vrcp.pop %v2244
  %v2246 = vmul.f32 1.0, %v2245
  %v2247 = vtanh.pop %v2240
  %v2250 = vunpack.c.l.s4 1983009808
  %v2251 = vunpack.c.0.s8 %v2250
  %v2252 = vlaneseq
  %v2253 = vshrl.u32 %v2252, 7
  %v2254 = vsub.s32 %v2251, %v2253
  %v2255 = vrot.slane %v2007, %v2254
  %2256 = vrot.lane.b32.xlu0 %v2255, 32
  %v2257 = vpop.permute.xlu0 %2256
  %v2259 = vmul.f32 %v2246, %v2257
  %2261 = vrot.lane.b32.xlu0 %v2247, 64
  %v2262 = vpop.permute.xlu0 %2261
  %v2264 = vmul.f32 %v2246, %v2262
  %2266 = vrot.lane.b32.xlu0 %v2264, 32
  %v2267 = vpop.permute.xlu0 %2266
  %v2269 = vadd.f32 %v2259, %v2267
  %v2270 = vtanh.pop %v2269
  %2272 = vrot.lane.b32.xlu0 %v2270, 64
  %v2273 = vpop.permute.xlu0 %2272
  %v2275 = vmul.f32 %v2246, %v2273
  %2277 = vset.pattern.permute.xlu0 0
  %2278 = vperm.xlu0 %2277, %v2166
  %v2279 = vpop.permute.xlu0 %2278
  %v2283 = vunpack.c.l.s4 1983009808
  %v2284 = vunpack.c.0.s8 %v2283
  %v2285 = vlaneseq
  %v2286 = vshrl.u32 %v2285, 7
  %v2287 = vsub.s32 %v2284, %v2286
  %v2288 = vrot.slane %v2275, %v2287
  %2289 = vrot.lane.b32.xlu0 %v2288, 32
  %v2290 = vpop.permute.xlu0 %2289
  %v2292 = vmul.f32 %v2279, %v2290
  %v2293 = vsub.f32 1.0, %v2166
  %2295 = vset.pattern.permute.xlu0 0
  %2296 = vperm.xlu0 %2295, %v2293
  %v2297 = vpop.permute.xlu0 %2296
  %v2299 = vmul.f32 %v2297, %v1993
  %v2300 = vadd.f32 %v2292, %v2299
  %v2301 = vld [vmem:[%s1] sm:$0x3]
  %v2303 = vsel %vm31, %v2145, 0
  %2305 = vmatprep.subr.mxu0 0.0
  %2306 = vmatpush1.msra.mxu0 %v23
  %2307 = vmatprep.subr.mxu0 0.0
  %2308 = vmatpush1.msra.mxu0 %v24
  %2309 = vmatprep.subr.mxu0 0.0
  %2310 = vmatpush1.msra.mxu0 %v25
  %2311 = vmatprep.subr.mxu0 0.0
  %2312 = vmatpush1.msra.mxu0 %v26
  %2313 = vmatprep.subr.mxu0 0.0
  %2314 = vmatpush1.msra.mxu0 0.0
  %2315 = vmatprep.subr.mxu0 0.0
  %2316 = vmatpush1.msra.mxu0 0.0
  %2317 = vmatprep.subr.mxu0 0.0
  %2318 = vmatpush1.msra.mxu0 0.0
  %2319 = vmatprep.subr.mxu0 0.0
  %2320 = vmatpush1.msra.mxu0 0.0
  %2321 = vmatprep.subr.mxu0 0.0
  %2322 = vmatpush1.msra.mxu0 0.0
  %2323 = vmatprep.subr.mxu0 0.0
  %2324 = vmatpush1.msra.mxu0 0.0
  %2325 = vmatprep.subr.mxu0 0.0
  %2326 = vmatpush1.msra.mxu0 0.0
  %2327 = vmatprep.subr.mxu0 0.0
  %2328 = vmatpush1.msra.mxu0 0.0
  %2329 = vmatprep.subr.mxu0 0.0
  %2330 = vmatpush1.msra.mxu0 0.0
  %2331 = vmatprep.subr.mxu0 0.0
  %2332 = vmatpush1.msra.mxu0 0.0
  %2333 = vmatprep.subr.mxu0 0.0
  %2334 = vmatpush1.msra.mxu0 0.0
  %2335 = vmatprep.subr.mxu0 0.0
  %2336 = vmatpush1.msra.mxu0 0.0
  %2337 = vmatprep.subr.mxu0 0.0
  %2338 = vmatpush1.msra.mxu0 0.0
  %2339 = vmatprep.subr.mxu0 0.0
  %2340 = vmatpush1.msra.mxu0 0.0
  %2341 = vmatprep.subr.mxu0 0.0
  %2342 = vmatpush1.msra.mxu0 0.0
  %2343 = vmatprep.subr.mxu0 0.0
  %2344 = vmatpush1.msra.mxu0 0.0
  %2345 = vmatprep.subr.mxu0 0.0
  %2346 = vmatpush1.msra.mxu0 0.0
  %2347 = vmatprep.subr.mxu0 0.0
  %2348 = vmatpush1.msra.mxu0 0.0
  %2349 = vmatprep.subr.mxu0 0.0
  %2350 = vmatpush1.msra.mxu0 0.0
  %2351 = vmatprep.subr.mxu0 0.0
  %2352 = vmatpush1.msra.mxu0 0.0
  %2353 = vmatprep.subr.mxu0 0.0
  %2354 = vmatpush1.msra.mxu0 0.0
  %2355 = vmatprep.subr.mxu0 0.0
  %2356 = vmatpush1.msra.mxu0 0.0
  %2357 = vmatprep.subr.mxu0 0.0
  %2358 = vmatpush1.msra.mxu0 0.0
  %2359 = vmatprep.subr.mxu0 0.0
  %2360 = vmatpush1.msra.mxu0 0.0
  %2361 = vmatprep.subr.mxu0 0.0
  %2362 = vmatpush1.msra.mxu0 0.0
  %2363 = vmatprep.subr.mxu0 0.0
  %2364 = vmatpush1.msra.mxu0 0.0
  %2365 = vmatprep.subr.mxu0 0.0
  %2366 = vmatpush1.msra.mxu0 0.0
  %2367 = vmatprep.subr.mxu0 0.0
  %2368 = vmatpush1.msra.mxu0 0.0
  %2369 = vmatprep.mubr.f32.mxu0 0.0
  %2370 = vmatmul.mubr.f32.gmra.mrb[0].mxu0 %v2303
  %v2371 = vpop.f32.mrb[0].mxu0
  %v2372 = vadd.f32 0.0, %v2371
  %v2373 = vpop.f32.mrb[0].mxu0
  %2374 = vdwg.mxu0
  %v2376 = vrot.slane %v2165, 2
  %v2378 = vadd.f32 %v2376, %v2372
  %v2379 = vxor.u32 %v2378, 2147483648
  %v2380 = vmul.f32 %v2379, 1.442695
  %v2381 = vpow.pop %v2380
  %v2382 = vadd.f32 %v2381, 1.0
  %v2383 = vrcp.pop %v2382
  %v2384 = vmul.f32 1.0, %v2383
  %v2385 = vtanh.pop %v2378
  %v2388 = vunpack.c.l.s4 1983009808
  %v2389 = vunpack.c.0.s8 %v2388
  %v2390 = vlaneseq
  %v2391 = vshrl.u32 %v2390, 7
  %v2392 = vsub.s32 %v2389, %v2391
  %v2393 = vrot.slane %v2159, %v2392
  %2394 = vrot.lane.b32.xlu0 %v2393, 32
  %v2395 = vpop.permute.xlu0 %2394
  %v2397 = vmul.f32 %v2384, %v2395
  %2399 = vrot.lane.b32.xlu0 %v2385, 64
  %v2400 = vpop.permute.xlu0 %2399
  %v2402 = vmul.f32 %v2384, %v2400
  %2404 = vrot.lane.b32.xlu0 %v2402, 32
  %v2405 = vpop.permute.xlu0 %2404
  %v2407 = vadd.f32 %v2397, %v2405
  %v2408 = vtanh.pop %v2407
  %2410 = vrot.lane.b32.xlu0 %v2408, 64
  %v2411 = vpop.permute.xlu0 %2410
  %v2413 = vmul.f32 %v2384, %v2411
  %2415 = vset.pattern.permute.xlu0 0
  %2416 = vperm.xlu0 %2415, %v2301
  %v2417 = vpop.permute.xlu0 %2416
  %v2421 = vunpack.c.l.s4 1983009808
  %v2422 = vunpack.c.0.s8 %v2421
  %v2423 = vlaneseq
  %v2424 = vshrl.u32 %v2423, 7
  %v2425 = vsub.s32 %v2422, %v2424
  %v2426 = vrot.slane %v2413, %v2425
  %2427 = vrot.lane.b32.xlu0 %v2426, 32
  %v2428 = vpop.permute.xlu0 %2427
  %v2430 = vmul.f32 %v2417, %v2428
  %v2431 = vsub.f32 1.0, %v2301
  %2433 = vset.pattern.permute.xlu0 0
  %2434 = vperm.xlu0 %2433, %v2431
  %v2435 = vpop.permute.xlu0 %2434
  %v2437 = vmul.f32 %v2435, %v2145
  %v2438 = vadd.f32 %v2430, %v2437
  %s2439 = scalar_lea.vmem %s4, 14
  %2440 = vst.msk [vmem:[%s2439] sm:$0x3] %vm306, %v2300
  %2441 = vst.msk [vmem:[%s5] sm:$0x3] %vm306, %v2438
  // Predicated region
  $region18: #{forward_core.9} parent=0 // pred_check
    _
  $region19: #{forward_core.9} parent=0 // pred_check_branch
    %2443 = sbr.rel (0) target = $region21
  $region20: #{forward_core.9} parent=0 // pred_region
    _
  $region21: #{forward_core.9} parent=0 // pred_fallthru
    _
  // Predicated region
  $region22: #{forward_core.9} parent=0 // pred_check
    _
  $region23: #{forward_core.9} parent=0 // pred_check_branch
    %2445 = sbr.rel (0) target = $region25
  $region24: #{forward_core.9} parent=0 // pred_region
    _
  $region25: #{forward_core.9} parent=0 // pred_fallthru
    _
  // Predicated region
  $region26: #{forward_core.9} parent=0 // pred_check
    _
  $region27: #{forward_core.9} parent=0 // pred_check_branch
    %2447 = sbr.rel (0) target = $region29
  $region28: #{forward_core.9} parent=0 // pred_region
    _
  $region29: #{forward_core.9} parent=0 // pred_fallthru
    _
  // Predicated region
  $region30: #{forward_core.9} parent=0 // pred_check
    _
  $region31: #{forward_core.9} parent=0 // pred_check_branch
    %2449 = sbr.rel (0) target = $region33
  $region32: #{forward_core.9} parent=0 // pred_region
    _
  $region33: #{forward_core.9} parent=0 // pred_fallthru
    _

// kernel: forward_core.13
$region0: #{forward_core.13}
  #allocation0 [shape = 'u32[]', space=smem, size = 0x4, offset = 0x4, fixed_abs, tag = 'smem constant byte address 0x4 - core index']
  #allocation1 [shape = 'u32[144,128]{1,0:T(1,128)}', space=vmem, size = 0x12000, scoped, tag = 'internal scratch']
  %s0 = inlined_call_operand.vmem [shape: f32[8,4,6,6], index: 0, kind: input, shape index: {}]
  %s1 = inlined_call_operand.vmem [shape: f32[8,4,6], index: 1, kind: input, shape index: {}]
  %s2 = inlined_call_operand.vmem [shape: f32[8,4,1], index: 2, kind: input, shape index: {}]
  %s3 = inlined_call_operand.vmem [shape: f32[4,1], index: 3, kind: output, shape index: {}]
  %s4 = sld [smem:[#allocation0]]
  $region22: #{forward_core.13} parent=0
    _
  %s6 = ssub.s32 1, %s4
  %s7 = scalar_select 0, %s6, %s4
  // Predicated region
  $region2: #{forward_core.13} parent=0 // pred_check
    _
  $region3: #{forward_core.13} parent=0 // pred_check_branch
    %9 = sbr.rel (0) target = $region5
  $region4: #{forward_core.13} parent=0 // pred_region
    _
  $region5: #{forward_core.13} parent=0 // pred_fallthru
    _
  // Predicated region
  $region6: #{forward_core.13} parent=0 // pred_check
    _
  $region7: #{forward_core.13} parent=0 // pred_check_branch
    %11 = sbr.rel (0) target = $region9
  $region8: #{forward_core.13} parent=0 // pred_region
    _
  $region9: #{forward_core.13} parent=0 // pred_fallthru
    _
  // Predicated region
  $region10: #{forward_core.13} parent=0 // pred_check
    _
  $region11: #{forward_core.13} parent=0 // pred_check_branch
    %13 = sbr.rel (0) target = $region13
  $region12: #{forward_core.13} parent=0 // pred_region
    _
  $region13: #{forward_core.13} parent=0 // pred_fallthru
    _
  %v14 = vld [vmem:[%s0] sm:$0x3f]
  %v15 = vld [vmem:[%s0 + $0x8] sm:$0x3f]
  %v16 = vld [vmem:[%s0 + $0x10] sm:$0x3f]
  %v17 = vld [vmem:[%s0 + $0x18] sm:$0x3f]
  %v18 = vld [vmem:[%s1] sm:$0xf]
  %v19 = vld [vmem:[%s2] sm:$0xf]
  %v21 = vrot.slane %v18, 3
  %v22 = vrot.slane %v18, 4
  %v23 = vrot.slane %v18, 5
  %v24 = vrot.slane %v18, 6
  %v29 = vmul.f32 %v14, %v21
  %v30 = vmul.f32 %v15, %v22
  %v31 = vmul.f32 %v16, %v23
  %v32 = vmul.f32 %v17, %v24
  %v37 = vrot.slane %v30, 7
  %vm38 = vcmask 1046534
  %v39 = vsel %vm38, %v37, %v29
  %v40 = vrot.slane %v31, 6
  %vm41 = vcmask 1047559
  %v42 = vsel %vm41, %v40, %v39
  %v43 = vrot.slane %v32, 5
  %vm46 = vcmask 48133
  %v47 = vsel %vm46, %v42, 0.0
  %48 = vadd.xlane.f32.xlu0 %v47
  %v49 = vpop.xlane.xlu0 %48
  %vm50 = vcmask 40960
  %v51 = vsel %vm50, %v43, 0.0
  %52 = vadd.xlane.f32.xlu0 %v51
  %v53 = vpop.xlane.xlu0 %52
  %v55 = vrot.slane %v19, 3
  %v57 = vmul.f32 %v49, %v55
  %v58 = vmul.f32 %v53, %v55
  %s59 = scalar_lea.vmem %s0, 32
  %v60 = vld [vmem:[%s59] sm:$0x3f]
  %v61 = vld [vmem:[%s59 + $0x8] sm:$0x3f]
  %v62 = vld [vmem:[%s59 + $0x10] sm:$0x3f]
  %v63 = vld [vmem:[%s59 + $0x18] sm:$0x3f]
  %s64 = scalar_lea.vmem %s1, 4
  %v65 = vld [vmem:[%s64] sm:$0xf]
  %s66 = scalar_lea.vmem %s2, 4
  %v67 = vld [vmem:[%s66] sm:$0xf]
  %v68 = vlaneseq
  %v69 = vshrl.u32 %v68, 7
  %v70 = vsub.s32 5, %v69
  %v71 = vrot.slane %v14, %v70
  %73 = vbcast.lane.b32.xlu0 %v71, 256
  %v74 = vpop.permute.xlu0 %73
  %v75 = vlaneseq
  %v76 = vshrl.u32 %v75, 7
  %v77 = vsub.s32 5, %v76
  %v78 = vrot.slane %v15, %v77
  %80 = vbcast.lane.b32.xlu0 %v78, 256
  %v81 = vpop.permute.xlu0 %80
  %v82 = vlaneseq
  %v83 = vshrl.u32 %v82, 7
  %v84 = vsub.s32 5, %v83
  %v85 = vrot.slane %v16, %v84
  %87 = vbcast.lane.b32.xlu0 %v85, 256
  %v88 = vpop.permute.xlu0 %87
  %v89 = vlaneseq
  %v90 = vshrl.u32 %v89, 7
  %v91 = vsub.s32 5, %v90
  %v92 = vrot.slane %v17, %v91
  %94 = vbcast.lane.b32.xlu0 %v92, 256
  %v95 = vpop.permute.xlu0 %94
  %v96 = vadd.f32 %v74, %v60
  %v97 = vadd.f32 %v81, %v61
  %v98 = vadd.f32 %v88, %v62
  %v99 = vadd.f32 %v95, %v63
  %vm100 = vcmask 46080
  %v101 = vsel %vm100, %v96, -inf
  %v102 = vrot.slane %v101, 4
  %v103 = vmax.f32 %v101, %v102
  %v104 = vrot.slane %v103, 2
  %v105 = vmax.f32 %v103, %v104
  %v106 = vrot.slane %v105, 1
  %v107 = vmax.f32 %v105, %v106
  %v108 = vsel %vm100, %v97, -inf
  %v109 = vrot.slane %v108, 4
  %v110 = vmax.f32 %v108, %v109
  %v111 = vrot.slane %v110, 2
  %v112 = vmax.f32 %v110, %v111
  %v113 = vrot.slane %v112, 1
  %v114 = vmax.f32 %v112, %v113
  %v115 = vsel %vm100, %v98, -inf
  %v116 = vrot.slane %v115, 4
  %v117 = vmax.f32 %v115, %v116
  %v118 = vrot.slane %v117, 2
  %v119 = vmax.f32 %v117, %v118
  %v120 = vrot.slane %v119, 1
  %v121 = vmax.f32 %v119, %v120
  %v122 = vsel %vm100, %v99, -inf
  %v123 = vrot.slane %v122, 4
  %v124 = vmax.f32 %v122, %v123
  %v125 = vrot.slane %v124, 2
  %v126 = vmax.f32 %v124, %v125
  %v127 = vrot.slane %v126, 1
  %v128 = vmax.f32 %v126, %v127
  %v129 = vsub.f32 %v96, %v107
  %v130 = vsub.f32 %v97, %v114
  %v131 = vsub.f32 %v98, %v121
  %v132 = vsub.f32 %v99, %v128
  %v133 = vmul.f32 %v129, 1.442695
  %v134 = vpow.pop %v133
  %v135 = vmul.f32 %v130, 1.442695
  %v136 = vpow.pop %v135
  %v137 = vmul.f32 %v131, 1.442695
  %v138 = vpow.pop %v137
  %v139 = vmul.f32 %v132, 1.442695
  %v140 = vpow.pop %v139
  %v141 = vsel %vm100, %v134, 0.0
  %v142 = vrot.slane %v141, 4
  %v143 = vadd.f32 %v141, %v142
  %v144 = vrot.slane %v143, 2
  %v145 = vadd.f32 %v143, %v144
  %v146 = vrot.slane %v145, 1
  %v147 = vadd.f32 %v145, %v146
  %v148 = vsel %vm100, %v136, 0.0
  %v149 = vrot.slane %v148, 4
  %v150 = vadd.f32 %v148, %v149
  %v151 = vrot.slane %v150, 2
  %v152 = vadd.f32 %v150, %v151
  %v153 = vrot.slane %v152, 1
  %v154 = vadd.f32 %v152, %v153
  %v155 = vsel %vm100, %v138, 0.0
  %v156 = vrot.slane %v155, 4
  %v157 = vadd.f32 %v155, %v156
  %v158 = vrot.slane %v157, 2
  %v159 = vadd.f32 %v157, %v158
  %v160 = vrot.slane %v159, 1
  %v161 = vadd.f32 %v159, %v160
  %v162 = vsel %vm100, %v140, 0.0
  %v163 = vrot.slane %v162, 4
  %v164 = vadd.f32 %v162, %v163
  %v165 = vrot.slane %v164, 2
  %v166 = vadd.f32 %v164, %v165
  %v167 = vrot.slane %v166, 1
  %v168 = vadd.f32 %v166, %v167
  %v169 = vlog2.pop %v147
  %v170 = vmul.f32 %v169, 0.6931472
  %v171 = vlog2.pop %v154
  %v172 = vmul.f32 %v171, 0.6931472
  %v173 = vlog2.pop %v161
  %v174 = vmul.f32 %v173, 0.6931472
  %v175 = vlog2.pop %v168
  %v176 = vmul.f32 %v175, 0.6931472
  %v177 = vadd.f32 %v170, %v107
  %v178 = vadd.f32 %v172, %v114
  %v179 = vadd.f32 %v174, %v121
  %v180 = vadd.f32 %v176, %v128
  %182 = vset.pattern.permute.xlu0 0
  %183 = vperm.xlu0 %182, %v67
  %v184 = vpop.permute.xlu0 %183
  %vm190 = vcmask 1041409
  %v191 = vsel %vm190, %v178, %v177
  %vm192 = vcmask 1042434
  %v193 = vsel %vm192, %v179, %v191
  %vm194 = vcmask 1043459
  %v195 = vsel %vm194, %v180, %v193
  %v197 = vmul.f32 %v184, %v195
  %v198 = vsub.f32 1.0, %v67
  %200 = vset.pattern.permute.xlu0 0
  %201 = vperm.xlu0 %200, %v198
  %v202 = vpop.permute.xlu0 %201
  %v208 = vrot.slane %v14, 5
  %v209 = vrot.slane %v15, 4
  %v210 = vsel %vm190, %v209, %v208
  %v211 = vrot.slane %v16, 3
  %v212 = vsel %vm192, %v211, %v210
  %v213 = vrot.slane %v17, 2
  %v214 = vsel %vm194, %v213, %v212
  %v216 = vmul.f32 %v202, %v214
  %v217 = vadd.f32 %v197, %v216
  %v218 = vlaneseq
  %v219 = vshrl.u32 %v218, 7
  %v220 = vsub.s32 0, %v219
  %v221 = vrot.slane %v18, %v220
  %223 = vbcast.lane.b32.xlu0 %v221, 256
  %v224 = vpop.permute.xlu0 %223
  %v225 = vlaneseq
  %v226 = vshrl.u32 %v225, 7
  %v227 = vsub.s32 1, %v226
  %v228 = vrot.slane %v18, %v227
  %230 = vbcast.lane.b32.xlu0 %v228, 256
  %v231 = vpop.permute.xlu0 %230
  %v232 = vlaneseq
  %v233 = vshrl.u32 %v232, 7
  %v234 = vsub.s32 2, %v233
  %v235 = vrot.slane %v18, %v234
  %237 = vbcast.lane.b32.xlu0 %v235, 256
  %v238 = vpop.permute.xlu0 %237
  %v239 = vlaneseq
  %v240 = vshrl.u32 %v239, 7
  %v241 = vsub.s32 3, %v240
  %v242 = vrot.slane %v18, %v241
  %244 = vbcast.lane.b32.xlu0 %v242, 256
  %v245 = vpop.permute.xlu0 %244
  %v246 = vmul.f32 %v224, %v60
  %v247 = vmul.f32 %v231, %v61
  %v248 = vmul.f32 %v238, %v62
  %v249 = vmul.f32 %v245, %v63
  %v252 = vunpack.c.l.s4 1966171168
  %v253 = vunpack.c.0.s8 %v252
  %v254 = vlaneseq
  %v255 = vshrl.u32 %v254, 7
  %v256 = vsub.s32 %v253, %v255
  %v257 = vrot.slane %v65, %v256
  %v258 = vcombine.high %v257, %v257
  %v260 = vunpack.c.l.s4 1966171168
  %v261 = vunpack.c.0.s8 %v260
  %v262 = vlaneseq
  %v263 = vshrl.u32 %v262, 7
  %v264 = vsub.s32 %v261, %v263
  %v265 = vrot.slane %v257, %v264
  %v267 = vunpack.c.l.s4 1966171168
  %v268 = vunpack.c.0.s8 %v267
  %v269 = vlaneseq
  %v270 = vshrl.u32 %v269, 7
  %v271 = vsub.s32 %v268, %v270
  %v272 = vrot.slane %v258, %v271
  %v273 = vcombine.high %v265, %v265
  %v274 = vcombine.high %v272, %v272
  %v275 = vlaneseq
  %v276 = vshrl.u32 %v275, 7
  %v277 = vsub.s32 0, %v276
  %v278 = vrot.slane %v265, %v277
  %v279 = vlaneseq
  %v280 = vshrl.u32 %v279, 7
  %v281 = vsub.s32 0, %v280
  %v282 = vrot.slane %v272, %v281
  %v283 = vlaneseq
  %v284 = vshrl.u32 %v283, 7
  %v285 = vsub.s32 0, %v284
  %v286 = vrot.slane %v273, %v285
  %v287 = vlaneseq
  %v288 = vshrl.u32 %v287, 7
  %v289 = vsub.s32 0, %v288
  %v290 = vrot.slane %v274, %v289
  %v295 = vmul.f32 %v246, %v278
  %v296 = vmul.f32 %v247, %v282
  %v297 = vmul.f32 %v248, %v286
  %v298 = vmul.f32 %v249, %v290
  %v299 = vsel %vm100, %v295, 0.0
  %300 = vadd.xlane.f32.xlu0 %v299
  %v301 = vpop.xlane.xlu0 %300
  %v302 = vsel %vm100, %v296, 0.0
  %303 = vadd.xlane.f32.xlu0 %v302
  %v304 = vpop.xlane.xlu0 %303
  %v305 = vsel %vm100, %v297, 0.0
  %306 = vadd.xlane.f32.xlu0 %v305
  %v307 = vpop.xlane.xlu0 %306
  %v308 = vsel %vm100, %v298, 0.0
  %309 = vadd.xlane.f32.xlu0 %v308
  %v310 = vpop.xlane.xlu0 %309
  %v315 = vlaneseq
  %v316 = vand.u32 %v315, 127
  %v317 = vlaneseq
  %v318 = vshrl.u32 %v317, 7
  %v319 = vsub.s32 %v316, %v318
  %v320 = vrot.slane %v301, %v319
  %v321 = vlaneseq
  %v322 = vshrl.u32 %v321, 7
  %v323 = vsub.s32 %v316, %v322
  %v324 = vrot.slane %v304, %v323
  %v325 = vlaneseq
  %v326 = vshrl.u32 %v325, 7
  %v327 = vsub.s32 %v316, %v326
  %v328 = vrot.slane %v307, %v327
  %v329 = vlaneseq
  %v330 = vshrl.u32 %v329, 7
  %v331 = vsub.s32 %v316, %v330
  %v332 = vrot.slane %v310, %v331
  %v333 = vsel %vm190, %v324, %v320
  %v334 = vsel %vm192, %v328, %v333
  %v335 = vsel %vm194, %v332, %v334
  %vm337 = vcmask 44032
  %v338 = vsel %vm337, %v335, 0.0
  %339 = vadd.xlane.f32.xlu0 %v338
  %v340 = vpop.xlane.xlu0 %339
  %v341 = vmul.f32 %v67, %v340
  %v343 = vrot.slane %v341, 3
  %v345 = vadd.f32 %v57, %v343
  %v346 = vadd.f32 %v58, %v343
  %v347 = vmul.f32 %v184, %v65
  %v348 = vmul.f32 %v202, %v18
  %v349 = vadd.f32 %v347, %v348
  %s350 = scalar_lea.vmem %s0, 64
  %v351 = vld [vmem:[%s350] sm:$0x3f]
  %v352 = vld [vmem:[%s350 + $0x8] sm:$0x3f]
  %v353 = vld [vmem:[%s350 + $0x10] sm:$0x3f]
  %v354 = vld [vmem:[%s350 + $0x18] sm:$0x3f]
  %s355 = scalar_lea.vmem %s1, 8
  %v356 = vld [vmem:[%s355] sm:$0xf]
  %s357 = scalar_lea.vmem %s2, 8
  %v358 = vld [vmem:[%s357] sm:$0xf]
  %v359 = vlaneseq
  %v360 = vshrl.u32 %v359, 7
  %v361 = vsub.s32 0, %v360
  %v362 = vrot.slane %v217, %v361
  %364 = vbcast.lane.b32.xlu0 %v362, 256
  %v365 = vpop.permute.xlu0 %364
  %v366 = vlaneseq
  %v367 = vshrl.u32 %v366, 7
  %v368 = vsub.s32 1, %v367
  %v369 = vrot.slane %v217, %v368
  %371 = vbcast.lane.b32.xlu0 %v369, 256
  %v372 = vpop.permute.xlu0 %371
  %v373 = vlaneseq
  %v374 = vshrl.u32 %v373, 7
  %v375 = vsub.s32 2, %v374
  %v376 = vrot.slane %v217, %v375
  %378 = vbcast.lane.b32.xlu0 %v376, 256
  %v379 = vpop.permute.xlu0 %378
  %v380 = vlaneseq
  %v381 = vshrl.u32 %v380, 7
  %v382 = vsub.s32 3, %v381
  %v383 = vrot.slane %v217, %v382
  %385 = vbcast.lane.b32.xlu0 %v383, 256
  %v386 = vpop.permute.xlu0 %385
  %v387 = vadd.f32 %v365, %v351
  %v388 = vadd.f32 %v372, %v352
  %v389 = vadd.f32 %v379, %v353
  %v390 = vadd.f32 %v386, %v354
  %v391 = vsel %vm100, %v387, -inf
  %v392 = vrot.slane %v391, 4
  %v393 = vmax.f32 %v391, %v392
  %v394 = vrot.slane %v393, 2
  %v395 = vmax.f32 %v393, %v394
  %v396 = vrot.slane %v395, 1
  %v397 = vmax.f32 %v395, %v396
  %v398 = vsel %vm100, %v388, -inf
  %v399 = vrot.slane %v398, 4
  %v400 = vmax.f32 %v398, %v399
  %v401 = vrot.slane %v400, 2
  %v402 = vmax.f32 %v400, %v401
  %v403 = vrot.slane %v402, 1
  %v404 = vmax.f32 %v402, %v403
  %v405 = vsel %vm100, %v389, -inf
  %v406 = vrot.slane %v405, 4
  %v407 = vmax.f32 %v405, %v406
  %v408 = vrot.slane %v407, 2
  %v409 = vmax.f32 %v407, %v408
  %v410 = vrot.slane %v409, 1
  %v411 = vmax.f32 %v409, %v410
  %v412 = vsel %vm100, %v390, -inf
  %v413 = vrot.slane %v412, 4
  %v414 = vmax.f32 %v412, %v413
  %v415 = vrot.slane %v414, 2
  %v416 = vmax.f32 %v414, %v415
  %v417 = vrot.slane %v416, 1
  %v418 = vmax.f32 %v416, %v417
  %v419 = vsub.f32 %v387, %v397
  %v420 = vsub.f32 %v388, %v404
  %v421 = vsub.f32 %v389, %v411
  %v422 = vsub.f32 %v390, %v418
  %v423 = vmul.f32 %v419, 1.442695
  %v424 = vpow.pop %v423
  %v425 = vmul.f32 %v420, 1.442695
  %v426 = vpow.pop %v425
  %v427 = vmul.f32 %v421, 1.442695
  %v428 = vpow.pop %v427
  %v429 = vmul.f32 %v422, 1.442695
  %v430 = vpow.pop %v429
  %v431 = vsel %vm100, %v424, 0.0
  %v432 = vrot.slane %v431, 4
  %v433 = vadd.f32 %v431, %v432
  %v434 = vrot.slane %v433, 2
  %v435 = vadd.f32 %v433, %v434
  %v436 = vrot.slane %v435, 1
  %v437 = vadd.f32 %v435, %v436
  %v438 = vsel %vm100, %v426, 0.0
  %v439 = vrot.slane %v438, 4
  %v440 = vadd.f32 %v438, %v439
  %v441 = vrot.slane %v440, 2
  %v442 = vadd.f32 %v440, %v441
  %v443 = vrot.slane %v442, 1
  %v444 = vadd.f32 %v442, %v443
  %v445 = vsel %vm100, %v428, 0.0
  %v446 = vrot.slane %v445, 4
  %v447 = vadd.f32 %v445, %v446
  %v448 = vrot.slane %v447, 2
  %v449 = vadd.f32 %v447, %v448
  %v450 = vrot.slane %v449, 1
  %v451 = vadd.f32 %v449, %v450
  %v452 = vsel %vm100, %v430, 0.0
  %v453 = vrot.slane %v452, 4
  %v454 = vadd.f32 %v452, %v453
  %v455 = vrot.slane %v454, 2
  %v456 = vadd.f32 %v454, %v455
  %v457 = vrot.slane %v456, 1
  %v458 = vadd.f32 %v456, %v457
  %v459 = vlog2.pop %v437
  %v460 = vmul.f32 %v459, 0.6931472
  %v461 = vlog2.pop %v444
  %v462 = vmul.f32 %v461, 0.6931472
  %v463 = vlog2.pop %v451
  %v464 = vmul.f32 %v463, 0.6931472
  %v465 = vlog2.pop %v458
  %v466 = vmul.f32 %v465, 0.6931472
  %v467 = vadd.f32 %v460, %v397
  %v468 = vadd.f32 %v462, %v404
  %v469 = vadd.f32 %v464, %v411
  %v470 = vadd.f32 %v466, %v418
  %472 = vset.pattern.permute.xlu0 0
  %473 = vperm.xlu0 %472, %v358
  %v474 = vpop.permute.xlu0 %473
  %v480 = vsel %vm190, %v468, %v467
  %v481 = vsel %vm192, %v469, %v480
  %v482 = vsel %vm194, %v470, %v481
  %v484 = vmul.f32 %v474, %v482
  %v485 = vsub.f32 1.0, %v358
  %487 = vset.pattern.permute.xlu0 0
  %488 = vperm.xlu0 %487, %v485
  %v489 = vpop.permute.xlu0 %488
  %v491 = vmul.f32 %v489, %v217
  %v492 = vadd.f32 %v484, %v491
  %v493 = vlaneseq
  %v494 = vshrl.u32 %v493, 7
  %v495 = vsub.s32 0, %v494
  %v496 = vrot.slane %v349, %v495
  %498 = vbcast.lane.b32.xlu0 %v496, 256
  %v499 = vpop.permute.xlu0 %498
  %v500 = vlaneseq
  %v501 = vshrl.u32 %v500, 7
  %v502 = vsub.s32 1, %v501
  %v503 = vrot.slane %v349, %v502
  %505 = vbcast.lane.b32.xlu0 %v503, 256
  %v506 = vpop.permute.xlu0 %505
  %v507 = vlaneseq
  %v508 = vshrl.u32 %v507, 7
  %v509 = vsub.s32 2, %v508
  %v510 = vrot.slane %v349, %v509
  %512 = vbcast.lane.b32.xlu0 %v510, 256
  %v513 = vpop.permute.xlu0 %512
  %v514 = vlaneseq
  %v515 = vshrl.u32 %v514, 7
  %v516 = vsub.s32 3, %v515
  %v517 = vrot.slane %v349, %v516
  %519 = vbcast.lane.b32.xlu0 %v517, 256
  %v520 = vpop.permute.xlu0 %519
  %v521 = vmul.f32 %v499, %v351
  %v522 = vmul.f32 %v506, %v352
  %v523 = vmul.f32 %v513, %v353
  %v524 = vmul.f32 %v520, %v354
  %v527 = vunpack.c.l.s4 1966171168
  %v528 = vunpack.c.0.s8 %v527
  %v529 = vlaneseq
  %v530 = vshrl.u32 %v529, 7
  %v531 = vsub.s32 %v528, %v530
  %v532 = vrot.slane %v356, %v531
  %v533 = vcombine.high %v532, %v532
  %v535 = vunpack.c.l.s4 1966171168
  %v536 = vunpack.c.0.s8 %v535
  %v537 = vlaneseq
  %v538 = vshrl.u32 %v537, 7
  %v539 = vsub.s32 %v536, %v538
  %v540 = vrot.slane %v532, %v539
  %v542 = vunpack.c.l.s4 1966171168
  %v543 = vunpack.c.0.s8 %v542
  %v544 = vlaneseq
  %v545 = vshrl.u32 %v544, 7
  %v546 = vsub.s32 %v543, %v545
  %v547 = vrot.slane %v533, %v546
  %v548 = vcombine.high %v540, %v540
  %v549 = vcombine.high %v547, %v547
  %v550 = vlaneseq
  %v551 = vshrl.u32 %v550, 7
  %v552 = vsub.s32 0, %v551
  %v553 = vrot.slane %v540, %v552
  %v554 = vlaneseq
  %v555 = vshrl.u32 %v554, 7
  %v556 = vsub.s32 0, %v555
  %v557 = vrot.slane %v547, %v556
  %v558 = vlaneseq
  %v559 = vshrl.u32 %v558, 7
  %v560 = vsub.s32 0, %v559
  %v561 = vrot.slane %v548, %v560
  %v562 = vlaneseq
  %v563 = vshrl.u32 %v562, 7
  %v564 = vsub.s32 0, %v563
  %v565 = vrot.slane %v549, %v564
  %v570 = vmul.f32 %v521, %v553
  %v571 = vmul.f32 %v522, %v557
  %v572 = vmul.f32 %v523, %v561
  %v573 = vmul.f32 %v524, %v565
  %v574 = vsel %vm100, %v570, 0.0
  %575 = vadd.xlane.f32.xlu0 %v574
  %v576 = vpop.xlane.xlu0 %575
  %v577 = vsel %vm100, %v571, 0.0
  %578 = vadd.xlane.f32.xlu0 %v577
  %v579 = vpop.xlane.xlu0 %578
  %v580 = vsel %vm100, %v572, 0.0
  %581 = vadd.xlane.f32.xlu0 %v580
  %v582 = vpop.xlane.xlu0 %581
  %v583 = vsel %vm100, %v573, 0.0
  %584 = vadd.xlane.f32.xlu0 %v583
  %v585 = vpop.xlane.xlu0 %584
  %v590 = vlaneseq
  %v591 = vshrl.u32 %v590, 7
  %v592 = vsub.s32 %v316, %v591
  %v593 = vrot.slane %v576, %v592
  %v594 = vlaneseq
  %v595 = vshrl.u32 %v594, 7
  %v596 = vsub.s32 %v316, %v595
  %v597 = vrot.slane %v579, %v596
  %v598 = vlaneseq
  %v599 = vshrl.u32 %v598, 7
  %v600 = vsub.s32 %v316, %v599
  %v601 = vrot.slane %v582, %v600
  %v602 = vlaneseq
  %v603 = vshrl.u32 %v602, 7
  %v604 = vsub.s32 %v316, %v603
  %v605 = vrot.slane %v585, %v604
  %v606 = vsel %vm190, %v597, %v593
  %v607 = vsel %vm192, %v601, %v606
  %v608 = vsel %vm194, %v605, %v607
  %v610 = vsel %vm337, %v608, 0.0
  %611 = vadd.xlane.f32.xlu0 %v610
  %v612 = vpop.xlane.xlu0 %611
  %v613 = vmul.f32 %v358, %v612
  %v615 = vrot.slane %v613, 3
  %v617 = vadd.f32 %v345, %v615
  %v618 = vadd.f32 %v346, %v615
  %v619 = vmul.f32 %v474, %v356
  %v620 = vmul.f32 %v489, %v349
  %v621 = vadd.f32 %v619, %v620
  %s622 = scalar_lea.vmem %s0, 96
  %v623 = vld [vmem:[%s622] sm:$0x3f]
  %v624 = vld [vmem:[%s622 + $0x8] sm:$0x3f]
  %v625 = vld [vmem:[%s622 + $0x10] sm:$0x3f]
  %v626 = vld [vmem:[%s622 + $0x18] sm:$0x3f]
  %s627 = scalar_lea.vmem %s1, 12
  %v628 = vld [vmem:[%s627] sm:$0xf]
  %s629 = scalar_lea.vmem %s2, 12
  %v630 = vld [vmem:[%s629] sm:$0xf]
  %v631 = vlaneseq
  %v632 = vshrl.u32 %v631, 7
  %v633 = vsub.s32 0, %v632
  %v634 = vrot.slane %v492, %v633
  %636 = vbcast.lane.b32.xlu0 %v634, 256
  %v637 = vpop.permute.xlu0 %636
  %v638 = vlaneseq
  %v639 = vshrl.u32 %v638, 7
  %v640 = vsub.s32 1, %v639
  %v641 = vrot.slane %v492, %v640
  %643 = vbcast.lane.b32.xlu0 %v641, 256
  %v644 = vpop.permute.xlu0 %643
  %v645 = vlaneseq
  %v646 = vshrl.u32 %v645, 7
  %v647 = vsub.s32 2, %v646
  %v648 = vrot.slane %v492, %v647
  %650 = vbcast.lane.b32.xlu0 %v648, 256
  %v651 = vpop.permute.xlu0 %650
  %v652 = vlaneseq
  %v653 = vshrl.u32 %v652, 7
  %v654 = vsub.s32 3, %v653
  %v655 = vrot.slane %v492, %v654
  %657 = vbcast.lane.b32.xlu0 %v655, 256
  %v658 = vpop.permute.xlu0 %657
  %v659 = vadd.f32 %v637, %v623
  %v660 = vadd.f32 %v644, %v624
  %v661 = vadd.f32 %v651, %v625
  %v662 = vadd.f32 %v658, %v626
  %v663 = vsel %vm100, %v659, -inf
  %v664 = vrot.slane %v663, 4
  %v665 = vmax.f32 %v663, %v664
  %v666 = vrot.slane %v665, 2
  %v667 = vmax.f32 %v665, %v666
  %v668 = vrot.slane %v667, 1
  %v669 = vmax.f32 %v667, %v668
  %v670 = vsel %vm100, %v660, -inf
  %v671 = vrot.slane %v670, 4
  %v672 = vmax.f32 %v670, %v671
  %v673 = vrot.slane %v672, 2
  %v674 = vmax.f32 %v672, %v673
  %v675 = vrot.slane %v674, 1
  %v676 = vmax.f32 %v674, %v675
  %v677 = vsel %vm100, %v661, -inf
  %v678 = vrot.slane %v677, 4
  %v679 = vmax.f32 %v677, %v678
  %v680 = vrot.slane %v679, 2
  %v681 = vmax.f32 %v679, %v680
  %v682 = vrot.slane %v681, 1
  %v683 = vmax.f32 %v681, %v682
  %v684 = vsel %vm100, %v662, -inf
  %v685 = vrot.slane %v684, 4
  %v686 = vmax.f32 %v684, %v685
  %v687 = vrot.slane %v686, 2
  %v688 = vmax.f32 %v686, %v687
  %v689 = vrot.slane %v688, 1
  %v690 = vmax.f32 %v688, %v689
  %v691 = vsub.f32 %v659, %v669
  %v692 = vsub.f32 %v660, %v676
  %v693 = vsub.f32 %v661, %v683
  %v694 = vsub.f32 %v662, %v690
  %v695 = vmul.f32 %v691, 1.442695
  %v696 = vpow.pop %v695
  %v697 = vmul.f32 %v692, 1.442695
  %v698 = vpow.pop %v697
  %v699 = vmul.f32 %v693, 1.442695
  %v700 = vpow.pop %v699
  %v701 = vmul.f32 %v694, 1.442695
  %v702 = vpow.pop %v701
  %v703 = vsel %vm100, %v696, 0.0
  %v704 = vrot.slane %v703, 4
  %v705 = vadd.f32 %v703, %v704
  %v706 = vrot.slane %v705, 2
  %v707 = vadd.f32 %v705, %v706
  %v708 = vrot.slane %v707, 1
  %v709 = vadd.f32 %v707, %v708
  %v710 = vsel %vm100, %v698, 0.0
  %v711 = vrot.slane %v710, 4
  %v712 = vadd.f32 %v710, %v711
  %v713 = vrot.slane %v712, 2
  %v714 = vadd.f32 %v712, %v713
  %v715 = vrot.slane %v714, 1
  %v716 = vadd.f32 %v714, %v715
  %v717 = vsel %vm100, %v700, 0.0
  %v718 = vrot.slane %v717, 4
  %v719 = vadd.f32 %v717, %v718
  %v720 = vrot.slane %v719, 2
  %v721 = vadd.f32 %v719, %v720
  %v722 = vrot.slane %v721, 1
  %v723 = vadd.f32 %v721, %v722
  %v724 = vsel %vm100, %v702, 0.0
  %v725 = vrot.slane %v724, 4
  %v726 = vadd.f32 %v724, %v725
  %v727 = vrot.slane %v726, 2
  %v728 = vadd.f32 %v726, %v727
  %v729 = vrot.slane %v728, 1
  %v730 = vadd.f32 %v728, %v729
  %v731 = vlog2.pop %v709
  %v732 = vmul.f32 %v731, 0.6931472
  %v733 = vlog2.pop %v716
  %v734 = vmul.f32 %v733, 0.6931472
  %v735 = vlog2.pop %v723
  %v736 = vmul.f32 %v735, 0.6931472
  %v737 = vlog2.pop %v730
  %v738 = vmul.f32 %v737, 0.6931472
  %v739 = vadd.f32 %v732, %v669
  %v740 = vadd.f32 %v734, %v676
  %v741 = vadd.f32 %v736, %v683
  %v742 = vadd.f32 %v738, %v690
  %744 = vset.pattern.permute.xlu0 0
  %745 = vperm.xlu0 %744, %v630
  %v746 = vpop.permute.xlu0 %745
  %v752 = vsel %vm190, %v740, %v739
  %v753 = vsel %vm192, %v741, %v752
  %v754 = vsel %vm194, %v742, %v753
  %v756 = vmul.f32 %v746, %v754
  %v757 = vsub.f32 1.0, %v630
  %759 = vset.pattern.permute.xlu0 0
  %760 = vperm.xlu0 %759, %v757
  %v761 = vpop.permute.xlu0 %760
  %v763 = vmul.f32 %v761, %v492
  %v764 = vadd.f32 %v756, %v763
  %v765 = vlaneseq
  %v766 = vshrl.u32 %v765, 7
  %v767 = vsub.s32 0, %v766
  %v768 = vrot.slane %v621, %v767
  %770 = vbcast.lane.b32.xlu0 %v768, 256
  %v771 = vpop.permute.xlu0 %770
  %v772 = vlaneseq
  %v773 = vshrl.u32 %v772, 7
  %v774 = vsub.s32 1, %v773
  %v775 = vrot.slane %v621, %v774
  %777 = vbcast.lane.b32.xlu0 %v775, 256
  %v778 = vpop.permute.xlu0 %777
  %v779 = vlaneseq
  %v780 = vshrl.u32 %v779, 7
  %v781 = vsub.s32 2, %v780
  %v782 = vrot.slane %v621, %v781
  %784 = vbcast.lane.b32.xlu0 %v782, 256
  %v785 = vpop.permute.xlu0 %784
  %v786 = vlaneseq
  %v787 = vshrl.u32 %v786, 7
  %v788 = vsub.s32 3, %v787
  %v789 = vrot.slane %v621, %v788
  %791 = vbcast.lane.b32.xlu0 %v789, 256
  %v792 = vpop.permute.xlu0 %791
  %v793 = vmul.f32 %v771, %v623
  %v794 = vmul.f32 %v778, %v624
  %v795 = vmul.f32 %v785, %v625
  %v796 = vmul.f32 %v792, %v626
  %v799 = vunpack.c.l.s4 1966171168
  %v800 = vunpack.c.0.s8 %v799
  %v801 = vlaneseq
  %v802 = vshrl.u32 %v801, 7
  %v803 = vsub.s32 %v800, %v802
  %v804 = vrot.slane %v628, %v803
  %v805 = vcombine.high %v804, %v804
  %v807 = vunpack.c.l.s4 1966171168
  %v808 = vunpack.c.0.s8 %v807
  %v809 = vlaneseq
  %v810 = vshrl.u32 %v809, 7
  %v811 = vsub.s32 %v808, %v810
  %v812 = vrot.slane %v804, %v811
  %v814 = vunpack.c.l.s4 1966171168
  %v815 = vunpack.c.0.s8 %v814
  %v816 = vlaneseq
  %v817 = vshrl.u32 %v816, 7
  %v818 = vsub.s32 %v815, %v817
  %v819 = vrot.slane %v805, %v818
  %v820 = vcombine.high %v812, %v812
  %v821 = vcombine.high %v819, %v819
  %v822 = vlaneseq
  %v823 = vshrl.u32 %v822, 7
  %v824 = vsub.s32 0, %v823
  %v825 = vrot.slane %v812, %v824
  %v826 = vlaneseq
  %v827 = vshrl.u32 %v826, 7
  %v828 = vsub.s32 0, %v827
  %v829 = vrot.slane %v819, %v828
  %v830 = vlaneseq
  %v831 = vshrl.u32 %v830, 7
  %v832 = vsub.s32 0, %v831
  %v833 = vrot.slane %v820, %v832
  %v834 = vlaneseq
  %v835 = vshrl.u32 %v834, 7
  %v836 = vsub.s32 0, %v835
  %v837 = vrot.slane %v821, %v836
  %v842 = vmul.f32 %v793, %v825
  %v843 = vmul.f32 %v794, %v829
  %v844 = vmul.f32 %v795, %v833
  %v845 = vmul.f32 %v796, %v837
  %v846 = vsel %vm100, %v842, 0.0
  %847 = vadd.xlane.f32.xlu0 %v846
  %v848 = vpop.xlane.xlu0 %847
  %v849 = vsel %vm100, %v843, 0.0
  %850 = vadd.xlane.f32.xlu0 %v849
  %v851 = vpop.xlane.xlu0 %850
  %v852 = vsel %vm100, %v844, 0.0
  %853 = vadd.xlane.f32.xlu0 %v852
  %v854 = vpop.xlane.xlu0 %853
  %v855 = vsel %vm100, %v845, 0.0
  %856 = vadd.xlane.f32.xlu0 %v855
  %v857 = vpop.xlane.xlu0 %856
  %v862 = vlaneseq
  %v863 = vshrl.u32 %v862, 7
  %v864 = vsub.s32 %v316, %v863
  %v865 = vrot.slane %v848, %v864
  %v866 = vlaneseq
  %v867 = vshrl.u32 %v866, 7
  %v868 = vsub.s32 %v316, %v867
  %v869 = vrot.slane %v851, %v868
  %v870 = vlaneseq
  %v871 = vshrl.u32 %v870, 7
  %v872 = vsub.s32 %v316, %v871
  %v873 = vrot.slane %v854, %v872
  %v874 = vlaneseq
  %v875 = vshrl.u32 %v874, 7
  %v876 = vsub.s32 %v316, %v875
  %v877 = vrot.slane %v857, %v876
  %v878 = vsel %vm190, %v869, %v865
  %v879 = vsel %vm192, %v873, %v878
  %v880 = vsel %vm194, %v877, %v879
  %v882 = vsel %vm337, %v880, 0.0
  %883 = vadd.xlane.f32.xlu0 %v882
  %v884 = vpop.xlane.xlu0 %883
  %v885 = vmul.f32 %v630, %v884
  %v887 = vrot.slane %v885, 3
  %v889 = vadd.f32 %v617, %v887
  %v890 = vadd.f32 %v618, %v887
  %v891 = vmul.f32 %v746, %v628
  %v892 = vmul.f32 %v761, %v621
  %v893 = vadd.f32 %v891, %v892
  %s894 = scalar_lea.vmem %s0, 128
  %v895 = vld [vmem:[%s894] sm:$0x3f]
  %v896 = vld [vmem:[%s894 + $0x8] sm:$0x3f]
  %v897 = vld [vmem:[%s894 + $0x10] sm:$0x3f]
  %v898 = vld [vmem:[%s894 + $0x18] sm:$0x3f]
  %s899 = scalar_lea.vmem %s1, 16
  %v900 = vld [vmem:[%s899] sm:$0xf]
  %s901 = scalar_lea.vmem %s2, 16
  %v902 = vld [vmem:[%s901] sm:$0xf]
  %v903 = vlaneseq
  %v904 = vshrl.u32 %v903, 7
  %v905 = vsub.s32 0, %v904
  %v906 = vrot.slane %v764, %v905
  %908 = vbcast.lane.b32.xlu0 %v906, 256
  %v909 = vpop.permute.xlu0 %908
  %v910 = vlaneseq
  %v911 = vshrl.u32 %v910, 7
  %v912 = vsub.s32 1, %v911
  %v913 = vrot.slane %v764, %v912
  %915 = vbcast.lane.b32.xlu0 %v913, 256
  %v916 = vpop.permute.xlu0 %915
  %v917 = vlaneseq
  %v918 = vshrl.u32 %v917, 7
  %v919 = vsub.s32 2, %v918
  %v920 = vrot.slane %v764, %v919
  %922 = vbcast.lane.b32.xlu0 %v920, 256
  %v923 = vpop.permute.xlu0 %922
  %v924 = vlaneseq
  %v925 = vshrl.u32 %v924, 7
  %v926 = vsub.s32 3, %v925
  %v927 = vrot.slane %v764, %v926
  %929 = vbcast.lane.b32.xlu0 %v927, 256
  %v930 = vpop.permute.xlu0 %929
  %v931 = vadd.f32 %v909, %v895
  %v932 = vadd.f32 %v916, %v896
  %v933 = vadd.f32 %v923, %v897
  %v934 = vadd.f32 %v930, %v898
  %v935 = vsel %vm100, %v931, -inf
  %v936 = vrot.slane %v935, 4
  %v937 = vmax.f32 %v935, %v936
  %v938 = vrot.slane %v937, 2
  %v939 = vmax.f32 %v937, %v938
  %v940 = vrot.slane %v939, 1
  %v941 = vmax.f32 %v939, %v940
  %v942 = vsel %vm100, %v932, -inf
  %v943 = vrot.slane %v942, 4
  %v944 = vmax.f32 %v942, %v943
  %v945 = vrot.slane %v944, 2
  %v946 = vmax.f32 %v944, %v945
  %v947 = vrot.slane %v946, 1
  %v948 = vmax.f32 %v946, %v947
  %v949 = vsel %vm100, %v933, -inf
  %v950 = vrot.slane %v949, 4
  %v951 = vmax.f32 %v949, %v950
  %v952 = vrot.slane %v951, 2
  %v953 = vmax.f32 %v951, %v952
  %v954 = vrot.slane %v953, 1
  %v955 = vmax.f32 %v953, %v954
  %v956 = vsel %vm100, %v934, -inf
  %v957 = vrot.slane %v956, 4
  %v958 = vmax.f32 %v956, %v957
  %v959 = vrot.slane %v958, 2
  %v960 = vmax.f32 %v958, %v959
  %v961 = vrot.slane %v960, 1
  %v962 = vmax.f32 %v960, %v961
  %v963 = vsub.f32 %v931, %v941
  %v964 = vsub.f32 %v932, %v948
  %v965 = vsub.f32 %v933, %v955
  %v966 = vsub.f32 %v934, %v962
  %v967 = vmul.f32 %v963, 1.442695
  %v968 = vpow.pop %v967
  %v969 = vmul.f32 %v964, 1.442695
  %v970 = vpow.pop %v969
  %v971 = vmul.f32 %v965, 1.442695
  %v972 = vpow.pop %v971
  %v973 = vmul.f32 %v966, 1.442695
  %v974 = vpow.pop %v973
  %v975 = vsel %vm100, %v968, 0.0
  %v976 = vrot.slane %v975, 4
  %v977 = vadd.f32 %v975, %v976
  %v978 = vrot.slane %v977, 2
  %v979 = vadd.f32 %v977, %v978
  %v980 = vrot.slane %v979, 1
  %v981 = vadd.f32 %v979, %v980
  %v982 = vsel %vm100, %v970, 0.0
  %v983 = vrot.slane %v982, 4
  %v984 = vadd.f32 %v982, %v983
  %v985 = vrot.slane %v984, 2
  %v986 = vadd.f32 %v984, %v985
  %v987 = vrot.slane %v986, 1
  %v988 = vadd.f32 %v986, %v987
  %v989 = vsel %vm100, %v972, 0.0
  %v990 = vrot.slane %v989, 4
  %v991 = vadd.f32 %v989, %v990
  %v992 = vrot.slane %v991, 2
  %v993 = vadd.f32 %v991, %v992
  %v994 = vrot.slane %v993, 1
  %v995 = vadd.f32 %v993, %v994
  %v996 = vsel %vm100, %v974, 0.0
  %v997 = vrot.slane %v996, 4
  %v998 = vadd.f32 %v996, %v997
  %v999 = vrot.slane %v998, 2
  %v1000 = vadd.f32 %v998, %v999
  %v1001 = vrot.slane %v1000, 1
  %v1002 = vadd.f32 %v1000, %v1001
  %v1003 = vlog2.pop %v981
  %v1004 = vmul.f32 %v1003, 0.6931472
  %v1005 = vlog2.pop %v988
  %v1006 = vmul.f32 %v1005, 0.6931472
  %v1007 = vlog2.pop %v995
  %v1008 = vmul.f32 %v1007, 0.6931472
  %v1009 = vlog2.pop %v1002
  %v1010 = vmul.f32 %v1009, 0.6931472
  %v1011 = vadd.f32 %v1004, %v941
  %v1012 = vadd.f32 %v1006, %v948
  %v1013 = vadd.f32 %v1008, %v955
  %v1014 = vadd.f32 %v1010, %v962
  %1016 = vset.pattern.permute.xlu0 0
  %1017 = vperm.xlu0 %1016, %v902
  %v1018 = vpop.permute.xlu0 %1017
  %v1024 = vsel %vm190, %v1012, %v1011
  %v1025 = vsel %vm192, %v1013, %v1024
  %v1026 = vsel %vm194, %v1014, %v1025
  %v1028 = vmul.f32 %v1018, %v1026
  %v1029 = vsub.f32 1.0, %v902
  %1031 = vset.pattern.permute.xlu0 0
  %1032 = vperm.xlu0 %1031, %v1029
  %v1033 = vpop.permute.xlu0 %1032
  %v1035 = vmul.f32 %v1033, %v764
  %v1036 = vadd.f32 %v1028, %v1035
  %v1037 = vlaneseq
  %v1038 = vshrl.u32 %v1037, 7
  %v1039 = vsub.s32 0, %v1038
  %v1040 = vrot.slane %v893, %v1039
  %1042 = vbcast.lane.b32.xlu0 %v1040, 256
  %v1043 = vpop.permute.xlu0 %1042
  %v1044 = vlaneseq
  %v1045 = vshrl.u32 %v1044, 7
  %v1046 = vsub.s32 1, %v1045
  %v1047 = vrot.slane %v893, %v1046
  %1049 = vbcast.lane.b32.xlu0 %v1047, 256
  %v1050 = vpop.permute.xlu0 %1049
  %v1051 = vlaneseq
  %v1052 = vshrl.u32 %v1051, 7
  %v1053 = vsub.s32 2, %v1052
  %v1054 = vrot.slane %v893, %v1053
  %1056 = vbcast.lane.b32.xlu0 %v1054, 256
  %v1057 = vpop.permute.xlu0 %1056
  %v1058 = vlaneseq
  %v1059 = vshrl.u32 %v1058, 7
  %v1060 = vsub.s32 3, %v1059
  %v1061 = vrot.slane %v893, %v1060
  %1063 = vbcast.lane.b32.xlu0 %v1061, 256
  %v1064 = vpop.permute.xlu0 %1063
  %v1065 = vmul.f32 %v1043, %v895
  %v1066 = vmul.f32 %v1050, %v896
  %v1067 = vmul.f32 %v1057, %v897
  %v1068 = vmul.f32 %v1064, %v898
  %v1071 = vunpack.c.l.s4 1966171168
  %v1072 = vunpack.c.0.s8 %v1071
  %v1073 = vlaneseq
  %v1074 = vshrl.u32 %v1073, 7
  %v1075 = vsub.s32 %v1072, %v1074
  %v1076 = vrot.slane %v900, %v1075
  %v1077 = vcombine.high %v1076, %v1076
  %v1079 = vunpack.c.l.s4 1966171168
  %v1080 = vunpack.c.0.s8 %v1079
  %v1081 = vlaneseq
  %v1082 = vshrl.u32 %v1081, 7
  %v1083 = vsub.s32 %v1080, %v1082
  %v1084 = vrot.slane %v1076, %v1083
  %v1086 = vunpack.c.l.s4 1966171168
  %v1087 = vunpack.c.0.s8 %v1086
  %v1088 = vlaneseq
  %v1089 = vshrl.u32 %v1088, 7
  %v1090 = vsub.s32 %v1087, %v1089
  %v1091 = vrot.slane %v1077, %v1090
  %v1092 = vcombine.high %v1084, %v1084
  %v1093 = vcombine.high %v1091, %v1091
  %v1094 = vlaneseq
  %v1095 = vshrl.u32 %v1094, 7
  %v1096 = vsub.s32 0, %v1095
  %v1097 = vrot.slane %v1084, %v1096
  %v1098 = vlaneseq
  %v1099 = vshrl.u32 %v1098, 7
  %v1100 = vsub.s32 0, %v1099
  %v1101 = vrot.slane %v1091, %v1100
  %v1102 = vlaneseq
  %v1103 = vshrl.u32 %v1102, 7
  %v1104 = vsub.s32 0, %v1103
  %v1105 = vrot.slane %v1092, %v1104
  %v1106 = vlaneseq
  %v1107 = vshrl.u32 %v1106, 7
  %v1108 = vsub.s32 0, %v1107
  %v1109 = vrot.slane %v1093, %v1108
  %v1114 = vmul.f32 %v1065, %v1097
  %v1115 = vmul.f32 %v1066, %v1101
  %v1116 = vmul.f32 %v1067, %v1105
  %v1117 = vmul.f32 %v1068, %v1109
  %v1118 = vsel %vm100, %v1114, 0.0
  %1119 = vadd.xlane.f32.xlu0 %v1118
  %v1120 = vpop.xlane.xlu0 %1119
  %v1121 = vsel %vm100, %v1115, 0.0
  %1122 = vadd.xlane.f32.xlu0 %v1121
  %v1123 = vpop.xlane.xlu0 %1122
  %v1124 = vsel %vm100, %v1116, 0.0
  %1125 = vadd.xlane.f32.xlu0 %v1124
  %v1126 = vpop.xlane.xlu0 %1125
  %v1127 = vsel %vm100, %v1117, 0.0
  %1128 = vadd.xlane.f32.xlu0 %v1127
  %v1129 = vpop.xlane.xlu0 %1128
  %v1134 = vlaneseq
  %v1135 = vshrl.u32 %v1134, 7
  %v1136 = vsub.s32 %v316, %v1135
  %v1137 = vrot.slane %v1120, %v1136
  %v1138 = vlaneseq
  %v1139 = vshrl.u32 %v1138, 7
  %v1140 = vsub.s32 %v316, %v1139
  %v1141 = vrot.slane %v1123, %v1140
  %v1142 = vlaneseq
  %v1143 = vshrl.u32 %v1142, 7
  %v1144 = vsub.s32 %v316, %v1143
  %v1145 = vrot.slane %v1126, %v1144
  %v1146 = vlaneseq
  %v1147 = vshrl.u32 %v1146, 7
  %v1148 = vsub.s32 %v316, %v1147
  %v1149 = vrot.slane %v1129, %v1148
  %v1150 = vsel %vm190, %v1141, %v1137
  %v1151 = vsel %vm192, %v1145, %v1150
  %v1152 = vsel %vm194, %v1149, %v1151
  %v1154 = vsel %vm337, %v1152, 0.0
  %1155 = vadd.xlane.f32.xlu0 %v1154
  %v1156 = vpop.xlane.xlu0 %1155
  %v1157 = vmul.f32 %v902, %v1156
  %v1159 = vrot.slane %v1157, 3
  %v1161 = vadd.f32 %v889, %v1159
  %v1162 = vadd.f32 %v890, %v1159
  %v1163 = vmul.f32 %v1018, %v900
  %v1164 = vmul.f32 %v1033, %v893
  %v1165 = vadd.f32 %v1163, %v1164
  %s1166 = scalar_lea.vmem %s0, 160
  %v1167 = vld [vmem:[%s1166] sm:$0x3f]
  %v1168 = vld [vmem:[%s1166 + $0x8] sm:$0x3f]
  %v1169 = vld [vmem:[%s1166 + $0x10] sm:$0x3f]
  %v1170 = vld [vmem:[%s1166 + $0x18] sm:$0x3f]
  %s1171 = scalar_lea.vmem %s1, 20
  %v1172 = vld [vmem:[%s1171] sm:$0xf]
  %s1173 = scalar_lea.vmem %s2, 20
  %v1174 = vld [vmem:[%s1173] sm:$0xf]
  %v1175 = vlaneseq
  %v1176 = vshrl.u32 %v1175, 7
  %v1177 = vsub.s32 0, %v1176
  %v1178 = vrot.slane %v1036, %v1177
  %1180 = vbcast.lane.b32.xlu0 %v1178, 256
  %v1181 = vpop.permute.xlu0 %1180
  %v1182 = vlaneseq
  %v1183 = vshrl.u32 %v1182, 7
  %v1184 = vsub.s32 1, %v1183
  %v1185 = vrot.slane %v1036, %v1184
  %1187 = vbcast.lane.b32.xlu0 %v1185, 256
  %v1188 = vpop.permute.xlu0 %1187
  %v1189 = vlaneseq
  %v1190 = vshrl.u32 %v1189, 7
  %v1191 = vsub.s32 2, %v1190
  %v1192 = vrot.slane %v1036, %v1191
  %1194 = vbcast.lane.b32.xlu0 %v1192, 256
  %v1195 = vpop.permute.xlu0 %1194
  %v1196 = vlaneseq
  %v1197 = vshrl.u32 %v1196, 7
  %v1198 = vsub.s32 3, %v1197
  %v1199 = vrot.slane %v1036, %v1198
  %1201 = vbcast.lane.b32.xlu0 %v1199, 256
  %v1202 = vpop.permute.xlu0 %1201
  %v1203 = vadd.f32 %v1181, %v1167
  %v1204 = vadd.f32 %v1188, %v1168
  %v1205 = vadd.f32 %v1195, %v1169
  %v1206 = vadd.f32 %v1202, %v1170
  %v1207 = vsel %vm100, %v1203, -inf
  %v1208 = vrot.slane %v1207, 4
  %v1209 = vmax.f32 %v1207, %v1208
  %v1210 = vrot.slane %v1209, 2
  %v1211 = vmax.f32 %v1209, %v1210
  %v1212 = vrot.slane %v1211, 1
  %v1213 = vmax.f32 %v1211, %v1212
  %v1214 = vsel %vm100, %v1204, -inf
  %v1215 = vrot.slane %v1214, 4
  %v1216 = vmax.f32 %v1214, %v1215
  %v1217 = vrot.slane %v1216, 2
  %v1218 = vmax.f32 %v1216, %v1217
  %v1219 = vrot.slane %v1218, 1
  %v1220 = vmax.f32 %v1218, %v1219
  %v1221 = vsel %vm100, %v1205, -inf
  %v1222 = vrot.slane %v1221, 4
  %v1223 = vmax.f32 %v1221, %v1222
  %v1224 = vrot.slane %v1223, 2
  %v1225 = vmax.f32 %v1223, %v1224
  %v1226 = vrot.slane %v1225, 1
  %v1227 = vmax.f32 %v1225, %v1226
  %v1228 = vsel %vm100, %v1206, -inf
  %v1229 = vrot.slane %v1228, 4
  %v1230 = vmax.f32 %v1228, %v1229
  %v1231 = vrot.slane %v1230, 2
  %v1232 = vmax.f32 %v1230, %v1231
  %v1233 = vrot.slane %v1232, 1
  %v1234 = vmax.f32 %v1232, %v1233
  %v1235 = vsub.f32 %v1203, %v1213
  %v1236 = vsub.f32 %v1204, %v1220
  %v1237 = vsub.f32 %v1205, %v1227
  %v1238 = vsub.f32 %v1206, %v1234
  %v1239 = vmul.f32 %v1235, 1.442695
  %v1240 = vpow.pop %v1239
  %v1241 = vmul.f32 %v1236, 1.442695
  %v1242 = vpow.pop %v1241
  %v1243 = vmul.f32 %v1237, 1.442695
  %v1244 = vpow.pop %v1243
  %v1245 = vmul.f32 %v1238, 1.442695
  %v1246 = vpow.pop %v1245
  %v1247 = vsel %vm100, %v1240, 0.0
  %v1248 = vrot.slane %v1247, 4
  %v1249 = vadd.f32 %v1247, %v1248
  %v1250 = vrot.slane %v1249, 2
  %v1251 = vadd.f32 %v1249, %v1250
  %v1252 = vrot.slane %v1251, 1
  %v1253 = vadd.f32 %v1251, %v1252
  %v1254 = vsel %vm100, %v1242, 0.0
  %v1255 = vrot.slane %v1254, 4
  %v1256 = vadd.f32 %v1254, %v1255
  %v1257 = vrot.slane %v1256, 2
  %v1258 = vadd.f32 %v1256, %v1257
  %v1259 = vrot.slane %v1258, 1
  %v1260 = vadd.f32 %v1258, %v1259
  %v1261 = vsel %vm100, %v1244, 0.0
  %v1262 = vrot.slane %v1261, 4
  %v1263 = vadd.f32 %v1261, %v1262
  %v1264 = vrot.slane %v1263, 2
  %v1265 = vadd.f32 %v1263, %v1264
  %v1266 = vrot.slane %v1265, 1
  %v1267 = vadd.f32 %v1265, %v1266
  %v1268 = vsel %vm100, %v1246, 0.0
  %v1269 = vrot.slane %v1268, 4
  %v1270 = vadd.f32 %v1268, %v1269
  %v1271 = vrot.slane %v1270, 2
  %v1272 = vadd.f32 %v1270, %v1271
  %v1273 = vrot.slane %v1272, 1
  %v1274 = vadd.f32 %v1272, %v1273
  %v1275 = vlog2.pop %v1253
  %v1276 = vmul.f32 %v1275, 0.6931472
  %v1277 = vlog2.pop %v1260
  %v1278 = vmul.f32 %v1277, 0.6931472
  %v1279 = vlog2.pop %v1267
  %v1280 = vmul.f32 %v1279, 0.6931472
  %v1281 = vlog2.pop %v1274
  %v1282 = vmul.f32 %v1281, 0.6931472
  %v1283 = vadd.f32 %v1276, %v1213
  %v1284 = vadd.f32 %v1278, %v1220
  %v1285 = vadd.f32 %v1280, %v1227
  %v1286 = vadd.f32 %v1282, %v1234
  %1288 = vset.pattern.permute.xlu0 0
  %1289 = vperm.xlu0 %1288, %v1174
  %v1290 = vpop.permute.xlu0 %1289
  %v1296 = vsel %vm190, %v1284, %v1283
  %v1297 = vsel %vm192, %v1285, %v1296
  %v1298 = vsel %vm194, %v1286, %v1297
  %v1300 = vmul.f32 %v1290, %v1298
  %v1301 = vsub.f32 1.0, %v1174
  %1303 = vset.pattern.permute.xlu0 0
  %1304 = vperm.xlu0 %1303, %v1301
  %v1305 = vpop.permute.xlu0 %1304
  %v1307 = vmul.f32 %v1305, %v1036
  %v1308 = vadd.f32 %v1300, %v1307
  %v1309 = vlaneseq
  %v1310 = vshrl.u32 %v1309, 7
  %v1311 = vsub.s32 0, %v1310
  %v1312 = vrot.slane %v1165, %v1311
  %1314 = vbcast.lane.b32.xlu0 %v1312, 256
  %v1315 = vpop.permute.xlu0 %1314
  %v1316 = vlaneseq
  %v1317 = vshrl.u32 %v1316, 7
  %v1318 = vsub.s32 1, %v1317
  %v1319 = vrot.slane %v1165, %v1318
  %1321 = vbcast.lane.b32.xlu0 %v1319, 256
  %v1322 = vpop.permute.xlu0 %1321
  %v1323 = vlaneseq
  %v1324 = vshrl.u32 %v1323, 7
  %v1325 = vsub.s32 2, %v1324
  %v1326 = vrot.slane %v1165, %v1325
  %1328 = vbcast.lane.b32.xlu0 %v1326, 256
  %v1329 = vpop.permute.xlu0 %1328
  %v1330 = vlaneseq
  %v1331 = vshrl.u32 %v1330, 7
  %v1332 = vsub.s32 3, %v1331
  %v1333 = vrot.slane %v1165, %v1332
  %1335 = vbcast.lane.b32.xlu0 %v1333, 256
  %v1336 = vpop.permute.xlu0 %1335
  %v1337 = vmul.f32 %v1315, %v1167
  %v1338 = vmul.f32 %v1322, %v1168
  %v1339 = vmul.f32 %v1329, %v1169
  %v1340 = vmul.f32 %v1336, %v1170
  %v1343 = vunpack.c.l.s4 1966171168
  %v1344 = vunpack.c.0.s8 %v1343
  %v1345 = vlaneseq
  %v1346 = vshrl.u32 %v1345, 7
  %v1347 = vsub.s32 %v1344, %v1346
  %v1348 = vrot.slane %v1172, %v1347
  %v1349 = vcombine.high %v1348, %v1348
  %v1351 = vunpack.c.l.s4 1966171168
  %v1352 = vunpack.c.0.s8 %v1351
  %v1353 = vlaneseq
  %v1354 = vshrl.u32 %v1353, 7
  %v1355 = vsub.s32 %v1352, %v1354
  %v1356 = vrot.slane %v1348, %v1355
  %v1358 = vunpack.c.l.s4 1966171168
  %v1359 = vunpack.c.0.s8 %v1358
  %v1360 = vlaneseq
  %v1361 = vshrl.u32 %v1360, 7
  %v1362 = vsub.s32 %v1359, %v1361
  %v1363 = vrot.slane %v1349, %v1362
  %v1364 = vcombine.high %v1356, %v1356
  %v1365 = vcombine.high %v1363, %v1363
  %v1366 = vlaneseq
  %v1367 = vshrl.u32 %v1366, 7
  %v1368 = vsub.s32 0, %v1367
  %v1369 = vrot.slane %v1356, %v1368
  %v1370 = vlaneseq
  %v1371 = vshrl.u32 %v1370, 7
  %v1372 = vsub.s32 0, %v1371
  %v1373 = vrot.slane %v1363, %v1372
  %v1374 = vlaneseq
  %v1375 = vshrl.u32 %v1374, 7
  %v1376 = vsub.s32 0, %v1375
  %v1377 = vrot.slane %v1364, %v1376
  %v1378 = vlaneseq
  %v1379 = vshrl.u32 %v1378, 7
  %v1380 = vsub.s32 0, %v1379
  %v1381 = vrot.slane %v1365, %v1380
  %v1386 = vmul.f32 %v1337, %v1369
  %v1387 = vmul.f32 %v1338, %v1373
  %v1388 = vmul.f32 %v1339, %v1377
  %v1389 = vmul.f32 %v1340, %v1381
  %v1390 = vsel %vm100, %v1386, 0.0
  %1391 = vadd.xlane.f32.xlu0 %v1390
  %v1392 = vpop.xlane.xlu0 %1391
  %v1393 = vsel %vm100, %v1387, 0.0
  %1394 = vadd.xlane.f32.xlu0 %v1393
  %v1395 = vpop.xlane.xlu0 %1394
  %v1396 = vsel %vm100, %v1388, 0.0
  %1397 = vadd.xlane.f32.xlu0 %v1396
  %v1398 = vpop.xlane.xlu0 %1397
  %v1399 = vsel %vm100, %v1389, 0.0
  %1400 = vadd.xlane.f32.xlu0 %v1399
  %v1401 = vpop.xlane.xlu0 %1400
  %v1406 = vlaneseq
  %v1407 = vshrl.u32 %v1406, 7
  %v1408 = vsub.s32 %v316, %v1407
  %v1409 = vrot.slane %v1392, %v1408
  %v1410 = vlaneseq
  %v1411 = vshrl.u32 %v1410, 7
  %v1412 = vsub.s32 %v316, %v1411
  %v1413 = vrot.slane %v1395, %v1412
  %v1414 = vlaneseq
  %v1415 = vshrl.u32 %v1414, 7
  %v1416 = vsub.s32 %v316, %v1415
  %v1417 = vrot.slane %v1398, %v1416
  %v1418 = vlaneseq
  %v1419 = vshrl.u32 %v1418, 7
  %v1420 = vsub.s32 %v316, %v1419
  %v1421 = vrot.slane %v1401, %v1420
  %v1422 = vsel %vm190, %v1413, %v1409
  %v1423 = vsel %vm192, %v1417, %v1422
  %v1424 = vsel %vm194, %v1421, %v1423
  %v1426 = vsel %vm337, %v1424, 0.0
  %1427 = vadd.xlane.f32.xlu0 %v1426
  %v1428 = vpop.xlane.xlu0 %1427
  %v1429 = vmul.f32 %v1174, %v1428
  %v1431 = vrot.slane %v1429, 3
  %v1433 = vadd.f32 %v1161, %v1431
  %v1434 = vadd.f32 %v1162, %v1431
  %v1435 = vmul.f32 %v1290, %v1172
  %v1436 = vmul.f32 %v1305, %v1165
  %v1437 = vadd.f32 %v1435, %v1436
  %s1438 = scalar_lea.vmem %s0, 192
  %v1439 = vld [vmem:[%s1438] sm:$0x3f]
  %v1440 = vld [vmem:[%s1438 + $0x8] sm:$0x3f]
  %v1441 = vld [vmem:[%s1438 + $0x10] sm:$0x3f]
  %v1442 = vld [vmem:[%s1438 + $0x18] sm:$0x3f]
  %s1443 = scalar_lea.vmem %s1, 24
  %v1444 = vld [vmem:[%s1443] sm:$0xf]
  %s1445 = scalar_lea.vmem %s2, 24
  %v1446 = vld [vmem:[%s1445] sm:$0xf]
  %v1447 = vlaneseq
  %v1448 = vshrl.u32 %v1447, 7
  %v1449 = vsub.s32 0, %v1448
  %v1450 = vrot.slane %v1308, %v1449
  %1452 = vbcast.lane.b32.xlu0 %v1450, 256
  %v1453 = vpop.permute.xlu0 %1452
  %v1454 = vlaneseq
  %v1455 = vshrl.u32 %v1454, 7
  %v1456 = vsub.s32 1, %v1455
  %v1457 = vrot.slane %v1308, %v1456
  %1459 = vbcast.lane.b32.xlu0 %v1457, 256
  %v1460 = vpop.permute.xlu0 %1459
  %v1461 = vlaneseq
  %v1462 = vshrl.u32 %v1461, 7
  %v1463 = vsub.s32 2, %v1462
  %v1464 = vrot.slane %v1308, %v1463
  %1466 = vbcast.lane.b32.xlu0 %v1464, 256
  %v1467 = vpop.permute.xlu0 %1466
  %v1468 = vlaneseq
  %v1469 = vshrl.u32 %v1468, 7
  %v1470 = vsub.s32 3, %v1469
  %v1471 = vrot.slane %v1308, %v1470
  %1473 = vbcast.lane.b32.xlu0 %v1471, 256
  %v1474 = vpop.permute.xlu0 %1473
  %v1475 = vadd.f32 %v1453, %v1439
  %v1476 = vadd.f32 %v1460, %v1440
  %v1477 = vadd.f32 %v1467, %v1441
  %v1478 = vadd.f32 %v1474, %v1442
  %v1479 = vsel %vm100, %v1475, -inf
  %v1480 = vrot.slane %v1479, 4
  %v1481 = vmax.f32 %v1479, %v1480
  %v1482 = vrot.slane %v1481, 2
  %v1483 = vmax.f32 %v1481, %v1482
  %v1484 = vrot.slane %v1483, 1
  %v1485 = vmax.f32 %v1483, %v1484
  %v1486 = vsel %vm100, %v1476, -inf
  %v1487 = vrot.slane %v1486, 4
  %v1488 = vmax.f32 %v1486, %v1487
  %v1489 = vrot.slane %v1488, 2
  %v1490 = vmax.f32 %v1488, %v1489
  %v1491 = vrot.slane %v1490, 1
  %v1492 = vmax.f32 %v1490, %v1491
  %v1493 = vsel %vm100, %v1477, -inf
  %v1494 = vrot.slane %v1493, 4
  %v1495 = vmax.f32 %v1493, %v1494
  %v1496 = vrot.slane %v1495, 2
  %v1497 = vmax.f32 %v1495, %v1496
  %v1498 = vrot.slane %v1497, 1
  %v1499 = vmax.f32 %v1497, %v1498
  %v1500 = vsel %vm100, %v1478, -inf
  %v1501 = vrot.slane %v1500, 4
  %v1502 = vmax.f32 %v1500, %v1501
  %v1503 = vrot.slane %v1502, 2
  %v1504 = vmax.f32 %v1502, %v1503
  %v1505 = vrot.slane %v1504, 1
  %v1506 = vmax.f32 %v1504, %v1505
  %v1507 = vsub.f32 %v1475, %v1485
  %v1508 = vsub.f32 %v1476, %v1492
  %v1509 = vsub.f32 %v1477, %v1499
  %v1510 = vsub.f32 %v1478, %v1506
  %v1511 = vmul.f32 %v1507, 1.442695
  %v1512 = vpow.pop %v1511
  %v1513 = vmul.f32 %v1508, 1.442695
  %v1514 = vpow.pop %v1513
  %v1515 = vmul.f32 %v1509, 1.442695
  %v1516 = vpow.pop %v1515
  %v1517 = vmul.f32 %v1510, 1.442695
  %v1518 = vpow.pop %v1517
  %v1519 = vsel %vm100, %v1512, 0.0
  %v1520 = vrot.slane %v1519, 4
  %v1521 = vadd.f32 %v1519, %v1520
  %v1522 = vrot.slane %v1521, 2
  %v1523 = vadd.f32 %v1521, %v1522
  %v1524 = vrot.slane %v1523, 1
  %v1525 = vadd.f32 %v1523, %v1524
  %v1526 = vsel %vm100, %v1514, 0.0
  %v1527 = vrot.slane %v1526, 4
  %v1528 = vadd.f32 %v1526, %v1527
  %v1529 = vrot.slane %v1528, 2
  %v1530 = vadd.f32 %v1528, %v1529
  %v1531 = vrot.slane %v1530, 1
  %v1532 = vadd.f32 %v1530, %v1531
  %v1533 = vsel %vm100, %v1516, 0.0
  %v1534 = vrot.slane %v1533, 4
  %v1535 = vadd.f32 %v1533, %v1534
  %v1536 = vrot.slane %v1535, 2
  %v1537 = vadd.f32 %v1535, %v1536
  %v1538 = vrot.slane %v1537, 1
  %v1539 = vadd.f32 %v1537, %v1538
  %v1540 = vsel %vm100, %v1518, 0.0
  %v1541 = vrot.slane %v1540, 4
  %v1542 = vadd.f32 %v1540, %v1541
  %v1543 = vrot.slane %v1542, 2
  %v1544 = vadd.f32 %v1542, %v1543
  %v1545 = vrot.slane %v1544, 1
  %v1546 = vadd.f32 %v1544, %v1545
  %v1547 = vlog2.pop %v1525
  %v1548 = vmul.f32 %v1547, 0.6931472
  %v1549 = vlog2.pop %v1532
  %v1550 = vmul.f32 %v1549, 0.6931472
  %v1551 = vlog2.pop %v1539
  %v1552 = vmul.f32 %v1551, 0.6931472
  %v1553 = vlog2.pop %v1546
  %v1554 = vmul.f32 %v1553, 0.6931472
  %v1555 = vadd.f32 %v1548, %v1485
  %v1556 = vadd.f32 %v1550, %v1492
  %v1557 = vadd.f32 %v1552, %v1499
  %v1558 = vadd.f32 %v1554, %v1506
  %1560 = vset.pattern.permute.xlu0 0
  %1561 = vperm.xlu0 %1560, %v1446
  %v1562 = vpop.permute.xlu0 %1561
  %v1568 = vsel %vm190, %v1556, %v1555
  %v1569 = vsel %vm192, %v1557, %v1568
  %v1570 = vsel %vm194, %v1558, %v1569
  %v1572 = vmul.f32 %v1562, %v1570
  %v1573 = vsub.f32 1.0, %v1446
  %1575 = vset.pattern.permute.xlu0 0
  %1576 = vperm.xlu0 %1575, %v1573
  %v1577 = vpop.permute.xlu0 %1576
  %v1579 = vmul.f32 %v1577, %v1308
  %v1580 = vadd.f32 %v1572, %v1579
  %v1581 = vlaneseq
  %v1582 = vshrl.u32 %v1581, 7
  %v1583 = vsub.s32 0, %v1582
  %v1584 = vrot.slane %v1437, %v1583
  %1586 = vbcast.lane.b32.xlu0 %v1584, 256
  %v1587 = vpop.permute.xlu0 %1586
  %v1588 = vlaneseq
  %v1589 = vshrl.u32 %v1588, 7
  %v1590 = vsub.s32 1, %v1589
  %v1591 = vrot.slane %v1437, %v1590
  %1593 = vbcast.lane.b32.xlu0 %v1591, 256
  %v1594 = vpop.permute.xlu0 %1593
  %v1595 = vlaneseq
  %v1596 = vshrl.u32 %v1595, 7
  %v1597 = vsub.s32 2, %v1596
  %v1598 = vrot.slane %v1437, %v1597
  %1600 = vbcast.lane.b32.xlu0 %v1598, 256
  %v1601 = vpop.permute.xlu0 %1600
  %v1602 = vlaneseq
  %v1603 = vshrl.u32 %v1602, 7
  %v1604 = vsub.s32 3, %v1603
  %v1605 = vrot.slane %v1437, %v1604
  %1607 = vbcast.lane.b32.xlu0 %v1605, 256
  %v1608 = vpop.permute.xlu0 %1607
  %v1609 = vmul.f32 %v1587, %v1439
  %v1610 = vmul.f32 %v1594, %v1440
  %v1611 = vmul.f32 %v1601, %v1441
  %v1612 = vmul.f32 %v1608, %v1442
  %v1615 = vunpack.c.l.s4 1966171168
  %v1616 = vunpack.c.0.s8 %v1615
  %v1617 = vlaneseq
  %v1618 = vshrl.u32 %v1617, 7
  %v1619 = vsub.s32 %v1616, %v1618
  %v1620 = vrot.slane %v1444, %v1619
  %v1621 = vcombine.high %v1620, %v1620
  %v1623 = vunpack.c.l.s4 1966171168
  %v1624 = vunpack.c.0.s8 %v1623
  %v1625 = vlaneseq
  %v1626 = vshrl.u32 %v1625, 7
  %v1627 = vsub.s32 %v1624, %v1626
  %v1628 = vrot.slane %v1620, %v1627
  %v1630 = vunpack.c.l.s4 1966171168
  %v1631 = vunpack.c.0.s8 %v1630
  %v1632 = vlaneseq
  %v1633 = vshrl.u32 %v1632, 7
  %v1634 = vsub.s32 %v1631, %v1633
  %v1635 = vrot.slane %v1621, %v1634
  %v1636 = vcombine.high %v1628, %v1628
  %v1637 = vcombine.high %v1635, %v1635
  %v1638 = vlaneseq
  %v1639 = vshrl.u32 %v1638, 7
  %v1640 = vsub.s32 0, %v1639
  %v1641 = vrot.slane %v1628, %v1640
  %v1642 = vlaneseq
  %v1643 = vshrl.u32 %v1642, 7
  %v1644 = vsub.s32 0, %v1643
  %v1645 = vrot.slane %v1635, %v1644
  %v1646 = vlaneseq
  %v1647 = vshrl.u32 %v1646, 7
  %v1648 = vsub.s32 0, %v1647
  %v1649 = vrot.slane %v1636, %v1648
  %v1650 = vlaneseq
  %v1651 = vshrl.u32 %v1650, 7
  %v1652 = vsub.s32 0, %v1651
  %v1653 = vrot.slane %v1637, %v1652
  %v1658 = vmul.f32 %v1609, %v1641
  %v1659 = vmul.f32 %v1610, %v1645
  %v1660 = vmul.f32 %v1611, %v1649
  %v1661 = vmul.f32 %v1612, %v1653
  %v1662 = vsel %vm100, %v1658, 0.0
  %1663 = vadd.xlane.f32.xlu0 %v1662
  %v1664 = vpop.xlane.xlu0 %1663
  %v1665 = vsel %vm100, %v1659, 0.0
  %1666 = vadd.xlane.f32.xlu0 %v1665
  %v1667 = vpop.xlane.xlu0 %1666
  %v1668 = vsel %vm100, %v1660, 0.0
  %1669 = vadd.xlane.f32.xlu0 %v1668
  %v1670 = vpop.xlane.xlu0 %1669
  %v1671 = vsel %vm100, %v1661, 0.0
  %1672 = vadd.xlane.f32.xlu0 %v1671
  %v1673 = vpop.xlane.xlu0 %1672
  %v1678 = vlaneseq
  %v1679 = vshrl.u32 %v1678, 7
  %v1680 = vsub.s32 %v316, %v1679
  %v1681 = vrot.slane %v1664, %v1680
  %v1682 = vlaneseq
  %v1683 = vshrl.u32 %v1682, 7
  %v1684 = vsub.s32 %v316, %v1683
  %v1685 = vrot.slane %v1667, %v1684
  %v1686 = vlaneseq
  %v1687 = vshrl.u32 %v1686, 7
  %v1688 = vsub.s32 %v316, %v1687
  %v1689 = vrot.slane %v1670, %v1688
  %v1690 = vlaneseq
  %v1691 = vshrl.u32 %v1690, 7
  %v1692 = vsub.s32 %v316, %v1691
  %v1693 = vrot.slane %v1673, %v1692
  %v1694 = vsel %vm190, %v1685, %v1681
  %v1695 = vsel %vm192, %v1689, %v1694
  %v1696 = vsel %vm194, %v1693, %v1695
  %v1698 = vsel %vm337, %v1696, 0.0
  %1699 = vadd.xlane.f32.xlu0 %v1698
  %v1700 = vpop.xlane.xlu0 %1699
  %v1701 = vmul.f32 %v1446, %v1700
  %v1703 = vrot.slane %v1701, 3
  %v1705 = vadd.f32 %v1433, %v1703
  %v1706 = vadd.f32 %v1434, %v1703
  %v1707 = vmul.f32 %v1562, %v1444
  %v1708 = vmul.f32 %v1577, %v1437
  %v1709 = vadd.f32 %v1707, %v1708
  %s1710 = scalar_lea.vmem %s0, 224
  %v1711 = vld [vmem:[%s1710] sm:$0x3f]
  %v1712 = vld [vmem:[%s1710 + $0x8] sm:$0x3f]
  %v1713 = vld [vmem:[%s1710 + $0x10] sm:$0x3f]
  %v1714 = vld [vmem:[%s1710 + $0x18] sm:$0x3f]
  %s1715 = scalar_lea.vmem %s1, 28
  %v1716 = vld [vmem:[%s1715] sm:$0xf]
  %s1717 = scalar_lea.vmem %s2, 28
  %v1718 = vld [vmem:[%s1717] sm:$0xf]
  %v1719 = vlaneseq
  %v1720 = vshrl.u32 %v1719, 7
  %v1721 = vsub.s32 0, %v1720
  %v1722 = vrot.slane %v1580, %v1721
  %1724 = vbcast.lane.b32.xlu0 %v1722, 256
  %v1725 = vpop.permute.xlu0 %1724
  %v1726 = vlaneseq
  %v1727 = vshrl.u32 %v1726, 7
  %v1728 = vsub.s32 1, %v1727
  %v1729 = vrot.slane %v1580, %v1728
  %1731 = vbcast.lane.b32.xlu0 %v1729, 256
  %v1732 = vpop.permute.xlu0 %1731
  %v1733 = vlaneseq
  %v1734 = vshrl.u32 %v1733, 7
  %v1735 = vsub.s32 2, %v1734
  %v1736 = vrot.slane %v1580, %v1735
  %1738 = vbcast.lane.b32.xlu0 %v1736, 256
  %v1739 = vpop.permute.xlu0 %1738
  %v1740 = vlaneseq
  %v1741 = vshrl.u32 %v1740, 7
  %v1742 = vsub.s32 3, %v1741
  %v1743 = vrot.slane %v1580, %v1742
  %1745 = vbcast.lane.b32.xlu0 %v1743, 256
  %v1746 = vpop.permute.xlu0 %1745
  %v1747 = vadd.f32 %v1725, %v1711
  %v1748 = vadd.f32 %v1732, %v1712
  %v1749 = vadd.f32 %v1739, %v1713
  %v1750 = vadd.f32 %v1746, %v1714
  %v1751 = vsel %vm100, %v1747, -inf
  %v1752 = vrot.slane %v1751, 4
  %v1753 = vmax.f32 %v1751, %v1752
  %v1754 = vrot.slane %v1753, 2
  %v1755 = vmax.f32 %v1753, %v1754
  %v1756 = vrot.slane %v1755, 1
  %v1757 = vmax.f32 %v1755, %v1756
  %v1758 = vsel %vm100, %v1748, -inf
  %v1759 = vrot.slane %v1758, 4
  %v1760 = vmax.f32 %v1758, %v1759
  %v1761 = vrot.slane %v1760, 2
  %v1762 = vmax.f32 %v1760, %v1761
  %v1763 = vrot.slane %v1762, 1
  %v1764 = vmax.f32 %v1762, %v1763
  %v1765 = vsel %vm100, %v1749, -inf
  %v1766 = vrot.slane %v1765, 4
  %v1767 = vmax.f32 %v1765, %v1766
  %v1768 = vrot.slane %v1767, 2
  %v1769 = vmax.f32 %v1767, %v1768
  %v1770 = vrot.slane %v1769, 1
  %v1771 = vmax.f32 %v1769, %v1770
  %v1772 = vsel %vm100, %v1750, -inf
  %v1773 = vrot.slane %v1772, 4
  %v1774 = vmax.f32 %v1772, %v1773
  %v1775 = vrot.slane %v1774, 2
  %v1776 = vmax.f32 %v1774, %v1775
  %v1777 = vrot.slane %v1776, 1
  %v1778 = vmax.f32 %v1776, %v1777
  %v1779 = vsub.f32 %v1747, %v1757
  %v1780 = vsub.f32 %v1748, %v1764
  %v1781 = vsub.f32 %v1749, %v1771
  %v1782 = vsub.f32 %v1750, %v1778
  %v1783 = vmul.f32 %v1779, 1.442695
  %v1784 = vpow.pop %v1783
  %v1785 = vmul.f32 %v1780, 1.442695
  %v1786 = vpow.pop %v1785
  %v1787 = vmul.f32 %v1781, 1.442695
  %v1788 = vpow.pop %v1787
  %v1789 = vmul.f32 %v1782, 1.442695
  %v1790 = vpow.pop %v1789
  %v1791 = vsel %vm100, %v1784, 0.0
  %v1792 = vrot.slane %v1791, 4
  %v1793 = vadd.f32 %v1791, %v1792
  %v1794 = vrot.slane %v1793, 2
  %v1795 = vadd.f32 %v1793, %v1794
  %v1796 = vrot.slane %v1795, 1
  %v1797 = vadd.f32 %v1795, %v1796
  %v1798 = vsel %vm100, %v1786, 0.0
  %v1799 = vrot.slane %v1798, 4
  %v1800 = vadd.f32 %v1798, %v1799
  %v1801 = vrot.slane %v1800, 2
  %v1802 = vadd.f32 %v1800, %v1801
  %v1803 = vrot.slane %v1802, 1
  %v1804 = vadd.f32 %v1802, %v1803
  %v1805 = vsel %vm100, %v1788, 0.0
  %v1806 = vrot.slane %v1805, 4
  %v1807 = vadd.f32 %v1805, %v1806
  %v1808 = vrot.slane %v1807, 2
  %v1809 = vadd.f32 %v1807, %v1808
  %v1810 = vrot.slane %v1809, 1
  %v1811 = vadd.f32 %v1809, %v1810
  %v1812 = vsel %vm100, %v1790, 0.0
  %v1813 = vrot.slane %v1812, 4
  %v1814 = vadd.f32 %v1812, %v1813
  %v1815 = vrot.slane %v1814, 2
  %v1816 = vadd.f32 %v1814, %v1815
  %v1817 = vrot.slane %v1816, 1
  %v1818 = vadd.f32 %v1816, %v1817
  %v1819 = vlog2.pop %v1797
  %v1820 = vmul.f32 %v1819, 0.6931472
  %v1821 = vlog2.pop %v1804
  %v1822 = vmul.f32 %v1821, 0.6931472
  %v1823 = vlog2.pop %v1811
  %v1824 = vmul.f32 %v1823, 0.6931472
  %v1825 = vlog2.pop %v1818
  %v1826 = vmul.f32 %v1825, 0.6931472
  %v1827 = vadd.f32 %v1820, %v1757
  %v1828 = vadd.f32 %v1822, %v1764
  %v1829 = vadd.f32 %v1824, %v1771
  %v1830 = vadd.f32 %v1826, %v1778
  %1832 = vset.pattern.permute.xlu0 0
  %1833 = vperm.xlu0 %1832, %v1718
  %v1834 = vpop.permute.xlu0 %1833
  %v1840 = vsel %vm190, %v1828, %v1827
  %v1841 = vsel %vm192, %v1829, %v1840
  %v1842 = vsel %vm194, %v1830, %v1841
  %v1844 = vmul.f32 %v1834, %v1842
  %v1845 = vsub.f32 1.0, %v1718
  %1847 = vset.pattern.permute.xlu0 0
  %1848 = vperm.xlu0 %1847, %v1845
  %v1849 = vpop.permute.xlu0 %1848
  %v1851 = vmul.f32 %v1849, %v1580
  %v1852 = vadd.f32 %v1844, %v1851
  %v1853 = vlaneseq
  %v1854 = vshrl.u32 %v1853, 7
  %v1855 = vsub.s32 0, %v1854
  %v1856 = vrot.slane %v1709, %v1855
  %1858 = vbcast.lane.b32.xlu0 %v1856, 256
  %v1859 = vpop.permute.xlu0 %1858
  %v1860 = vlaneseq
  %v1861 = vshrl.u32 %v1860, 7
  %v1862 = vsub.s32 1, %v1861
  %v1863 = vrot.slane %v1709, %v1862
  %1865 = vbcast.lane.b32.xlu0 %v1863, 256
  %v1866 = vpop.permute.xlu0 %1865
  %v1867 = vlaneseq
  %v1868 = vshrl.u32 %v1867, 7
  %v1869 = vsub.s32 2, %v1868
  %v1870 = vrot.slane %v1709, %v1869
  %1872 = vbcast.lane.b32.xlu0 %v1870, 256
  %v1873 = vpop.permute.xlu0 %1872
  %v1874 = vlaneseq
  %v1875 = vshrl.u32 %v1874, 7
  %v1876 = vsub.s32 3, %v1875
  %v1877 = vrot.slane %v1709, %v1876
  %1879 = vbcast.lane.b32.xlu0 %v1877, 256
  %v1880 = vpop.permute.xlu0 %1879
  %v1881 = vmul.f32 %v1859, %v1711
  %v1882 = vmul.f32 %v1866, %v1712
  %v1883 = vmul.f32 %v1873, %v1713
  %v1884 = vmul.f32 %v1880, %v1714
  %v1887 = vunpack.c.l.s4 1966171168
  %v1888 = vunpack.c.0.s8 %v1887
  %v1889 = vlaneseq
  %v1890 = vshrl.u32 %v1889, 7
  %v1891 = vsub.s32 %v1888, %v1890
  %v1892 = vrot.slane %v1716, %v1891
  %v1893 = vcombine.high %v1892, %v1892
  %v1895 = vunpack.c.l.s4 1966171168
  %v1896 = vunpack.c.0.s8 %v1895
  %v1897 = vlaneseq
  %v1898 = vshrl.u32 %v1897, 7
  %v1899 = vsub.s32 %v1896, %v1898
  %v1900 = vrot.slane %v1892, %v1899
  %v1902 = vunpack.c.l.s4 1966171168
  %v1903 = vunpack.c.0.s8 %v1902
  %v1904 = vlaneseq
  %v1905 = vshrl.u32 %v1904, 7
  %v1906 = vsub.s32 %v1903, %v1905
  %v1907 = vrot.slane %v1893, %v1906
  %v1908 = vcombine.high %v1900, %v1900
  %v1909 = vcombine.high %v1907, %v1907
  %v1910 = vlaneseq
  %v1911 = vshrl.u32 %v1910, 7
  %v1912 = vsub.s32 0, %v1911
  %v1913 = vrot.slane %v1900, %v1912
  %v1914 = vlaneseq
  %v1915 = vshrl.u32 %v1914, 7
  %v1916 = vsub.s32 0, %v1915
  %v1917 = vrot.slane %v1907, %v1916
  %v1918 = vlaneseq
  %v1919 = vshrl.u32 %v1918, 7
  %v1920 = vsub.s32 0, %v1919
  %v1921 = vrot.slane %v1908, %v1920
  %v1922 = vlaneseq
  %v1923 = vshrl.u32 %v1922, 7
  %v1924 = vsub.s32 0, %v1923
  %v1925 = vrot.slane %v1909, %v1924
  %v1930 = vmul.f32 %v1881, %v1913
  %v1931 = vmul.f32 %v1882, %v1917
  %v1932 = vmul.f32 %v1883, %v1921
  %v1933 = vmul.f32 %v1884, %v1925
  %v1934 = vsel %vm100, %v1930, 0.0
  %1935 = vadd.xlane.f32.xlu0 %v1934
  %v1936 = vpop.xlane.xlu0 %1935
  %v1937 = vsel %vm100, %v1931, 0.0
  %1938 = vadd.xlane.f32.xlu0 %v1937
  %v1939 = vpop.xlane.xlu0 %1938
  %v1940 = vsel %vm100, %v1932, 0.0
  %1941 = vadd.xlane.f32.xlu0 %v1940
  %v1942 = vpop.xlane.xlu0 %1941
  %v1943 = vsel %vm100, %v1933, 0.0
  %1944 = vadd.xlane.f32.xlu0 %v1943
  %v1945 = vpop.xlane.xlu0 %1944
  %v1950 = vlaneseq
  %v1951 = vshrl.u32 %v1950, 7
  %v1952 = vsub.s32 %v316, %v1951
  %v1953 = vrot.slane %v1936, %v1952
  %v1954 = vlaneseq
  %v1955 = vshrl.u32 %v1954, 7
  %v1956 = vsub.s32 %v316, %v1955
  %v1957 = vrot.slane %v1939, %v1956
  %v1958 = vlaneseq
  %v1959 = vshrl.u32 %v1958, 7
  %v1960 = vsub.s32 %v316, %v1959
  %v1961 = vrot.slane %v1942, %v1960
  %v1962 = vlaneseq
  %v1963 = vshrl.u32 %v1962, 7
  %v1964 = vsub.s32 %v316, %v1963
  %v1965 = vrot.slane %v1945, %v1964
  %v1966 = vsel %vm190, %v1957, %v1953
  %v1967 = vsel %vm192, %v1961, %v1966
  %v1968 = vsel %vm194, %v1965, %v1967
  %v1970 = vsel %vm337, %v1968, 0.0
  %1971 = vadd.xlane.f32.xlu0 %v1970
  %v1972 = vpop.xlane.xlu0 %1971
  %v1973 = vmul.f32 %v1718, %v1972
  %v1975 = vrot.slane %v1973, 3
  %v1977 = vadd.f32 %v1705, %v1975
  %v1978 = vadd.f32 %v1706, %v1975
  %v1979 = vsel %vm337, %v1852, -inf
  %1980 = vmax.xlane.f32.xlu0 %v1979
  %v1981 = vpop.xlane.xlu0 %1980
  %v1982 = vsub.f32 %v1852, %v1981
  %v1983 = vmul.f32 %v1982, 1.442695
  %v1984 = vpow.pop %v1983
  %v1985 = vsel %vm337, %v1984, 0.0
  %1986 = vadd.xlane.f32.xlu0 %v1985
  %v1987 = vpop.xlane.xlu0 %1986
  %v1988 = vlog2.pop %v1987
  %v1989 = vmul.f32 %v1988, 0.6931472
  %v1990 = vadd.f32 %v1989, %v1981
  %vm1993 = vcmask 1042432
  %v1994 = vrot.slane %v1977, 5
  %v1995 = vrot.slane %v1978, 5
  %v1996 = vsel %vm1993, %v1994, %v1995
  %v1998 = vsub.f32 %v1990, %v1996
  %vm1999 = vcmask 3072
  %2000 = vst.msk [vmem:[%s3] sm:$0xf] %vm1999, %v1998
  // Predicated region
  $region14: #{forward_core.13} parent=0 // pred_check
    _
  $region15: #{forward_core.13} parent=0 // pred_check_branch
    %2002 = sbr.rel (0) target = $region17
  $region16: #{forward_core.13} parent=0 // pred_region
    _
  $region17: #{forward_core.13} parent=0 // pred_fallthru
    _
  // Predicated region
  $region18: #{forward_core.13} parent=0 // pred_check
    _
  $region19: #{forward_core.13} parent=0 // pred_check_branch
    %2004 = sbr.rel (0) target = $region21
  $region20: #{forward_core.13} parent=0 // pred_region
    _
  $region21: #{forward_core.13} parent=0 // pred_fallthru
    _

</llo_original>
